<compile_context>
chip_gen: v7x
topology: tpu7x:2x2x1
jax: 0.10.0
libtpu: 0.0.40
codegen_flags: <defaults>
</compile_context>

<pallas_src>
import math

import jax
import jax.numpy as jnp
from jax.experimental import pallas as pl
from jax.experimental.pallas import tpu as pltpu


def _round_up(x, n):
    return ((x + n - 1) // n) * n


def _make_fine_matching_kernel(W, WW, C, temperature, scale0, scale1):
    inv_temp = 1.0 / temperature
    inv_sqrt_c = 1.0 / math.sqrt(C)
    rs0 = float(W // 2) * scale0
    rs1 = float(W // 2) * scale1

    def kernel(score_ref, f0_ref, f1_ref, grid_ref, aux_ref, out_ref):
        # heatmap0 = softmax(score_map0 / temperature, dim=-1)
        s0 = score_ref[...].astype(jnp.float32) * inv_temp            # [TM, WW]
        s0 = s0 - jnp.max(s0, axis=-1, keepdims=True)
        e0 = jnp.exp(s0)
        h0 = e0 / jnp.sum(e0, axis=-1, keepdims=True)                 # [TM, WW] f32

        # dsnt.spatial_expectation2d: normalized (x, y) expectation = h @ grid
        grid = grid_ref[...]                                          # [WW, 2]
        coords0 = jnp.dot(h0, grid, preferred_element_type=jnp.float32)   # [TM, 2]

        # feat_f0_picked = (feat_f0 * heatmap0[..., None]).sum(1)  ==  h0 @ feat_f0 (batched, MXU)
        h0b = h0[:, None, :].astype(f0_ref.dtype)                     # [TM, 1, WW]
        f0p = jnp.einsum('mqr,mrc->mqc', h0b, f0_ref[...],
                         preferred_element_type=jnp.float32)          # [TM, 1, C] f32 acc

        # sim_matrix = einsum('mc,mrc->mr', feat_f0_picked, feat_f1) / sqrt(C)  (batched, MXU)
        sim3 = jnp.einsum('mqc,mrc->mqr', f0p.astype(f1_ref.dtype), f1_ref[...],
                          preferred_element_type=jnp.float32)         # [TM, 1, WW]
        sim = sim3[:, 0, :] * inv_sqrt_c                              # [TM, WW]

        # heatmap1 = softmax(sim, dim=-1); mconf = max(heatmap1, dim=-1)
        sim = sim - jnp.max(sim, axis=-1, keepdims=True)
        e1 = jnp.exp(sim)
        denom = jnp.sum(e1, axis=-1, keepdims=True)
        h1 = e1 / denom                                               # [TM, WW]
        mconf = jnp.max(h1, axis=-1, keepdims=True)                   # [TM, 1]
        coords1 = jnp.dot(h1, grid, preferred_element_type=jnp.float32)   # [TM, 2]

        # aux packing: [mk0c_x, mk0c_y, mk1c_x, mk1c_y, coarse_mconf, 0, 0, 0]
        aux = aux_ref[...]                                            # [TM, 8]
        out_ref[:, 0:2] = aux[:, 0:2] + coords0 * rs0                 # all_mkpts0_f
        out_ref[:, 2:4] = aux[:, 2:4] + coords1 * rs1                 # all_mkpts1_f
        out_ref[:, 4:5] = aux[:, 4:5] * mconf                         # fine mconf * coarse mconf
        out_ref[:, 5:8] = jnp.zeros_like(aux[:, 5:8])                 # lane padding

    return kernel


def dynamic_fine_matching(feat_f0, feat_f1, data, *, block_m=256):
    """JAX/Pallas equivalent of DynamicFineMatching.forward (inference path)."""
    M, WW, C = feat_f0.shape
    W = int(math.sqrt(WW))
    assert W * W == WW

    if M == 0:
        out = {'f_b_ids': data['b_ids'],
               'all_mkpts0_f': data['all_mkpts0_c'], 'all_mkpts1_f': data['all_mkpts1_c'],
               'mkpts0_f': data['mkpts0_c'], 'mkpts1_f': data['mkpts1_c']}
        data.update(out)
        return out

    scale = float(data['hw0_i'][0]) / float(data['hw0_f'][0])
    # TODO(synk): per-batch 'scale0'/'scale1' tensors (indexed by b_ids) not folded into the
    # kernel; the scalar-scale else-branch of the PyTorch module is implemented here.
    scale0 = scale
    scale1 = scale
    temperature = 0.1  # inference

    # kornia create_meshgrid(W, W, normalized=True) flattened: x over columns, y over rows, [-1,1].
    xs = jnp.linspace(-1.0, 1.0, W, dtype=jnp.float32)
    grid_xy = jnp.stack([jnp.tile(xs, W), jnp.repeat(xs, W)], axis=-1)     # [WW, 2]

    score = data['score_map0'].astype(jnp.float32)                         # [M, WW]
    aux = jnp.concatenate([
        data['all_mkpts0_c'].astype(jnp.float32),
        data['all_mkpts1_c'].astype(jnp.float32),
        data['mconf'].astype(jnp.float32).reshape(M, 1),
        jnp.zeros((M, 3), jnp.float32),
    ], axis=-1)                                                            # [M, 8]

    # M tiling: TM multiple of 8, shrunk until both double-buffered feat tiles fit comfortably
    # in scoped VMEM on every TPU generation (v7x has only 64 MiB physical / 32 MiB default).
    feat_itemsize = feat_f0.dtype.itemsize
    TM = _round_up(min(block_m, _round_up(M, 8)), 8)
    while TM > 8 and 4 * TM * WW * C * feat_itemsize > 24 * 1024 * 1024:
        TM = _round_up(TM // 2, 8)
    M_pad = _round_up(M, TM)
    if M_pad != M:
        pad = M_pad - M
        score = jnp.pad(score, ((0, pad), (0, 0)))
        feat_f0 = jnp.pad(feat_f0, ((0, pad), (0, 0), (0, 0)))
        feat_f1 = jnp.pad(feat_f1, ((0, pad), (0, 0), (0, 0)))
        aux = jnp.pad(aux, ((0, pad), (0, 0)))

    kernel = _make_fine_matching_kernel(W, WW, C, temperature, scale0, scale1)

    out8 = pl.pallas_call(
        kernel,
        out_shape=jax.ShapeDtypeStruct((M_pad, 8), jnp.float32),
        grid_spec=pltpu.PrefetchScalarGridSpec(
            num_scalar_prefetch=0,
            grid=(M_pad // TM,),
            in_specs=[
                pl.BlockSpec((TM, WW), lambda i: (i, 0)),        # score_map0
                pl.BlockSpec((TM, WW, C), lambda i: (i, 0, 0)),  # feat_f0 (native dtype)
                pl.BlockSpec((TM, WW, C), lambda i: (i, 0, 0)),  # feat_f1 (native dtype)
                pl.BlockSpec((WW, 2), lambda i: (0, 0)),         # dsnt grid (x, y)
                pl.BlockSpec((TM, 8), lambda i: (i, 0)),         # packed mk0c|mk1c|mconf_c
            ],
            out_specs=pl.BlockSpec((TM, 8), lambda i: (i, 0)),   # packed mk0f|mk1f|mconf
        ),
        compiler_params=pltpu.CompilerParams(
            dimension_semantics=("parallel",),
            vmem_limit_bytes=48 * 1024 * 1024,
        ),
    )(score, feat_f0, feat_f1, grid_xy, aux)

    mk0f = out8[:M, 0:2]
    mk1f = out8[:M, 2:4]
    mconf = out8[:M, 4]

    # TODO(synk): boolean gather below has a data-dependent output shape; done eagerly in JAX
    # glue (no static-shape Pallas equivalent). mconf is pre-multiplied by the coarse confidence
    # inside the kernel, which matches the PyTorch `out['mconf'] *= data['mconf']` whenever the
    # shapes are consistent (e.g. gt_mask all False).
    true_matches = jnp.logical_not(data['gt_mask'])
    out = {
        'f_b_ids': data['b_ids'],
        'm_bids': data['b_ids'][true_matches],
        'mconf': mconf[true_matches],
        'all_mkpts0_f': mk0f,
        'all_mkpts1_f': mk1f,
        'mkpts0_f': mk0f[true_matches],
        'mkpts1_f': mk1f[true_matches],
    }
    data.update(out)
    return out


def _reference(feat_f0, feat_f1, data):
    """Pure-JAX literal translation of the same math (for correctness check)."""
    M, WW, C = feat_f0.shape
    W = int(math.sqrt(WW))
    scale = float(data['hw0_i'][0]) / float(data['hw0_f'][0])
    xs = jnp.linspace(-1.0, 1.0, W, dtype=jnp.float32)
    grid_xy = jnp.stack([jnp.tile(xs, W), jnp.repeat(xs, W)], axis=-1)

    h0 = jax.nn.softmax(data['score_map0'].astype(jnp.float32) / 0.1, axis=-1)
    f0p = (feat_f0.astype(jnp.float32) * h0[..., None]).sum(axis=1)
    coords0 = h0 @ grid_xy
    sim = jnp.einsum('mc,mrc->mr', f0p, feat_f1.astype(jnp.float32)) / math.sqrt(C)
    h1 = jax.nn.softmax(sim, axis=1)
    mconf = h1.max(axis=1) * data['mconf'].astype(jnp.float32)
    coords1 = h1 @ grid_xy
    mk0f = data['all_mkpts0_c'] + coords0 * (W // 2) * scale
    mk1f = data['all_mkpts1_c'] + coords1 * (W // 2) * scale
    return mk0f, mk1f, mconf


if __name__ == "__main__":
    jax.config.update("jax_default_matmul_precision", "highest")

    key = jax.random.PRNGKey(0)
    M, W, C = 8, 8, 32
    WW = W * W

    k = jax.random.split(key, 6)
    feat_f0 = jax.random.normal(k[0], (M, WW, C), dtype=jnp.float32)
    feat_f1 = jax.random.normal(k[1], (M, WW, C), dtype=jnp.float32)

    data = {
        'hw0_i': (512, 512),
        'hw0_f': (128, 128),
        'b_ids': jnp.concatenate([jnp.zeros(M // 2, jnp.int32), jnp.ones(M - M // 2, jnp.int32)]),
        'score_map0': jax.random.normal(k[2], (M, WW), dtype=jnp.float32),
        'mconf': jax.random.uniform(k[3], (M,), dtype=jnp.float32),
        'all_mkpts0_c': jax.random.uniform(k[4], (M, 2), dtype=jnp.float32) * 128.0,
        'all_mkpts1_c': jax.random.uniform(k[5], (M, 2), dtype=jnp.float32) * 128.0,
        'gt_mask': jnp.zeros((M,), dtype=bool),  # all predicted matches are "true" matches
    }

    # Reference MUST be computed before the call: the module mutates data via data.update(out),
    # which overwrites data['mconf'] (this ordering bug caused the previous assertion failure).
    mk0f_r, mk1f_r, mconf_r = _reference(feat_f0, feat_f1, data)

    out = dynamic_fine_matching(feat_f0, feat_f1, data)
    jax.block_until_ready(out['all_mkpts0_f'])
    jax.block_until_ready(out['all_mkpts1_f'])
    jax.block_until_ready(out['mconf'])

    assert jnp.allclose(out['all_mkpts0_f'], mk0f_r, rtol=1e-3, atol=1e-3), "all_mkpts0_f mismatch"
    assert jnp.allclose(out['all_mkpts1_f'], mk1f_r, rtol=1e-3, atol=1e-3), "all_mkpts1_f mismatch"
    assert jnp.allclose(out['mconf'], mconf_r, rtol=1e-3, atol=1e-3), "mconf mismatch"

    print("KERNEL_OK")
</pallas_src>

<mosaic_0001>
module attributes {stable_mosaic.version = 11 : i64} {
  func.func @kernel(%arg0: i32, %arg1: memref<8x64xf32, #tpu.memory_space<vmem>>, %arg2: memref<8x64x32xf32, #tpu.memory_space<vmem>>, %arg3: memref<8x64x32xf32, #tpu.memory_space<vmem>>, %arg4: memref<64x2xf32, #tpu.memory_space<vmem>>, %arg5: memref<8x8xf32, #tpu.memory_space<vmem>>, %arg6: memref<8x8xf32, #tpu.memory_space<vmem>>) attributes {dimension_semantics = [#tpu.dimension_semantics<parallel>], iteration_bounds = array<i64: 1>, scalar_prefetch = 0 : i64, scratch_operands = 0 : i64, tpu.core_type = #tpu.core_type<tc>, window_params = [{transform_indices = @transform_0, window_bounds = array<i64: 8, 64>}, {transform_indices = @transform_1, window_bounds = array<i64: 8, 64, 32>}, {transform_indices = @transform_2, window_bounds = array<i64: 8, 64, 32>}, {pipeline_mode = #tpu.pipeline_mode<synchronous>, transform_indices = @transform_3, window_bounds = array<i64: 64, 2>}, {transform_indices = @transform_4, window_bounds = array<i64: 8, 8>}, {transform_indices = @transform_5, window_bounds = array<i64: 8, 8>}]} {
    %c0 = arith.constant 0 : index
    %c0_0 = arith.constant 0 : index
    %0 = vector.load %arg1[%c0, %c0_0] : memref<8x64xf32, #tpu.memory_space<vmem>>, vector<8x64xf32>
    %cst = arith.constant 1.000000e+01 : f32
    %1 = vector.broadcast %cst : f32 to vector<8x64xf32>
    %2 = arith.mulf %0, %1 : vector<8x64xf32>
    %cst_1 = arith.constant dense<0xFF800000> : vector<8xf32>
    %3 = vector.multi_reduction <maximumf>, %2, %cst_1 [1] : vector<8x64xf32> to vector<8xf32>
    %4 = vector.shape_cast %3 : vector<8xf32> to vector<8x1xf32>
    %5 = vector.broadcast %4 : vector<8x1xf32> to vector<8x64xf32>
    %6 = arith.subf %2, %5 : vector<8x64xf32>
    %7 = math.exp %6 : vector<8x64xf32>
    %cst_2 = arith.constant dense<0.000000e+00> : vector<8xf32>
    %8 = vector.multi_reduction <add>, %7, %cst_2 [1] : vector<8x64xf32> to vector<8xf32>
    %9 = vector.shape_cast %8 : vector<8xf32> to vector<8x1xf32>
    %10 = vector.broadcast %9 : vector<8x1xf32> to vector<8x64xf32>
    %11 = arith.divf %7, %10 : vector<8x64xf32>
    %c0_3 = arith.constant 0 : index
    %c0_4 = arith.constant 0 : index
    %12 = vector.load %arg4[%c0_3, %c0_4] : memref<64x2xf32, #tpu.memory_space<vmem>>, vector<64x2xf32>
    %cst_5 = arith.constant dense<0.000000e+00> : vector<8x2xf32>
    %13 = tpu.matmul %11, %12, %cst_5 {dimension_numbers = #tpu.dot_dimension_numbers<[1], [0], [0], [1], [0, 0, 1, 1], [], []>, precision = #tpu.contract_precision<fp32>} : vector<8x64xf32>, vector<64x2xf32>, vector<8x2xf32> -> vector<8x2xf32>
    %14 = vector.shape_cast %11 : vector<8x64xf32> to vector<8x1x64xf32>
    %c0_6 = arith.constant 0 : index
    %c0_7 = arith.constant 0 : index
    %c0_8 = arith.constant 0 : index
    %15 = vector.load %arg2[%c0_6, %c0_7, %c0_8] : memref<8x64x32xf32, #tpu.memory_space<vmem>>, vector<8x64x32xf32>
    "tpu.trace_start"() <{level = 10 : i32, message = "mqr,mrc->mqc"}> : () -> ()
    %cst_9 = arith.constant dense<0.000000e+00> : vector<8x1x32xf32>
    %16 = tpu.matmul %14, %15, %cst_9 {dimension_numbers = #tpu.dot_dimension_numbers<[2], [1], [1], [2], [0, 0, 0, 1, 1, 2], [0], [0]>, precision = #tpu.contract_precision<fp32>} : vector<8x1x64xf32>, vector<8x64x32xf32>, vector<8x1x32xf32> -> vector<8x1x32xf32>
    "tpu.trace_stop"() : () -> ()
    %c0_10 = arith.constant 0 : index
    %c0_11 = arith.constant 0 : index
    %c0_12 = arith.constant 0 : index
    %17 = vector.load %arg3[%c0_10, %c0_11, %c0_12] : memref<8x64x32xf32, #tpu.memory_space<vmem>>, vector<8x64x32xf32>
    "tpu.trace_start"() <{level = 10 : i32, message = "mqc,mrc->mqr"}> : () -> ()
    %cst_13 = arith.constant dense<0.000000e+00> : vector<8x1x64xf32>
    %18 = tpu.matmul %16, %17, %cst_13 {dimension_numbers = #tpu.dot_dimension_numbers<[2], [2], [1], [1], [0, 0, 0, 1, 1, 1], [0], [0]>, precision = #tpu.contract_precision<fp32>} : vector<8x1x32xf32>, vector<8x64x32xf32>, vector<8x1x64xf32> -> vector<8x1x64xf32>
    "tpu.trace_stop"() : () -> ()
    %19 = vector.shape_cast %18 : vector<8x1x64xf32> to vector<8x64xf32>
    %cst_14 = arith.constant 0.176776692 : f32
    %20 = vector.broadcast %cst_14 : f32 to vector<8x64xf32>
    %21 = arith.mulf %19, %20 : vector<8x64xf32>
    %cst_15 = arith.constant dense<0xFF800000> : vector<8xf32>
    %22 = vector.multi_reduction <maximumf>, %21, %cst_15 [1] : vector<8x64xf32> to vector<8xf32>
    %23 = vector.shape_cast %22 : vector<8xf32> to vector<8x1xf32>
    %24 = vector.broadcast %23 : vector<8x1xf32> to vector<8x64xf32>
    %25 = arith.subf %21, %24 : vector<8x64xf32>
    %26 = math.exp %25 : vector<8x64xf32>
    %cst_16 = arith.constant dense<0.000000e+00> : vector<8xf32>
    %27 = vector.multi_reduction <add>, %26, %cst_16 [1] : vector<8x64xf32> to vector<8xf32>
    %28 = vector.shape_cast %27 : vector<8xf32> to vector<8x1xf32>
    %29 = vector.broadcast %28 : vector<8x1xf32> to vector<8x64xf32>
    %30 = arith.divf %26, %29 : vector<8x64xf32>
    %cst_17 = arith.constant dense<0xFF800000> : vector<8xf32>
    %31 = vector.multi_reduction <maximumf>, %30, %cst_17 [1] : vector<8x64xf32> to vector<8xf32>
    %32 = vector.shape_cast %31 : vector<8xf32> to vector<8x1xf32>
    %cst_18 = arith.constant dense<0.000000e+00> : vector<8x2xf32>
    %33 = tpu.matmul %30, %12, %cst_18 {dimension_numbers = #tpu.dot_dimension_numbers<[1], [0], [0], [1], [0, 0, 1, 1], [], []>, precision = #tpu.contract_precision<fp32>} : vector<8x64xf32>, vector<64x2xf32>, vector<8x2xf32> -> vector<8x2xf32>
    %c0_19 = arith.constant 0 : index
    %c0_20 = arith.constant 0 : index
    %34 = vector.load %arg5[%c0_19, %c0_20] : memref<8x8xf32, #tpu.memory_space<vmem>>, vector<8x8xf32>
    %35 = vector.extract_strided_slice %34 {offsets = [0, 0], sizes = [8, 2], strides = [1, 1]} : vector<8x8xf32> to vector<8x2xf32>
    %cst_21 = arith.constant 1.600000e+01 : f32
    %36 = vector.broadcast %cst_21 : f32 to vector<8x2xf32>
    %37 = arith.mulf %13, %36 : vector<8x2xf32>
    %38 = arith.addf %35, %37 : vector<8x2xf32>
    %c0_22 = arith.constant 0 : index
    %c0_23 = arith.constant 0 : index
    %39 = vector.load %arg6[%c0_22, %c0_23] : memref<8x8xf32, #tpu.memory_space<vmem>>, vector<8x2xf32>
    tpu.vector_store %arg6[%c0_22, %c0_23], %38 {strides = array<i32>} : memref<8x8xf32, #tpu.memory_space<vmem>>, vector<8x2xf32>,
    %40 = vector.extract_strided_slice %34 {offsets = [0, 2], sizes = [8, 2], strides = [1, 1]} : vector<8x8xf32> to vector<8x2xf32>
    %cst_24 = arith.constant 1.600000e+01 : f32
    %41 = vector.broadcast %cst_24 : f32 to vector<8x2xf32>
    %42 = arith.mulf %33, %41 : vector<8x2xf32>
    %43 = arith.addf %40, %42 : vector<8x2xf32>
    %c0_25 = arith.constant 0 : index
    %c2 = arith.constant 2 : index
    %44 = vector.load %arg6[%c0_25, %c2] : memref<8x8xf32, #tpu.memory_space<vmem>>, vector<8x2xf32>
    tpu.vector_store %arg6[%c0_25, %c2], %43 {strides = array<i32>} : memref<8x8xf32, #tpu.memory_space<vmem>>, vector<8x2xf32>,
    %45 = vector.extract_strided_slice %34 {offsets = [0, 4], sizes = [8, 1], strides = [1, 1]} : vector<8x8xf32> to vector<8x1xf32>
    %46 = arith.mulf %45, %32 : vector<8x1xf32>
    %c0_26 = arith.constant 0 : index
    %c4 = arith.constant 4 : index
    %47 = vector.load %arg6[%c0_26, %c4] : memref<8x8xf32, #tpu.memory_space<vmem>>, vector<8x1xf32>
    tpu.vector_store %arg6[%c0_26, %c4], %46 {strides = array<i32>} : memref<8x8xf32, #tpu.memory_space<vmem>>, vector<8x1xf32>,
    %cst_27 = arith.constant 0.000000e+00 : f32
    %48 = vector.broadcast %cst_27 : f32 to vector<8x3xf32>
    %c0_28 = arith.constant 0 : index
    %c5 = arith.constant 5 : index
    %49 = vector.load %arg6[%c0_28, %c5] : memref<8x8xf32, #tpu.memory_space<vmem>>, vector<8x3xf32>
    tpu.vector_store %arg6[%c0_28, %c5], %48 {strides = array<i32>} : memref<8x8xf32, #tpu.memory_space<vmem>>, vector<8x3xf32>,
    return
  }
  func.func @transform_0(%arg0: i32) -> (i32, i32) {
    %c0_i32 = arith.constant 0 : i32
    %c0_i32_0 = arith.constant 0 : i32
    return %arg0, %c0_i32 : i32, i32
  }
  func.func @transform_1(%arg0: i32) -> (i32, i32, i32) {
    %c0_i32 = arith.constant 0 : i32
    %c0_i32_0 = arith.constant 0 : i32
    %c0_i32_1 = arith.constant 0 : i32
    return %arg0, %c0_i32, %c0_i32_0 : i32, i32, i32
  }
  func.func @transform_2(%arg0: i32) -> (i32, i32, i32) {
    %c0_i32 = arith.constant 0 : i32
    %c0_i32_0 = arith.constant 0 : i32
    %c0_i32_1 = arith.constant 0 : i32
    return %arg0, %c0_i32, %c0_i32_0 : i32, i32, i32
  }
  func.func @transform_3(%arg0: i32) -> (i32, i32) {
    %c0_i32 = arith.constant 0 : i32
    %c0_i32_0 = arith.constant 0 : i32
    %c0_i32_1 = arith.constant 0 : i32
    return %c0_i32, %c0_i32_0 : i32, i32
  }
  func.func @transform_4(%arg0: i32) -> (i32, i32) {
    %c0_i32 = arith.constant 0 : i32
    %c0_i32_0 = arith.constant 0 : i32
    return %arg0, %c0_i32 : i32, i32
  }
  func.func @transform_5(%arg0: i32) -> (i32, i32) {
    %c0_i32 = arith.constant 0 : i32
    %c0_i32_0 = arith.constant 0 : i32
    return %arg0, %c0_i32 : i32, i32
  }
}

</mosaic_0001>

<llo_original>
// kernel: tpu_custom_call.1
$region0: #{tpu_custom_call.1}
  #allocation0 [shape = 'u32[]', space=smem, size = 0x4, offset = 0x4, fixed_abs, tag = 'smem constant byte address 0x4 - core index']
  #allocation1 [shape = 'u32[144,128]{1,0:T(1,128)}', space=vmem, size = 0x12000, scoped, tag = 'internal scratch']
  %s0 = inlined_call_operand.vmem [shape: f32[8,64], index: 0, kind: input, shape index: {}]
  %s1 = inlined_call_operand.vmem [shape: f32[8,64,32], index: 1, kind: input, shape index: {}]
  %s2 = inlined_call_operand.vmem [shape: f32[8,64,32], index: 2, kind: input, shape index: {}]
  %s3 = inlined_call_operand.vmem [shape: f32[64,2], index: 3, kind: input, shape index: {}]
  %s4 = inlined_call_operand.vmem [shape: f32[8,8], index: 4, kind: input, shape index: {}]
  %s5 = inlined_call_operand.hbm [shape: f32[8,8], index: 5, kind: output, shape index: {}]
  %s6 = sld [smem:[#allocation0]]
  $region30: #{tpu_custom_call.1} parent=0
    _
  %s8 = ssub.s32 1, %s6
  %s9 = scalar_select 0, %s8, %s6
  $region1: #{tpu_custom_call.1} parent=0
    #allocation2 [shape = 'u8[4096]{0}', space=vmem, size = 0x1000, scoped, tag = 'output window, operand 0, single buffered']
    #allocation3 [shape = 's32[1]{0}', space=sflag, size = 0x4, scoped, tag = 'scoped memory for tpu_custom_call.1']
    %10 = vsyncpa [#allocation3], 0
    // Predicated region
    $region2: #{tpu_custom_call.1} parent=1 // pred_check
      _
    $region3: #{tpu_custom_call.1} parent=1 // pred_check_branch
      %12 = sbr.rel (0) target = $region5
    $region4: #{tpu_custom_call.1} parent=1 // pred_region
      _
    $region5: #{tpu_custom_call.1} parent=1 // pred_fallthru
      _
    // Predicated region
    $region6: #{tpu_custom_call.1} parent=1 // pred_check
      _
    $region7: #{tpu_custom_call.1} parent=1 // pred_check_branch
      %14 = sbr.rel (0) target = $region9
    $region8: #{tpu_custom_call.1} parent=1 // pred_region
      _
    $region9: #{tpu_custom_call.1} parent=1 // pred_fallthru
      _
    // Predicated region
    $region10: #{tpu_custom_call.1} parent=1 // pred_check
      _
    $region11: #{tpu_custom_call.1} parent=1 // pred_check_branch
      %16 = sbr.rel (0) target = $region13
    $region12: #{tpu_custom_call.1} parent=1 // pred_region
      _
    $region13: #{tpu_custom_call.1} parent=1 // pred_fallthru
      _
    // Predicated region
    $region14: #{tpu_custom_call.1} parent=1 // pred_check
      _
    $region15: #{tpu_custom_call.1} parent=1 // pred_check_branch
      %18 = sbr.rel (0) target = $region17
    $region16: #{tpu_custom_call.1} parent=1 // pred_region
      _
    $region17: #{tpu_custom_call.1} parent=1 // pred_fallthru
      _
    // Predicated region
    $region18: #{tpu_custom_call.1} parent=1 // pred_check
      _
    $region19: #{tpu_custom_call.1} parent=1 // pred_check_branch
      %20 = sbr.rel (0) target = $region21
    $region20: #{tpu_custom_call.1} parent=1 // pred_region
      _
    $region21: #{tpu_custom_call.1} parent=1 // pred_fallthru
      _
    %v21 = vld [vmem:[%s0] sm:$0xff]
    %v22 = vmul.f32 %v21, 10.0
    %vm23 = vcmask 523264
    %v24 = vsel %vm23, %v22, -inf
    %25 = vmax.xlane.f32.xlu0 %v24
    %v26 = vpop.xlane.xlu0 %25
    %v27 = vsub.f32 %v22, %v26
    %v28 = vmul.f32 %v27, 1.442695
    %v29 = vpow.pop %v28
    %v30 = vsel %vm23, %v29, 0.0
    %31 = vadd.xlane.f32.xlu0 %v30
    %v32 = vpop.xlane.xlu0 %31
    %v33 = vrcp.pop %v32
    %v34 = vmul.f32 %v29, %v33
    %v35 = vld [vmem:[%s3] sm:$0xff]
    %v36 = vld [vmem:[%s3 + $0x8] sm:$0xff]
    %v37 = vld [vmem:[%s3 + $0x10] sm:$0xff]
    %v38 = vld [vmem:[%s3 + $0x18] sm:$0xff]
    %v39 = vld [vmem:[%s3 + $0x20] sm:$0xff]
    %v40 = vld [vmem:[%s3 + $0x28] sm:$0xff]
    %v41 = vld [vmem:[%s3 + $0x30] sm:$0xff]
    %v42 = vld [vmem:[%s3 + $0x38] sm:$0xff]
    %v44 = vsel %vm23, %v34, 0
    %46 = vmatprep.subr.mxu0 0.0
    %v47 = vand.u32 %v35, 4294901760
    %48 = vmatpush1.msra.mxu0 %v47
    %49 = vmatprep.subr.mxu0 0.0
    %v50 = vand.u32 %v36, 4294901760
    %51 = vmatpush1.msra.mxu0 %v50
    %52 = vmatprep.subr.mxu0 0.0
    %v53 = vand.u32 %v37, 4294901760
    %54 = vmatpush1.msra.mxu0 %v53
    %55 = vmatprep.subr.mxu0 0.0
    %v56 = vand.u32 %v38, 4294901760
    %57 = vmatpush1.msra.mxu0 %v56
    %58 = vmatprep.subr.mxu0 0.0
    %v59 = vand.u32 %v39, 4294901760
    %60 = vmatpush1.msra.mxu0 %v59
    %61 = vmatprep.subr.mxu0 0.0
    %v62 = vand.u32 %v40, 4294901760
    %63 = vmatpush1.msra.mxu0 %v62
    %64 = vmatprep.subr.mxu0 0.0
    %v65 = vand.u32 %v41, 4294901760
    %66 = vmatpush1.msra.mxu0 %v65
    %67 = vmatprep.subr.mxu0 0.0
    %v68 = vand.u32 %v42, 4294901760
    %69 = vmatpush1.msra.mxu0 %v68
    %70 = vmatprep.subr.mxu0 0.0
    %71 = vmatpush1.msra.mxu0 0.0
    %72 = vmatprep.subr.mxu0 0.0
    %73 = vmatpush1.msra.mxu0 0.0
    %74 = vmatprep.subr.mxu0 0.0
    %75 = vmatpush1.msra.mxu0 0.0
    %76 = vmatprep.subr.mxu0 0.0
    %77 = vmatpush1.msra.mxu0 0.0
    %78 = vmatprep.subr.mxu0 0.0
    %79 = vmatpush1.msra.mxu0 0.0
    %80 = vmatprep.subr.mxu0 0.0
    %81 = vmatpush1.msra.mxu0 0.0
    %82 = vmatprep.subr.mxu0 0.0
    %83 = vmatpush1.msra.mxu0 0.0
    %84 = vmatprep.subr.mxu0 0.0
    %85 = vmatpush1.msra.mxu0 0.0
    %86 = vmatprep.subr.mxu0 0.0
    %87 = vmatpush1.msra.mxu0 0.0
    %88 = vmatprep.subr.mxu0 0.0
    %89 = vmatpush1.msra.mxu0 0.0
    %90 = vmatprep.subr.mxu0 0.0
    %91 = vmatpush1.msra.mxu0 0.0
    %92 = vmatprep.subr.mxu0 0.0
    %93 = vmatpush1.msra.mxu0 0.0
    %94 = vmatprep.subr.mxu0 0.0
    %95 = vmatpush1.msra.mxu0 0.0
    %96 = vmatprep.subr.mxu0 0.0
    %97 = vmatpush1.msra.mxu0 0.0
    %98 = vmatprep.subr.mxu0 0.0
    %99 = vmatpush1.msra.mxu0 0.0
    %100 = vmatprep.subr.mxu0 0.0
    %101 = vmatpush1.msra.mxu0 0.0
    %102 = vmatprep.subr.mxu0 0.0
    %103 = vmatpush1.msra.mxu0 0.0
    %104 = vmatprep.subr.mxu0 0.0
    %105 = vmatpush1.msra.mxu0 0.0
    %106 = vmatprep.subr.mxu0 0.0
    %107 = vmatpush1.msra.mxu0 0.0
    %108 = vmatprep.subr.mxu0 0.0
    %109 = vmatpush1.msra.mxu0 0.0
    %110 = vmatprep.subr.mxu0 0.0
    %111 = vmatpush1.msra.mxu0 0.0
    %112 = vmatprep.subr.mxu0 0.0
    %113 = vmatpush1.msra.mxu0 0.0
    %114 = vmatprep.subr.mxu0 0.0
    %115 = vmatpush1.msra.mxu0 0.0
    %116 = vmatprep.subr.mxu0 0.0
    %117 = vmatpush1.msra.mxu0 0.0
    %118 = vmatprep.mubr.f32.mxu0 0.0
    %v119 = vand.u32 %v44, 4294901760
    %v120 = vsub.f32 %v44, %v119
    %v121 = vand.u32 %v120, 4294901760
    %v122 = vsub.f32 %v120, %v121
    %v123 = vand.u32 %v122, 4294901760
    %124 = vmatmul.mubr.f32.gmra.mrb[0].mxu0 %v123
    %v125 = vpop.f32.mrb[0].mxu0
    %v126 = vadd.f32 0.0, %v125
    %v127 = vpop.f32.mrb[0].mxu0
    %128 = vdwg.mxu0
    %129 = vmatprep.subr.mxu0 0.0
    %v130 = vand.u32 %v35, 4294901760
    %v131 = vsub.f32 %v35, %v130
    %v132 = vand.u32 %v131, 4294901760
    %v133 = vsub.f32 %v131, %v132
    %v134 = vand.u32 %v133, 4294901760
    %135 = vmatpush1.msra.mxu0 %v134
    %136 = vmatprep.subr.mxu0 0.0
    %v137 = vand.u32 %v36, 4294901760
    %v138 = vsub.f32 %v36, %v137
    %v139 = vand.u32 %v138, 4294901760
    %v140 = vsub.f32 %v138, %v139
    %v141 = vand.u32 %v140, 4294901760
    %142 = vmatpush1.msra.mxu0 %v141
    %143 = vmatprep.subr.mxu0 0.0
    %v144 = vand.u32 %v37, 4294901760
    %v145 = vsub.f32 %v37, %v144
    %v146 = vand.u32 %v145, 4294901760
    %v147 = vsub.f32 %v145, %v146
    %v148 = vand.u32 %v147, 4294901760
    %149 = vmatpush1.msra.mxu0 %v148
    %150 = vmatprep.subr.mxu0 0.0
    %v151 = vand.u32 %v38, 4294901760
    %v152 = vsub.f32 %v38, %v151
    %v153 = vand.u32 %v152, 4294901760
    %v154 = vsub.f32 %v152, %v153
    %v155 = vand.u32 %v154, 4294901760
    %156 = vmatpush1.msra.mxu0 %v155
    %157 = vmatprep.subr.mxu0 0.0
    %v158 = vand.u32 %v39, 4294901760
    %v159 = vsub.f32 %v39, %v158
    %v160 = vand.u32 %v159, 4294901760
    %v161 = vsub.f32 %v159, %v160
    %v162 = vand.u32 %v161, 4294901760
    %163 = vmatpush1.msra.mxu0 %v162
    %164 = vmatprep.subr.mxu0 0.0
    %v165 = vand.u32 %v40, 4294901760
    %v166 = vsub.f32 %v40, %v165
    %v167 = vand.u32 %v166, 4294901760
    %v168 = vsub.f32 %v166, %v167
    %v169 = vand.u32 %v168, 4294901760
    %170 = vmatpush1.msra.mxu0 %v169
    %171 = vmatprep.subr.mxu0 0.0
    %v172 = vand.u32 %v41, 4294901760
    %v173 = vsub.f32 %v41, %v172
    %v174 = vand.u32 %v173, 4294901760
    %v175 = vsub.f32 %v173, %v174
    %v176 = vand.u32 %v175, 4294901760
    %177 = vmatpush1.msra.mxu0 %v176
    %178 = vmatprep.subr.mxu0 0.0
    %v179 = vand.u32 %v42, 4294901760
    %v180 = vsub.f32 %v42, %v179
    %v181 = vand.u32 %v180, 4294901760
    %v182 = vsub.f32 %v180, %v181
    %v183 = vand.u32 %v182, 4294901760
    %184 = vmatpush1.msra.mxu0 %v183
    %185 = vmatprep.subr.mxu0 0.0
    %186 = vmatpush1.msra.mxu0 0.0
    %187 = vmatprep.subr.mxu0 0.0
    %188 = vmatpush1.msra.mxu0 0.0
    %189 = vmatprep.subr.mxu0 0.0
    %190 = vmatpush1.msra.mxu0 0.0
    %191 = vmatprep.subr.mxu0 0.0
    %192 = vmatpush1.msra.mxu0 0.0
    %193 = vmatprep.subr.mxu0 0.0
    %194 = vmatpush1.msra.mxu0 0.0
    %195 = vmatprep.subr.mxu0 0.0
    %196 = vmatpush1.msra.mxu0 0.0
    %197 = vmatprep.subr.mxu0 0.0
    %198 = vmatpush1.msra.mxu0 0.0
    %199 = vmatprep.subr.mxu0 0.0
    %200 = vmatpush1.msra.mxu0 0.0
    %201 = vmatprep.subr.mxu0 0.0
    %202 = vmatpush1.msra.mxu0 0.0
    %203 = vmatprep.subr.mxu0 0.0
    %204 = vmatpush1.msra.mxu0 0.0
    %205 = vmatprep.subr.mxu0 0.0
    %206 = vmatpush1.msra.mxu0 0.0
    %207 = vmatprep.subr.mxu0 0.0
    %208 = vmatpush1.msra.mxu0 0.0
    %209 = vmatprep.subr.mxu0 0.0
    %210 = vmatpush1.msra.mxu0 0.0
    %211 = vmatprep.subr.mxu0 0.0
    %212 = vmatpush1.msra.mxu0 0.0
    %213 = vmatprep.subr.mxu0 0.0
    %214 = vmatpush1.msra.mxu0 0.0
    %215 = vmatprep.subr.mxu0 0.0
    %216 = vmatpush1.msra.mxu0 0.0
    %217 = vmatprep.subr.mxu0 0.0
    %218 = vmatpush1.msra.mxu0 0.0
    %219 = vmatprep.subr.mxu0 0.0
    %220 = vmatpush1.msra.mxu0 0.0
    %221 = vmatprep.subr.mxu0 0.0
    %222 = vmatpush1.msra.mxu0 0.0
    %223 = vmatprep.subr.mxu0 0.0
    %224 = vmatpush1.msra.mxu0 0.0
    %225 = vmatprep.subr.mxu0 0.0
    %226 = vmatpush1.msra.mxu0 0.0
    %227 = vmatprep.subr.mxu0 0.0
    %228 = vmatpush1.msra.mxu0 0.0
    %229 = vmatprep.subr.mxu0 0.0
    %230 = vmatpush1.msra.mxu0 0.0
    %231 = vmatprep.subr.mxu0 0.0
    %232 = vmatpush1.msra.mxu0 0.0
    %233 = vmatprep.mubr.f32.mxu0 0.0
    %v234 = vand.u32 %v44, 4294901760
    %235 = vmatmul.mubr.f32.gmra.mrb[0].mxu0 %v234
    %v236 = vpop.f32.mrb[0].mxu0
    %v237 = vadd.f32 %v126, %v236
    %v238 = vpop.f32.mrb[0].mxu0
    %239 = vdwg.mxu0
    %240 = vmatprep.subr.mxu0 0.0
    %v241 = vand.u32 %v35, 4294901760
    %v242 = vsub.f32 %v35, %v241
    %243 = vmatpush1.msra.mxu0 %v242
    %244 = vmatprep.subr.mxu0 0.0
    %v245 = vand.u32 %v36, 4294901760
    %v246 = vsub.f32 %v36, %v245
    %247 = vmatpush1.msra.mxu0 %v246
    %248 = vmatprep.subr.mxu0 0.0
    %v249 = vand.u32 %v37, 4294901760
    %v250 = vsub.f32 %v37, %v249
    %251 = vmatpush1.msra.mxu0 %v250
    %252 = vmatprep.subr.mxu0 0.0
    %v253 = vand.u32 %v38, 4294901760
    %v254 = vsub.f32 %v38, %v253
    %255 = vmatpush1.msra.mxu0 %v254
    %256 = vmatprep.subr.mxu0 0.0
    %v257 = vand.u32 %v39, 4294901760
    %v258 = vsub.f32 %v39, %v257
    %259 = vmatpush1.msra.mxu0 %v258
    %260 = vmatprep.subr.mxu0 0.0
    %v261 = vand.u32 %v40, 4294901760
    %v262 = vsub.f32 %v40, %v261
    %263 = vmatpush1.msra.mxu0 %v262
    %264 = vmatprep.subr.mxu0 0.0
    %v265 = vand.u32 %v41, 4294901760
    %v266 = vsub.f32 %v41, %v265
    %267 = vmatpush1.msra.mxu0 %v266
    %268 = vmatprep.subr.mxu0 0.0
    %v269 = vand.u32 %v42, 4294901760
    %v270 = vsub.f32 %v42, %v269
    %271 = vmatpush1.msra.mxu0 %v270
    %272 = vmatprep.subr.mxu0 0.0
    %273 = vmatpush1.msra.mxu0 0.0
    %274 = vmatprep.subr.mxu0 0.0
    %275 = vmatpush1.msra.mxu0 0.0
    %276 = vmatprep.subr.mxu0 0.0
    %277 = vmatpush1.msra.mxu0 0.0
    %278 = vmatprep.subr.mxu0 0.0
    %279 = vmatpush1.msra.mxu0 0.0
    %280 = vmatprep.subr.mxu0 0.0
    %281 = vmatpush1.msra.mxu0 0.0
    %282 = vmatprep.subr.mxu0 0.0
    %283 = vmatpush1.msra.mxu0 0.0
    %284 = vmatprep.subr.mxu0 0.0
    %285 = vmatpush1.msra.mxu0 0.0
    %286 = vmatprep.subr.mxu0 0.0
    %287 = vmatpush1.msra.mxu0 0.0
    %288 = vmatprep.subr.mxu0 0.0
    %289 = vmatpush1.msra.mxu0 0.0
    %290 = vmatprep.subr.mxu0 0.0
    %291 = vmatpush1.msra.mxu0 0.0
    %292 = vmatprep.subr.mxu0 0.0
    %293 = vmatpush1.msra.mxu0 0.0
    %294 = vmatprep.subr.mxu0 0.0
    %295 = vmatpush1.msra.mxu0 0.0
    %296 = vmatprep.subr.mxu0 0.0
    %297 = vmatpush1.msra.mxu0 0.0
    %298 = vmatprep.subr.mxu0 0.0
    %299 = vmatpush1.msra.mxu0 0.0
    %300 = vmatprep.subr.mxu0 0.0
    %301 = vmatpush1.msra.mxu0 0.0
    %302 = vmatprep.subr.mxu0 0.0
    %303 = vmatpush1.msra.mxu0 0.0
    %304 = vmatprep.subr.mxu0 0.0
    %305 = vmatpush1.msra.mxu0 0.0
    %306 = vmatprep.subr.mxu0 0.0
    %307 = vmatpush1.msra.mxu0 0.0
    %308 = vmatprep.subr.mxu0 0.0
    %309 = vmatpush1.msra.mxu0 0.0
    %310 = vmatprep.subr.mxu0 0.0
    %311 = vmatpush1.msra.mxu0 0.0
    %312 = vmatprep.subr.mxu0 0.0
    %313 = vmatpush1.msra.mxu0 0.0
    %314 = vmatprep.subr.mxu0 0.0
    %315 = vmatpush1.msra.mxu0 0.0
    %316 = vmatprep.subr.mxu0 0.0
    %317 = vmatpush1.msra.mxu0 0.0
    %318 = vmatprep.subr.mxu0 0.0
    %319 = vmatpush1.msra.mxu0 0.0
    %320 = vmatprep.mubr.f32.mxu0 0.0
    %v321 = vand.u32 %v44, 4294901760
    %v322 = vsub.f32 %v44, %v321
    %323 = vmatmul.mubr.f32.gmra.mrb[0].mxu0 %v322
    %v324 = vpop.f32.mrb[0].mxu0
    %v325 = vadd.f32 %v237, %v324
    %v326 = vpop.f32.mrb[0].mxu0
    %327 = vdwg.mxu0
    %328 = vmatprep.subr.mxu0 0.0
    %v329 = vand.u32 %v35, 4294901760
    %330 = vmatpush1.msra.mxu0 %v329
    %331 = vmatprep.subr.mxu0 0.0
    %v332 = vand.u32 %v36, 4294901760
    %333 = vmatpush1.msra.mxu0 %v332
    %334 = vmatprep.subr.mxu0 0.0
    %v335 = vand.u32 %v37, 4294901760
    %336 = vmatpush1.msra.mxu0 %v335
    %337 = vmatprep.subr.mxu0 0.0
    %v338 = vand.u32 %v38, 4294901760
    %339 = vmatpush1.msra.mxu0 %v338
    %340 = vmatprep.subr.mxu0 0.0
    %v341 = vand.u32 %v39, 4294901760
    %342 = vmatpush1.msra.mxu0 %v341
    %343 = vmatprep.subr.mxu0 0.0
    %v344 = vand.u32 %v40, 4294901760
    %345 = vmatpush1.msra.mxu0 %v344
    %346 = vmatprep.subr.mxu0 0.0
    %v347 = vand.u32 %v41, 4294901760
    %348 = vmatpush1.msra.mxu0 %v347
    %349 = vmatprep.subr.mxu0 0.0
    %v350 = vand.u32 %v42, 4294901760
    %351 = vmatpush1.msra.mxu0 %v350
    %352 = vmatprep.subr.mxu0 0.0
    %353 = vmatpush1.msra.mxu0 0.0
    %354 = vmatprep.subr.mxu0 0.0
    %355 = vmatpush1.msra.mxu0 0.0
    %356 = vmatprep.subr.mxu0 0.0
    %357 = vmatpush1.msra.mxu0 0.0
    %358 = vmatprep.subr.mxu0 0.0
    %359 = vmatpush1.msra.mxu0 0.0
    %360 = vmatprep.subr.mxu0 0.0
    %361 = vmatpush1.msra.mxu0 0.0
    %362 = vmatprep.subr.mxu0 0.0
    %363 = vmatpush1.msra.mxu0 0.0
    %364 = vmatprep.subr.mxu0 0.0
    %365 = vmatpush1.msra.mxu0 0.0
    %366 = vmatprep.subr.mxu0 0.0
    %367 = vmatpush1.msra.mxu0 0.0
    %368 = vmatprep.subr.mxu0 0.0
    %369 = vmatpush1.msra.mxu0 0.0
    %370 = vmatprep.subr.mxu0 0.0
    %371 = vmatpush1.msra.mxu0 0.0
    %372 = vmatprep.subr.mxu0 0.0
    %373 = vmatpush1.msra.mxu0 0.0
    %374 = vmatprep.subr.mxu0 0.0
    %375 = vmatpush1.msra.mxu0 0.0
    %376 = vmatprep.subr.mxu0 0.0
    %377 = vmatpush1.msra.mxu0 0.0
    %378 = vmatprep.subr.mxu0 0.0
    %379 = vmatpush1.msra.mxu0 0.0
    %380 = vmatprep.subr.mxu0 0.0
    %381 = vmatpush1.msra.mxu0 0.0
    %382 = vmatprep.subr.mxu0 0.0
    %383 = vmatpush1.msra.mxu0 0.0
    %384 = vmatprep.subr.mxu0 0.0
    %385 = vmatpush1.msra.mxu0 0.0
    %386 = vmatprep.subr.mxu0 0.0
    %387 = vmatpush1.msra.mxu0 0.0
    %388 = vmatprep.subr.mxu0 0.0
    %389 = vmatpush1.msra.mxu0 0.0
    %390 = vmatprep.subr.mxu0 0.0
    %391 = vmatpush1.msra.mxu0 0.0
    %392 = vmatprep.subr.mxu0 0.0
    %393 = vmatpush1.msra.mxu0 0.0
    %394 = vmatprep.subr.mxu0 0.0
    %395 = vmatpush1.msra.mxu0 0.0
    %396 = vmatprep.subr.mxu0 0.0
    %397 = vmatpush1.msra.mxu0 0.0
    %398 = vmatprep.subr.mxu0 0.0
    %399 = vmatpush1.msra.mxu0 0.0
    %400 = vmatprep.mubr.f32.mxu0 0.0
    %v401 = vand.u32 %v44, 4294901760
    %v402 = vsub.f32 %v44, %v401
    %v403 = vand.u32 %v402, 4294901760
    %404 = vmatmul.mubr.f32.gmra.mrb[0].mxu0 %v403
    %v405 = vpop.f32.mrb[0].mxu0
    %v406 = vadd.f32 %v325, %v405
    %v407 = vpop.f32.mrb[0].mxu0
    %408 = vdwg.mxu0
    %409 = vmatprep.subr.mxu0 0.0
    %v410 = vand.u32 %v35, 4294901760
    %v411 = vsub.f32 %v35, %v410
    %v412 = vand.u32 %v411, 4294901760
    %413 = vmatpush1.msra.mxu0 %v412
    %414 = vmatprep.subr.mxu0 0.0
    %v415 = vand.u32 %v36, 4294901760
    %v416 = vsub.f32 %v36, %v415
    %v417 = vand.u32 %v416, 4294901760
    %418 = vmatpush1.msra.mxu0 %v417
    %419 = vmatprep.subr.mxu0 0.0
    %v420 = vand.u32 %v37, 4294901760
    %v421 = vsub.f32 %v37, %v420
    %v422 = vand.u32 %v421, 4294901760
    %423 = vmatpush1.msra.mxu0 %v422
    %424 = vmatprep.subr.mxu0 0.0
    %v425 = vand.u32 %v38, 4294901760
    %v426 = vsub.f32 %v38, %v425
    %v427 = vand.u32 %v426, 4294901760
    %428 = vmatpush1.msra.mxu0 %v427
    %429 = vmatprep.subr.mxu0 0.0
    %v430 = vand.u32 %v39, 4294901760
    %v431 = vsub.f32 %v39, %v430
    %v432 = vand.u32 %v431, 4294901760
    %433 = vmatpush1.msra.mxu0 %v432
    %434 = vmatprep.subr.mxu0 0.0
    %v435 = vand.u32 %v40, 4294901760
    %v436 = vsub.f32 %v40, %v435
    %v437 = vand.u32 %v436, 4294901760
    %438 = vmatpush1.msra.mxu0 %v437
    %439 = vmatprep.subr.mxu0 0.0
    %v440 = vand.u32 %v41, 4294901760
    %v441 = vsub.f32 %v41, %v440
    %v442 = vand.u32 %v441, 4294901760
    %443 = vmatpush1.msra.mxu0 %v442
    %444 = vmatprep.subr.mxu0 0.0
    %v445 = vand.u32 %v42, 4294901760
    %v446 = vsub.f32 %v42, %v445
    %v447 = vand.u32 %v446, 4294901760
    %448 = vmatpush1.msra.mxu0 %v447
    %449 = vmatprep.subr.mxu0 0.0
    %450 = vmatpush1.msra.mxu0 0.0
    %451 = vmatprep.subr.mxu0 0.0
    %452 = vmatpush1.msra.mxu0 0.0
    %453 = vmatprep.subr.mxu0 0.0
    %454 = vmatpush1.msra.mxu0 0.0
    %455 = vmatprep.subr.mxu0 0.0
    %456 = vmatpush1.msra.mxu0 0.0
    %457 = vmatprep.subr.mxu0 0.0
    %458 = vmatpush1.msra.mxu0 0.0
    %459 = vmatprep.subr.mxu0 0.0
    %460 = vmatpush1.msra.mxu0 0.0
    %461 = vmatprep.subr.mxu0 0.0
    %462 = vmatpush1.msra.mxu0 0.0
    %463 = vmatprep.subr.mxu0 0.0
    %464 = vmatpush1.msra.mxu0 0.0
    %465 = vmatprep.subr.mxu0 0.0
    %466 = vmatpush1.msra.mxu0 0.0
    %467 = vmatprep.subr.mxu0 0.0
    %468 = vmatpush1.msra.mxu0 0.0
    %469 = vmatprep.subr.mxu0 0.0
    %470 = vmatpush1.msra.mxu0 0.0
    %471 = vmatprep.subr.mxu0 0.0
    %472 = vmatpush1.msra.mxu0 0.0
    %473 = vmatprep.subr.mxu0 0.0
    %474 = vmatpush1.msra.mxu0 0.0
    %475 = vmatprep.subr.mxu0 0.0
    %476 = vmatpush1.msra.mxu0 0.0
    %477 = vmatprep.subr.mxu0 0.0
    %478 = vmatpush1.msra.mxu0 0.0
    %479 = vmatprep.subr.mxu0 0.0
    %480 = vmatpush1.msra.mxu0 0.0
    %481 = vmatprep.subr.mxu0 0.0
    %482 = vmatpush1.msra.mxu0 0.0
    %483 = vmatprep.subr.mxu0 0.0
    %484 = vmatpush1.msra.mxu0 0.0
    %485 = vmatprep.subr.mxu0 0.0
    %486 = vmatpush1.msra.mxu0 0.0
    %487 = vmatprep.subr.mxu0 0.0
    %488 = vmatpush1.msra.mxu0 0.0
    %489 = vmatprep.subr.mxu0 0.0
    %490 = vmatpush1.msra.mxu0 0.0
    %491 = vmatprep.subr.mxu0 0.0
    %492 = vmatpush1.msra.mxu0 0.0
    %493 = vmatprep.subr.mxu0 0.0
    %494 = vmatpush1.msra.mxu0 0.0
    %495 = vmatprep.subr.mxu0 0.0
    %496 = vmatpush1.msra.mxu0 0.0
    %497 = vmatprep.mubr.f32.mxu0 0.0
    %v498 = vand.u32 %v44, 4294901760
    %499 = vmatmul.mubr.f32.gmra.mrb[0].mxu0 %v498
    %v500 = vpop.f32.mrb[0].mxu0
    %v501 = vadd.f32 %v406, %v500
    %v502 = vpop.f32.mrb[0].mxu0
    %503 = vdwg.mxu0
    %504 = vmatprep.subr.mxu0 0.0
    %v505 = vand.u32 %v35, 4294901760
    %506 = vmatpush1.msra.mxu0 %v505
    %507 = vmatprep.subr.mxu0 0.0
    %v508 = vand.u32 %v36, 4294901760
    %509 = vmatpush1.msra.mxu0 %v508
    %510 = vmatprep.subr.mxu0 0.0
    %v511 = vand.u32 %v37, 4294901760
    %512 = vmatpush1.msra.mxu0 %v511
    %513 = vmatprep.subr.mxu0 0.0
    %v514 = vand.u32 %v38, 4294901760
    %515 = vmatpush1.msra.mxu0 %v514
    %516 = vmatprep.subr.mxu0 0.0
    %v517 = vand.u32 %v39, 4294901760
    %518 = vmatpush1.msra.mxu0 %v517
    %519 = vmatprep.subr.mxu0 0.0
    %v520 = vand.u32 %v40, 4294901760
    %521 = vmatpush1.msra.mxu0 %v520
    %522 = vmatprep.subr.mxu0 0.0
    %v523 = vand.u32 %v41, 4294901760
    %524 = vmatpush1.msra.mxu0 %v523
    %525 = vmatprep.subr.mxu0 0.0
    %v526 = vand.u32 %v42, 4294901760
    %527 = vmatpush1.msra.mxu0 %v526
    %528 = vmatprep.subr.mxu0 0.0
    %529 = vmatpush1.msra.mxu0 0.0
    %530 = vmatprep.subr.mxu0 0.0
    %531 = vmatpush1.msra.mxu0 0.0
    %532 = vmatprep.subr.mxu0 0.0
    %533 = vmatpush1.msra.mxu0 0.0
    %534 = vmatprep.subr.mxu0 0.0
    %535 = vmatpush1.msra.mxu0 0.0
    %536 = vmatprep.subr.mxu0 0.0
    %537 = vmatpush1.msra.mxu0 0.0
    %538 = vmatprep.subr.mxu0 0.0
    %539 = vmatpush1.msra.mxu0 0.0
    %540 = vmatprep.subr.mxu0 0.0
    %541 = vmatpush1.msra.mxu0 0.0
    %542 = vmatprep.subr.mxu0 0.0
    %543 = vmatpush1.msra.mxu0 0.0
    %544 = vmatprep.subr.mxu0 0.0
    %545 = vmatpush1.msra.mxu0 0.0
    %546 = vmatprep.subr.mxu0 0.0
    %547 = vmatpush1.msra.mxu0 0.0
    %548 = vmatprep.subr.mxu0 0.0
    %549 = vmatpush1.msra.mxu0 0.0
    %550 = vmatprep.subr.mxu0 0.0
    %551 = vmatpush1.msra.mxu0 0.0
    %552 = vmatprep.subr.mxu0 0.0
    %553 = vmatpush1.msra.mxu0 0.0
    %554 = vmatprep.subr.mxu0 0.0
    %555 = vmatpush1.msra.mxu0 0.0
    %556 = vmatprep.subr.mxu0 0.0
    %557 = vmatpush1.msra.mxu0 0.0
    %558 = vmatprep.subr.mxu0 0.0
    %559 = vmatpush1.msra.mxu0 0.0
    %560 = vmatprep.subr.mxu0 0.0
    %561 = vmatpush1.msra.mxu0 0.0
    %562 = vmatprep.subr.mxu0 0.0
    %563 = vmatpush1.msra.mxu0 0.0
    %564 = vmatprep.subr.mxu0 0.0
    %565 = vmatpush1.msra.mxu0 0.0
    %566 = vmatprep.subr.mxu0 0.0
    %567 = vmatpush1.msra.mxu0 0.0
    %568 = vmatprep.subr.mxu0 0.0
    %569 = vmatpush1.msra.mxu0 0.0
    %570 = vmatprep.subr.mxu0 0.0
    %571 = vmatpush1.msra.mxu0 0.0
    %572 = vmatprep.subr.mxu0 0.0
    %573 = vmatpush1.msra.mxu0 0.0
    %574 = vmatprep.subr.mxu0 0.0
    %575 = vmatpush1.msra.mxu0 0.0
    %576 = vmatprep.mubr.f32.mxu0 0.0
    %v577 = vand.u32 %v44, 4294901760
    %578 = vmatmul.mubr.f32.gmra.mrb[0].mxu0 %v577
    %v579 = vpop.f32.mrb[0].mxu0
    %v580 = vadd.f32 %v501, %v579
    %v581 = vpop.f32.mrb[0].mxu0
    %582 = vdwg.mxu0
    %v583 = vcombine.high %v34, %v34
    %v585 = vunpack.c.l.s4 1966171168
    %v586 = vunpack.c.0.s8 %v585
    %v587 = vlaneseq
    %v588 = vshrl.u32 %v587, 7
    %v589 = vsub.s32 %v586, %v588
    %v590 = vrot.slane %v34, %v589
    %v592 = vunpack.c.l.s4 1966171168
    %v593 = vunpack.c.0.s8 %v592
    %v594 = vlaneseq
    %v595 = vshrl.u32 %v594, 7
    %v596 = vsub.s32 %v593, %v595
    %v597 = vrot.slane %v583, %v596
    %v598 = vcombine.high %v590, %v590
    %v599 = vcombine.high %v597, %v597
    %v601 = vunpack.c.l.s4 1966171168
    %v602 = vunpack.c.0.s8 %v601
    %v603 = vlaneseq
    %v604 = vshrl.u32 %v603, 7
    %v605 = vsub.s32 %v602, %v604
    %v606 = vrot.slane %v590, %v605
    %v608 = vunpack.c.l.s4 1966171168
    %v609 = vunpack.c.0.s8 %v608
    %v610 = vlaneseq
    %v611 = vshrl.u32 %v610, 7
    %v612 = vsub.s32 %v609, %v611
    %v613 = vrot.slane %v597, %v612
    %v615 = vunpack.c.l.s4 1966171168
    %v616 = vunpack.c.0.s8 %v615
    %v617 = vlaneseq
    %v618 = vshrl.u32 %v617, 7
    %v619 = vsub.s32 %v616, %v618
    %v620 = vrot.slane %v598, %v619
    %v622 = vunpack.c.l.s4 1966171168
    %v623 = vunpack.c.0.s8 %v622
    %v624 = vlaneseq
    %v625 = vshrl.u32 %v624, 7
    %v626 = vsub.s32 %v623, %v625
    %v627 = vrot.slane %v599, %v626
    %v628 = vcombine.high %v606, %v606
    %v629 = vcombine.high %v613, %v613
    %v630 = vcombine.high %v620, %v620
    %v631 = vcombine.high %v627, %v627
    %v632 = vld [vmem:[%s1] sm:$0xff]
    %v633 = vld [vmem:[%s1 + $0x8] sm:$0xff]
    %v634 = vld [vmem:[%s1 + $0x10] sm:$0xff]
    %v635 = vld [vmem:[%s1 + $0x18] sm:$0xff]
    %v636 = vld [vmem:[%s1 + $0x20] sm:$0xff]
    %v637 = vld [vmem:[%s1 + $0x28] sm:$0xff]
    %v638 = vld [vmem:[%s1 + $0x30] sm:$0xff]
    %v639 = vld [vmem:[%s1 + $0x38] sm:$0xff]
    %v640 = vld [vmem:[%s1 + $0x40] sm:$0xff]
    %v641 = vld [vmem:[%s1 + $0x48] sm:$0xff]
    %v642 = vld [vmem:[%s1 + $0x50] sm:$0xff]
    %v643 = vld [vmem:[%s1 + $0x58] sm:$0xff]
    %v644 = vld [vmem:[%s1 + $0x60] sm:$0xff]
    %v645 = vld [vmem:[%s1 + $0x68] sm:$0xff]
    %v646 = vld [vmem:[%s1 + $0x70] sm:$0xff]
    %v647 = vld [vmem:[%s1 + $0x78] sm:$0xff]
    %v648 = vld [vmem:[%s1 + $0x80] sm:$0xff]
    %v649 = vld [vmem:[%s1 + $0x88] sm:$0xff]
    %v650 = vld [vmem:[%s1 + $0x90] sm:$0xff]
    %v651 = vld [vmem:[%s1 + $0x98] sm:$0xff]
    %v652 = vld [vmem:[%s1 + $0xa0] sm:$0xff]
    %v653 = vld [vmem:[%s1 + $0xa8] sm:$0xff]
    %v654 = vld [vmem:[%s1 + $0xb0] sm:$0xff]
    %v655 = vld [vmem:[%s1 + $0xb8] sm:$0xff]
    %v656 = vld [vmem:[%s1 + $0xc0] sm:$0xff]
    %v657 = vld [vmem:[%s1 + $0xc8] sm:$0xff]
    %v658 = vld [vmem:[%s1 + $0xd0] sm:$0xff]
    %v659 = vld [vmem:[%s1 + $0xd8] sm:$0xff]
    %v660 = vld [vmem:[%s1 + $0xe0] sm:$0xff]
    %v661 = vld [vmem:[%s1 + $0xe8] sm:$0xff]
    %v662 = vld [vmem:[%s1 + $0xf0] sm:$0xff]
    %v663 = vld [vmem:[%s1 + $0xf8] sm:$0xff]
    %v664 = vld [vmem:[%s1 + $0x100] sm:$0xff]
    %v665 = vld [vmem:[%s1 + $0x108] sm:$0xff]
    %v666 = vld [vmem:[%s1 + $0x110] sm:$0xff]
    %v667 = vld [vmem:[%s1 + $0x118] sm:$0xff]
    %v668 = vld [vmem:[%s1 + $0x120] sm:$0xff]
    %v669 = vld [vmem:[%s1 + $0x128] sm:$0xff]
    %v670 = vld [vmem:[%s1 + $0x130] sm:$0xff]
    %v671 = vld [vmem:[%s1 + $0x138] sm:$0xff]
    %v672 = vld [vmem:[%s1 + $0x140] sm:$0xff]
    %v673 = vld [vmem:[%s1 + $0x148] sm:$0xff]
    %v674 = vld [vmem:[%s1 + $0x150] sm:$0xff]
    %v675 = vld [vmem:[%s1 + $0x158] sm:$0xff]
    %v676 = vld [vmem:[%s1 + $0x160] sm:$0xff]
    %v677 = vld [vmem:[%s1 + $0x168] sm:$0xff]
    %v678 = vld [vmem:[%s1 + $0x170] sm:$0xff]
    %v679 = vld [vmem:[%s1 + $0x178] sm:$0xff]
    %v680 = vld [vmem:[%s1 + $0x180] sm:$0xff]
    %v681 = vld [vmem:[%s1 + $0x188] sm:$0xff]
    %v682 = vld [vmem:[%s1 + $0x190] sm:$0xff]
    %v683 = vld [vmem:[%s1 + $0x198] sm:$0xff]
    %v684 = vld [vmem:[%s1 + $0x1a0] sm:$0xff]
    %v685 = vld [vmem:[%s1 + $0x1a8] sm:$0xff]
    %v686 = vld [vmem:[%s1 + $0x1b0] sm:$0xff]
    %v687 = vld [vmem:[%s1 + $0x1b8] sm:$0xff]
    %v688 = vld [vmem:[%s1 + $0x1c0] sm:$0xff]
    %v689 = vld [vmem:[%s1 + $0x1c8] sm:$0xff]
    %v690 = vld [vmem:[%s1 + $0x1d0] sm:$0xff]
    %v691 = vld [vmem:[%s1 + $0x1d8] sm:$0xff]
    %v692 = vld [vmem:[%s1 + $0x1e0] sm:$0xff]
    %v693 = vld [vmem:[%s1 + $0x1e8] sm:$0xff]
    %v694 = vld [vmem:[%s1 + $0x1f0] sm:$0xff]
    %v695 = vld [vmem:[%s1 + $0x1f8] sm:$0xff]
    %v696 = vsel %vm23, %v606, 0
    %698 = vmatprep.subr.mxu0 0.0
    %v699 = vand.u32 %v632, 4294901760
    %700 = vmatpush1.msra.mxu0 %v699
    %701 = vmatprep.subr.mxu0 0.0
    %v702 = vand.u32 %v633, 4294901760
    %703 = vmatpush1.msra.mxu0 %v702
    %704 = vmatprep.subr.mxu0 0.0
    %v705 = vand.u32 %v634, 4294901760
    %706 = vmatpush1.msra.mxu0 %v705
    %707 = vmatprep.subr.mxu0 0.0
    %v708 = vand.u32 %v635, 4294901760
    %709 = vmatpush1.msra.mxu0 %v708
    %710 = vmatprep.subr.mxu0 0.0
    %v711 = vand.u32 %v636, 4294901760
    %712 = vmatpush1.msra.mxu0 %v711
    %713 = vmatprep.subr.mxu0 0.0
    %v714 = vand.u32 %v637, 4294901760
    %715 = vmatpush1.msra.mxu0 %v714
    %716 = vmatprep.subr.mxu0 0.0
    %v717 = vand.u32 %v638, 4294901760
    %718 = vmatpush1.msra.mxu0 %v717
    %719 = vmatprep.subr.mxu0 0.0
    %v720 = vand.u32 %v639, 4294901760
    %721 = vmatpush1.msra.mxu0 %v720
    %722 = vmatprep.subr.mxu0 0.0
    %723 = vmatpush1.msra.mxu0 0.0
    %724 = vmatprep.subr.mxu0 0.0
    %725 = vmatpush1.msra.mxu0 0.0
    %726 = vmatprep.subr.mxu0 0.0
    %727 = vmatpush1.msra.mxu0 0.0
    %728 = vmatprep.subr.mxu0 0.0
    %729 = vmatpush1.msra.mxu0 0.0
    %730 = vmatprep.subr.mxu0 0.0
    %731 = vmatpush1.msra.mxu0 0.0
    %732 = vmatprep.subr.mxu0 0.0
    %733 = vmatpush1.msra.mxu0 0.0
    %734 = vmatprep.subr.mxu0 0.0
    %735 = vmatpush1.msra.mxu0 0.0
    %736 = vmatprep.subr.mxu0 0.0
    %737 = vmatpush1.msra.mxu0 0.0
    %738 = vmatprep.subr.mxu0 0.0
    %739 = vmatpush1.msra.mxu0 0.0
    %740 = vmatprep.subr.mxu0 0.0
    %741 = vmatpush1.msra.mxu0 0.0
    %742 = vmatprep.subr.mxu0 0.0
    %743 = vmatpush1.msra.mxu0 0.0
    %744 = vmatprep.subr.mxu0 0.0
    %745 = vmatpush1.msra.mxu0 0.0
    %746 = vmatprep.subr.mxu0 0.0
    %747 = vmatpush1.msra.mxu0 0.0
    %748 = vmatprep.subr.mxu0 0.0
    %749 = vmatpush1.msra.mxu0 0.0
    %750 = vmatprep.subr.mxu0 0.0
    %751 = vmatpush1.msra.mxu0 0.0
    %752 = vmatprep.subr.mxu0 0.0
    %753 = vmatpush1.msra.mxu0 0.0
    %754 = vmatprep.subr.mxu0 0.0
    %755 = vmatpush1.msra.mxu0 0.0
    %756 = vmatprep.subr.mxu0 0.0
    %757 = vmatpush1.msra.mxu0 0.0
    %758 = vmatprep.subr.mxu0 0.0
    %759 = vmatpush1.msra.mxu0 0.0
    %760 = vmatprep.subr.mxu0 0.0
    %761 = vmatpush1.msra.mxu0 0.0
    %762 = vmatprep.subr.mxu0 0.0
    %763 = vmatpush1.msra.mxu0 0.0
    %764 = vmatprep.subr.mxu0 0.0
    %765 = vmatpush1.msra.mxu0 0.0
    %766 = vmatprep.subr.mxu0 0.0
    %767 = vmatpush1.msra.mxu0 0.0
    %768 = vmatprep.subr.mxu0 0.0
    %769 = vmatpush1.msra.mxu0 0.0
    %770 = vmatprep.mubr.f32.mxu0 0.0
    %v771 = vand.u32 %v696, 4294901760
    %v772 = vsub.f32 %v696, %v771
    %v773 = vand.u32 %v772, 4294901760
    %v774 = vsub.f32 %v772, %v773
    %v775 = vand.u32 %v774, 4294901760
    %776 = vmatmul.mubr.f32.gmra.mrb[0].mxu0 %v775
    %v777 = vpop.f32.mrb[0].mxu0
    %v778 = vadd.f32 0.0, %v777
    %v779 = vpop.f32.mrb[0].mxu0
    %780 = vdwg.mxu0
    %781 = vmatprep.subr.mxu0 0.0
    %v782 = vand.u32 %v632, 4294901760
    %v783 = vsub.f32 %v632, %v782
    %v784 = vand.u32 %v783, 4294901760
    %v785 = vsub.f32 %v783, %v784
    %v786 = vand.u32 %v785, 4294901760
    %787 = vmatpush1.msra.mxu0 %v786
    %788 = vmatprep.subr.mxu0 0.0
    %v789 = vand.u32 %v633, 4294901760
    %v790 = vsub.f32 %v633, %v789
    %v791 = vand.u32 %v790, 4294901760
    %v792 = vsub.f32 %v790, %v791
    %v793 = vand.u32 %v792, 4294901760
    %794 = vmatpush1.msra.mxu0 %v793
    %795 = vmatprep.subr.mxu0 0.0
    %v796 = vand.u32 %v634, 4294901760
    %v797 = vsub.f32 %v634, %v796
    %v798 = vand.u32 %v797, 4294901760
    %v799 = vsub.f32 %v797, %v798
    %v800 = vand.u32 %v799, 4294901760
    %801 = vmatpush1.msra.mxu0 %v800
    %802 = vmatprep.subr.mxu0 0.0
    %v803 = vand.u32 %v635, 4294901760
    %v804 = vsub.f32 %v635, %v803
    %v805 = vand.u32 %v804, 4294901760
    %v806 = vsub.f32 %v804, %v805
    %v807 = vand.u32 %v806, 4294901760
    %808 = vmatpush1.msra.mxu0 %v807
    %809 = vmatprep.subr.mxu0 0.0
    %v810 = vand.u32 %v636, 4294901760
    %v811 = vsub.f32 %v636, %v810
    %v812 = vand.u32 %v811, 4294901760
    %v813 = vsub.f32 %v811, %v812
    %v814 = vand.u32 %v813, 4294901760
    %815 = vmatpush1.msra.mxu0 %v814
    %816 = vmatprep.subr.mxu0 0.0
    %v817 = vand.u32 %v637, 4294901760
    %v818 = vsub.f32 %v637, %v817
    %v819 = vand.u32 %v818, 4294901760
    %v820 = vsub.f32 %v818, %v819
    %v821 = vand.u32 %v820, 4294901760
    %822 = vmatpush1.msra.mxu0 %v821
    %823 = vmatprep.subr.mxu0 0.0
    %v824 = vand.u32 %v638, 4294901760
    %v825 = vsub.f32 %v638, %v824
    %v826 = vand.u32 %v825, 4294901760
    %v827 = vsub.f32 %v825, %v826
    %v828 = vand.u32 %v827, 4294901760
    %829 = vmatpush1.msra.mxu0 %v828
    %830 = vmatprep.subr.mxu0 0.0
    %v831 = vand.u32 %v639, 4294901760
    %v832 = vsub.f32 %v639, %v831
    %v833 = vand.u32 %v832, 4294901760
    %v834 = vsub.f32 %v832, %v833
    %v835 = vand.u32 %v834, 4294901760
    %836 = vmatpush1.msra.mxu0 %v835
    %837 = vmatprep.subr.mxu0 0.0
    %838 = vmatpush1.msra.mxu0 0.0
    %839 = vmatprep.subr.mxu0 0.0
    %840 = vmatpush1.msra.mxu0 0.0
    %841 = vmatprep.subr.mxu0 0.0
    %842 = vmatpush1.msra.mxu0 0.0
    %843 = vmatprep.subr.mxu0 0.0
    %844 = vmatpush1.msra.mxu0 0.0
    %845 = vmatprep.subr.mxu0 0.0
    %846 = vmatpush1.msra.mxu0 0.0
    %847 = vmatprep.subr.mxu0 0.0
    %848 = vmatpush1.msra.mxu0 0.0
    %849 = vmatprep.subr.mxu0 0.0
    %850 = vmatpush1.msra.mxu0 0.0
    %851 = vmatprep.subr.mxu0 0.0
    %852 = vmatpush1.msra.mxu0 0.0
    %853 = vmatprep.subr.mxu0 0.0
    %854 = vmatpush1.msra.mxu0 0.0
    %855 = vmatprep.subr.mxu0 0.0
    %856 = vmatpush1.msra.mxu0 0.0
    %857 = vmatprep.subr.mxu0 0.0
    %858 = vmatpush1.msra.mxu0 0.0
    %859 = vmatprep.subr.mxu0 0.0
    %860 = vmatpush1.msra.mxu0 0.0
    %861 = vmatprep.subr.mxu0 0.0
    %862 = vmatpush1.msra.mxu0 0.0
    %863 = vmatprep.subr.mxu0 0.0
    %864 = vmatpush1.msra.mxu0 0.0
    %865 = vmatprep.subr.mxu0 0.0
    %866 = vmatpush1.msra.mxu0 0.0
    %867 = vmatprep.subr.mxu0 0.0
    %868 = vmatpush1.msra.mxu0 0.0
    %869 = vmatprep.subr.mxu0 0.0
    %870 = vmatpush1.msra.mxu0 0.0
    %871 = vmatprep.subr.mxu0 0.0
    %872 = vmatpush1.msra.mxu0 0.0
    %873 = vmatprep.subr.mxu0 0.0
    %874 = vmatpush1.msra.mxu0 0.0
    %875 = vmatprep.subr.mxu0 0.0
    %876 = vmatpush1.msra.mxu0 0.0
    %877 = vmatprep.subr.mxu0 0.0
    %878 = vmatpush1.msra.mxu0 0.0
    %879 = vmatprep.subr.mxu0 0.0
    %880 = vmatpush1.msra.mxu0 0.0
    %881 = vmatprep.subr.mxu0 0.0
    %882 = vmatpush1.msra.mxu0 0.0
    %883 = vmatprep.subr.mxu0 0.0
    %884 = vmatpush1.msra.mxu0 0.0
    %885 = vmatprep.mubr.f32.mxu0 0.0
    %v886 = vand.u32 %v696, 4294901760
    %887 = vmatmul.mubr.f32.gmra.mrb[0].mxu0 %v886
    %v888 = vpop.f32.mrb[0].mxu0
    %v889 = vadd.f32 %v778, %v888
    %v890 = vpop.f32.mrb[0].mxu0
    %891 = vdwg.mxu0
    %892 = vmatprep.subr.mxu0 0.0
    %v893 = vand.u32 %v632, 4294901760
    %v894 = vsub.f32 %v632, %v893
    %895 = vmatpush1.msra.mxu0 %v894
    %896 = vmatprep.subr.mxu0 0.0
    %v897 = vand.u32 %v633, 4294901760
    %v898 = vsub.f32 %v633, %v897
    %899 = vmatpush1.msra.mxu0 %v898
    %900 = vmatprep.subr.mxu0 0.0
    %v901 = vand.u32 %v634, 4294901760
    %v902 = vsub.f32 %v634, %v901
    %903 = vmatpush1.msra.mxu0 %v902
    %904 = vmatprep.subr.mxu0 0.0
    %v905 = vand.u32 %v635, 4294901760
    %v906 = vsub.f32 %v635, %v905
    %907 = vmatpush1.msra.mxu0 %v906
    %908 = vmatprep.subr.mxu0 0.0
    %v909 = vand.u32 %v636, 4294901760
    %v910 = vsub.f32 %v636, %v909
    %911 = vmatpush1.msra.mxu0 %v910
    %912 = vmatprep.subr.mxu0 0.0
    %v913 = vand.u32 %v637, 4294901760
    %v914 = vsub.f32 %v637, %v913
    %915 = vmatpush1.msra.mxu0 %v914
    %916 = vmatprep.subr.mxu0 0.0
    %v917 = vand.u32 %v638, 4294901760
    %v918 = vsub.f32 %v638, %v917
    %919 = vmatpush1.msra.mxu0 %v918
    %920 = vmatprep.subr.mxu0 0.0
    %v921 = vand.u32 %v639, 4294901760
    %v922 = vsub.f32 %v639, %v921
    %923 = vmatpush1.msra.mxu0 %v922
    %924 = vmatprep.subr.mxu0 0.0
    %925 = vmatpush1.msra.mxu0 0.0
    %926 = vmatprep.subr.mxu0 0.0
    %927 = vmatpush1.msra.mxu0 0.0
    %928 = vmatprep.subr.mxu0 0.0
    %929 = vmatpush1.msra.mxu0 0.0
    %930 = vmatprep.subr.mxu0 0.0
    %931 = vmatpush1.msra.mxu0 0.0
    %932 = vmatprep.subr.mxu0 0.0
    %933 = vmatpush1.msra.mxu0 0.0
    %934 = vmatprep.subr.mxu0 0.0
    %935 = vmatpush1.msra.mxu0 0.0
    %936 = vmatprep.subr.mxu0 0.0
    %937 = vmatpush1.msra.mxu0 0.0
    %938 = vmatprep.subr.mxu0 0.0
    %939 = vmatpush1.msra.mxu0 0.0
    %940 = vmatprep.subr.mxu0 0.0
    %941 = vmatpush1.msra.mxu0 0.0
    %942 = vmatprep.subr.mxu0 0.0
    %943 = vmatpush1.msra.mxu0 0.0
    %944 = vmatprep.subr.mxu0 0.0
    %945 = vmatpush1.msra.mxu0 0.0
    %946 = vmatprep.subr.mxu0 0.0
    %947 = vmatpush1.msra.mxu0 0.0
    %948 = vmatprep.subr.mxu0 0.0
    %949 = vmatpush1.msra.mxu0 0.0
    %950 = vmatprep.subr.mxu0 0.0
    %951 = vmatpush1.msra.mxu0 0.0
    %952 = vmatprep.subr.mxu0 0.0
    %953 = vmatpush1.msra.mxu0 0.0
    %954 = vmatprep.subr.mxu0 0.0
    %955 = vmatpush1.msra.mxu0 0.0
    %956 = vmatprep.subr.mxu0 0.0
    %957 = vmatpush1.msra.mxu0 0.0
    %958 = vmatprep.subr.mxu0 0.0
    %959 = vmatpush1.msra.mxu0 0.0
    %960 = vmatprep.subr.mxu0 0.0
    %961 = vmatpush1.msra.mxu0 0.0
    %962 = vmatprep.subr.mxu0 0.0
    %963 = vmatpush1.msra.mxu0 0.0
    %964 = vmatprep.subr.mxu0 0.0
    %965 = vmatpush1.msra.mxu0 0.0
    %966 = vmatprep.subr.mxu0 0.0
    %967 = vmatpush1.msra.mxu0 0.0
    %968 = vmatprep.subr.mxu0 0.0
    %969 = vmatpush1.msra.mxu0 0.0
    %970 = vmatprep.subr.mxu0 0.0
    %971 = vmatpush1.msra.mxu0 0.0
    %972 = vmatprep.mubr.f32.mxu0 0.0
    %v973 = vand.u32 %v696, 4294901760
    %v974 = vsub.f32 %v696, %v973
    %975 = vmatmul.mubr.f32.gmra.mrb[0].mxu0 %v974
    %v976 = vpop.f32.mrb[0].mxu0
    %v977 = vadd.f32 %v889, %v976
    %v978 = vpop.f32.mrb[0].mxu0
    %979 = vdwg.mxu0
    %980 = vmatprep.subr.mxu0 0.0
    %v981 = vand.u32 %v632, 4294901760
    %982 = vmatpush1.msra.mxu0 %v981
    %983 = vmatprep.subr.mxu0 0.0
    %v984 = vand.u32 %v633, 4294901760
    %985 = vmatpush1.msra.mxu0 %v984
    %986 = vmatprep.subr.mxu0 0.0
    %v987 = vand.u32 %v634, 4294901760
    %988 = vmatpush1.msra.mxu0 %v987
    %989 = vmatprep.subr.mxu0 0.0
    %v990 = vand.u32 %v635, 4294901760
    %991 = vmatpush1.msra.mxu0 %v990
    %992 = vmatprep.subr.mxu0 0.0
    %v993 = vand.u32 %v636, 4294901760
    %994 = vmatpush1.msra.mxu0 %v993
    %995 = vmatprep.subr.mxu0 0.0
    %v996 = vand.u32 %v637, 4294901760
    %997 = vmatpush1.msra.mxu0 %v996
    %998 = vmatprep.subr.mxu0 0.0
    %v999 = vand.u32 %v638, 4294901760
    %1000 = vmatpush1.msra.mxu0 %v999
    %1001 = vmatprep.subr.mxu0 0.0
    %v1002 = vand.u32 %v639, 4294901760
    %1003 = vmatpush1.msra.mxu0 %v1002
    %1004 = vmatprep.subr.mxu0 0.0
    %1005 = vmatpush1.msra.mxu0 0.0
    %1006 = vmatprep.subr.mxu0 0.0
    %1007 = vmatpush1.msra.mxu0 0.0
    %1008 = vmatprep.subr.mxu0 0.0
    %1009 = vmatpush1.msra.mxu0 0.0
    %1010 = vmatprep.subr.mxu0 0.0
    %1011 = vmatpush1.msra.mxu0 0.0
    %1012 = vmatprep.subr.mxu0 0.0
    %1013 = vmatpush1.msra.mxu0 0.0
    %1014 = vmatprep.subr.mxu0 0.0
    %1015 = vmatpush1.msra.mxu0 0.0
    %1016 = vmatprep.subr.mxu0 0.0
    %1017 = vmatpush1.msra.mxu0 0.0
    %1018 = vmatprep.subr.mxu0 0.0
    %1019 = vmatpush1.msra.mxu0 0.0
    %1020 = vmatprep.subr.mxu0 0.0
    %1021 = vmatpush1.msra.mxu0 0.0
    %1022 = vmatprep.subr.mxu0 0.0
    %1023 = vmatpush1.msra.mxu0 0.0
    %1024 = vmatprep.subr.mxu0 0.0
    %1025 = vmatpush1.msra.mxu0 0.0
    %1026 = vmatprep.subr.mxu0 0.0
    %1027 = vmatpush1.msra.mxu0 0.0
    %1028 = vmatprep.subr.mxu0 0.0
    %1029 = vmatpush1.msra.mxu0 0.0
    %1030 = vmatprep.subr.mxu0 0.0
    %1031 = vmatpush1.msra.mxu0 0.0
    %1032 = vmatprep.subr.mxu0 0.0
    %1033 = vmatpush1.msra.mxu0 0.0
    %1034 = vmatprep.subr.mxu0 0.0
    %1035 = vmatpush1.msra.mxu0 0.0
    %1036 = vmatprep.subr.mxu0 0.0
    %1037 = vmatpush1.msra.mxu0 0.0
    %1038 = vmatprep.subr.mxu0 0.0
    %1039 = vmatpush1.msra.mxu0 0.0
    %1040 = vmatprep.subr.mxu0 0.0
    %1041 = vmatpush1.msra.mxu0 0.0
    %1042 = vmatprep.subr.mxu0 0.0
    %1043 = vmatpush1.msra.mxu0 0.0
    %1044 = vmatprep.subr.mxu0 0.0
    %1045 = vmatpush1.msra.mxu0 0.0
    %1046 = vmatprep.subr.mxu0 0.0
    %1047 = vmatpush1.msra.mxu0 0.0
    %1048 = vmatprep.subr.mxu0 0.0
    %1049 = vmatpush1.msra.mxu0 0.0
    %1050 = vmatprep.subr.mxu0 0.0
    %1051 = vmatpush1.msra.mxu0 0.0
    %1052 = vmatprep.mubr.f32.mxu0 0.0
    %v1053 = vand.u32 %v696, 4294901760
    %v1054 = vsub.f32 %v696, %v1053
    %v1055 = vand.u32 %v1054, 4294901760
    %1056 = vmatmul.mubr.f32.gmra.mrb[0].mxu0 %v1055
    %v1057 = vpop.f32.mrb[0].mxu0
    %v1058 = vadd.f32 %v977, %v1057
    %v1059 = vpop.f32.mrb[0].mxu0
    %1060 = vdwg.mxu0
    %1061 = vmatprep.subr.mxu0 0.0
    %v1062 = vand.u32 %v632, 4294901760
    %v1063 = vsub.f32 %v632, %v1062
    %v1064 = vand.u32 %v1063, 4294901760
    %1065 = vmatpush1.msra.mxu0 %v1064
    %1066 = vmatprep.subr.mxu0 0.0
    %v1067 = vand.u32 %v633, 4294901760
    %v1068 = vsub.f32 %v633, %v1067
    %v1069 = vand.u32 %v1068, 4294901760
    %1070 = vmatpush1.msra.mxu0 %v1069
    %1071 = vmatprep.subr.mxu0 0.0
    %v1072 = vand.u32 %v634, 4294901760
    %v1073 = vsub.f32 %v634, %v1072
    %v1074 = vand.u32 %v1073, 4294901760
    %1075 = vmatpush1.msra.mxu0 %v1074
    %1076 = vmatprep.subr.mxu0 0.0
    %v1077 = vand.u32 %v635, 4294901760
    %v1078 = vsub.f32 %v635, %v1077
    %v1079 = vand.u32 %v1078, 4294901760
    %1080 = vmatpush1.msra.mxu0 %v1079
    %1081 = vmatprep.subr.mxu0 0.0
    %v1082 = vand.u32 %v636, 4294901760
    %v1083 = vsub.f32 %v636, %v1082
    %v1084 = vand.u32 %v1083, 4294901760
    %1085 = vmatpush1.msra.mxu0 %v1084
    %1086 = vmatprep.subr.mxu0 0.0
    %v1087 = vand.u32 %v637, 4294901760
    %v1088 = vsub.f32 %v637, %v1087
    %v1089 = vand.u32 %v1088, 4294901760
    %1090 = vmatpush1.msra.mxu0 %v1089
    %1091 = vmatprep.subr.mxu0 0.0
    %v1092 = vand.u32 %v638, 4294901760
    %v1093 = vsub.f32 %v638, %v1092
    %v1094 = vand.u32 %v1093, 4294901760
    %1095 = vmatpush1.msra.mxu0 %v1094
    %1096 = vmatprep.subr.mxu0 0.0
    %v1097 = vand.u32 %v639, 4294901760
    %v1098 = vsub.f32 %v639, %v1097
    %v1099 = vand.u32 %v1098, 4294901760
    %1100 = vmatpush1.msra.mxu0 %v1099
    %1101 = vmatprep.subr.mxu0 0.0
    %1102 = vmatpush1.msra.mxu0 0.0
    %1103 = vmatprep.subr.mxu0 0.0
    %1104 = vmatpush1.msra.mxu0 0.0
    %1105 = vmatprep.subr.mxu0 0.0
    %1106 = vmatpush1.msra.mxu0 0.0
    %1107 = vmatprep.subr.mxu0 0.0
    %1108 = vmatpush1.msra.mxu0 0.0
    %1109 = vmatprep.subr.mxu0 0.0
    %1110 = vmatpush1.msra.mxu0 0.0
    %1111 = vmatprep.subr.mxu0 0.0
    %1112 = vmatpush1.msra.mxu0 0.0
    %1113 = vmatprep.subr.mxu0 0.0
    %1114 = vmatpush1.msra.mxu0 0.0
    %1115 = vmatprep.subr.mxu0 0.0
    %1116 = vmatpush1.msra.mxu0 0.0
    %1117 = vmatprep.subr.mxu0 0.0
    %1118 = vmatpush1.msra.mxu0 0.0
    %1119 = vmatprep.subr.mxu0 0.0
    %1120 = vmatpush1.msra.mxu0 0.0
    %1121 = vmatprep.subr.mxu0 0.0
    %1122 = vmatpush1.msra.mxu0 0.0
    %1123 = vmatprep.subr.mxu0 0.0
    %1124 = vmatpush1.msra.mxu0 0.0
    %1125 = vmatprep.subr.mxu0 0.0
    %1126 = vmatpush1.msra.mxu0 0.0
    %1127 = vmatprep.subr.mxu0 0.0
    %1128 = vmatpush1.msra.mxu0 0.0
    %1129 = vmatprep.subr.mxu0 0.0
    %1130 = vmatpush1.msra.mxu0 0.0
    %1131 = vmatprep.subr.mxu0 0.0
    %1132 = vmatpush1.msra.mxu0 0.0
    %1133 = vmatprep.subr.mxu0 0.0
    %1134 = vmatpush1.msra.mxu0 0.0
    %1135 = vmatprep.subr.mxu0 0.0
    %1136 = vmatpush1.msra.mxu0 0.0
    %1137 = vmatprep.subr.mxu0 0.0
    %1138 = vmatpush1.msra.mxu0 0.0
    %1139 = vmatprep.subr.mxu0 0.0
    %1140 = vmatpush1.msra.mxu0 0.0
    %1141 = vmatprep.subr.mxu0 0.0
    %1142 = vmatpush1.msra.mxu0 0.0
    %1143 = vmatprep.subr.mxu0 0.0
    %1144 = vmatpush1.msra.mxu0 0.0
    %1145 = vmatprep.subr.mxu0 0.0
    %1146 = vmatpush1.msra.mxu0 0.0
    %1147 = vmatprep.subr.mxu0 0.0
    %1148 = vmatpush1.msra.mxu0 0.0
    %1149 = vmatprep.mubr.f32.mxu0 0.0
    %v1150 = vand.u32 %v696, 4294901760
    %1151 = vmatmul.mubr.f32.gmra.mrb[0].mxu0 %v1150
    %v1152 = vpop.f32.mrb[0].mxu0
    %v1153 = vadd.f32 %v1058, %v1152
    %v1154 = vpop.f32.mrb[0].mxu0
    %1155 = vdwg.mxu0
    %1156 = vmatprep.subr.mxu0 0.0
    %v1157 = vand.u32 %v632, 4294901760
    %1158 = vmatpush1.msra.mxu0 %v1157
    %1159 = vmatprep.subr.mxu0 0.0
    %v1160 = vand.u32 %v633, 4294901760
    %1161 = vmatpush1.msra.mxu0 %v1160
    %1162 = vmatprep.subr.mxu0 0.0
    %v1163 = vand.u32 %v634, 4294901760
    %1164 = vmatpush1.msra.mxu0 %v1163
    %1165 = vmatprep.subr.mxu0 0.0
    %v1166 = vand.u32 %v635, 4294901760
    %1167 = vmatpush1.msra.mxu0 %v1166
    %1168 = vmatprep.subr.mxu0 0.0
    %v1169 = vand.u32 %v636, 4294901760
    %1170 = vmatpush1.msra.mxu0 %v1169
    %1171 = vmatprep.subr.mxu0 0.0
    %v1172 = vand.u32 %v637, 4294901760
    %1173 = vmatpush1.msra.mxu0 %v1172
    %1174 = vmatprep.subr.mxu0 0.0
    %v1175 = vand.u32 %v638, 4294901760
    %1176 = vmatpush1.msra.mxu0 %v1175
    %1177 = vmatprep.subr.mxu0 0.0
    %v1178 = vand.u32 %v639, 4294901760
    %1179 = vmatpush1.msra.mxu0 %v1178
    %1180 = vmatprep.subr.mxu0 0.0
    %1181 = vmatpush1.msra.mxu0 0.0
    %1182 = vmatprep.subr.mxu0 0.0
    %1183 = vmatpush1.msra.mxu0 0.0
    %1184 = vmatprep.subr.mxu0 0.0
    %1185 = vmatpush1.msra.mxu0 0.0
    %1186 = vmatprep.subr.mxu0 0.0
    %1187 = vmatpush1.msra.mxu0 0.0
    %1188 = vmatprep.subr.mxu0 0.0
    %1189 = vmatpush1.msra.mxu0 0.0
    %1190 = vmatprep.subr.mxu0 0.0
    %1191 = vmatpush1.msra.mxu0 0.0
    %1192 = vmatprep.subr.mxu0 0.0
    %1193 = vmatpush1.msra.mxu0 0.0
    %1194 = vmatprep.subr.mxu0 0.0
    %1195 = vmatpush1.msra.mxu0 0.0
    %1196 = vmatprep.subr.mxu0 0.0
    %1197 = vmatpush1.msra.mxu0 0.0
    %1198 = vmatprep.subr.mxu0 0.0
    %1199 = vmatpush1.msra.mxu0 0.0
    %1200 = vmatprep.subr.mxu0 0.0
    %1201 = vmatpush1.msra.mxu0 0.0
    %1202 = vmatprep.subr.mxu0 0.0
    %1203 = vmatpush1.msra.mxu0 0.0
    %1204 = vmatprep.subr.mxu0 0.0
    %1205 = vmatpush1.msra.mxu0 0.0
    %1206 = vmatprep.subr.mxu0 0.0
    %1207 = vmatpush1.msra.mxu0 0.0
    %1208 = vmatprep.subr.mxu0 0.0
    %1209 = vmatpush1.msra.mxu0 0.0
    %1210 = vmatprep.subr.mxu0 0.0
    %1211 = vmatpush1.msra.mxu0 0.0
    %1212 = vmatprep.subr.mxu0 0.0
    %1213 = vmatpush1.msra.mxu0 0.0
    %1214 = vmatprep.subr.mxu0 0.0
    %1215 = vmatpush1.msra.mxu0 0.0
    %1216 = vmatprep.subr.mxu0 0.0
    %1217 = vmatpush1.msra.mxu0 0.0
    %1218 = vmatprep.subr.mxu0 0.0
    %1219 = vmatpush1.msra.mxu0 0.0
    %1220 = vmatprep.subr.mxu0 0.0
    %1221 = vmatpush1.msra.mxu0 0.0
    %1222 = vmatprep.subr.mxu0 0.0
    %1223 = vmatpush1.msra.mxu0 0.0
    %1224 = vmatprep.subr.mxu0 0.0
    %1225 = vmatpush1.msra.mxu0 0.0
    %1226 = vmatprep.subr.mxu0 0.0
    %1227 = vmatpush1.msra.mxu0 0.0
    %1228 = vmatprep.mubr.f32.mxu0 0.0
    %v1229 = vand.u32 %v696, 4294901760
    %1230 = vmatmul.mubr.f32.gmra.mrb[0].mxu0 %v1229
    %v1231 = vpop.f32.mrb[0].mxu0
    %v1232 = vadd.f32 %v1153, %v1231
    %v1233 = vpop.f32.mrb[0].mxu0
    %1234 = vdwg.mxu0
    %v1235 = vsel %vm23, %v620, 0
    %1237 = vmatprep.subr.mxu0 0.0
    %v1238 = vand.u32 %v640, 4294901760
    %1239 = vmatpush1.msra.mxu0 %v1238
    %1240 = vmatprep.subr.mxu0 0.0
    %v1241 = vand.u32 %v641, 4294901760
    %1242 = vmatpush1.msra.mxu0 %v1241
    %1243 = vmatprep.subr.mxu0 0.0
    %v1244 = vand.u32 %v642, 4294901760
    %1245 = vmatpush1.msra.mxu0 %v1244
    %1246 = vmatprep.subr.mxu0 0.0
    %v1247 = vand.u32 %v643, 4294901760
    %1248 = vmatpush1.msra.mxu0 %v1247
    %1249 = vmatprep.subr.mxu0 0.0
    %v1250 = vand.u32 %v644, 4294901760
    %1251 = vmatpush1.msra.mxu0 %v1250
    %1252 = vmatprep.subr.mxu0 0.0
    %v1253 = vand.u32 %v645, 4294901760
    %1254 = vmatpush1.msra.mxu0 %v1253
    %1255 = vmatprep.subr.mxu0 0.0
    %v1256 = vand.u32 %v646, 4294901760
    %1257 = vmatpush1.msra.mxu0 %v1256
    %1258 = vmatprep.subr.mxu0 0.0
    %v1259 = vand.u32 %v647, 4294901760
    %1260 = vmatpush1.msra.mxu0 %v1259
    %1261 = vmatprep.subr.mxu0 0.0
    %1262 = vmatpush1.msra.mxu0 0.0
    %1263 = vmatprep.subr.mxu0 0.0
    %1264 = vmatpush1.msra.mxu0 0.0
    %1265 = vmatprep.subr.mxu0 0.0
    %1266 = vmatpush1.msra.mxu0 0.0
    %1267 = vmatprep.subr.mxu0 0.0
    %1268 = vmatpush1.msra.mxu0 0.0
    %1269 = vmatprep.subr.mxu0 0.0
    %1270 = vmatpush1.msra.mxu0 0.0
    %1271 = vmatprep.subr.mxu0 0.0
    %1272 = vmatpush1.msra.mxu0 0.0
    %1273 = vmatprep.subr.mxu0 0.0
    %1274 = vmatpush1.msra.mxu0 0.0
    %1275 = vmatprep.subr.mxu0 0.0
    %1276 = vmatpush1.msra.mxu0 0.0
    %1277 = vmatprep.subr.mxu0 0.0
    %1278 = vmatpush1.msra.mxu0 0.0
    %1279 = vmatprep.subr.mxu0 0.0
    %1280 = vmatpush1.msra.mxu0 0.0
    %1281 = vmatprep.subr.mxu0 0.0
    %1282 = vmatpush1.msra.mxu0 0.0
    %1283 = vmatprep.subr.mxu0 0.0
    %1284 = vmatpush1.msra.mxu0 0.0
    %1285 = vmatprep.subr.mxu0 0.0
    %1286 = vmatpush1.msra.mxu0 0.0
    %1287 = vmatprep.subr.mxu0 0.0
    %1288 = vmatpush1.msra.mxu0 0.0
    %1289 = vmatprep.subr.mxu0 0.0
    %1290 = vmatpush1.msra.mxu0 0.0
    %1291 = vmatprep.subr.mxu0 0.0
    %1292 = vmatpush1.msra.mxu0 0.0
    %1293 = vmatprep.subr.mxu0 0.0
    %1294 = vmatpush1.msra.mxu0 0.0
    %1295 = vmatprep.subr.mxu0 0.0
    %1296 = vmatpush1.msra.mxu0 0.0
    %1297 = vmatprep.subr.mxu0 0.0
    %1298 = vmatpush1.msra.mxu0 0.0
    %1299 = vmatprep.subr.mxu0 0.0
    %1300 = vmatpush1.msra.mxu0 0.0
    %1301 = vmatprep.subr.mxu0 0.0
    %1302 = vmatpush1.msra.mxu0 0.0
    %1303 = vmatprep.subr.mxu0 0.0
    %1304 = vmatpush1.msra.mxu0 0.0
    %1305 = vmatprep.subr.mxu0 0.0
    %1306 = vmatpush1.msra.mxu0 0.0
    %1307 = vmatprep.subr.mxu0 0.0
    %1308 = vmatpush1.msra.mxu0 0.0
    %1309 = vmatprep.mubr.f32.mxu0 0.0
    %v1310 = vand.u32 %v1235, 4294901760
    %v1311 = vsub.f32 %v1235, %v1310
    %v1312 = vand.u32 %v1311, 4294901760
    %v1313 = vsub.f32 %v1311, %v1312
    %v1314 = vand.u32 %v1313, 4294901760
    %1315 = vmatmul.mubr.f32.gmra.mrb[0].mxu0 %v1314
    %v1316 = vpop.f32.mrb[0].mxu0
    %v1317 = vadd.f32 0.0, %v1316
    %v1318 = vpop.f32.mrb[0].mxu0
    %1319 = vdwg.mxu0
    %1320 = vmatprep.subr.mxu0 0.0
    %v1321 = vand.u32 %v640, 4294901760
    %v1322 = vsub.f32 %v640, %v1321
    %v1323 = vand.u32 %v1322, 4294901760
    %v1324 = vsub.f32 %v1322, %v1323
    %v1325 = vand.u32 %v1324, 4294901760
    %1326 = vmatpush1.msra.mxu0 %v1325
    %1327 = vmatprep.subr.mxu0 0.0
    %v1328 = vand.u32 %v641, 4294901760
    %v1329 = vsub.f32 %v641, %v1328
    %v1330 = vand.u32 %v1329, 4294901760
    %v1331 = vsub.f32 %v1329, %v1330
    %v1332 = vand.u32 %v1331, 4294901760
    %1333 = vmatpush1.msra.mxu0 %v1332
    %1334 = vmatprep.subr.mxu0 0.0
    %v1335 = vand.u32 %v642, 4294901760
    %v1336 = vsub.f32 %v642, %v1335
    %v1337 = vand.u32 %v1336, 4294901760
    %v1338 = vsub.f32 %v1336, %v1337
    %v1339 = vand.u32 %v1338, 4294901760
    %1340 = vmatpush1.msra.mxu0 %v1339
    %1341 = vmatprep.subr.mxu0 0.0
    %v1342 = vand.u32 %v643, 4294901760
    %v1343 = vsub.f32 %v643, %v1342
    %v1344 = vand.u32 %v1343, 4294901760
    %v1345 = vsub.f32 %v1343, %v1344
    %v1346 = vand.u32 %v1345, 4294901760
    %1347 = vmatpush1.msra.mxu0 %v1346
    %1348 = vmatprep.subr.mxu0 0.0
    %v1349 = vand.u32 %v644, 4294901760
    %v1350 = vsub.f32 %v644, %v1349
    %v1351 = vand.u32 %v1350, 4294901760
    %v1352 = vsub.f32 %v1350, %v1351
    %v1353 = vand.u32 %v1352, 4294901760
    %1354 = vmatpush1.msra.mxu0 %v1353
    %1355 = vmatprep.subr.mxu0 0.0
    %v1356 = vand.u32 %v645, 4294901760
    %v1357 = vsub.f32 %v645, %v1356
    %v1358 = vand.u32 %v1357, 4294901760
    %v1359 = vsub.f32 %v1357, %v1358
    %v1360 = vand.u32 %v1359, 4294901760
    %1361 = vmatpush1.msra.mxu0 %v1360
    %1362 = vmatprep.subr.mxu0 0.0
    %v1363 = vand.u32 %v646, 4294901760
    %v1364 = vsub.f32 %v646, %v1363
    %v1365 = vand.u32 %v1364, 4294901760
    %v1366 = vsub.f32 %v1364, %v1365
    %v1367 = vand.u32 %v1366, 4294901760
    %1368 = vmatpush1.msra.mxu0 %v1367
    %1369 = vmatprep.subr.mxu0 0.0
    %v1370 = vand.u32 %v647, 4294901760
    %v1371 = vsub.f32 %v647, %v1370
    %v1372 = vand.u32 %v1371, 4294901760
    %v1373 = vsub.f32 %v1371, %v1372
    %v1374 = vand.u32 %v1373, 4294901760
    %1375 = vmatpush1.msra.mxu0 %v1374
    %1376 = vmatprep.subr.mxu0 0.0
    %1377 = vmatpush1.msra.mxu0 0.0
    %1378 = vmatprep.subr.mxu0 0.0
    %1379 = vmatpush1.msra.mxu0 0.0
    %1380 = vmatprep.subr.mxu0 0.0
    %1381 = vmatpush1.msra.mxu0 0.0
    %1382 = vmatprep.subr.mxu0 0.0
    %1383 = vmatpush1.msra.mxu0 0.0
    %1384 = vmatprep.subr.mxu0 0.0
    %1385 = vmatpush1.msra.mxu0 0.0
    %1386 = vmatprep.subr.mxu0 0.0
    %1387 = vmatpush1.msra.mxu0 0.0
    %1388 = vmatprep.subr.mxu0 0.0
    %1389 = vmatpush1.msra.mxu0 0.0
    %1390 = vmatprep.subr.mxu0 0.0
    %1391 = vmatpush1.msra.mxu0 0.0
    %1392 = vmatprep.subr.mxu0 0.0
    %1393 = vmatpush1.msra.mxu0 0.0
    %1394 = vmatprep.subr.mxu0 0.0
    %1395 = vmatpush1.msra.mxu0 0.0
    %1396 = vmatprep.subr.mxu0 0.0
    %1397 = vmatpush1.msra.mxu0 0.0
    %1398 = vmatprep.subr.mxu0 0.0
    %1399 = vmatpush1.msra.mxu0 0.0
    %1400 = vmatprep.subr.mxu0 0.0
    %1401 = vmatpush1.msra.mxu0 0.0
    %1402 = vmatprep.subr.mxu0 0.0
    %1403 = vmatpush1.msra.mxu0 0.0
    %1404 = vmatprep.subr.mxu0 0.0
    %1405 = vmatpush1.msra.mxu0 0.0
    %1406 = vmatprep.subr.mxu0 0.0
    %1407 = vmatpush1.msra.mxu0 0.0
    %1408 = vmatprep.subr.mxu0 0.0
    %1409 = vmatpush1.msra.mxu0 0.0
    %1410 = vmatprep.subr.mxu0 0.0
    %1411 = vmatpush1.msra.mxu0 0.0
    %1412 = vmatprep.subr.mxu0 0.0
    %1413 = vmatpush1.msra.mxu0 0.0
    %1414 = vmatprep.subr.mxu0 0.0
    %1415 = vmatpush1.msra.mxu0 0.0
    %1416 = vmatprep.subr.mxu0 0.0
    %1417 = vmatpush1.msra.mxu0 0.0
    %1418 = vmatprep.subr.mxu0 0.0
    %1419 = vmatpush1.msra.mxu0 0.0
    %1420 = vmatprep.subr.mxu0 0.0
    %1421 = vmatpush1.msra.mxu0 0.0
    %1422 = vmatprep.subr.mxu0 0.0
    %1423 = vmatpush1.msra.mxu0 0.0
    %1424 = vmatprep.mubr.f32.mxu0 0.0
    %v1425 = vand.u32 %v1235, 4294901760
    %1426 = vmatmul.mubr.f32.gmra.mrb[0].mxu0 %v1425
    %v1427 = vpop.f32.mrb[0].mxu0
    %v1428 = vadd.f32 %v1317, %v1427
    %v1429 = vpop.f32.mrb[0].mxu0
    %1430 = vdwg.mxu0
    %1431 = vmatprep.subr.mxu0 0.0
    %v1432 = vand.u32 %v640, 4294901760
    %v1433 = vsub.f32 %v640, %v1432
    %1434 = vmatpush1.msra.mxu0 %v1433
    %1435 = vmatprep.subr.mxu0 0.0
    %v1436 = vand.u32 %v641, 4294901760
    %v1437 = vsub.f32 %v641, %v1436
    %1438 = vmatpush1.msra.mxu0 %v1437
    %1439 = vmatprep.subr.mxu0 0.0
    %v1440 = vand.u32 %v642, 4294901760
    %v1441 = vsub.f32 %v642, %v1440
    %1442 = vmatpush1.msra.mxu0 %v1441
    %1443 = vmatprep.subr.mxu0 0.0
    %v1444 = vand.u32 %v643, 4294901760
    %v1445 = vsub.f32 %v643, %v1444
    %1446 = vmatpush1.msra.mxu0 %v1445
    %1447 = vmatprep.subr.mxu0 0.0
    %v1448 = vand.u32 %v644, 4294901760
    %v1449 = vsub.f32 %v644, %v1448
    %1450 = vmatpush1.msra.mxu0 %v1449
    %1451 = vmatprep.subr.mxu0 0.0
    %v1452 = vand.u32 %v645, 4294901760
    %v1453 = vsub.f32 %v645, %v1452
    %1454 = vmatpush1.msra.mxu0 %v1453
    %1455 = vmatprep.subr.mxu0 0.0
    %v1456 = vand.u32 %v646, 4294901760
    %v1457 = vsub.f32 %v646, %v1456
    %1458 = vmatpush1.msra.mxu0 %v1457
    %1459 = vmatprep.subr.mxu0 0.0
    %v1460 = vand.u32 %v647, 4294901760
    %v1461 = vsub.f32 %v647, %v1460
    %1462 = vmatpush1.msra.mxu0 %v1461
    %1463 = vmatprep.subr.mxu0 0.0
    %1464 = vmatpush1.msra.mxu0 0.0
    %1465 = vmatprep.subr.mxu0 0.0
    %1466 = vmatpush1.msra.mxu0 0.0
    %1467 = vmatprep.subr.mxu0 0.0
    %1468 = vmatpush1.msra.mxu0 0.0
    %1469 = vmatprep.subr.mxu0 0.0
    %1470 = vmatpush1.msra.mxu0 0.0
    %1471 = vmatprep.subr.mxu0 0.0
    %1472 = vmatpush1.msra.mxu0 0.0
    %1473 = vmatprep.subr.mxu0 0.0
    %1474 = vmatpush1.msra.mxu0 0.0
    %1475 = vmatprep.subr.mxu0 0.0
    %1476 = vmatpush1.msra.mxu0 0.0
    %1477 = vmatprep.subr.mxu0 0.0
    %1478 = vmatpush1.msra.mxu0 0.0
    %1479 = vmatprep.subr.mxu0 0.0
    %1480 = vmatpush1.msra.mxu0 0.0
    %1481 = vmatprep.subr.mxu0 0.0
    %1482 = vmatpush1.msra.mxu0 0.0
    %1483 = vmatprep.subr.mxu0 0.0
    %1484 = vmatpush1.msra.mxu0 0.0
    %1485 = vmatprep.subr.mxu0 0.0
    %1486 = vmatpush1.msra.mxu0 0.0
    %1487 = vmatprep.subr.mxu0 0.0
    %1488 = vmatpush1.msra.mxu0 0.0
    %1489 = vmatprep.subr.mxu0 0.0
    %1490 = vmatpush1.msra.mxu0 0.0
    %1491 = vmatprep.subr.mxu0 0.0
    %1492 = vmatpush1.msra.mxu0 0.0
    %1493 = vmatprep.subr.mxu0 0.0
    %1494 = vmatpush1.msra.mxu0 0.0
    %1495 = vmatprep.subr.mxu0 0.0
    %1496 = vmatpush1.msra.mxu0 0.0
    %1497 = vmatprep.subr.mxu0 0.0
    %1498 = vmatpush1.msra.mxu0 0.0
    %1499 = vmatprep.subr.mxu0 0.0
    %1500 = vmatpush1.msra.mxu0 0.0
    %1501 = vmatprep.subr.mxu0 0.0
    %1502 = vmatpush1.msra.mxu0 0.0
    %1503 = vmatprep.subr.mxu0 0.0
    %1504 = vmatpush1.msra.mxu0 0.0
    %1505 = vmatprep.subr.mxu0 0.0
    %1506 = vmatpush1.msra.mxu0 0.0
    %1507 = vmatprep.subr.mxu0 0.0
    %1508 = vmatpush1.msra.mxu0 0.0
    %1509 = vmatprep.subr.mxu0 0.0
    %1510 = vmatpush1.msra.mxu0 0.0
    %1511 = vmatprep.mubr.f32.mxu0 0.0
    %v1512 = vand.u32 %v1235, 4294901760
    %v1513 = vsub.f32 %v1235, %v1512
    %1514 = vmatmul.mubr.f32.gmra.mrb[0].mxu0 %v1513
    %v1515 = vpop.f32.mrb[0].mxu0
    %v1516 = vadd.f32 %v1428, %v1515
    %v1517 = vpop.f32.mrb[0].mxu0
    %1518 = vdwg.mxu0
    %1519 = vmatprep.subr.mxu0 0.0
    %v1520 = vand.u32 %v640, 4294901760
    %1521 = vmatpush1.msra.mxu0 %v1520
    %1522 = vmatprep.subr.mxu0 0.0
    %v1523 = vand.u32 %v641, 4294901760
    %1524 = vmatpush1.msra.mxu0 %v1523
    %1525 = vmatprep.subr.mxu0 0.0
    %v1526 = vand.u32 %v642, 4294901760
    %1527 = vmatpush1.msra.mxu0 %v1526
    %1528 = vmatprep.subr.mxu0 0.0
    %v1529 = vand.u32 %v643, 4294901760
    %1530 = vmatpush1.msra.mxu0 %v1529
    %1531 = vmatprep.subr.mxu0 0.0
    %v1532 = vand.u32 %v644, 4294901760
    %1533 = vmatpush1.msra.mxu0 %v1532
    %1534 = vmatprep.subr.mxu0 0.0
    %v1535 = vand.u32 %v645, 4294901760
    %1536 = vmatpush1.msra.mxu0 %v1535
    %1537 = vmatprep.subr.mxu0 0.0
    %v1538 = vand.u32 %v646, 4294901760
    %1539 = vmatpush1.msra.mxu0 %v1538
    %1540 = vmatprep.subr.mxu0 0.0
    %v1541 = vand.u32 %v647, 4294901760
    %1542 = vmatpush1.msra.mxu0 %v1541
    %1543 = vmatprep.subr.mxu0 0.0
    %1544 = vmatpush1.msra.mxu0 0.0
    %1545 = vmatprep.subr.mxu0 0.0
    %1546 = vmatpush1.msra.mxu0 0.0
    %1547 = vmatprep.subr.mxu0 0.0
    %1548 = vmatpush1.msra.mxu0 0.0
    %1549 = vmatprep.subr.mxu0 0.0
    %1550 = vmatpush1.msra.mxu0 0.0
    %1551 = vmatprep.subr.mxu0 0.0
    %1552 = vmatpush1.msra.mxu0 0.0
    %1553 = vmatprep.subr.mxu0 0.0
    %1554 = vmatpush1.msra.mxu0 0.0
    %1555 = vmatprep.subr.mxu0 0.0
    %1556 = vmatpush1.msra.mxu0 0.0
    %1557 = vmatprep.subr.mxu0 0.0
    %1558 = vmatpush1.msra.mxu0 0.0
    %1559 = vmatprep.subr.mxu0 0.0
    %1560 = vmatpush1.msra.mxu0 0.0
    %1561 = vmatprep.subr.mxu0 0.0
    %1562 = vmatpush1.msra.mxu0 0.0
    %1563 = vmatprep.subr.mxu0 0.0
    %1564 = vmatpush1.msra.mxu0 0.0
    %1565 = vmatprep.subr.mxu0 0.0
    %1566 = vmatpush1.msra.mxu0 0.0
    %1567 = vmatprep.subr.mxu0 0.0
    %1568 = vmatpush1.msra.mxu0 0.0
    %1569 = vmatprep.subr.mxu0 0.0
    %1570 = vmatpush1.msra.mxu0 0.0
    %1571 = vmatprep.subr.mxu0 0.0
    %1572 = vmatpush1.msra.mxu0 0.0
    %1573 = vmatprep.subr.mxu0 0.0
    %1574 = vmatpush1.msra.mxu0 0.0
    %1575 = vmatprep.subr.mxu0 0.0
    %1576 = vmatpush1.msra.mxu0 0.0
    %1577 = vmatprep.subr.mxu0 0.0
    %1578 = vmatpush1.msra.mxu0 0.0
    %1579 = vmatprep.subr.mxu0 0.0
    %1580 = vmatpush1.msra.mxu0 0.0
    %1581 = vmatprep.subr.mxu0 0.0
    %1582 = vmatpush1.msra.mxu0 0.0
    %1583 = vmatprep.subr.mxu0 0.0
    %1584 = vmatpush1.msra.mxu0 0.0
    %1585 = vmatprep.subr.mxu0 0.0
    %1586 = vmatpush1.msra.mxu0 0.0
    %1587 = vmatprep.subr.mxu0 0.0
    %1588 = vmatpush1.msra.mxu0 0.0
    %1589 = vmatprep.subr.mxu0 0.0
    %1590 = vmatpush1.msra.mxu0 0.0
    %1591 = vmatprep.mubr.f32.mxu0 0.0
    %v1592 = vand.u32 %v1235, 4294901760
    %v1593 = vsub.f32 %v1235, %v1592
    %v1594 = vand.u32 %v1593, 4294901760
    %1595 = vmatmul.mubr.f32.gmra.mrb[0].mxu0 %v1594
    %v1596 = vpop.f32.mrb[0].mxu0
    %v1597 = vadd.f32 %v1516, %v1596
    %v1598 = vpop.f32.mrb[0].mxu0
    %1599 = vdwg.mxu0
    %1600 = vmatprep.subr.mxu0 0.0
    %v1601 = vand.u32 %v640, 4294901760
    %v1602 = vsub.f32 %v640, %v1601
    %v1603 = vand.u32 %v1602, 4294901760
    %1604 = vmatpush1.msra.mxu0 %v1603
    %1605 = vmatprep.subr.mxu0 0.0
    %v1606 = vand.u32 %v641, 4294901760
    %v1607 = vsub.f32 %v641, %v1606
    %v1608 = vand.u32 %v1607, 4294901760
    %1609 = vmatpush1.msra.mxu0 %v1608
    %1610 = vmatprep.subr.mxu0 0.0
    %v1611 = vand.u32 %v642, 4294901760
    %v1612 = vsub.f32 %v642, %v1611
    %v1613 = vand.u32 %v1612, 4294901760
    %1614 = vmatpush1.msra.mxu0 %v1613
    %1615 = vmatprep.subr.mxu0 0.0
    %v1616 = vand.u32 %v643, 4294901760
    %v1617 = vsub.f32 %v643, %v1616
    %v1618 = vand.u32 %v1617, 4294901760
    %1619 = vmatpush1.msra.mxu0 %v1618
    %1620 = vmatprep.subr.mxu0 0.0
    %v1621 = vand.u32 %v644, 4294901760
    %v1622 = vsub.f32 %v644, %v1621
    %v1623 = vand.u32 %v1622, 4294901760
    %1624 = vmatpush1.msra.mxu0 %v1623
    %1625 = vmatprep.subr.mxu0 0.0
    %v1626 = vand.u32 %v645, 4294901760
    %v1627 = vsub.f32 %v645, %v1626
    %v1628 = vand.u32 %v1627, 4294901760
    %1629 = vmatpush1.msra.mxu0 %v1628
    %1630 = vmatprep.subr.mxu0 0.0
    %v1631 = vand.u32 %v646, 4294901760
    %v1632 = vsub.f32 %v646, %v1631
    %v1633 = vand.u32 %v1632, 4294901760
    %1634 = vmatpush1.msra.mxu0 %v1633
    %1635 = vmatprep.subr.mxu0 0.0
    %v1636 = vand.u32 %v647, 4294901760
    %v1637 = vsub.f32 %v647, %v1636
    %v1638 = vand.u32 %v1637, 4294901760
    %1639 = vmatpush1.msra.mxu0 %v1638
    %1640 = vmatprep.subr.mxu0 0.0
    %1641 = vmatpush1.msra.mxu0 0.0
    %1642 = vmatprep.subr.mxu0 0.0
    %1643 = vmatpush1.msra.mxu0 0.0
    %1644 = vmatprep.subr.mxu0 0.0
    %1645 = vmatpush1.msra.mxu0 0.0
    %1646 = vmatprep.subr.mxu0 0.0
    %1647 = vmatpush1.msra.mxu0 0.0
    %1648 = vmatprep.subr.mxu0 0.0
    %1649 = vmatpush1.msra.mxu0 0.0
    %1650 = vmatprep.subr.mxu0 0.0
    %1651 = vmatpush1.msra.mxu0 0.0
    %1652 = vmatprep.subr.mxu0 0.0
    %1653 = vmatpush1.msra.mxu0 0.0
    %1654 = vmatprep.subr.mxu0 0.0
    %1655 = vmatpush1.msra.mxu0 0.0
    %1656 = vmatprep.subr.mxu0 0.0
    %1657 = vmatpush1.msra.mxu0 0.0
    %1658 = vmatprep.subr.mxu0 0.0
    %1659 = vmatpush1.msra.mxu0 0.0
    %1660 = vmatprep.subr.mxu0 0.0
    %1661 = vmatpush1.msra.mxu0 0.0
    %1662 = vmatprep.subr.mxu0 0.0
    %1663 = vmatpush1.msra.mxu0 0.0
    %1664 = vmatprep.subr.mxu0 0.0
    %1665 = vmatpush1.msra.mxu0 0.0
    %1666 = vmatprep.subr.mxu0 0.0
    %1667 = vmatpush1.msra.mxu0 0.0
    %1668 = vmatprep.subr.mxu0 0.0
    %1669 = vmatpush1.msra.mxu0 0.0
    %1670 = vmatprep.subr.mxu0 0.0
    %1671 = vmatpush1.msra.mxu0 0.0
    %1672 = vmatprep.subr.mxu0 0.0
    %1673 = vmatpush1.msra.mxu0 0.0
    %1674 = vmatprep.subr.mxu0 0.0
    %1675 = vmatpush1.msra.mxu0 0.0
    %1676 = vmatprep.subr.mxu0 0.0
    %1677 = vmatpush1.msra.mxu0 0.0
    %1678 = vmatprep.subr.mxu0 0.0
    %1679 = vmatpush1.msra.mxu0 0.0
    %1680 = vmatprep.subr.mxu0 0.0
    %1681 = vmatpush1.msra.mxu0 0.0
    %1682 = vmatprep.subr.mxu0 0.0
    %1683 = vmatpush1.msra.mxu0 0.0
    %1684 = vmatprep.subr.mxu0 0.0
    %1685 = vmatpush1.msra.mxu0 0.0
    %1686 = vmatprep.subr.mxu0 0.0
    %1687 = vmatpush1.msra.mxu0 0.0
    %1688 = vmatprep.mubr.f32.mxu0 0.0
    %v1689 = vand.u32 %v1235, 4294901760
    %1690 = vmatmul.mubr.f32.gmra.mrb[0].mxu0 %v1689
    %v1691 = vpop.f32.mrb[0].mxu0
    %v1692 = vadd.f32 %v1597, %v1691
    %v1693 = vpop.f32.mrb[0].mxu0
    %1694 = vdwg.mxu0
    %1695 = vmatprep.subr.mxu0 0.0
    %v1696 = vand.u32 %v640, 4294901760
    %1697 = vmatpush1.msra.mxu0 %v1696
    %1698 = vmatprep.subr.mxu0 0.0
    %v1699 = vand.u32 %v641, 4294901760
    %1700 = vmatpush1.msra.mxu0 %v1699
    %1701 = vmatprep.subr.mxu0 0.0
    %v1702 = vand.u32 %v642, 4294901760
    %1703 = vmatpush1.msra.mxu0 %v1702
    %1704 = vmatprep.subr.mxu0 0.0
    %v1705 = vand.u32 %v643, 4294901760
    %1706 = vmatpush1.msra.mxu0 %v1705
    %1707 = vmatprep.subr.mxu0 0.0
    %v1708 = vand.u32 %v644, 4294901760
    %1709 = vmatpush1.msra.mxu0 %v1708
    %1710 = vmatprep.subr.mxu0 0.0
    %v1711 = vand.u32 %v645, 4294901760
    %1712 = vmatpush1.msra.mxu0 %v1711
    %1713 = vmatprep.subr.mxu0 0.0
    %v1714 = vand.u32 %v646, 4294901760
    %1715 = vmatpush1.msra.mxu0 %v1714
    %1716 = vmatprep.subr.mxu0 0.0
    %v1717 = vand.u32 %v647, 4294901760
    %1718 = vmatpush1.msra.mxu0 %v1717
    %1719 = vmatprep.subr.mxu0 0.0
    %1720 = vmatpush1.msra.mxu0 0.0
    %1721 = vmatprep.subr.mxu0 0.0
    %1722 = vmatpush1.msra.mxu0 0.0
    %1723 = vmatprep.subr.mxu0 0.0
    %1724 = vmatpush1.msra.mxu0 0.0
    %1725 = vmatprep.subr.mxu0 0.0
    %1726 = vmatpush1.msra.mxu0 0.0
    %1727 = vmatprep.subr.mxu0 0.0
    %1728 = vmatpush1.msra.mxu0 0.0
    %1729 = vmatprep.subr.mxu0 0.0
    %1730 = vmatpush1.msra.mxu0 0.0
    %1731 = vmatprep.subr.mxu0 0.0
    %1732 = vmatpush1.msra.mxu0 0.0
    %1733 = vmatprep.subr.mxu0 0.0
    %1734 = vmatpush1.msra.mxu0 0.0
    %1735 = vmatprep.subr.mxu0 0.0
    %1736 = vmatpush1.msra.mxu0 0.0
    %1737 = vmatprep.subr.mxu0 0.0
    %1738 = vmatpush1.msra.mxu0 0.0
    %1739 = vmatprep.subr.mxu0 0.0
    %1740 = vmatpush1.msra.mxu0 0.0
    %1741 = vmatprep.subr.mxu0 0.0
    %1742 = vmatpush1.msra.mxu0 0.0
    %1743 = vmatprep.subr.mxu0 0.0
    %1744 = vmatpush1.msra.mxu0 0.0
    %1745 = vmatprep.subr.mxu0 0.0
    %1746 = vmatpush1.msra.mxu0 0.0
    %1747 = vmatprep.subr.mxu0 0.0
    %1748 = vmatpush1.msra.mxu0 0.0
    %1749 = vmatprep.subr.mxu0 0.0
    %1750 = vmatpush1.msra.mxu0 0.0
    %1751 = vmatprep.subr.mxu0 0.0
    %1752 = vmatpush1.msra.mxu0 0.0
    %1753 = vmatprep.subr.mxu0 0.0
    %1754 = vmatpush1.msra.mxu0 0.0
    %1755 = vmatprep.subr.mxu0 0.0
    %1756 = vmatpush1.msra.mxu0 0.0
    %1757 = vmatprep.subr.mxu0 0.0
    %1758 = vmatpush1.msra.mxu0 0.0
    %1759 = vmatprep.subr.mxu0 0.0
    %1760 = vmatpush1.msra.mxu0 0.0
    %1761 = vmatprep.subr.mxu0 0.0
    %1762 = vmatpush1.msra.mxu0 0.0
    %1763 = vmatprep.subr.mxu0 0.0
    %1764 = vmatpush1.msra.mxu0 0.0
    %1765 = vmatprep.subr.mxu0 0.0
    %1766 = vmatpush1.msra.mxu0 0.0
    %1767 = vmatprep.mubr.f32.mxu0 0.0
    %v1768 = vand.u32 %v1235, 4294901760
    %1769 = vmatmul.mubr.f32.gmra.mrb[0].mxu0 %v1768
    %v1770 = vpop.f32.mrb[0].mxu0
    %v1771 = vadd.f32 %v1692, %v1770
    %v1772 = vpop.f32.mrb[0].mxu0
    %1773 = vdwg.mxu0
    %v1774 = vsel %vm23, %v628, 0
    %1776 = vmatprep.subr.mxu0 0.0
    %v1777 = vand.u32 %v648, 4294901760
    %1778 = vmatpush1.msra.mxu0 %v1777
    %1779 = vmatprep.subr.mxu0 0.0
    %v1780 = vand.u32 %v649, 4294901760
    %1781 = vmatpush1.msra.mxu0 %v1780
    %1782 = vmatprep.subr.mxu0 0.0
    %v1783 = vand.u32 %v650, 4294901760
    %1784 = vmatpush1.msra.mxu0 %v1783
    %1785 = vmatprep.subr.mxu0 0.0
    %v1786 = vand.u32 %v651, 4294901760
    %1787 = vmatpush1.msra.mxu0 %v1786
    %1788 = vmatprep.subr.mxu0 0.0
    %v1789 = vand.u32 %v652, 4294901760
    %1790 = vmatpush1.msra.mxu0 %v1789
    %1791 = vmatprep.subr.mxu0 0.0
    %v1792 = vand.u32 %v653, 4294901760
    %1793 = vmatpush1.msra.mxu0 %v1792
    %1794 = vmatprep.subr.mxu0 0.0
    %v1795 = vand.u32 %v654, 4294901760
    %1796 = vmatpush1.msra.mxu0 %v1795
    %1797 = vmatprep.subr.mxu0 0.0
    %v1798 = vand.u32 %v655, 4294901760
    %1799 = vmatpush1.msra.mxu0 %v1798
    %1800 = vmatprep.subr.mxu0 0.0
    %1801 = vmatpush1.msra.mxu0 0.0
    %1802 = vmatprep.subr.mxu0 0.0
    %1803 = vmatpush1.msra.mxu0 0.0
    %1804 = vmatprep.subr.mxu0 0.0
    %1805 = vmatpush1.msra.mxu0 0.0
    %1806 = vmatprep.subr.mxu0 0.0
    %1807 = vmatpush1.msra.mxu0 0.0
    %1808 = vmatprep.subr.mxu0 0.0
    %1809 = vmatpush1.msra.mxu0 0.0
    %1810 = vmatprep.subr.mxu0 0.0
    %1811 = vmatpush1.msra.mxu0 0.0
    %1812 = vmatprep.subr.mxu0 0.0
    %1813 = vmatpush1.msra.mxu0 0.0
    %1814 = vmatprep.subr.mxu0 0.0
    %1815 = vmatpush1.msra.mxu0 0.0
    %1816 = vmatprep.subr.mxu0 0.0
    %1817 = vmatpush1.msra.mxu0 0.0
    %1818 = vmatprep.subr.mxu0 0.0
    %1819 = vmatpush1.msra.mxu0 0.0
    %1820 = vmatprep.subr.mxu0 0.0
    %1821 = vmatpush1.msra.mxu0 0.0
    %1822 = vmatprep.subr.mxu0 0.0
    %1823 = vmatpush1.msra.mxu0 0.0
    %1824 = vmatprep.subr.mxu0 0.0
    %1825 = vmatpush1.msra.mxu0 0.0
    %1826 = vmatprep.subr.mxu0 0.0
    %1827 = vmatpush1.msra.mxu0 0.0
    %1828 = vmatprep.subr.mxu0 0.0
    %1829 = vmatpush1.msra.mxu0 0.0
    %1830 = vmatprep.subr.mxu0 0.0
    %1831 = vmatpush1.msra.mxu0 0.0
    %1832 = vmatprep.subr.mxu0 0.0
    %1833 = vmatpush1.msra.mxu0 0.0
    %1834 = vmatprep.subr.mxu0 0.0
    %1835 = vmatpush1.msra.mxu0 0.0
    %1836 = vmatprep.subr.mxu0 0.0
    %1837 = vmatpush1.msra.mxu0 0.0
    %1838 = vmatprep.subr.mxu0 0.0
    %1839 = vmatpush1.msra.mxu0 0.0
    %1840 = vmatprep.subr.mxu0 0.0
    %1841 = vmatpush1.msra.mxu0 0.0
    %1842 = vmatprep.subr.mxu0 0.0
    %1843 = vmatpush1.msra.mxu0 0.0
    %1844 = vmatprep.subr.mxu0 0.0
    %1845 = vmatpush1.msra.mxu0 0.0
    %1846 = vmatprep.subr.mxu0 0.0
    %1847 = vmatpush1.msra.mxu0 0.0
    %1848 = vmatprep.mubr.f32.mxu0 0.0
    %v1849 = vand.u32 %v1774, 4294901760
    %v1850 = vsub.f32 %v1774, %v1849
    %v1851 = vand.u32 %v1850, 4294901760
    %v1852 = vsub.f32 %v1850, %v1851
    %v1853 = vand.u32 %v1852, 4294901760
    %1854 = vmatmul.mubr.f32.gmra.mrb[0].mxu0 %v1853
    %v1855 = vpop.f32.mrb[0].mxu0
    %v1856 = vadd.f32 0.0, %v1855
    %v1857 = vpop.f32.mrb[0].mxu0
    %1858 = vdwg.mxu0
    %1859 = vmatprep.subr.mxu0 0.0
    %v1860 = vand.u32 %v648, 4294901760
    %v1861 = vsub.f32 %v648, %v1860
    %v1862 = vand.u32 %v1861, 4294901760
    %v1863 = vsub.f32 %v1861, %v1862
    %v1864 = vand.u32 %v1863, 4294901760
    %1865 = vmatpush1.msra.mxu0 %v1864
    %1866 = vmatprep.subr.mxu0 0.0
    %v1867 = vand.u32 %v649, 4294901760
    %v1868 = vsub.f32 %v649, %v1867
    %v1869 = vand.u32 %v1868, 4294901760
    %v1870 = vsub.f32 %v1868, %v1869
    %v1871 = vand.u32 %v1870, 4294901760
    %1872 = vmatpush1.msra.mxu0 %v1871
    %1873 = vmatprep.subr.mxu0 0.0
    %v1874 = vand.u32 %v650, 4294901760
    %v1875 = vsub.f32 %v650, %v1874
    %v1876 = vand.u32 %v1875, 4294901760
    %v1877 = vsub.f32 %v1875, %v1876
    %v1878 = vand.u32 %v1877, 4294901760
    %1879 = vmatpush1.msra.mxu0 %v1878
    %1880 = vmatprep.subr.mxu0 0.0
    %v1881 = vand.u32 %v651, 4294901760
    %v1882 = vsub.f32 %v651, %v1881
    %v1883 = vand.u32 %v1882, 4294901760
    %v1884 = vsub.f32 %v1882, %v1883
    %v1885 = vand.u32 %v1884, 4294901760
    %1886 = vmatpush1.msra.mxu0 %v1885
    %1887 = vmatprep.subr.mxu0 0.0
    %v1888 = vand.u32 %v652, 4294901760
    %v1889 = vsub.f32 %v652, %v1888
    %v1890 = vand.u32 %v1889, 4294901760
    %v1891 = vsub.f32 %v1889, %v1890
    %v1892 = vand.u32 %v1891, 4294901760
    %1893 = vmatpush1.msra.mxu0 %v1892
    %1894 = vmatprep.subr.mxu0 0.0
    %v1895 = vand.u32 %v653, 4294901760
    %v1896 = vsub.f32 %v653, %v1895
    %v1897 = vand.u32 %v1896, 4294901760
    %v1898 = vsub.f32 %v1896, %v1897
    %v1899 = vand.u32 %v1898, 4294901760
    %1900 = vmatpush1.msra.mxu0 %v1899
    %1901 = vmatprep.subr.mxu0 0.0
    %v1902 = vand.u32 %v654, 4294901760
    %v1903 = vsub.f32 %v654, %v1902
    %v1904 = vand.u32 %v1903, 4294901760
    %v1905 = vsub.f32 %v1903, %v1904
    %v1906 = vand.u32 %v1905, 4294901760
    %1907 = vmatpush1.msra.mxu0 %v1906
    %1908 = vmatprep.subr.mxu0 0.0
    %v1909 = vand.u32 %v655, 4294901760
    %v1910 = vsub.f32 %v655, %v1909
    %v1911 = vand.u32 %v1910, 4294901760
    %v1912 = vsub.f32 %v1910, %v1911
    %v1913 = vand.u32 %v1912, 4294901760
    %1914 = vmatpush1.msra.mxu0 %v1913
    %1915 = vmatprep.subr.mxu0 0.0
    %1916 = vmatpush1.msra.mxu0 0.0
    %1917 = vmatprep.subr.mxu0 0.0
    %1918 = vmatpush1.msra.mxu0 0.0
    %1919 = vmatprep.subr.mxu0 0.0
    %1920 = vmatpush1.msra.mxu0 0.0
    %1921 = vmatprep.subr.mxu0 0.0
    %1922 = vmatpush1.msra.mxu0 0.0
    %1923 = vmatprep.subr.mxu0 0.0
    %1924 = vmatpush1.msra.mxu0 0.0
    %1925 = vmatprep.subr.mxu0 0.0
    %1926 = vmatpush1.msra.mxu0 0.0
    %1927 = vmatprep.subr.mxu0 0.0
    %1928 = vmatpush1.msra.mxu0 0.0
    %1929 = vmatprep.subr.mxu0 0.0
    %1930 = vmatpush1.msra.mxu0 0.0
    %1931 = vmatprep.subr.mxu0 0.0
    %1932 = vmatpush1.msra.mxu0 0.0
    %1933 = vmatprep.subr.mxu0 0.0
    %1934 = vmatpush1.msra.mxu0 0.0
    %1935 = vmatprep.subr.mxu0 0.0
    %1936 = vmatpush1.msra.mxu0 0.0
    %1937 = vmatprep.subr.mxu0 0.0
    %1938 = vmatpush1.msra.mxu0 0.0
    %1939 = vmatprep.subr.mxu0 0.0
    %1940 = vmatpush1.msra.mxu0 0.0
    %1941 = vmatprep.subr.mxu0 0.0
    %1942 = vmatpush1.msra.mxu0 0.0
    %1943 = vmatprep.subr.mxu0 0.0
    %1944 = vmatpush1.msra.mxu0 0.0
    %1945 = vmatprep.subr.mxu0 0.0
    %1946 = vmatpush1.msra.mxu0 0.0
    %1947 = vmatprep.subr.mxu0 0.0
    %1948 = vmatpush1.msra.mxu0 0.0
    %1949 = vmatprep.subr.mxu0 0.0
    %1950 = vmatpush1.msra.mxu0 0.0
    %1951 = vmatprep.subr.mxu0 0.0
    %1952 = vmatpush1.msra.mxu0 0.0
    %1953 = vmatprep.subr.mxu0 0.0
    %1954 = vmatpush1.msra.mxu0 0.0
    %1955 = vmatprep.subr.mxu0 0.0
    %1956 = vmatpush1.msra.mxu0 0.0
    %1957 = vmatprep.subr.mxu0 0.0
    %1958 = vmatpush1.msra.mxu0 0.0
    %1959 = vmatprep.subr.mxu0 0.0
    %1960 = vmatpush1.msra.mxu0 0.0
    %1961 = vmatprep.subr.mxu0 0.0
    %1962 = vmatpush1.msra.mxu0 0.0
    %1963 = vmatprep.mubr.f32.mxu0 0.0
    %v1964 = vand.u32 %v1774, 4294901760
    %1965 = vmatmul.mubr.f32.gmra.mrb[0].mxu0 %v1964
    %v1966 = vpop.f32.mrb[0].mxu0
    %v1967 = vadd.f32 %v1856, %v1966
    %v1968 = vpop.f32.mrb[0].mxu0
    %1969 = vdwg.mxu0
    %1970 = vmatprep.subr.mxu0 0.0
    %v1971 = vand.u32 %v648, 4294901760
    %v1972 = vsub.f32 %v648, %v1971
    %1973 = vmatpush1.msra.mxu0 %v1972
    %1974 = vmatprep.subr.mxu0 0.0
    %v1975 = vand.u32 %v649, 4294901760
    %v1976 = vsub.f32 %v649, %v1975
    %1977 = vmatpush1.msra.mxu0 %v1976
    %1978 = vmatprep.subr.mxu0 0.0
    %v1979 = vand.u32 %v650, 4294901760
    %v1980 = vsub.f32 %v650, %v1979
    %1981 = vmatpush1.msra.mxu0 %v1980
    %1982 = vmatprep.subr.mxu0 0.0
    %v1983 = vand.u32 %v651, 4294901760
    %v1984 = vsub.f32 %v651, %v1983
    %1985 = vmatpush1.msra.mxu0 %v1984
    %1986 = vmatprep.subr.mxu0 0.0
    %v1987 = vand.u32 %v652, 4294901760
    %v1988 = vsub.f32 %v652, %v1987
    %1989 = vmatpush1.msra.mxu0 %v1988
    %1990 = vmatprep.subr.mxu0 0.0
    %v1991 = vand.u32 %v653, 4294901760
    %v1992 = vsub.f32 %v653, %v1991
    %1993 = vmatpush1.msra.mxu0 %v1992
    %1994 = vmatprep.subr.mxu0 0.0
    %v1995 = vand.u32 %v654, 4294901760
    %v1996 = vsub.f32 %v654, %v1995
    %1997 = vmatpush1.msra.mxu0 %v1996
    %1998 = vmatprep.subr.mxu0 0.0
    %v1999 = vand.u32 %v655, 4294901760
    %v2000 = vsub.f32 %v655, %v1999
    %2001 = vmatpush1.msra.mxu0 %v2000
    %2002 = vmatprep.subr.mxu0 0.0
    %2003 = vmatpush1.msra.mxu0 0.0
    %2004 = vmatprep.subr.mxu0 0.0
    %2005 = vmatpush1.msra.mxu0 0.0
    %2006 = vmatprep.subr.mxu0 0.0
    %2007 = vmatpush1.msra.mxu0 0.0
    %2008 = vmatprep.subr.mxu0 0.0
    %2009 = vmatpush1.msra.mxu0 0.0
    %2010 = vmatprep.subr.mxu0 0.0
    %2011 = vmatpush1.msra.mxu0 0.0
    %2012 = vmatprep.subr.mxu0 0.0
    %2013 = vmatpush1.msra.mxu0 0.0
    %2014 = vmatprep.subr.mxu0 0.0
    %2015 = vmatpush1.msra.mxu0 0.0
    %2016 = vmatprep.subr.mxu0 0.0
    %2017 = vmatpush1.msra.mxu0 0.0
    %2018 = vmatprep.subr.mxu0 0.0
    %2019 = vmatpush1.msra.mxu0 0.0
    %2020 = vmatprep.subr.mxu0 0.0
    %2021 = vmatpush1.msra.mxu0 0.0
    %2022 = vmatprep.subr.mxu0 0.0
    %2023 = vmatpush1.msra.mxu0 0.0
    %2024 = vmatprep.subr.mxu0 0.0
    %2025 = vmatpush1.msra.mxu0 0.0
    %2026 = vmatprep.subr.mxu0 0.0
    %2027 = vmatpush1.msra.mxu0 0.0
    %2028 = vmatprep.subr.mxu0 0.0
    %2029 = vmatpush1.msra.mxu0 0.0
    %2030 = vmatprep.subr.mxu0 0.0
    %2031 = vmatpush1.msra.mxu0 0.0
    %2032 = vmatprep.subr.mxu0 0.0
    %2033 = vmatpush1.msra.mxu0 0.0
    %2034 = vmatprep.subr.mxu0 0.0
    %2035 = vmatpush1.msra.mxu0 0.0
    %2036 = vmatprep.subr.mxu0 0.0
    %2037 = vmatpush1.msra.mxu0 0.0
    %2038 = vmatprep.subr.mxu0 0.0
    %2039 = vmatpush1.msra.mxu0 0.0
    %2040 = vmatprep.subr.mxu0 0.0
    %2041 = vmatpush1.msra.mxu0 0.0
    %2042 = vmatprep.subr.mxu0 0.0
    %2043 = vmatpush1.msra.mxu0 0.0
    %2044 = vmatprep.subr.mxu0 0.0
    %2045 = vmatpush1.msra.mxu0 0.0
    %2046 = vmatprep.subr.mxu0 0.0
    %2047 = vmatpush1.msra.mxu0 0.0
    %2048 = vmatprep.subr.mxu0 0.0
    %2049 = vmatpush1.msra.mxu0 0.0
    %2050 = vmatprep.mubr.f32.mxu0 0.0
    %v2051 = vand.u32 %v1774, 4294901760
    %v2052 = vsub.f32 %v1774, %v2051
    %2053 = vmatmul.mubr.f32.gmra.mrb[0].mxu0 %v2052
    %v2054 = vpop.f32.mrb[0].mxu0
    %v2055 = vadd.f32 %v1967, %v2054
    %v2056 = vpop.f32.mrb[0].mxu0
    %2057 = vdwg.mxu0
    %2058 = vmatprep.subr.mxu0 0.0
    %v2059 = vand.u32 %v648, 4294901760
    %2060 = vmatpush1.msra.mxu0 %v2059
    %2061 = vmatprep.subr.mxu0 0.0
    %v2062 = vand.u32 %v649, 4294901760
    %2063 = vmatpush1.msra.mxu0 %v2062
    %2064 = vmatprep.subr.mxu0 0.0
    %v2065 = vand.u32 %v650, 4294901760
    %2066 = vmatpush1.msra.mxu0 %v2065
    %2067 = vmatprep.subr.mxu0 0.0
    %v2068 = vand.u32 %v651, 4294901760
    %2069 = vmatpush1.msra.mxu0 %v2068
    %2070 = vmatprep.subr.mxu0 0.0
    %v2071 = vand.u32 %v652, 4294901760
    %2072 = vmatpush1.msra.mxu0 %v2071
    %2073 = vmatprep.subr.mxu0 0.0
    %v2074 = vand.u32 %v653, 4294901760
    %2075 = vmatpush1.msra.mxu0 %v2074
    %2076 = vmatprep.subr.mxu0 0.0
    %v2077 = vand.u32 %v654, 4294901760
    %2078 = vmatpush1.msra.mxu0 %v2077
    %2079 = vmatprep.subr.mxu0 0.0
    %v2080 = vand.u32 %v655, 4294901760
    %2081 = vmatpush1.msra.mxu0 %v2080
    %2082 = vmatprep.subr.mxu0 0.0
    %2083 = vmatpush1.msra.mxu0 0.0
    %2084 = vmatprep.subr.mxu0 0.0
    %2085 = vmatpush1.msra.mxu0 0.0
    %2086 = vmatprep.subr.mxu0 0.0
    %2087 = vmatpush1.msra.mxu0 0.0
    %2088 = vmatprep.subr.mxu0 0.0
    %2089 = vmatpush1.msra.mxu0 0.0
    %2090 = vmatprep.subr.mxu0 0.0
    %2091 = vmatpush1.msra.mxu0 0.0
    %2092 = vmatprep.subr.mxu0 0.0
    %2093 = vmatpush1.msra.mxu0 0.0
    %2094 = vmatprep.subr.mxu0 0.0
    %2095 = vmatpush1.msra.mxu0 0.0
    %2096 = vmatprep.subr.mxu0 0.0
    %2097 = vmatpush1.msra.mxu0 0.0
    %2098 = vmatprep.subr.mxu0 0.0
    %2099 = vmatpush1.msra.mxu0 0.0
    %2100 = vmatprep.subr.mxu0 0.0
    %2101 = vmatpush1.msra.mxu0 0.0
    %2102 = vmatprep.subr.mxu0 0.0
    %2103 = vmatpush1.msra.mxu0 0.0
    %2104 = vmatprep.subr.mxu0 0.0
    %2105 = vmatpush1.msra.mxu0 0.0
    %2106 = vmatprep.subr.mxu0 0.0
    %2107 = vmatpush1.msra.mxu0 0.0
    %2108 = vmatprep.subr.mxu0 0.0
    %2109 = vmatpush1.msra.mxu0 0.0
    %2110 = vmatprep.subr.mxu0 0.0
    %2111 = vmatpush1.msra.mxu0 0.0
    %2112 = vmatprep.subr.mxu0 0.0
    %2113 = vmatpush1.msra.mxu0 0.0
    %2114 = vmatprep.subr.mxu0 0.0
    %2115 = vmatpush1.msra.mxu0 0.0
    %2116 = vmatprep.subr.mxu0 0.0
    %2117 = vmatpush1.msra.mxu0 0.0
    %2118 = vmatprep.subr.mxu0 0.0
    %2119 = vmatpush1.msra.mxu0 0.0
    %2120 = vmatprep.subr.mxu0 0.0
    %2121 = vmatpush1.msra.mxu0 0.0
    %2122 = vmatprep.subr.mxu0 0.0
    %2123 = vmatpush1.msra.mxu0 0.0
    %2124 = vmatprep.subr.mxu0 0.0
    %2125 = vmatpush1.msra.mxu0 0.0
    %2126 = vmatprep.subr.mxu0 0.0
    %2127 = vmatpush1.msra.mxu0 0.0
    %2128 = vmatprep.subr.mxu0 0.0
    %2129 = vmatpush1.msra.mxu0 0.0
    %2130 = vmatprep.mubr.f32.mxu0 0.0
    %v2131 = vand.u32 %v1774, 4294901760
    %v2132 = vsub.f32 %v1774, %v2131
    %v2133 = vand.u32 %v2132, 4294901760
    %2134 = vmatmul.mubr.f32.gmra.mrb[0].mxu0 %v2133
    %v2135 = vpop.f32.mrb[0].mxu0
    %v2136 = vadd.f32 %v2055, %v2135
    %v2137 = vpop.f32.mrb[0].mxu0
    %2138 = vdwg.mxu0
    %2139 = vmatprep.subr.mxu0 0.0
    %v2140 = vand.u32 %v648, 4294901760
    %v2141 = vsub.f32 %v648, %v2140
    %v2142 = vand.u32 %v2141, 4294901760
    %2143 = vmatpush1.msra.mxu0 %v2142
    %2144 = vmatprep.subr.mxu0 0.0
    %v2145 = vand.u32 %v649, 4294901760
    %v2146 = vsub.f32 %v649, %v2145
    %v2147 = vand.u32 %v2146, 4294901760
    %2148 = vmatpush1.msra.mxu0 %v2147
    %2149 = vmatprep.subr.mxu0 0.0
    %v2150 = vand.u32 %v650, 4294901760
    %v2151 = vsub.f32 %v650, %v2150
    %v2152 = vand.u32 %v2151, 4294901760
    %2153 = vmatpush1.msra.mxu0 %v2152
    %2154 = vmatprep.subr.mxu0 0.0
    %v2155 = vand.u32 %v651, 4294901760
    %v2156 = vsub.f32 %v651, %v2155
    %v2157 = vand.u32 %v2156, 4294901760
    %2158 = vmatpush1.msra.mxu0 %v2157
    %2159 = vmatprep.subr.mxu0 0.0
    %v2160 = vand.u32 %v652, 4294901760
    %v2161 = vsub.f32 %v652, %v2160
    %v2162 = vand.u32 %v2161, 4294901760
    %2163 = vmatpush1.msra.mxu0 %v2162
    %2164 = vmatprep.subr.mxu0 0.0
    %v2165 = vand.u32 %v653, 4294901760
    %v2166 = vsub.f32 %v653, %v2165
    %v2167 = vand.u32 %v2166, 4294901760
    %2168 = vmatpush1.msra.mxu0 %v2167
    %2169 = vmatprep.subr.mxu0 0.0
    %v2170 = vand.u32 %v654, 4294901760
    %v2171 = vsub.f32 %v654, %v2170
    %v2172 = vand.u32 %v2171, 4294901760
    %2173 = vmatpush1.msra.mxu0 %v2172
    %2174 = vmatprep.subr.mxu0 0.0
    %v2175 = vand.u32 %v655, 4294901760
    %v2176 = vsub.f32 %v655, %v2175
    %v2177 = vand.u32 %v2176, 4294901760
    %2178 = vmatpush1.msra.mxu0 %v2177
    %2179 = vmatprep.subr.mxu0 0.0
    %2180 = vmatpush1.msra.mxu0 0.0
    %2181 = vmatprep.subr.mxu0 0.0
    %2182 = vmatpush1.msra.mxu0 0.0
    %2183 = vmatprep.subr.mxu0 0.0
    %2184 = vmatpush1.msra.mxu0 0.0
    %2185 = vmatprep.subr.mxu0 0.0
    %2186 = vmatpush1.msra.mxu0 0.0
    %2187 = vmatprep.subr.mxu0 0.0
    %2188 = vmatpush1.msra.mxu0 0.0
    %2189 = vmatprep.subr.mxu0 0.0
    %2190 = vmatpush1.msra.mxu0 0.0
    %2191 = vmatprep.subr.mxu0 0.0
    %2192 = vmatpush1.msra.mxu0 0.0
    %2193 = vmatprep.subr.mxu0 0.0
    %2194 = vmatpush1.msra.mxu0 0.0
    %2195 = vmatprep.subr.mxu0 0.0
    %2196 = vmatpush1.msra.mxu0 0.0
    %2197 = vmatprep.subr.mxu0 0.0
    %2198 = vmatpush1.msra.mxu0 0.0
    %2199 = vmatprep.subr.mxu0 0.0
    %2200 = vmatpush1.msra.mxu0 0.0
    %2201 = vmatprep.subr.mxu0 0.0
    %2202 = vmatpush1.msra.mxu0 0.0
    %2203 = vmatprep.subr.mxu0 0.0
    %2204 = vmatpush1.msra.mxu0 0.0
    %2205 = vmatprep.subr.mxu0 0.0
    %2206 = vmatpush1.msra.mxu0 0.0
    %2207 = vmatprep.subr.mxu0 0.0
    %2208 = vmatpush1.msra.mxu0 0.0
    %2209 = vmatprep.subr.mxu0 0.0
    %2210 = vmatpush1.msra.mxu0 0.0
    %2211 = vmatprep.subr.mxu0 0.0
    %2212 = vmatpush1.msra.mxu0 0.0
    %2213 = vmatprep.subr.mxu0 0.0
    %2214 = vmatpush1.msra.mxu0 0.0
    %2215 = vmatprep.subr.mxu0 0.0
    %2216 = vmatpush1.msra.mxu0 0.0
    %2217 = vmatprep.subr.mxu0 0.0
    %2218 = vmatpush1.msra.mxu0 0.0
    %2219 = vmatprep.subr.mxu0 0.0
    %2220 = vmatpush1.msra.mxu0 0.0
    %2221 = vmatprep.subr.mxu0 0.0
    %2222 = vmatpush1.msra.mxu0 0.0
    %2223 = vmatprep.subr.mxu0 0.0
    %2224 = vmatpush1.msra.mxu0 0.0
    %2225 = vmatprep.subr.mxu0 0.0
    %2226 = vmatpush1.msra.mxu0 0.0
    %2227 = vmatprep.mubr.f32.mxu0 0.0
    %v2228 = vand.u32 %v1774, 4294901760
    %2229 = vmatmul.mubr.f32.gmra.mrb[0].mxu0 %v2228
    %v2230 = vpop.f32.mrb[0].mxu0
    %v2231 = vadd.f32 %v2136, %v2230
    %v2232 = vpop.f32.mrb[0].mxu0
    %2233 = vdwg.mxu0
    %2234 = vmatprep.subr.mxu0 0.0
    %v2235 = vand.u32 %v648, 4294901760
    %2236 = vmatpush1.msra.mxu0 %v2235
    %2237 = vmatprep.subr.mxu0 0.0
    %v2238 = vand.u32 %v649, 4294901760
    %2239 = vmatpush1.msra.mxu0 %v2238
    %2240 = vmatprep.subr.mxu0 0.0
    %v2241 = vand.u32 %v650, 4294901760
    %2242 = vmatpush1.msra.mxu0 %v2241
    %2243 = vmatprep.subr.mxu0 0.0
    %v2244 = vand.u32 %v651, 4294901760
    %2245 = vmatpush1.msra.mxu0 %v2244
    %2246 = vmatprep.subr.mxu0 0.0
    %v2247 = vand.u32 %v652, 4294901760
    %2248 = vmatpush1.msra.mxu0 %v2247
    %2249 = vmatprep.subr.mxu0 0.0
    %v2250 = vand.u32 %v653, 4294901760
    %2251 = vmatpush1.msra.mxu0 %v2250
    %2252 = vmatprep.subr.mxu0 0.0
    %v2253 = vand.u32 %v654, 4294901760
    %2254 = vmatpush1.msra.mxu0 %v2253
    %2255 = vmatprep.subr.mxu0 0.0
    %v2256 = vand.u32 %v655, 4294901760
    %2257 = vmatpush1.msra.mxu0 %v2256
    %2258 = vmatprep.subr.mxu0 0.0
    %2259 = vmatpush1.msra.mxu0 0.0
    %2260 = vmatprep.subr.mxu0 0.0
    %2261 = vmatpush1.msra.mxu0 0.0
    %2262 = vmatprep.subr.mxu0 0.0
    %2263 = vmatpush1.msra.mxu0 0.0
    %2264 = vmatprep.subr.mxu0 0.0
    %2265 = vmatpush1.msra.mxu0 0.0
    %2266 = vmatprep.subr.mxu0 0.0
    %2267 = vmatpush1.msra.mxu0 0.0
    %2268 = vmatprep.subr.mxu0 0.0
    %2269 = vmatpush1.msra.mxu0 0.0
    %2270 = vmatprep.subr.mxu0 0.0
    %2271 = vmatpush1.msra.mxu0 0.0
    %2272 = vmatprep.subr.mxu0 0.0
    %2273 = vmatpush1.msra.mxu0 0.0
    %2274 = vmatprep.subr.mxu0 0.0
    %2275 = vmatpush1.msra.mxu0 0.0
    %2276 = vmatprep.subr.mxu0 0.0
    %2277 = vmatpush1.msra.mxu0 0.0
    %2278 = vmatprep.subr.mxu0 0.0
    %2279 = vmatpush1.msra.mxu0 0.0
    %2280 = vmatprep.subr.mxu0 0.0
    %2281 = vmatpush1.msra.mxu0 0.0
    %2282 = vmatprep.subr.mxu0 0.0
    %2283 = vmatpush1.msra.mxu0 0.0
    %2284 = vmatprep.subr.mxu0 0.0
    %2285 = vmatpush1.msra.mxu0 0.0
    %2286 = vmatprep.subr.mxu0 0.0
    %2287 = vmatpush1.msra.mxu0 0.0
    %2288 = vmatprep.subr.mxu0 0.0
    %2289 = vmatpush1.msra.mxu0 0.0
    %2290 = vmatprep.subr.mxu0 0.0
    %2291 = vmatpush1.msra.mxu0 0.0
    %2292 = vmatprep.subr.mxu0 0.0
    %2293 = vmatpush1.msra.mxu0 0.0
    %2294 = vmatprep.subr.mxu0 0.0
    %2295 = vmatpush1.msra.mxu0 0.0
    %2296 = vmatprep.subr.mxu0 0.0
    %2297 = vmatpush1.msra.mxu0 0.0
    %2298 = vmatprep.subr.mxu0 0.0
    %2299 = vmatpush1.msra.mxu0 0.0
    %2300 = vmatprep.subr.mxu0 0.0
    %2301 = vmatpush1.msra.mxu0 0.0
    %2302 = vmatprep.subr.mxu0 0.0
    %2303 = vmatpush1.msra.mxu0 0.0
    %2304 = vmatprep.subr.mxu0 0.0
    %2305 = vmatpush1.msra.mxu0 0.0
    %2306 = vmatprep.mubr.f32.mxu0 0.0
    %v2307 = vand.u32 %v1774, 4294901760
    %2308 = vmatmul.mubr.f32.gmra.mrb[0].mxu0 %v2307
    %v2309 = vpop.f32.mrb[0].mxu0
    %v2310 = vadd.f32 %v2231, %v2309
    %v2311 = vpop.f32.mrb[0].mxu0
    %2312 = vdwg.mxu0
    %v2313 = vsel %vm23, %v630, 0
    %2315 = vmatprep.subr.mxu0 0.0
    %v2316 = vand.u32 %v656, 4294901760
    %2317 = vmatpush1.msra.mxu0 %v2316
    %2318 = vmatprep.subr.mxu0 0.0
    %v2319 = vand.u32 %v657, 4294901760
    %2320 = vmatpush1.msra.mxu0 %v2319
    %2321 = vmatprep.subr.mxu0 0.0
    %v2322 = vand.u32 %v658, 4294901760
    %2323 = vmatpush1.msra.mxu0 %v2322
    %2324 = vmatprep.subr.mxu0 0.0
    %v2325 = vand.u32 %v659, 4294901760
    %2326 = vmatpush1.msra.mxu0 %v2325
    %2327 = vmatprep.subr.mxu0 0.0
    %v2328 = vand.u32 %v660, 4294901760
    %2329 = vmatpush1.msra.mxu0 %v2328
    %2330 = vmatprep.subr.mxu0 0.0
    %v2331 = vand.u32 %v661, 4294901760
    %2332 = vmatpush1.msra.mxu0 %v2331
    %2333 = vmatprep.subr.mxu0 0.0
    %v2334 = vand.u32 %v662, 4294901760
    %2335 = vmatpush1.msra.mxu0 %v2334
    %2336 = vmatprep.subr.mxu0 0.0
    %v2337 = vand.u32 %v663, 4294901760
    %2338 = vmatpush1.msra.mxu0 %v2337
    %2339 = vmatprep.subr.mxu0 0.0
    %2340 = vmatpush1.msra.mxu0 0.0
    %2341 = vmatprep.subr.mxu0 0.0
    %2342 = vmatpush1.msra.mxu0 0.0
    %2343 = vmatprep.subr.mxu0 0.0
    %2344 = vmatpush1.msra.mxu0 0.0
    %2345 = vmatprep.subr.mxu0 0.0
    %2346 = vmatpush1.msra.mxu0 0.0
    %2347 = vmatprep.subr.mxu0 0.0
    %2348 = vmatpush1.msra.mxu0 0.0
    %2349 = vmatprep.subr.mxu0 0.0
    %2350 = vmatpush1.msra.mxu0 0.0
    %2351 = vmatprep.subr.mxu0 0.0
    %2352 = vmatpush1.msra.mxu0 0.0
    %2353 = vmatprep.subr.mxu0 0.0
    %2354 = vmatpush1.msra.mxu0 0.0
    %2355 = vmatprep.subr.mxu0 0.0
    %2356 = vmatpush1.msra.mxu0 0.0
    %2357 = vmatprep.subr.mxu0 0.0
    %2358 = vmatpush1.msra.mxu0 0.0
    %2359 = vmatprep.subr.mxu0 0.0
    %2360 = vmatpush1.msra.mxu0 0.0
    %2361 = vmatprep.subr.mxu0 0.0
    %2362 = vmatpush1.msra.mxu0 0.0
    %2363 = vmatprep.subr.mxu0 0.0
    %2364 = vmatpush1.msra.mxu0 0.0
    %2365 = vmatprep.subr.mxu0 0.0
    %2366 = vmatpush1.msra.mxu0 0.0
    %2367 = vmatprep.subr.mxu0 0.0
    %2368 = vmatpush1.msra.mxu0 0.0
    %2369 = vmatprep.subr.mxu0 0.0
    %2370 = vmatpush1.msra.mxu0 0.0
    %2371 = vmatprep.subr.mxu0 0.0
    %2372 = vmatpush1.msra.mxu0 0.0
    %2373 = vmatprep.subr.mxu0 0.0
    %2374 = vmatpush1.msra.mxu0 0.0
    %2375 = vmatprep.subr.mxu0 0.0
    %2376 = vmatpush1.msra.mxu0 0.0
    %2377 = vmatprep.subr.mxu0 0.0
    %2378 = vmatpush1.msra.mxu0 0.0
    %2379 = vmatprep.subr.mxu0 0.0
    %2380 = vmatpush1.msra.mxu0 0.0
    %2381 = vmatprep.subr.mxu0 0.0
    %2382 = vmatpush1.msra.mxu0 0.0
    %2383 = vmatprep.subr.mxu0 0.0
    %2384 = vmatpush1.msra.mxu0 0.0
    %2385 = vmatprep.subr.mxu0 0.0
    %2386 = vmatpush1.msra.mxu0 0.0
    %2387 = vmatprep.mubr.f32.mxu0 0.0
    %v2388 = vand.u32 %v2313, 4294901760
    %v2389 = vsub.f32 %v2313, %v2388
    %v2390 = vand.u32 %v2389, 4294901760
    %v2391 = vsub.f32 %v2389, %v2390
    %v2392 = vand.u32 %v2391, 4294901760
    %2393 = vmatmul.mubr.f32.gmra.mrb[0].mxu0 %v2392
    %v2394 = vpop.f32.mrb[0].mxu0
    %v2395 = vadd.f32 0.0, %v2394
    %v2396 = vpop.f32.mrb[0].mxu0
    %2397 = vdwg.mxu0
    %2398 = vmatprep.subr.mxu0 0.0
    %v2399 = vand.u32 %v656, 4294901760
    %v2400 = vsub.f32 %v656, %v2399
    %v2401 = vand.u32 %v2400, 4294901760
    %v2402 = vsub.f32 %v2400, %v2401
    %v2403 = vand.u32 %v2402, 4294901760
    %2404 = vmatpush1.msra.mxu0 %v2403
    %2405 = vmatprep.subr.mxu0 0.0
    %v2406 = vand.u32 %v657, 4294901760
    %v2407 = vsub.f32 %v657, %v2406
    %v2408 = vand.u32 %v2407, 4294901760
    %v2409 = vsub.f32 %v2407, %v2408
    %v2410 = vand.u32 %v2409, 4294901760
    %2411 = vmatpush1.msra.mxu0 %v2410
    %2412 = vmatprep.subr.mxu0 0.0
    %v2413 = vand.u32 %v658, 4294901760
    %v2414 = vsub.f32 %v658, %v2413
    %v2415 = vand.u32 %v2414, 4294901760
    %v2416 = vsub.f32 %v2414, %v2415
    %v2417 = vand.u32 %v2416, 4294901760
    %2418 = vmatpush1.msra.mxu0 %v2417
    %2419 = vmatprep.subr.mxu0 0.0
    %v2420 = vand.u32 %v659, 4294901760
    %v2421 = vsub.f32 %v659, %v2420
    %v2422 = vand.u32 %v2421, 4294901760
    %v2423 = vsub.f32 %v2421, %v2422
    %v2424 = vand.u32 %v2423, 4294901760
    %2425 = vmatpush1.msra.mxu0 %v2424
    %2426 = vmatprep.subr.mxu0 0.0
    %v2427 = vand.u32 %v660, 4294901760
    %v2428 = vsub.f32 %v660, %v2427
    %v2429 = vand.u32 %v2428, 4294901760
    %v2430 = vsub.f32 %v2428, %v2429
    %v2431 = vand.u32 %v2430, 4294901760
    %2432 = vmatpush1.msra.mxu0 %v2431
    %2433 = vmatprep.subr.mxu0 0.0
    %v2434 = vand.u32 %v661, 4294901760
    %v2435 = vsub.f32 %v661, %v2434
    %v2436 = vand.u32 %v2435, 4294901760
    %v2437 = vsub.f32 %v2435, %v2436
    %v2438 = vand.u32 %v2437, 4294901760
    %2439 = vmatpush1.msra.mxu0 %v2438
    %2440 = vmatprep.subr.mxu0 0.0
    %v2441 = vand.u32 %v662, 4294901760
    %v2442 = vsub.f32 %v662, %v2441
    %v2443 = vand.u32 %v2442, 4294901760
    %v2444 = vsub.f32 %v2442, %v2443
    %v2445 = vand.u32 %v2444, 4294901760
    %2446 = vmatpush1.msra.mxu0 %v2445
    %2447 = vmatprep.subr.mxu0 0.0
    %v2448 = vand.u32 %v663, 4294901760
    %v2449 = vsub.f32 %v663, %v2448
    %v2450 = vand.u32 %v2449, 4294901760
    %v2451 = vsub.f32 %v2449, %v2450
    %v2452 = vand.u32 %v2451, 4294901760
    %2453 = vmatpush1.msra.mxu0 %v2452
    %2454 = vmatprep.subr.mxu0 0.0
    %2455 = vmatpush1.msra.mxu0 0.0
    %2456 = vmatprep.subr.mxu0 0.0
    %2457 = vmatpush1.msra.mxu0 0.0
    %2458 = vmatprep.subr.mxu0 0.0
    %2459 = vmatpush1.msra.mxu0 0.0
    %2460 = vmatprep.subr.mxu0 0.0
    %2461 = vmatpush1.msra.mxu0 0.0
    %2462 = vmatprep.subr.mxu0 0.0
    %2463 = vmatpush1.msra.mxu0 0.0
    %2464 = vmatprep.subr.mxu0 0.0
    %2465 = vmatpush1.msra.mxu0 0.0
    %2466 = vmatprep.subr.mxu0 0.0
    %2467 = vmatpush1.msra.mxu0 0.0
    %2468 = vmatprep.subr.mxu0 0.0
    %2469 = vmatpush1.msra.mxu0 0.0
    %2470 = vmatprep.subr.mxu0 0.0
    %2471 = vmatpush1.msra.mxu0 0.0
    %2472 = vmatprep.subr.mxu0 0.0
    %2473 = vmatpush1.msra.mxu0 0.0
    %2474 = vmatprep.subr.mxu0 0.0
    %2475 = vmatpush1.msra.mxu0 0.0
    %2476 = vmatprep.subr.mxu0 0.0
    %2477 = vmatpush1.msra.mxu0 0.0
    %2478 = vmatprep.subr.mxu0 0.0
    %2479 = vmatpush1.msra.mxu0 0.0
    %2480 = vmatprep.subr.mxu0 0.0
    %2481 = vmatpush1.msra.mxu0 0.0
    %2482 = vmatprep.subr.mxu0 0.0
    %2483 = vmatpush1.msra.mxu0 0.0
    %2484 = vmatprep.subr.mxu0 0.0
    %2485 = vmatpush1.msra.mxu0 0.0
    %2486 = vmatprep.subr.mxu0 0.0
    %2487 = vmatpush1.msra.mxu0 0.0
    %2488 = vmatprep.subr.mxu0 0.0
    %2489 = vmatpush1.msra.mxu0 0.0
    %2490 = vmatprep.subr.mxu0 0.0
    %2491 = vmatpush1.msra.mxu0 0.0
    %2492 = vmatprep.subr.mxu0 0.0
    %2493 = vmatpush1.msra.mxu0 0.0
    %2494 = vmatprep.subr.mxu0 0.0
    %2495 = vmatpush1.msra.mxu0 0.0
    %2496 = vmatprep.subr.mxu0 0.0
    %2497 = vmatpush1.msra.mxu0 0.0
    %2498 = vmatprep.subr.mxu0 0.0
    %2499 = vmatpush1.msra.mxu0 0.0
    %2500 = vmatprep.subr.mxu0 0.0
    %2501 = vmatpush1.msra.mxu0 0.0
    %2502 = vmatprep.mubr.f32.mxu0 0.0
    %v2503 = vand.u32 %v2313, 4294901760
    %2504 = vmatmul.mubr.f32.gmra.mrb[0].mxu0 %v2503
    %v2505 = vpop.f32.mrb[0].mxu0
    %v2506 = vadd.f32 %v2395, %v2505
    %v2507 = vpop.f32.mrb[0].mxu0
    %2508 = vdwg.mxu0
    %2509 = vmatprep.subr.mxu0 0.0
    %v2510 = vand.u32 %v656, 4294901760
    %v2511 = vsub.f32 %v656, %v2510
    %2512 = vmatpush1.msra.mxu0 %v2511
    %2513 = vmatprep.subr.mxu0 0.0
    %v2514 = vand.u32 %v657, 4294901760
    %v2515 = vsub.f32 %v657, %v2514
    %2516 = vmatpush1.msra.mxu0 %v2515
    %2517 = vmatprep.subr.mxu0 0.0
    %v2518 = vand.u32 %v658, 4294901760
    %v2519 = vsub.f32 %v658, %v2518
    %2520 = vmatpush1.msra.mxu0 %v2519
    %2521 = vmatprep.subr.mxu0 0.0
    %v2522 = vand.u32 %v659, 4294901760
    %v2523 = vsub.f32 %v659, %v2522
    %2524 = vmatpush1.msra.mxu0 %v2523
    %2525 = vmatprep.subr.mxu0 0.0
    %v2526 = vand.u32 %v660, 4294901760
    %v2527 = vsub.f32 %v660, %v2526
    %2528 = vmatpush1.msra.mxu0 %v2527
    %2529 = vmatprep.subr.mxu0 0.0
    %v2530 = vand.u32 %v661, 4294901760
    %v2531 = vsub.f32 %v661, %v2530
    %2532 = vmatpush1.msra.mxu0 %v2531
    %2533 = vmatprep.subr.mxu0 0.0
    %v2534 = vand.u32 %v662, 4294901760
    %v2535 = vsub.f32 %v662, %v2534
    %2536 = vmatpush1.msra.mxu0 %v2535
    %2537 = vmatprep.subr.mxu0 0.0
    %v2538 = vand.u32 %v663, 4294901760
    %v2539 = vsub.f32 %v663, %v2538
    %2540 = vmatpush1.msra.mxu0 %v2539
    %2541 = vmatprep.subr.mxu0 0.0
    %2542 = vmatpush1.msra.mxu0 0.0
    %2543 = vmatprep.subr.mxu0 0.0
    %2544 = vmatpush1.msra.mxu0 0.0
    %2545 = vmatprep.subr.mxu0 0.0
    %2546 = vmatpush1.msra.mxu0 0.0
    %2547 = vmatprep.subr.mxu0 0.0
    %2548 = vmatpush1.msra.mxu0 0.0
    %2549 = vmatprep.subr.mxu0 0.0
    %2550 = vmatpush1.msra.mxu0 0.0
    %2551 = vmatprep.subr.mxu0 0.0
    %2552 = vmatpush1.msra.mxu0 0.0
    %2553 = vmatprep.subr.mxu0 0.0
    %2554 = vmatpush1.msra.mxu0 0.0
    %2555 = vmatprep.subr.mxu0 0.0
    %2556 = vmatpush1.msra.mxu0 0.0
    %2557 = vmatprep.subr.mxu0 0.0
    %2558 = vmatpush1.msra.mxu0 0.0
    %2559 = vmatprep.subr.mxu0 0.0
    %2560 = vmatpush1.msra.mxu0 0.0
    %2561 = vmatprep.subr.mxu0 0.0
    %2562 = vmatpush1.msra.mxu0 0.0
    %2563 = vmatprep.subr.mxu0 0.0
    %2564 = vmatpush1.msra.mxu0 0.0
    %2565 = vmatprep.subr.mxu0 0.0
    %2566 = vmatpush1.msra.mxu0 0.0
    %2567 = vmatprep.subr.mxu0 0.0
    %2568 = vmatpush1.msra.mxu0 0.0
    %2569 = vmatprep.subr.mxu0 0.0
    %2570 = vmatpush1.msra.mxu0 0.0
    %2571 = vmatprep.subr.mxu0 0.0
    %2572 = vmatpush1.msra.mxu0 0.0
    %2573 = vmatprep.subr.mxu0 0.0
    %2574 = vmatpush1.msra.mxu0 0.0
    %2575 = vmatprep.subr.mxu0 0.0
    %2576 = vmatpush1.msra.mxu0 0.0
    %2577 = vmatprep.subr.mxu0 0.0
    %2578 = vmatpush1.msra.mxu0 0.0
    %2579 = vmatprep.subr.mxu0 0.0
    %2580 = vmatpush1.msra.mxu0 0.0
    %2581 = vmatprep.subr.mxu0 0.0
    %2582 = vmatpush1.msra.mxu0 0.0
    %2583 = vmatprep.subr.mxu0 0.0
    %2584 = vmatpush1.msra.mxu0 0.0
    %2585 = vmatprep.subr.mxu0 0.0
    %2586 = vmatpush1.msra.mxu0 0.0
    %2587 = vmatprep.subr.mxu0 0.0
    %2588 = vmatpush1.msra.mxu0 0.0
    %2589 = vmatprep.mubr.f32.mxu0 0.0
    %v2590 = vand.u32 %v2313, 4294901760
    %v2591 = vsub.f32 %v2313, %v2590
    %2592 = vmatmul.mubr.f32.gmra.mrb[0].mxu0 %v2591
    %v2593 = vpop.f32.mrb[0].mxu0
    %v2594 = vadd.f32 %v2506, %v2593
    %v2595 = vpop.f32.mrb[0].mxu0
    %2596 = vdwg.mxu0
    %2597 = vmatprep.subr.mxu0 0.0
    %v2598 = vand.u32 %v656, 4294901760
    %2599 = vmatpush1.msra.mxu0 %v2598
    %2600 = vmatprep.subr.mxu0 0.0
    %v2601 = vand.u32 %v657, 4294901760
    %2602 = vmatpush1.msra.mxu0 %v2601
    %2603 = vmatprep.subr.mxu0 0.0
    %v2604 = vand.u32 %v658, 4294901760
    %2605 = vmatpush1.msra.mxu0 %v2604
    %2606 = vmatprep.subr.mxu0 0.0
    %v2607 = vand.u32 %v659, 4294901760
    %2608 = vmatpush1.msra.mxu0 %v2607
    %2609 = vmatprep.subr.mxu0 0.0
    %v2610 = vand.u32 %v660, 4294901760
    %2611 = vmatpush1.msra.mxu0 %v2610
    %2612 = vmatprep.subr.mxu0 0.0
    %v2613 = vand.u32 %v661, 4294901760
    %2614 = vmatpush1.msra.mxu0 %v2613
    %2615 = vmatprep.subr.mxu0 0.0
    %v2616 = vand.u32 %v662, 4294901760
    %2617 = vmatpush1.msra.mxu0 %v2616
    %2618 = vmatprep.subr.mxu0 0.0
    %v2619 = vand.u32 %v663, 4294901760
    %2620 = vmatpush1.msra.mxu0 %v2619
    %2621 = vmatprep.subr.mxu0 0.0
    %2622 = vmatpush1.msra.mxu0 0.0
    %2623 = vmatprep.subr.mxu0 0.0
    %2624 = vmatpush1.msra.mxu0 0.0
    %2625 = vmatprep.subr.mxu0 0.0
    %2626 = vmatpush1.msra.mxu0 0.0
    %2627 = vmatprep.subr.mxu0 0.0
    %2628 = vmatpush1.msra.mxu0 0.0
    %2629 = vmatprep.subr.mxu0 0.0
    %2630 = vmatpush1.msra.mxu0 0.0
    %2631 = vmatprep.subr.mxu0 0.0
    %2632 = vmatpush1.msra.mxu0 0.0
    %2633 = vmatprep.subr.mxu0 0.0
    %2634 = vmatpush1.msra.mxu0 0.0
    %2635 = vmatprep.subr.mxu0 0.0
    %2636 = vmatpush1.msra.mxu0 0.0
    %2637 = vmatprep.subr.mxu0 0.0
    %2638 = vmatpush1.msra.mxu0 0.0
    %2639 = vmatprep.subr.mxu0 0.0
    %2640 = vmatpush1.msra.mxu0 0.0
    %2641 = vmatprep.subr.mxu0 0.0
    %2642 = vmatpush1.msra.mxu0 0.0
    %2643 = vmatprep.subr.mxu0 0.0
    %2644 = vmatpush1.msra.mxu0 0.0
    %2645 = vmatprep.subr.mxu0 0.0
    %2646 = vmatpush1.msra.mxu0 0.0
    %2647 = vmatprep.subr.mxu0 0.0
    %2648 = vmatpush1.msra.mxu0 0.0
    %2649 = vmatprep.subr.mxu0 0.0
    %2650 = vmatpush1.msra.mxu0 0.0
    %2651 = vmatprep.subr.mxu0 0.0
    %2652 = vmatpush1.msra.mxu0 0.0
    %2653 = vmatprep.subr.mxu0 0.0
    %2654 = vmatpush1.msra.mxu0 0.0
    %2655 = vmatprep.subr.mxu0 0.0
    %2656 = vmatpush1.msra.mxu0 0.0
    %2657 = vmatprep.subr.mxu0 0.0
    %2658 = vmatpush1.msra.mxu0 0.0
    %2659 = vmatprep.subr.mxu0 0.0
    %2660 = vmatpush1.msra.mxu0 0.0
    %2661 = vmatprep.subr.mxu0 0.0
    %2662 = vmatpush1.msra.mxu0 0.0
    %2663 = vmatprep.subr.mxu0 0.0
    %2664 = vmatpush1.msra.mxu0 0.0
    %2665 = vmatprep.subr.mxu0 0.0
    %2666 = vmatpush1.msra.mxu0 0.0
    %2667 = vmatprep.subr.mxu0 0.0
    %2668 = vmatpush1.msra.mxu0 0.0
    %2669 = vmatprep.mubr.f32.mxu0 0.0
    %v2670 = vand.u32 %v2313, 4294901760
    %v2671 = vsub.f32 %v2313, %v2670
    %v2672 = vand.u32 %v2671, 4294901760
    %2673 = vmatmul.mubr.f32.gmra.mrb[0].mxu0 %v2672
    %v2674 = vpop.f32.mrb[0].mxu0
    %v2675 = vadd.f32 %v2594, %v2674
    %v2676 = vpop.f32.mrb[0].mxu0
    %2677 = vdwg.mxu0
    %2678 = vmatprep.subr.mxu0 0.0
    %v2679 = vand.u32 %v656, 4294901760
    %v2680 = vsub.f32 %v656, %v2679
    %v2681 = vand.u32 %v2680, 4294901760
    %2682 = vmatpush1.msra.mxu0 %v2681
    %2683 = vmatprep.subr.mxu0 0.0
    %v2684 = vand.u32 %v657, 4294901760
    %v2685 = vsub.f32 %v657, %v2684
    %v2686 = vand.u32 %v2685, 4294901760
    %2687 = vmatpush1.msra.mxu0 %v2686
    %2688 = vmatprep.subr.mxu0 0.0
    %v2689 = vand.u32 %v658, 4294901760
    %v2690 = vsub.f32 %v658, %v2689
    %v2691 = vand.u32 %v2690, 4294901760
    %2692 = vmatpush1.msra.mxu0 %v2691
    %2693 = vmatprep.subr.mxu0 0.0
    %v2694 = vand.u32 %v659, 4294901760
    %v2695 = vsub.f32 %v659, %v2694
    %v2696 = vand.u32 %v2695, 4294901760
    %2697 = vmatpush1.msra.mxu0 %v2696
    %2698 = vmatprep.subr.mxu0 0.0
    %v2699 = vand.u32 %v660, 4294901760
    %v2700 = vsub.f32 %v660, %v2699
    %v2701 = vand.u32 %v2700, 4294901760
    %2702 = vmatpush1.msra.mxu0 %v2701
    %2703 = vmatprep.subr.mxu0 0.0
    %v2704 = vand.u32 %v661, 4294901760
    %v2705 = vsub.f32 %v661, %v2704
    %v2706 = vand.u32 %v2705, 4294901760
    %2707 = vmatpush1.msra.mxu0 %v2706
    %2708 = vmatprep.subr.mxu0 0.0
    %v2709 = vand.u32 %v662, 4294901760
    %v2710 = vsub.f32 %v662, %v2709
    %v2711 = vand.u32 %v2710, 4294901760
    %2712 = vmatpush1.msra.mxu0 %v2711
    %2713 = vmatprep.subr.mxu0 0.0
    %v2714 = vand.u32 %v663, 4294901760
    %v2715 = vsub.f32 %v663, %v2714
    %v2716 = vand.u32 %v2715, 4294901760
    %2717 = vmatpush1.msra.mxu0 %v2716
    %2718 = vmatprep.subr.mxu0 0.0
    %2719 = vmatpush1.msra.mxu0 0.0
    %2720 = vmatprep.subr.mxu0 0.0
    %2721 = vmatpush1.msra.mxu0 0.0
    %2722 = vmatprep.subr.mxu0 0.0
    %2723 = vmatpush1.msra.mxu0 0.0
    %2724 = vmatprep.subr.mxu0 0.0
    %2725 = vmatpush1.msra.mxu0 0.0
    %2726 = vmatprep.subr.mxu0 0.0
    %2727 = vmatpush1.msra.mxu0 0.0
    %2728 = vmatprep.subr.mxu0 0.0
    %2729 = vmatpush1.msra.mxu0 0.0
    %2730 = vmatprep.subr.mxu0 0.0
    %2731 = vmatpush1.msra.mxu0 0.0
    %2732 = vmatprep.subr.mxu0 0.0
    %2733 = vmatpush1.msra.mxu0 0.0
    %2734 = vmatprep.subr.mxu0 0.0
    %2735 = vmatpush1.msra.mxu0 0.0
    %2736 = vmatprep.subr.mxu0 0.0
    %2737 = vmatpush1.msra.mxu0 0.0
    %2738 = vmatprep.subr.mxu0 0.0
    %2739 = vmatpush1.msra.mxu0 0.0
    %2740 = vmatprep.subr.mxu0 0.0
    %2741 = vmatpush1.msra.mxu0 0.0
    %2742 = vmatprep.subr.mxu0 0.0
    %2743 = vmatpush1.msra.mxu0 0.0
    %2744 = vmatprep.subr.mxu0 0.0
    %2745 = vmatpush1.msra.mxu0 0.0
    %2746 = vmatprep.subr.mxu0 0.0
    %2747 = vmatpush1.msra.mxu0 0.0
    %2748 = vmatprep.subr.mxu0 0.0
    %2749 = vmatpush1.msra.mxu0 0.0
    %2750 = vmatprep.subr.mxu0 0.0
    %2751 = vmatpush1.msra.mxu0 0.0
    %2752 = vmatprep.subr.mxu0 0.0
    %2753 = vmatpush1.msra.mxu0 0.0
    %2754 = vmatprep.subr.mxu0 0.0
    %2755 = vmatpush1.msra.mxu0 0.0
    %2756 = vmatprep.subr.mxu0 0.0
    %2757 = vmatpush1.msra.mxu0 0.0
    %2758 = vmatprep.subr.mxu0 0.0
    %2759 = vmatpush1.msra.mxu0 0.0
    %2760 = vmatprep.subr.mxu0 0.0
    %2761 = vmatpush1.msra.mxu0 0.0
    %2762 = vmatprep.subr.mxu0 0.0
    %2763 = vmatpush1.msra.mxu0 0.0
    %2764 = vmatprep.subr.mxu0 0.0
    %2765 = vmatpush1.msra.mxu0 0.0
    %2766 = vmatprep.mubr.f32.mxu0 0.0
    %v2767 = vand.u32 %v2313, 4294901760
    %2768 = vmatmul.mubr.f32.gmra.mrb[0].mxu0 %v2767
    %v2769 = vpop.f32.mrb[0].mxu0
    %v2770 = vadd.f32 %v2675, %v2769
    %v2771 = vpop.f32.mrb[0].mxu0
    %2772 = vdwg.mxu0
    %2773 = vmatprep.subr.mxu0 0.0
    %v2774 = vand.u32 %v656, 4294901760
    %2775 = vmatpush1.msra.mxu0 %v2774
    %2776 = vmatprep.subr.mxu0 0.0
    %v2777 = vand.u32 %v657, 4294901760
    %2778 = vmatpush1.msra.mxu0 %v2777
    %2779 = vmatprep.subr.mxu0 0.0
    %v2780 = vand.u32 %v658, 4294901760
    %2781 = vmatpush1.msra.mxu0 %v2780
    %2782 = vmatprep.subr.mxu0 0.0
    %v2783 = vand.u32 %v659, 4294901760
    %2784 = vmatpush1.msra.mxu0 %v2783
    %2785 = vmatprep.subr.mxu0 0.0
    %v2786 = vand.u32 %v660, 4294901760
    %2787 = vmatpush1.msra.mxu0 %v2786
    %2788 = vmatprep.subr.mxu0 0.0
    %v2789 = vand.u32 %v661, 4294901760
    %2790 = vmatpush1.msra.mxu0 %v2789
    %2791 = vmatprep.subr.mxu0 0.0
    %v2792 = vand.u32 %v662, 4294901760
    %2793 = vmatpush1.msra.mxu0 %v2792
    %2794 = vmatprep.subr.mxu0 0.0
    %v2795 = vand.u32 %v663, 4294901760
    %2796 = vmatpush1.msra.mxu0 %v2795
    %2797 = vmatprep.subr.mxu0 0.0
    %2798 = vmatpush1.msra.mxu0 0.0
    %2799 = vmatprep.subr.mxu0 0.0
    %2800 = vmatpush1.msra.mxu0 0.0
    %2801 = vmatprep.subr.mxu0 0.0
    %2802 = vmatpush1.msra.mxu0 0.0
    %2803 = vmatprep.subr.mxu0 0.0
    %2804 = vmatpush1.msra.mxu0 0.0
    %2805 = vmatprep.subr.mxu0 0.0
    %2806 = vmatpush1.msra.mxu0 0.0
    %2807 = vmatprep.subr.mxu0 0.0
    %2808 = vmatpush1.msra.mxu0 0.0
    %2809 = vmatprep.subr.mxu0 0.0
    %2810 = vmatpush1.msra.mxu0 0.0
    %2811 = vmatprep.subr.mxu0 0.0
    %2812 = vmatpush1.msra.mxu0 0.0
    %2813 = vmatprep.subr.mxu0 0.0
    %2814 = vmatpush1.msra.mxu0 0.0
    %2815 = vmatprep.subr.mxu0 0.0
    %2816 = vmatpush1.msra.mxu0 0.0
    %2817 = vmatprep.subr.mxu0 0.0
    %2818 = vmatpush1.msra.mxu0 0.0
    %2819 = vmatprep.subr.mxu0 0.0
    %2820 = vmatpush1.msra.mxu0 0.0
    %2821 = vmatprep.subr.mxu0 0.0
    %2822 = vmatpush1.msra.mxu0 0.0
    %2823 = vmatprep.subr.mxu0 0.0
    %2824 = vmatpush1.msra.mxu0 0.0
    %2825 = vmatprep.subr.mxu0 0.0
    %2826 = vmatpush1.msra.mxu0 0.0
    %2827 = vmatprep.subr.mxu0 0.0
    %2828 = vmatpush1.msra.mxu0 0.0
    %2829 = vmatprep.subr.mxu0 0.0
    %2830 = vmatpush1.msra.mxu0 0.0
    %2831 = vmatprep.subr.mxu0 0.0
    %2832 = vmatpush1.msra.mxu0 0.0
    %2833 = vmatprep.subr.mxu0 0.0
    %2834 = vmatpush1.msra.mxu0 0.0
    %2835 = vmatprep.subr.mxu0 0.0
    %2836 = vmatpush1.msra.mxu0 0.0
    %2837 = vmatprep.subr.mxu0 0.0
    %2838 = vmatpush1.msra.mxu0 0.0
    %2839 = vmatprep.subr.mxu0 0.0
    %2840 = vmatpush1.msra.mxu0 0.0
    %2841 = vmatprep.subr.mxu0 0.0
    %2842 = vmatpush1.msra.mxu0 0.0
    %2843 = vmatprep.subr.mxu0 0.0
    %2844 = vmatpush1.msra.mxu0 0.0
    %2845 = vmatprep.mubr.f32.mxu0 0.0
    %v2846 = vand.u32 %v2313, 4294901760
    %2847 = vmatmul.mubr.f32.gmra.mrb[0].mxu0 %v2846
    %v2848 = vpop.f32.mrb[0].mxu0
    %v2849 = vadd.f32 %v2770, %v2848
    %v2850 = vpop.f32.mrb[0].mxu0
    %2851 = vdwg.mxu0
    %v2852 = vsel %vm23, %v613, 0
    %2854 = vmatprep.subr.mxu0 0.0
    %v2855 = vand.u32 %v664, 4294901760
    %2856 = vmatpush1.msra.mxu0 %v2855
    %2857 = vmatprep.subr.mxu0 0.0
    %v2858 = vand.u32 %v665, 4294901760
    %2859 = vmatpush1.msra.mxu0 %v2858
    %2860 = vmatprep.subr.mxu0 0.0
    %v2861 = vand.u32 %v666, 4294901760
    %2862 = vmatpush1.msra.mxu0 %v2861
    %2863 = vmatprep.subr.mxu0 0.0
    %v2864 = vand.u32 %v667, 4294901760
    %2865 = vmatpush1.msra.mxu0 %v2864
    %2866 = vmatprep.subr.mxu0 0.0
    %v2867 = vand.u32 %v668, 4294901760
    %2868 = vmatpush1.msra.mxu0 %v2867
    %2869 = vmatprep.subr.mxu0 0.0
    %v2870 = vand.u32 %v669, 4294901760
    %2871 = vmatpush1.msra.mxu0 %v2870
    %2872 = vmatprep.subr.mxu0 0.0
    %v2873 = vand.u32 %v670, 4294901760
    %2874 = vmatpush1.msra.mxu0 %v2873
    %2875 = vmatprep.subr.mxu0 0.0
    %v2876 = vand.u32 %v671, 4294901760
    %2877 = vmatpush1.msra.mxu0 %v2876
    %2878 = vmatprep.subr.mxu0 0.0
    %2879 = vmatpush1.msra.mxu0 0.0
    %2880 = vmatprep.subr.mxu0 0.0
    %2881 = vmatpush1.msra.mxu0 0.0
    %2882 = vmatprep.subr.mxu0 0.0
    %2883 = vmatpush1.msra.mxu0 0.0
    %2884 = vmatprep.subr.mxu0 0.0
    %2885 = vmatpush1.msra.mxu0 0.0
    %2886 = vmatprep.subr.mxu0 0.0
    %2887 = vmatpush1.msra.mxu0 0.0
    %2888 = vmatprep.subr.mxu0 0.0
    %2889 = vmatpush1.msra.mxu0 0.0
    %2890 = vmatprep.subr.mxu0 0.0
    %2891 = vmatpush1.msra.mxu0 0.0
    %2892 = vmatprep.subr.mxu0 0.0
    %2893 = vmatpush1.msra.mxu0 0.0
    %2894 = vmatprep.subr.mxu0 0.0
    %2895 = vmatpush1.msra.mxu0 0.0
    %2896 = vmatprep.subr.mxu0 0.0
    %2897 = vmatpush1.msra.mxu0 0.0
    %2898 = vmatprep.subr.mxu0 0.0
    %2899 = vmatpush1.msra.mxu0 0.0
    %2900 = vmatprep.subr.mxu0 0.0
    %2901 = vmatpush1.msra.mxu0 0.0
    %2902 = vmatprep.subr.mxu0 0.0
    %2903 = vmatpush1.msra.mxu0 0.0
    %2904 = vmatprep.subr.mxu0 0.0
    %2905 = vmatpush1.msra.mxu0 0.0
    %2906 = vmatprep.subr.mxu0 0.0
    %2907 = vmatpush1.msra.mxu0 0.0
    %2908 = vmatprep.subr.mxu0 0.0
    %2909 = vmatpush1.msra.mxu0 0.0
    %2910 = vmatprep.subr.mxu0 0.0
    %2911 = vmatpush1.msra.mxu0 0.0
    %2912 = vmatprep.subr.mxu0 0.0
    %2913 = vmatpush1.msra.mxu0 0.0
    %2914 = vmatprep.subr.mxu0 0.0
    %2915 = vmatpush1.msra.mxu0 0.0
    %2916 = vmatprep.subr.mxu0 0.0
    %2917 = vmatpush1.msra.mxu0 0.0
    %2918 = vmatprep.subr.mxu0 0.0
    %2919 = vmatpush1.msra.mxu0 0.0
    %2920 = vmatprep.subr.mxu0 0.0
    %2921 = vmatpush1.msra.mxu0 0.0
    %2922 = vmatprep.subr.mxu0 0.0
    %2923 = vmatpush1.msra.mxu0 0.0
    %2924 = vmatprep.subr.mxu0 0.0
    %2925 = vmatpush1.msra.mxu0 0.0
    %2926 = vmatprep.mubr.f32.mxu0 0.0
    %v2927 = vand.u32 %v2852, 4294901760
    %v2928 = vsub.f32 %v2852, %v2927
    %v2929 = vand.u32 %v2928, 4294901760
    %v2930 = vsub.f32 %v2928, %v2929
    %v2931 = vand.u32 %v2930, 4294901760
    %2932 = vmatmul.mubr.f32.gmra.mrb[0].mxu0 %v2931
    %v2933 = vpop.f32.mrb[0].mxu0
    %v2934 = vadd.f32 0.0, %v2933
    %v2935 = vpop.f32.mrb[0].mxu0
    %2936 = vdwg.mxu0
    %2937 = vmatprep.subr.mxu0 0.0
    %v2938 = vand.u32 %v664, 4294901760
    %v2939 = vsub.f32 %v664, %v2938
    %v2940 = vand.u32 %v2939, 4294901760
    %v2941 = vsub.f32 %v2939, %v2940
    %v2942 = vand.u32 %v2941, 4294901760
    %2943 = vmatpush1.msra.mxu0 %v2942
    %2944 = vmatprep.subr.mxu0 0.0
    %v2945 = vand.u32 %v665, 4294901760
    %v2946 = vsub.f32 %v665, %v2945
    %v2947 = vand.u32 %v2946, 4294901760
    %v2948 = vsub.f32 %v2946, %v2947
    %v2949 = vand.u32 %v2948, 4294901760
    %2950 = vmatpush1.msra.mxu0 %v2949
    %2951 = vmatprep.subr.mxu0 0.0
    %v2952 = vand.u32 %v666, 4294901760
    %v2953 = vsub.f32 %v666, %v2952
    %v2954 = vand.u32 %v2953, 4294901760
    %v2955 = vsub.f32 %v2953, %v2954
    %v2956 = vand.u32 %v2955, 4294901760
    %2957 = vmatpush1.msra.mxu0 %v2956
    %2958 = vmatprep.subr.mxu0 0.0
    %v2959 = vand.u32 %v667, 4294901760
    %v2960 = vsub.f32 %v667, %v2959
    %v2961 = vand.u32 %v2960, 4294901760
    %v2962 = vsub.f32 %v2960, %v2961
    %v2963 = vand.u32 %v2962, 4294901760
    %2964 = vmatpush1.msra.mxu0 %v2963
    %2965 = vmatprep.subr.mxu0 0.0
    %v2966 = vand.u32 %v668, 4294901760
    %v2967 = vsub.f32 %v668, %v2966
    %v2968 = vand.u32 %v2967, 4294901760
    %v2969 = vsub.f32 %v2967, %v2968
    %v2970 = vand.u32 %v2969, 4294901760
    %2971 = vmatpush1.msra.mxu0 %v2970
    %2972 = vmatprep.subr.mxu0 0.0
    %v2973 = vand.u32 %v669, 4294901760
    %v2974 = vsub.f32 %v669, %v2973
    %v2975 = vand.u32 %v2974, 4294901760
    %v2976 = vsub.f32 %v2974, %v2975
    %v2977 = vand.u32 %v2976, 4294901760
    %2978 = vmatpush1.msra.mxu0 %v2977
    %2979 = vmatprep.subr.mxu0 0.0
    %v2980 = vand.u32 %v670, 4294901760
    %v2981 = vsub.f32 %v670, %v2980
    %v2982 = vand.u32 %v2981, 4294901760
    %v2983 = vsub.f32 %v2981, %v2982
    %v2984 = vand.u32 %v2983, 4294901760
    %2985 = vmatpush1.msra.mxu0 %v2984
    %2986 = vmatprep.subr.mxu0 0.0
    %v2987 = vand.u32 %v671, 4294901760
    %v2988 = vsub.f32 %v671, %v2987
    %v2989 = vand.u32 %v2988, 4294901760
    %v2990 = vsub.f32 %v2988, %v2989
    %v2991 = vand.u32 %v2990, 4294901760
    %2992 = vmatpush1.msra.mxu0 %v2991
    %2993 = vmatprep.subr.mxu0 0.0
    %2994 = vmatpush1.msra.mxu0 0.0
    %2995 = vmatprep.subr.mxu0 0.0
    %2996 = vmatpush1.msra.mxu0 0.0
    %2997 = vmatprep.subr.mxu0 0.0
    %2998 = vmatpush1.msra.mxu0 0.0
    %2999 = vmatprep.subr.mxu0 0.0
    %3000 = vmatpush1.msra.mxu0 0.0
    %3001 = vmatprep.subr.mxu0 0.0
    %3002 = vmatpush1.msra.mxu0 0.0
    %3003 = vmatprep.subr.mxu0 0.0
    %3004 = vmatpush1.msra.mxu0 0.0
    %3005 = vmatprep.subr.mxu0 0.0
    %3006 = vmatpush1.msra.mxu0 0.0
    %3007 = vmatprep.subr.mxu0 0.0
    %3008 = vmatpush1.msra.mxu0 0.0
    %3009 = vmatprep.subr.mxu0 0.0
    %3010 = vmatpush1.msra.mxu0 0.0
    %3011 = vmatprep.subr.mxu0 0.0
    %3012 = vmatpush1.msra.mxu0 0.0
    %3013 = vmatprep.subr.mxu0 0.0
    %3014 = vmatpush1.msra.mxu0 0.0
    %3015 = vmatprep.subr.mxu0 0.0
    %3016 = vmatpush1.msra.mxu0 0.0
    %3017 = vmatprep.subr.mxu0 0.0
    %3018 = vmatpush1.msra.mxu0 0.0
    %3019 = vmatprep.subr.mxu0 0.0
    %3020 = vmatpush1.msra.mxu0 0.0
    %3021 = vmatprep.subr.mxu0 0.0
    %3022 = vmatpush1.msra.mxu0 0.0
    %3023 = vmatprep.subr.mxu0 0.0
    %3024 = vmatpush1.msra.mxu0 0.0
    %3025 = vmatprep.subr.mxu0 0.0
    %3026 = vmatpush1.msra.mxu0 0.0
    %3027 = vmatprep.subr.mxu0 0.0
    %3028 = vmatpush1.msra.mxu0 0.0
    %3029 = vmatprep.subr.mxu0 0.0
    %3030 = vmatpush1.msra.mxu0 0.0
    %3031 = vmatprep.subr.mxu0 0.0
    %3032 = vmatpush1.msra.mxu0 0.0
    %3033 = vmatprep.subr.mxu0 0.0
    %3034 = vmatpush1.msra.mxu0 0.0
    %3035 = vmatprep.subr.mxu0 0.0
    %3036 = vmatpush1.msra.mxu0 0.0
    %3037 = vmatprep.subr.mxu0 0.0
    %3038 = vmatpush1.msra.mxu0 0.0
    %3039 = vmatprep.subr.mxu0 0.0
    %3040 = vmatpush1.msra.mxu0 0.0
    %3041 = vmatprep.mubr.f32.mxu0 0.0
    %v3042 = vand.u32 %v2852, 4294901760
    %3043 = vmatmul.mubr.f32.gmra.mrb[0].mxu0 %v3042
    %v3044 = vpop.f32.mrb[0].mxu0
    %v3045 = vadd.f32 %v2934, %v3044
    %v3046 = vpop.f32.mrb[0].mxu0
    %3047 = vdwg.mxu0
    %3048 = vmatprep.subr.mxu0 0.0
    %v3049 = vand.u32 %v664, 4294901760
    %v3050 = vsub.f32 %v664, %v3049
    %3051 = vmatpush1.msra.mxu0 %v3050
    %3052 = vmatprep.subr.mxu0 0.0
    %v3053 = vand.u32 %v665, 4294901760
    %v3054 = vsub.f32 %v665, %v3053
    %3055 = vmatpush1.msra.mxu0 %v3054
    %3056 = vmatprep.subr.mxu0 0.0
    %v3057 = vand.u32 %v666, 4294901760
    %v3058 = vsub.f32 %v666, %v3057
    %3059 = vmatpush1.msra.mxu0 %v3058
    %3060 = vmatprep.subr.mxu0 0.0
    %v3061 = vand.u32 %v667, 4294901760
    %v3062 = vsub.f32 %v667, %v3061
    %3063 = vmatpush1.msra.mxu0 %v3062
    %3064 = vmatprep.subr.mxu0 0.0
    %v3065 = vand.u32 %v668, 4294901760
    %v3066 = vsub.f32 %v668, %v3065
    %3067 = vmatpush1.msra.mxu0 %v3066
    %3068 = vmatprep.subr.mxu0 0.0
    %v3069 = vand.u32 %v669, 4294901760
    %v3070 = vsub.f32 %v669, %v3069
    %3071 = vmatpush1.msra.mxu0 %v3070
    %3072 = vmatprep.subr.mxu0 0.0
    %v3073 = vand.u32 %v670, 4294901760
    %v3074 = vsub.f32 %v670, %v3073
    %3075 = vmatpush1.msra.mxu0 %v3074
    %3076 = vmatprep.subr.mxu0 0.0
    %v3077 = vand.u32 %v671, 4294901760
    %v3078 = vsub.f32 %v671, %v3077
    %3079 = vmatpush1.msra.mxu0 %v3078
    %3080 = vmatprep.subr.mxu0 0.0
    %3081 = vmatpush1.msra.mxu0 0.0
    %3082 = vmatprep.subr.mxu0 0.0
    %3083 = vmatpush1.msra.mxu0 0.0
    %3084 = vmatprep.subr.mxu0 0.0
    %3085 = vmatpush1.msra.mxu0 0.0
    %3086 = vmatprep.subr.mxu0 0.0
    %3087 = vmatpush1.msra.mxu0 0.0
    %3088 = vmatprep.subr.mxu0 0.0
    %3089 = vmatpush1.msra.mxu0 0.0
    %3090 = vmatprep.subr.mxu0 0.0
    %3091 = vmatpush1.msra.mxu0 0.0
    %3092 = vmatprep.subr.mxu0 0.0
    %3093 = vmatpush1.msra.mxu0 0.0
    %3094 = vmatprep.subr.mxu0 0.0
    %3095 = vmatpush1.msra.mxu0 0.0
    %3096 = vmatprep.subr.mxu0 0.0
    %3097 = vmatpush1.msra.mxu0 0.0
    %3098 = vmatprep.subr.mxu0 0.0
    %3099 = vmatpush1.msra.mxu0 0.0
    %3100 = vmatprep.subr.mxu0 0.0
    %3101 = vmatpush1.msra.mxu0 0.0
    %3102 = vmatprep.subr.mxu0 0.0
    %3103 = vmatpush1.msra.mxu0 0.0
    %3104 = vmatprep.subr.mxu0 0.0
    %3105 = vmatpush1.msra.mxu0 0.0
    %3106 = vmatprep.subr.mxu0 0.0
    %3107 = vmatpush1.msra.mxu0 0.0
    %3108 = vmatprep.subr.mxu0 0.0
    %3109 = vmatpush1.msra.mxu0 0.0
    %3110 = vmatprep.subr.mxu0 0.0
    %3111 = vmatpush1.msra.mxu0 0.0
    %3112 = vmatprep.subr.mxu0 0.0
    %3113 = vmatpush1.msra.mxu0 0.0
    %3114 = vmatprep.subr.mxu0 0.0
    %3115 = vmatpush1.msra.mxu0 0.0
    %3116 = vmatprep.subr.mxu0 0.0
    %3117 = vmatpush1.msra.mxu0 0.0
    %3118 = vmatprep.subr.mxu0 0.0
    %3119 = vmatpush1.msra.mxu0 0.0
    %3120 = vmatprep.subr.mxu0 0.0
    %3121 = vmatpush1.msra.mxu0 0.0
    %3122 = vmatprep.subr.mxu0 0.0
    %3123 = vmatpush1.msra.mxu0 0.0
    %3124 = vmatprep.subr.mxu0 0.0
    %3125 = vmatpush1.msra.mxu0 0.0
    %3126 = vmatprep.subr.mxu0 0.0
    %3127 = vmatpush1.msra.mxu0 0.0
    %3128 = vmatprep.mubr.f32.mxu0 0.0
    %v3129 = vand.u32 %v2852, 4294901760
    %v3130 = vsub.f32 %v2852, %v3129
    %3131 = vmatmul.mubr.f32.gmra.mrb[0].mxu0 %v3130
    %v3132 = vpop.f32.mrb[0].mxu0
    %v3133 = vadd.f32 %v3045, %v3132
    %v3134 = vpop.f32.mrb[0].mxu0
    %3135 = vdwg.mxu0
    %3136 = vmatprep.subr.mxu0 0.0
    %v3137 = vand.u32 %v664, 4294901760
    %3138 = vmatpush1.msra.mxu0 %v3137
    %3139 = vmatprep.subr.mxu0 0.0
    %v3140 = vand.u32 %v665, 4294901760
    %3141 = vmatpush1.msra.mxu0 %v3140
    %3142 = vmatprep.subr.mxu0 0.0
    %v3143 = vand.u32 %v666, 4294901760
    %3144 = vmatpush1.msra.mxu0 %v3143
    %3145 = vmatprep.subr.mxu0 0.0
    %v3146 = vand.u32 %v667, 4294901760
    %3147 = vmatpush1.msra.mxu0 %v3146
    %3148 = vmatprep.subr.mxu0 0.0
    %v3149 = vand.u32 %v668, 4294901760
    %3150 = vmatpush1.msra.mxu0 %v3149
    %3151 = vmatprep.subr.mxu0 0.0
    %v3152 = vand.u32 %v669, 4294901760
    %3153 = vmatpush1.msra.mxu0 %v3152
    %3154 = vmatprep.subr.mxu0 0.0
    %v3155 = vand.u32 %v670, 4294901760
    %3156 = vmatpush1.msra.mxu0 %v3155
    %3157 = vmatprep.subr.mxu0 0.0
    %v3158 = vand.u32 %v671, 4294901760
    %3159 = vmatpush1.msra.mxu0 %v3158
    %3160 = vmatprep.subr.mxu0 0.0
    %3161 = vmatpush1.msra.mxu0 0.0
    %3162 = vmatprep.subr.mxu0 0.0
    %3163 = vmatpush1.msra.mxu0 0.0
    %3164 = vmatprep.subr.mxu0 0.0
    %3165 = vmatpush1.msra.mxu0 0.0
    %3166 = vmatprep.subr.mxu0 0.0
    %3167 = vmatpush1.msra.mxu0 0.0
    %3168 = vmatprep.subr.mxu0 0.0
    %3169 = vmatpush1.msra.mxu0 0.0
    %3170 = vmatprep.subr.mxu0 0.0
    %3171 = vmatpush1.msra.mxu0 0.0
    %3172 = vmatprep.subr.mxu0 0.0
    %3173 = vmatpush1.msra.mxu0 0.0
    %3174 = vmatprep.subr.mxu0 0.0
    %3175 = vmatpush1.msra.mxu0 0.0
    %3176 = vmatprep.subr.mxu0 0.0
    %3177 = vmatpush1.msra.mxu0 0.0
    %3178 = vmatprep.subr.mxu0 0.0
    %3179 = vmatpush1.msra.mxu0 0.0
    %3180 = vmatprep.subr.mxu0 0.0
    %3181 = vmatpush1.msra.mxu0 0.0
    %3182 = vmatprep.subr.mxu0 0.0
    %3183 = vmatpush1.msra.mxu0 0.0
    %3184 = vmatprep.subr.mxu0 0.0
    %3185 = vmatpush1.msra.mxu0 0.0
    %3186 = vmatprep.subr.mxu0 0.0
    %3187 = vmatpush1.msra.mxu0 0.0
    %3188 = vmatprep.subr.mxu0 0.0
    %3189 = vmatpush1.msra.mxu0 0.0
    %3190 = vmatprep.subr.mxu0 0.0
    %3191 = vmatpush1.msra.mxu0 0.0
    %3192 = vmatprep.subr.mxu0 0.0
    %3193 = vmatpush1.msra.mxu0 0.0
    %3194 = vmatprep.subr.mxu0 0.0
    %3195 = vmatpush1.msra.mxu0 0.0
    %3196 = vmatprep.subr.mxu0 0.0
    %3197 = vmatpush1.msra.mxu0 0.0
    %3198 = vmatprep.subr.mxu0 0.0
    %3199 = vmatpush1.msra.mxu0 0.0
    %3200 = vmatprep.subr.mxu0 0.0
    %3201 = vmatpush1.msra.mxu0 0.0
    %3202 = vmatprep.subr.mxu0 0.0
    %3203 = vmatpush1.msra.mxu0 0.0
    %3204 = vmatprep.subr.mxu0 0.0
    %3205 = vmatpush1.msra.mxu0 0.0
    %3206 = vmatprep.subr.mxu0 0.0
    %3207 = vmatpush1.msra.mxu0 0.0
    %3208 = vmatprep.mubr.f32.mxu0 0.0
    %v3209 = vand.u32 %v2852, 4294901760
    %v3210 = vsub.f32 %v2852, %v3209
    %v3211 = vand.u32 %v3210, 4294901760
    %3212 = vmatmul.mubr.f32.gmra.mrb[0].mxu0 %v3211
    %v3213 = vpop.f32.mrb[0].mxu0
    %v3214 = vadd.f32 %v3133, %v3213
    %v3215 = vpop.f32.mrb[0].mxu0
    %3216 = vdwg.mxu0
    %3217 = vmatprep.subr.mxu0 0.0
    %v3218 = vand.u32 %v664, 4294901760
    %v3219 = vsub.f32 %v664, %v3218
    %v3220 = vand.u32 %v3219, 4294901760
    %3221 = vmatpush1.msra.mxu0 %v3220
    %3222 = vmatprep.subr.mxu0 0.0
    %v3223 = vand.u32 %v665, 4294901760
    %v3224 = vsub.f32 %v665, %v3223
    %v3225 = vand.u32 %v3224, 4294901760
    %3226 = vmatpush1.msra.mxu0 %v3225
    %3227 = vmatprep.subr.mxu0 0.0
    %v3228 = vand.u32 %v666, 4294901760
    %v3229 = vsub.f32 %v666, %v3228
    %v3230 = vand.u32 %v3229, 4294901760
    %3231 = vmatpush1.msra.mxu0 %v3230
    %3232 = vmatprep.subr.mxu0 0.0
    %v3233 = vand.u32 %v667, 4294901760
    %v3234 = vsub.f32 %v667, %v3233
    %v3235 = vand.u32 %v3234, 4294901760
    %3236 = vmatpush1.msra.mxu0 %v3235
    %3237 = vmatprep.subr.mxu0 0.0
    %v3238 = vand.u32 %v668, 4294901760
    %v3239 = vsub.f32 %v668, %v3238
    %v3240 = vand.u32 %v3239, 4294901760
    %3241 = vmatpush1.msra.mxu0 %v3240
    %3242 = vmatprep.subr.mxu0 0.0
    %v3243 = vand.u32 %v669, 4294901760
    %v3244 = vsub.f32 %v669, %v3243
    %v3245 = vand.u32 %v3244, 4294901760
    %3246 = vmatpush1.msra.mxu0 %v3245
    %3247 = vmatprep.subr.mxu0 0.0
    %v3248 = vand.u32 %v670, 4294901760
    %v3249 = vsub.f32 %v670, %v3248
    %v3250 = vand.u32 %v3249, 4294901760
    %3251 = vmatpush1.msra.mxu0 %v3250
    %3252 = vmatprep.subr.mxu0 0.0
    %v3253 = vand.u32 %v671, 4294901760
    %v3254 = vsub.f32 %v671, %v3253
    %v3255 = vand.u32 %v3254, 4294901760
    %3256 = vmatpush1.msra.mxu0 %v3255
    %3257 = vmatprep.subr.mxu0 0.0
    %3258 = vmatpush1.msra.mxu0 0.0
    %3259 = vmatprep.subr.mxu0 0.0
    %3260 = vmatpush1.msra.mxu0 0.0
    %3261 = vmatprep.subr.mxu0 0.0
    %3262 = vmatpush1.msra.mxu0 0.0
    %3263 = vmatprep.subr.mxu0 0.0
    %3264 = vmatpush1.msra.mxu0 0.0
    %3265 = vmatprep.subr.mxu0 0.0
    %3266 = vmatpush1.msra.mxu0 0.0
    %3267 = vmatprep.subr.mxu0 0.0
    %3268 = vmatpush1.msra.mxu0 0.0
    %3269 = vmatprep.subr.mxu0 0.0
    %3270 = vmatpush1.msra.mxu0 0.0
    %3271 = vmatprep.subr.mxu0 0.0
    %3272 = vmatpush1.msra.mxu0 0.0
    %3273 = vmatprep.subr.mxu0 0.0
    %3274 = vmatpush1.msra.mxu0 0.0
    %3275 = vmatprep.subr.mxu0 0.0
    %3276 = vmatpush1.msra.mxu0 0.0
    %3277 = vmatprep.subr.mxu0 0.0
    %3278 = vmatpush1.msra.mxu0 0.0
    %3279 = vmatprep.subr.mxu0 0.0
    %3280 = vmatpush1.msra.mxu0 0.0
    %3281 = vmatprep.subr.mxu0 0.0
    %3282 = vmatpush1.msra.mxu0 0.0
    %3283 = vmatprep.subr.mxu0 0.0
    %3284 = vmatpush1.msra.mxu0 0.0
    %3285 = vmatprep.subr.mxu0 0.0
    %3286 = vmatpush1.msra.mxu0 0.0
    %3287 = vmatprep.subr.mxu0 0.0
    %3288 = vmatpush1.msra.mxu0 0.0
    %3289 = vmatprep.subr.mxu0 0.0
    %3290 = vmatpush1.msra.mxu0 0.0
    %3291 = vmatprep.subr.mxu0 0.0
    %3292 = vmatpush1.msra.mxu0 0.0
    %3293 = vmatprep.subr.mxu0 0.0
    %3294 = vmatpush1.msra.mxu0 0.0
    %3295 = vmatprep.subr.mxu0 0.0
    %3296 = vmatpush1.msra.mxu0 0.0
    %3297 = vmatprep.subr.mxu0 0.0
    %3298 = vmatpush1.msra.mxu0 0.0
    %3299 = vmatprep.subr.mxu0 0.0
    %3300 = vmatpush1.msra.mxu0 0.0
    %3301 = vmatprep.subr.mxu0 0.0
    %3302 = vmatpush1.msra.mxu0 0.0
    %3303 = vmatprep.subr.mxu0 0.0
    %3304 = vmatpush1.msra.mxu0 0.0
    %3305 = vmatprep.mubr.f32.mxu0 0.0
    %v3306 = vand.u32 %v2852, 4294901760
    %3307 = vmatmul.mubr.f32.gmra.mrb[0].mxu0 %v3306
    %v3308 = vpop.f32.mrb[0].mxu0
    %v3309 = vadd.f32 %v3214, %v3308
    %v3310 = vpop.f32.mrb[0].mxu0
    %3311 = vdwg.mxu0
    %3312 = vmatprep.subr.mxu0 0.0
    %v3313 = vand.u32 %v664, 4294901760
    %3314 = vmatpush1.msra.mxu0 %v3313
    %3315 = vmatprep.subr.mxu0 0.0
    %v3316 = vand.u32 %v665, 4294901760
    %3317 = vmatpush1.msra.mxu0 %v3316
    %3318 = vmatprep.subr.mxu0 0.0
    %v3319 = vand.u32 %v666, 4294901760
    %3320 = vmatpush1.msra.mxu0 %v3319
    %3321 = vmatprep.subr.mxu0 0.0
    %v3322 = vand.u32 %v667, 4294901760
    %3323 = vmatpush1.msra.mxu0 %v3322
    %3324 = vmatprep.subr.mxu0 0.0
    %v3325 = vand.u32 %v668, 4294901760
    %3326 = vmatpush1.msra.mxu0 %v3325
    %3327 = vmatprep.subr.mxu0 0.0
    %v3328 = vand.u32 %v669, 4294901760
    %3329 = vmatpush1.msra.mxu0 %v3328
    %3330 = vmatprep.subr.mxu0 0.0
    %v3331 = vand.u32 %v670, 4294901760
    %3332 = vmatpush1.msra.mxu0 %v3331
    %3333 = vmatprep.subr.mxu0 0.0
    %v3334 = vand.u32 %v671, 4294901760
    %3335 = vmatpush1.msra.mxu0 %v3334
    %3336 = vmatprep.subr.mxu0 0.0
    %3337 = vmatpush1.msra.mxu0 0.0
    %3338 = vmatprep.subr.mxu0 0.0
    %3339 = vmatpush1.msra.mxu0 0.0
    %3340 = vmatprep.subr.mxu0 0.0
    %3341 = vmatpush1.msra.mxu0 0.0
    %3342 = vmatprep.subr.mxu0 0.0
    %3343 = vmatpush1.msra.mxu0 0.0
    %3344 = vmatprep.subr.mxu0 0.0
    %3345 = vmatpush1.msra.mxu0 0.0
    %3346 = vmatprep.subr.mxu0 0.0
    %3347 = vmatpush1.msra.mxu0 0.0
    %3348 = vmatprep.subr.mxu0 0.0
    %3349 = vmatpush1.msra.mxu0 0.0
    %3350 = vmatprep.subr.mxu0 0.0
    %3351 = vmatpush1.msra.mxu0 0.0
    %3352 = vmatprep.subr.mxu0 0.0
    %3353 = vmatpush1.msra.mxu0 0.0
    %3354 = vmatprep.subr.mxu0 0.0
    %3355 = vmatpush1.msra.mxu0 0.0
    %3356 = vmatprep.subr.mxu0 0.0
    %3357 = vmatpush1.msra.mxu0 0.0
    %3358 = vmatprep.subr.mxu0 0.0
    %3359 = vmatpush1.msra.mxu0 0.0
    %3360 = vmatprep.subr.mxu0 0.0
    %3361 = vmatpush1.msra.mxu0 0.0
    %3362 = vmatprep.subr.mxu0 0.0
    %3363 = vmatpush1.msra.mxu0 0.0
    %3364 = vmatprep.subr.mxu0 0.0
    %3365 = vmatpush1.msra.mxu0 0.0
    %3366 = vmatprep.subr.mxu0 0.0
    %3367 = vmatpush1.msra.mxu0 0.0
    %3368 = vmatprep.subr.mxu0 0.0
    %3369 = vmatpush1.msra.mxu0 0.0
    %3370 = vmatprep.subr.mxu0 0.0
    %3371 = vmatpush1.msra.mxu0 0.0
    %3372 = vmatprep.subr.mxu0 0.0
    %3373 = vmatpush1.msra.mxu0 0.0
    %3374 = vmatprep.subr.mxu0 0.0
    %3375 = vmatpush1.msra.mxu0 0.0
    %3376 = vmatprep.subr.mxu0 0.0
    %3377 = vmatpush1.msra.mxu0 0.0
    %3378 = vmatprep.subr.mxu0 0.0
    %3379 = vmatpush1.msra.mxu0 0.0
    %3380 = vmatprep.subr.mxu0 0.0
    %3381 = vmatpush1.msra.mxu0 0.0
    %3382 = vmatprep.subr.mxu0 0.0
    %3383 = vmatpush1.msra.mxu0 0.0
    %3384 = vmatprep.mubr.f32.mxu0 0.0
    %v3385 = vand.u32 %v2852, 4294901760
    %3386 = vmatmul.mubr.f32.gmra.mrb[0].mxu0 %v3385
    %v3387 = vpop.f32.mrb[0].mxu0
    %v3388 = vadd.f32 %v3309, %v3387
    %v3389 = vpop.f32.mrb[0].mxu0
    %3390 = vdwg.mxu0
    %v3391 = vsel %vm23, %v627, 0
    %3393 = vmatprep.subr.mxu0 0.0
    %v3394 = vand.u32 %v672, 4294901760
    %3395 = vmatpush1.msra.mxu0 %v3394
    %3396 = vmatprep.subr.mxu0 0.0
    %v3397 = vand.u32 %v673, 4294901760
    %3398 = vmatpush1.msra.mxu0 %v3397
    %3399 = vmatprep.subr.mxu0 0.0
    %v3400 = vand.u32 %v674, 4294901760
    %3401 = vmatpush1.msra.mxu0 %v3400
    %3402 = vmatprep.subr.mxu0 0.0
    %v3403 = vand.u32 %v675, 4294901760
    %3404 = vmatpush1.msra.mxu0 %v3403
    %3405 = vmatprep.subr.mxu0 0.0
    %v3406 = vand.u32 %v676, 4294901760
    %3407 = vmatpush1.msra.mxu0 %v3406
    %3408 = vmatprep.subr.mxu0 0.0
    %v3409 = vand.u32 %v677, 4294901760
    %3410 = vmatpush1.msra.mxu0 %v3409
    %3411 = vmatprep.subr.mxu0 0.0
    %v3412 = vand.u32 %v678, 4294901760
    %3413 = vmatpush1.msra.mxu0 %v3412
    %3414 = vmatprep.subr.mxu0 0.0
    %v3415 = vand.u32 %v679, 4294901760
    %3416 = vmatpush1.msra.mxu0 %v3415
    %3417 = vmatprep.subr.mxu0 0.0
    %3418 = vmatpush1.msra.mxu0 0.0
    %3419 = vmatprep.subr.mxu0 0.0
    %3420 = vmatpush1.msra.mxu0 0.0
    %3421 = vmatprep.subr.mxu0 0.0
    %3422 = vmatpush1.msra.mxu0 0.0
    %3423 = vmatprep.subr.mxu0 0.0
    %3424 = vmatpush1.msra.mxu0 0.0
    %3425 = vmatprep.subr.mxu0 0.0
    %3426 = vmatpush1.msra.mxu0 0.0
    %3427 = vmatprep.subr.mxu0 0.0
    %3428 = vmatpush1.msra.mxu0 0.0
    %3429 = vmatprep.subr.mxu0 0.0
    %3430 = vmatpush1.msra.mxu0 0.0
    %3431 = vmatprep.subr.mxu0 0.0
    %3432 = vmatpush1.msra.mxu0 0.0
    %3433 = vmatprep.subr.mxu0 0.0
    %3434 = vmatpush1.msra.mxu0 0.0
    %3435 = vmatprep.subr.mxu0 0.0
    %3436 = vmatpush1.msra.mxu0 0.0
    %3437 = vmatprep.subr.mxu0 0.0
    %3438 = vmatpush1.msra.mxu0 0.0
    %3439 = vmatprep.subr.mxu0 0.0
    %3440 = vmatpush1.msra.mxu0 0.0
    %3441 = vmatprep.subr.mxu0 0.0
    %3442 = vmatpush1.msra.mxu0 0.0
    %3443 = vmatprep.subr.mxu0 0.0
    %3444 = vmatpush1.msra.mxu0 0.0
    %3445 = vmatprep.subr.mxu0 0.0
    %3446 = vmatpush1.msra.mxu0 0.0
    %3447 = vmatprep.subr.mxu0 0.0
    %3448 = vmatpush1.msra.mxu0 0.0
    %3449 = vmatprep.subr.mxu0 0.0
    %3450 = vmatpush1.msra.mxu0 0.0
    %3451 = vmatprep.subr.mxu0 0.0
    %3452 = vmatpush1.msra.mxu0 0.0
    %3453 = vmatprep.subr.mxu0 0.0
    %3454 = vmatpush1.msra.mxu0 0.0
    %3455 = vmatprep.subr.mxu0 0.0
    %3456 = vmatpush1.msra.mxu0 0.0
    %3457 = vmatprep.subr.mxu0 0.0
    %3458 = vmatpush1.msra.mxu0 0.0
    %3459 = vmatprep.subr.mxu0 0.0
    %3460 = vmatpush1.msra.mxu0 0.0
    %3461 = vmatprep.subr.mxu0 0.0
    %3462 = vmatpush1.msra.mxu0 0.0
    %3463 = vmatprep.subr.mxu0 0.0
    %3464 = vmatpush1.msra.mxu0 0.0
    %3465 = vmatprep.mubr.f32.mxu0 0.0
    %v3466 = vand.u32 %v3391, 4294901760
    %v3467 = vsub.f32 %v3391, %v3466
    %v3468 = vand.u32 %v3467, 4294901760
    %v3469 = vsub.f32 %v3467, %v3468
    %v3470 = vand.u32 %v3469, 4294901760
    %3471 = vmatmul.mubr.f32.gmra.mrb[0].mxu0 %v3470
    %v3472 = vpop.f32.mrb[0].mxu0
    %v3473 = vadd.f32 0.0, %v3472
    %v3474 = vpop.f32.mrb[0].mxu0
    %3475 = vdwg.mxu0
    %3476 = vmatprep.subr.mxu0 0.0
    %v3477 = vand.u32 %v672, 4294901760
    %v3478 = vsub.f32 %v672, %v3477
    %v3479 = vand.u32 %v3478, 4294901760
    %v3480 = vsub.f32 %v3478, %v3479
    %v3481 = vand.u32 %v3480, 4294901760
    %3482 = vmatpush1.msra.mxu0 %v3481
    %3483 = vmatprep.subr.mxu0 0.0
    %v3484 = vand.u32 %v673, 4294901760
    %v3485 = vsub.f32 %v673, %v3484
    %v3486 = vand.u32 %v3485, 4294901760
    %v3487 = vsub.f32 %v3485, %v3486
    %v3488 = vand.u32 %v3487, 4294901760
    %3489 = vmatpush1.msra.mxu0 %v3488
    %3490 = vmatprep.subr.mxu0 0.0
    %v3491 = vand.u32 %v674, 4294901760
    %v3492 = vsub.f32 %v674, %v3491
    %v3493 = vand.u32 %v3492, 4294901760
    %v3494 = vsub.f32 %v3492, %v3493
    %v3495 = vand.u32 %v3494, 4294901760
    %3496 = vmatpush1.msra.mxu0 %v3495
    %3497 = vmatprep.subr.mxu0 0.0
    %v3498 = vand.u32 %v675, 4294901760
    %v3499 = vsub.f32 %v675, %v3498
    %v3500 = vand.u32 %v3499, 4294901760
    %v3501 = vsub.f32 %v3499, %v3500
    %v3502 = vand.u32 %v3501, 4294901760
    %3503 = vmatpush1.msra.mxu0 %v3502
    %3504 = vmatprep.subr.mxu0 0.0
    %v3505 = vand.u32 %v676, 4294901760
    %v3506 = vsub.f32 %v676, %v3505
    %v3507 = vand.u32 %v3506, 4294901760
    %v3508 = vsub.f32 %v3506, %v3507
    %v3509 = vand.u32 %v3508, 4294901760
    %3510 = vmatpush1.msra.mxu0 %v3509
    %3511 = vmatprep.subr.mxu0 0.0
    %v3512 = vand.u32 %v677, 4294901760
    %v3513 = vsub.f32 %v677, %v3512
    %v3514 = vand.u32 %v3513, 4294901760
    %v3515 = vsub.f32 %v3513, %v3514
    %v3516 = vand.u32 %v3515, 4294901760
    %3517 = vmatpush1.msra.mxu0 %v3516
    %3518 = vmatprep.subr.mxu0 0.0
    %v3519 = vand.u32 %v678, 4294901760
    %v3520 = vsub.f32 %v678, %v3519
    %v3521 = vand.u32 %v3520, 4294901760
    %v3522 = vsub.f32 %v3520, %v3521
    %v3523 = vand.u32 %v3522, 4294901760
    %3524 = vmatpush1.msra.mxu0 %v3523
    %3525 = vmatprep.subr.mxu0 0.0
    %v3526 = vand.u32 %v679, 4294901760
    %v3527 = vsub.f32 %v679, %v3526
    %v3528 = vand.u32 %v3527, 4294901760
    %v3529 = vsub.f32 %v3527, %v3528
    %v3530 = vand.u32 %v3529, 4294901760
    %3531 = vmatpush1.msra.mxu0 %v3530
    %3532 = vmatprep.subr.mxu0 0.0
    %3533 = vmatpush1.msra.mxu0 0.0
    %3534 = vmatprep.subr.mxu0 0.0
    %3535 = vmatpush1.msra.mxu0 0.0
    %3536 = vmatprep.subr.mxu0 0.0
    %3537 = vmatpush1.msra.mxu0 0.0
    %3538 = vmatprep.subr.mxu0 0.0
    %3539 = vmatpush1.msra.mxu0 0.0
    %3540 = vmatprep.subr.mxu0 0.0
    %3541 = vmatpush1.msra.mxu0 0.0
    %3542 = vmatprep.subr.mxu0 0.0
    %3543 = vmatpush1.msra.mxu0 0.0
    %3544 = vmatprep.subr.mxu0 0.0
    %3545 = vmatpush1.msra.mxu0 0.0
    %3546 = vmatprep.subr.mxu0 0.0
    %3547 = vmatpush1.msra.mxu0 0.0
    %3548 = vmatprep.subr.mxu0 0.0
    %3549 = vmatpush1.msra.mxu0 0.0
    %3550 = vmatprep.subr.mxu0 0.0
    %3551 = vmatpush1.msra.mxu0 0.0
    %3552 = vmatprep.subr.mxu0 0.0
    %3553 = vmatpush1.msra.mxu0 0.0
    %3554 = vmatprep.subr.mxu0 0.0
    %3555 = vmatpush1.msra.mxu0 0.0
    %3556 = vmatprep.subr.mxu0 0.0
    %3557 = vmatpush1.msra.mxu0 0.0
    %3558 = vmatprep.subr.mxu0 0.0
    %3559 = vmatpush1.msra.mxu0 0.0
    %3560 = vmatprep.subr.mxu0 0.0
    %3561 = vmatpush1.msra.mxu0 0.0
    %3562 = vmatprep.subr.mxu0 0.0
    %3563 = vmatpush1.msra.mxu0 0.0
    %3564 = vmatprep.subr.mxu0 0.0
    %3565 = vmatpush1.msra.mxu0 0.0
    %3566 = vmatprep.subr.mxu0 0.0
    %3567 = vmatpush1.msra.mxu0 0.0
    %3568 = vmatprep.subr.mxu0 0.0
    %3569 = vmatpush1.msra.mxu0 0.0
    %3570 = vmatprep.subr.mxu0 0.0
    %3571 = vmatpush1.msra.mxu0 0.0
    %3572 = vmatprep.subr.mxu0 0.0
    %3573 = vmatpush1.msra.mxu0 0.0
    %3574 = vmatprep.subr.mxu0 0.0
    %3575 = vmatpush1.msra.mxu0 0.0
    %3576 = vmatprep.subr.mxu0 0.0
    %3577 = vmatpush1.msra.mxu0 0.0
    %3578 = vmatprep.subr.mxu0 0.0
    %3579 = vmatpush1.msra.mxu0 0.0
    %3580 = vmatprep.mubr.f32.mxu0 0.0
    %v3581 = vand.u32 %v3391, 4294901760
    %3582 = vmatmul.mubr.f32.gmra.mrb[0].mxu0 %v3581
    %v3583 = vpop.f32.mrb[0].mxu0
    %v3584 = vadd.f32 %v3473, %v3583
    %v3585 = vpop.f32.mrb[0].mxu0
    %3586 = vdwg.mxu0
    %3587 = vmatprep.subr.mxu0 0.0
    %v3588 = vand.u32 %v672, 4294901760
    %v3589 = vsub.f32 %v672, %v3588
    %3590 = vmatpush1.msra.mxu0 %v3589
    %3591 = vmatprep.subr.mxu0 0.0
    %v3592 = vand.u32 %v673, 4294901760
    %v3593 = vsub.f32 %v673, %v3592
    %3594 = vmatpush1.msra.mxu0 %v3593
    %3595 = vmatprep.subr.mxu0 0.0
    %v3596 = vand.u32 %v674, 4294901760
    %v3597 = vsub.f32 %v674, %v3596
    %3598 = vmatpush1.msra.mxu0 %v3597
    %3599 = vmatprep.subr.mxu0 0.0
    %v3600 = vand.u32 %v675, 4294901760
    %v3601 = vsub.f32 %v675, %v3600
    %3602 = vmatpush1.msra.mxu0 %v3601
    %3603 = vmatprep.subr.mxu0 0.0
    %v3604 = vand.u32 %v676, 4294901760
    %v3605 = vsub.f32 %v676, %v3604
    %3606 = vmatpush1.msra.mxu0 %v3605
    %3607 = vmatprep.subr.mxu0 0.0
    %v3608 = vand.u32 %v677, 4294901760
    %v3609 = vsub.f32 %v677, %v3608
    %3610 = vmatpush1.msra.mxu0 %v3609
    %3611 = vmatprep.subr.mxu0 0.0
    %v3612 = vand.u32 %v678, 4294901760
    %v3613 = vsub.f32 %v678, %v3612
    %3614 = vmatpush1.msra.mxu0 %v3613
    %3615 = vmatprep.subr.mxu0 0.0
    %v3616 = vand.u32 %v679, 4294901760
    %v3617 = vsub.f32 %v679, %v3616
    %3618 = vmatpush1.msra.mxu0 %v3617
    %3619 = vmatprep.subr.mxu0 0.0
    %3620 = vmatpush1.msra.mxu0 0.0
    %3621 = vmatprep.subr.mxu0 0.0
    %3622 = vmatpush1.msra.mxu0 0.0
    %3623 = vmatprep.subr.mxu0 0.0
    %3624 = vmatpush1.msra.mxu0 0.0
    %3625 = vmatprep.subr.mxu0 0.0
    %3626 = vmatpush1.msra.mxu0 0.0
    %3627 = vmatprep.subr.mxu0 0.0
    %3628 = vmatpush1.msra.mxu0 0.0
    %3629 = vmatprep.subr.mxu0 0.0
    %3630 = vmatpush1.msra.mxu0 0.0
    %3631 = vmatprep.subr.mxu0 0.0
    %3632 = vmatpush1.msra.mxu0 0.0
    %3633 = vmatprep.subr.mxu0 0.0
    %3634 = vmatpush1.msra.mxu0 0.0
    %3635 = vmatprep.subr.mxu0 0.0
    %3636 = vmatpush1.msra.mxu0 0.0
    %3637 = vmatprep.subr.mxu0 0.0
    %3638 = vmatpush1.msra.mxu0 0.0
    %3639 = vmatprep.subr.mxu0 0.0
    %3640 = vmatpush1.msra.mxu0 0.0
    %3641 = vmatprep.subr.mxu0 0.0
    %3642 = vmatpush1.msra.mxu0 0.0
    %3643 = vmatprep.subr.mxu0 0.0
    %3644 = vmatpush1.msra.mxu0 0.0
    %3645 = vmatprep.subr.mxu0 0.0
    %3646 = vmatpush1.msra.mxu0 0.0
    %3647 = vmatprep.subr.mxu0 0.0
    %3648 = vmatpush1.msra.mxu0 0.0
    %3649 = vmatprep.subr.mxu0 0.0
    %3650 = vmatpush1.msra.mxu0 0.0
    %3651 = vmatprep.subr.mxu0 0.0
    %3652 = vmatpush1.msra.mxu0 0.0
    %3653 = vmatprep.subr.mxu0 0.0
    %3654 = vmatpush1.msra.mxu0 0.0
    %3655 = vmatprep.subr.mxu0 0.0
    %3656 = vmatpush1.msra.mxu0 0.0
    %3657 = vmatprep.subr.mxu0 0.0
    %3658 = vmatpush1.msra.mxu0 0.0
    %3659 = vmatprep.subr.mxu0 0.0
    %3660 = vmatpush1.msra.mxu0 0.0
    %3661 = vmatprep.subr.mxu0 0.0
    %3662 = vmatpush1.msra.mxu0 0.0
    %3663 = vmatprep.subr.mxu0 0.0
    %3664 = vmatpush1.msra.mxu0 0.0
    %3665 = vmatprep.subr.mxu0 0.0
    %3666 = vmatpush1.msra.mxu0 0.0
    %3667 = vmatprep.mubr.f32.mxu0 0.0
    %v3668 = vand.u32 %v3391, 4294901760
    %v3669 = vsub.f32 %v3391, %v3668
    %3670 = vmatmul.mubr.f32.gmra.mrb[0].mxu0 %v3669
    %v3671 = vpop.f32.mrb[0].mxu0
    %v3672 = vadd.f32 %v3584, %v3671
    %v3673 = vpop.f32.mrb[0].mxu0
    %3674 = vdwg.mxu0
    %3675 = vmatprep.subr.mxu0 0.0
    %v3676 = vand.u32 %v672, 4294901760
    %3677 = vmatpush1.msra.mxu0 %v3676
    %3678 = vmatprep.subr.mxu0 0.0
    %v3679 = vand.u32 %v673, 4294901760
    %3680 = vmatpush1.msra.mxu0 %v3679
    %3681 = vmatprep.subr.mxu0 0.0
    %v3682 = vand.u32 %v674, 4294901760
    %3683 = vmatpush1.msra.mxu0 %v3682
    %3684 = vmatprep.subr.mxu0 0.0
    %v3685 = vand.u32 %v675, 4294901760
    %3686 = vmatpush1.msra.mxu0 %v3685
    %3687 = vmatprep.subr.mxu0 0.0
    %v3688 = vand.u32 %v676, 4294901760
    %3689 = vmatpush1.msra.mxu0 %v3688
    %3690 = vmatprep.subr.mxu0 0.0
    %v3691 = vand.u32 %v677, 4294901760
    %3692 = vmatpush1.msra.mxu0 %v3691
    %3693 = vmatprep.subr.mxu0 0.0
    %v3694 = vand.u32 %v678, 4294901760
    %3695 = vmatpush1.msra.mxu0 %v3694
    %3696 = vmatprep.subr.mxu0 0.0
    %v3697 = vand.u32 %v679, 4294901760
    %3698 = vmatpush1.msra.mxu0 %v3697
    %3699 = vmatprep.subr.mxu0 0.0
    %3700 = vmatpush1.msra.mxu0 0.0
    %3701 = vmatprep.subr.mxu0 0.0
    %3702 = vmatpush1.msra.mxu0 0.0
    %3703 = vmatprep.subr.mxu0 0.0
    %3704 = vmatpush1.msra.mxu0 0.0
    %3705 = vmatprep.subr.mxu0 0.0
    %3706 = vmatpush1.msra.mxu0 0.0
    %3707 = vmatprep.subr.mxu0 0.0
    %3708 = vmatpush1.msra.mxu0 0.0
    %3709 = vmatprep.subr.mxu0 0.0
    %3710 = vmatpush1.msra.mxu0 0.0
    %3711 = vmatprep.subr.mxu0 0.0
    %3712 = vmatpush1.msra.mxu0 0.0
    %3713 = vmatprep.subr.mxu0 0.0
    %3714 = vmatpush1.msra.mxu0 0.0
    %3715 = vmatprep.subr.mxu0 0.0
    %3716 = vmatpush1.msra.mxu0 0.0
    %3717 = vmatprep.subr.mxu0 0.0
    %3718 = vmatpush1.msra.mxu0 0.0
    %3719 = vmatprep.subr.mxu0 0.0
    %3720 = vmatpush1.msra.mxu0 0.0
    %3721 = vmatprep.subr.mxu0 0.0
    %3722 = vmatpush1.msra.mxu0 0.0
    %3723 = vmatprep.subr.mxu0 0.0
    %3724 = vmatpush1.msra.mxu0 0.0
    %3725 = vmatprep.subr.mxu0 0.0
    %3726 = vmatpush1.msra.mxu0 0.0
    %3727 = vmatprep.subr.mxu0 0.0
    %3728 = vmatpush1.msra.mxu0 0.0
    %3729 = vmatprep.subr.mxu0 0.0
    %3730 = vmatpush1.msra.mxu0 0.0
    %3731 = vmatprep.subr.mxu0 0.0
    %3732 = vmatpush1.msra.mxu0 0.0
    %3733 = vmatprep.subr.mxu0 0.0
    %3734 = vmatpush1.msra.mxu0 0.0
    %3735 = vmatprep.subr.mxu0 0.0
    %3736 = vmatpush1.msra.mxu0 0.0
    %3737 = vmatprep.subr.mxu0 0.0
    %3738 = vmatpush1.msra.mxu0 0.0
    %3739 = vmatprep.subr.mxu0 0.0
    %3740 = vmatpush1.msra.mxu0 0.0
    %3741 = vmatprep.subr.mxu0 0.0
    %3742 = vmatpush1.msra.mxu0 0.0
    %3743 = vmatprep.subr.mxu0 0.0
    %3744 = vmatpush1.msra.mxu0 0.0
    %3745 = vmatprep.subr.mxu0 0.0
    %3746 = vmatpush1.msra.mxu0 0.0
    %3747 = vmatprep.mubr.f32.mxu0 0.0
    %v3748 = vand.u32 %v3391, 4294901760
    %v3749 = vsub.f32 %v3391, %v3748
    %v3750 = vand.u32 %v3749, 4294901760
    %3751 = vmatmul.mubr.f32.gmra.mrb[0].mxu0 %v3750
    %v3752 = vpop.f32.mrb[0].mxu0
    %v3753 = vadd.f32 %v3672, %v3752
    %v3754 = vpop.f32.mrb[0].mxu0
    %3755 = vdwg.mxu0
    %3756 = vmatprep.subr.mxu0 0.0
    %v3757 = vand.u32 %v672, 4294901760
    %v3758 = vsub.f32 %v672, %v3757
    %v3759 = vand.u32 %v3758, 4294901760
    %3760 = vmatpush1.msra.mxu0 %v3759
    %3761 = vmatprep.subr.mxu0 0.0
    %v3762 = vand.u32 %v673, 4294901760
    %v3763 = vsub.f32 %v673, %v3762
    %v3764 = vand.u32 %v3763, 4294901760
    %3765 = vmatpush1.msra.mxu0 %v3764
    %3766 = vmatprep.subr.mxu0 0.0
    %v3767 = vand.u32 %v674, 4294901760
    %v3768 = vsub.f32 %v674, %v3767
    %v3769 = vand.u32 %v3768, 4294901760
    %3770 = vmatpush1.msra.mxu0 %v3769
    %3771 = vmatprep.subr.mxu0 0.0
    %v3772 = vand.u32 %v675, 4294901760
    %v3773 = vsub.f32 %v675, %v3772
    %v3774 = vand.u32 %v3773, 4294901760
    %3775 = vmatpush1.msra.mxu0 %v3774
    %3776 = vmatprep.subr.mxu0 0.0
    %v3777 = vand.u32 %v676, 4294901760
    %v3778 = vsub.f32 %v676, %v3777
    %v3779 = vand.u32 %v3778, 4294901760
    %3780 = vmatpush1.msra.mxu0 %v3779
    %3781 = vmatprep.subr.mxu0 0.0
    %v3782 = vand.u32 %v677, 4294901760
    %v3783 = vsub.f32 %v677, %v3782
    %v3784 = vand.u32 %v3783, 4294901760
    %3785 = vmatpush1.msra.mxu0 %v3784
    %3786 = vmatprep.subr.mxu0 0.0
    %v3787 = vand.u32 %v678, 4294901760
    %v3788 = vsub.f32 %v678, %v3787
    %v3789 = vand.u32 %v3788, 4294901760
    %3790 = vmatpush1.msra.mxu0 %v3789
    %3791 = vmatprep.subr.mxu0 0.0
    %v3792 = vand.u32 %v679, 4294901760
    %v3793 = vsub.f32 %v679, %v3792
    %v3794 = vand.u32 %v3793, 4294901760
    %3795 = vmatpush1.msra.mxu0 %v3794
    %3796 = vmatprep.subr.mxu0 0.0
    %3797 = vmatpush1.msra.mxu0 0.0
    %3798 = vmatprep.subr.mxu0 0.0
    %3799 = vmatpush1.msra.mxu0 0.0
    %3800 = vmatprep.subr.mxu0 0.0
    %3801 = vmatpush1.msra.mxu0 0.0
    %3802 = vmatprep.subr.mxu0 0.0
    %3803 = vmatpush1.msra.mxu0 0.0
    %3804 = vmatprep.subr.mxu0 0.0
    %3805 = vmatpush1.msra.mxu0 0.0
    %3806 = vmatprep.subr.mxu0 0.0
    %3807 = vmatpush1.msra.mxu0 0.0
    %3808 = vmatprep.subr.mxu0 0.0
    %3809 = vmatpush1.msra.mxu0 0.0
    %3810 = vmatprep.subr.mxu0 0.0
    %3811 = vmatpush1.msra.mxu0 0.0
    %3812 = vmatprep.subr.mxu0 0.0
    %3813 = vmatpush1.msra.mxu0 0.0
    %3814 = vmatprep.subr.mxu0 0.0
    %3815 = vmatpush1.msra.mxu0 0.0
    %3816 = vmatprep.subr.mxu0 0.0
    %3817 = vmatpush1.msra.mxu0 0.0
    %3818 = vmatprep.subr.mxu0 0.0
    %3819 = vmatpush1.msra.mxu0 0.0
    %3820 = vmatprep.subr.mxu0 0.0
    %3821 = vmatpush1.msra.mxu0 0.0
    %3822 = vmatprep.subr.mxu0 0.0
    %3823 = vmatpush1.msra.mxu0 0.0
    %3824 = vmatprep.subr.mxu0 0.0
    %3825 = vmatpush1.msra.mxu0 0.0
    %3826 = vmatprep.subr.mxu0 0.0
    %3827 = vmatpush1.msra.mxu0 0.0
    %3828 = vmatprep.subr.mxu0 0.0
    %3829 = vmatpush1.msra.mxu0 0.0
    %3830 = vmatprep.subr.mxu0 0.0
    %3831 = vmatpush1.msra.mxu0 0.0
    %3832 = vmatprep.subr.mxu0 0.0
    %3833 = vmatpush1.msra.mxu0 0.0
    %3834 = vmatprep.subr.mxu0 0.0
    %3835 = vmatpush1.msra.mxu0 0.0
    %3836 = vmatprep.subr.mxu0 0.0
    %3837 = vmatpush1.msra.mxu0 0.0
    %3838 = vmatprep.subr.mxu0 0.0
    %3839 = vmatpush1.msra.mxu0 0.0
    %3840 = vmatprep.subr.mxu0 0.0
    %3841 = vmatpush1.msra.mxu0 0.0
    %3842 = vmatprep.subr.mxu0 0.0
    %3843 = vmatpush1.msra.mxu0 0.0
    %3844 = vmatprep.mubr.f32.mxu0 0.0
    %v3845 = vand.u32 %v3391, 4294901760
    %3846 = vmatmul.mubr.f32.gmra.mrb[0].mxu0 %v3845
    %v3847 = vpop.f32.mrb[0].mxu0
    %v3848 = vadd.f32 %v3753, %v3847
    %v3849 = vpop.f32.mrb[0].mxu0
    %3850 = vdwg.mxu0
    %3851 = vmatprep.subr.mxu0 0.0
    %v3852 = vand.u32 %v672, 4294901760
    %3853 = vmatpush1.msra.mxu0 %v3852
    %3854 = vmatprep.subr.mxu0 0.0
    %v3855 = vand.u32 %v673, 4294901760
    %3856 = vmatpush1.msra.mxu0 %v3855
    %3857 = vmatprep.subr.mxu0 0.0
    %v3858 = vand.u32 %v674, 4294901760
    %3859 = vmatpush1.msra.mxu0 %v3858
    %3860 = vmatprep.subr.mxu0 0.0
    %v3861 = vand.u32 %v675, 4294901760
    %3862 = vmatpush1.msra.mxu0 %v3861
    %3863 = vmatprep.subr.mxu0 0.0
    %v3864 = vand.u32 %v676, 4294901760
    %3865 = vmatpush1.msra.mxu0 %v3864
    %3866 = vmatprep.subr.mxu0 0.0
    %v3867 = vand.u32 %v677, 4294901760
    %3868 = vmatpush1.msra.mxu0 %v3867
    %3869 = vmatprep.subr.mxu0 0.0
    %v3870 = vand.u32 %v678, 4294901760
    %3871 = vmatpush1.msra.mxu0 %v3870
    %3872 = vmatprep.subr.mxu0 0.0
    %v3873 = vand.u32 %v679, 4294901760
    %3874 = vmatpush1.msra.mxu0 %v3873
    %3875 = vmatprep.subr.mxu0 0.0
    %3876 = vmatpush1.msra.mxu0 0.0
    %3877 = vmatprep.subr.mxu0 0.0
    %3878 = vmatpush1.msra.mxu0 0.0
    %3879 = vmatprep.subr.mxu0 0.0
    %3880 = vmatpush1.msra.mxu0 0.0
    %3881 = vmatprep.subr.mxu0 0.0
    %3882 = vmatpush1.msra.mxu0 0.0
    %3883 = vmatprep.subr.mxu0 0.0
    %3884 = vmatpush1.msra.mxu0 0.0
    %3885 = vmatprep.subr.mxu0 0.0
    %3886 = vmatpush1.msra.mxu0 0.0
    %3887 = vmatprep.subr.mxu0 0.0
    %3888 = vmatpush1.msra.mxu0 0.0
    %3889 = vmatprep.subr.mxu0 0.0
    %3890 = vmatpush1.msra.mxu0 0.0
    %3891 = vmatprep.subr.mxu0 0.0
    %3892 = vmatpush1.msra.mxu0 0.0
    %3893 = vmatprep.subr.mxu0 0.0
    %3894 = vmatpush1.msra.mxu0 0.0
    %3895 = vmatprep.subr.mxu0 0.0
    %3896 = vmatpush1.msra.mxu0 0.0
    %3897 = vmatprep.subr.mxu0 0.0
    %3898 = vmatpush1.msra.mxu0 0.0
    %3899 = vmatprep.subr.mxu0 0.0
    %3900 = vmatpush1.msra.mxu0 0.0
    %3901 = vmatprep.subr.mxu0 0.0
    %3902 = vmatpush1.msra.mxu0 0.0
    %3903 = vmatprep.subr.mxu0 0.0
    %3904 = vmatpush1.msra.mxu0 0.0
    %3905 = vmatprep.subr.mxu0 0.0
    %3906 = vmatpush1.msra.mxu0 0.0
    %3907 = vmatprep.subr.mxu0 0.0
    %3908 = vmatpush1.msra.mxu0 0.0
    %3909 = vmatprep.subr.mxu0 0.0
    %3910 = vmatpush1.msra.mxu0 0.0
    %3911 = vmatprep.subr.mxu0 0.0
    %3912 = vmatpush1.msra.mxu0 0.0
    %3913 = vmatprep.subr.mxu0 0.0
    %3914 = vmatpush1.msra.mxu0 0.0
    %3915 = vmatprep.subr.mxu0 0.0
    %3916 = vmatpush1.msra.mxu0 0.0
    %3917 = vmatprep.subr.mxu0 0.0
    %3918 = vmatpush1.msra.mxu0 0.0
    %3919 = vmatprep.subr.mxu0 0.0
    %3920 = vmatpush1.msra.mxu0 0.0
    %3921 = vmatprep.subr.mxu0 0.0
    %3922 = vmatpush1.msra.mxu0 0.0
    %3923 = vmatprep.mubr.f32.mxu0 0.0
    %v3924 = vand.u32 %v3391, 4294901760
    %3925 = vmatmul.mubr.f32.gmra.mrb[0].mxu0 %v3924
    %v3926 = vpop.f32.mrb[0].mxu0
    %v3927 = vadd.f32 %v3848, %v3926
    %v3928 = vpop.f32.mrb[0].mxu0
    %3929 = vdwg.mxu0
    %v3930 = vsel %vm23, %v629, 0
    %3932 = vmatprep.subr.mxu0 0.0
    %v3933 = vand.u32 %v680, 4294901760
    %3934 = vmatpush1.msra.mxu0 %v3933
    %3935 = vmatprep.subr.mxu0 0.0
    %v3936 = vand.u32 %v681, 4294901760
    %3937 = vmatpush1.msra.mxu0 %v3936
    %3938 = vmatprep.subr.mxu0 0.0
    %v3939 = vand.u32 %v682, 4294901760
    %3940 = vmatpush1.msra.mxu0 %v3939
    %3941 = vmatprep.subr.mxu0 0.0
    %v3942 = vand.u32 %v683, 4294901760
    %3943 = vmatpush1.msra.mxu0 %v3942
    %3944 = vmatprep.subr.mxu0 0.0
    %v3945 = vand.u32 %v684, 4294901760
    %3946 = vmatpush1.msra.mxu0 %v3945
    %3947 = vmatprep.subr.mxu0 0.0
    %v3948 = vand.u32 %v685, 4294901760
    %3949 = vmatpush1.msra.mxu0 %v3948
    %3950 = vmatprep.subr.mxu0 0.0
    %v3951 = vand.u32 %v686, 4294901760
    %3952 = vmatpush1.msra.mxu0 %v3951
    %3953 = vmatprep.subr.mxu0 0.0
    %v3954 = vand.u32 %v687, 4294901760
    %3955 = vmatpush1.msra.mxu0 %v3954
    %3956 = vmatprep.subr.mxu0 0.0
    %3957 = vmatpush1.msra.mxu0 0.0
    %3958 = vmatprep.subr.mxu0 0.0
    %3959 = vmatpush1.msra.mxu0 0.0
    %3960 = vmatprep.subr.mxu0 0.0
    %3961 = vmatpush1.msra.mxu0 0.0
    %3962 = vmatprep.subr.mxu0 0.0
    %3963 = vmatpush1.msra.mxu0 0.0
    %3964 = vmatprep.subr.mxu0 0.0
    %3965 = vmatpush1.msra.mxu0 0.0
    %3966 = vmatprep.subr.mxu0 0.0
    %3967 = vmatpush1.msra.mxu0 0.0
    %3968 = vmatprep.subr.mxu0 0.0
    %3969 = vmatpush1.msra.mxu0 0.0
    %3970 = vmatprep.subr.mxu0 0.0
    %3971 = vmatpush1.msra.mxu0 0.0
    %3972 = vmatprep.subr.mxu0 0.0
    %3973 = vmatpush1.msra.mxu0 0.0
    %3974 = vmatprep.subr.mxu0 0.0
    %3975 = vmatpush1.msra.mxu0 0.0
    %3976 = vmatprep.subr.mxu0 0.0
    %3977 = vmatpush1.msra.mxu0 0.0
    %3978 = vmatprep.subr.mxu0 0.0
    %3979 = vmatpush1.msra.mxu0 0.0
    %3980 = vmatprep.subr.mxu0 0.0
    %3981 = vmatpush1.msra.mxu0 0.0
    %3982 = vmatprep.subr.mxu0 0.0
    %3983 = vmatpush1.msra.mxu0 0.0
    %3984 = vmatprep.subr.mxu0 0.0
    %3985 = vmatpush1.msra.mxu0 0.0
    %3986 = vmatprep.subr.mxu0 0.0
    %3987 = vmatpush1.msra.mxu0 0.0
    %3988 = vmatprep.subr.mxu0 0.0
    %3989 = vmatpush1.msra.mxu0 0.0
    %3990 = vmatprep.subr.mxu0 0.0
    %3991 = vmatpush1.msra.mxu0 0.0
    %3992 = vmatprep.subr.mxu0 0.0
    %3993 = vmatpush1.msra.mxu0 0.0
    %3994 = vmatprep.subr.mxu0 0.0
    %3995 = vmatpush1.msra.mxu0 0.0
    %3996 = vmatprep.subr.mxu0 0.0
    %3997 = vmatpush1.msra.mxu0 0.0
    %3998 = vmatprep.subr.mxu0 0.0
    %3999 = vmatpush1.msra.mxu0 0.0
    %4000 = vmatprep.subr.mxu0 0.0
    %4001 = vmatpush1.msra.mxu0 0.0
    %4002 = vmatprep.subr.mxu0 0.0
    %4003 = vmatpush1.msra.mxu0 0.0
    %4004 = vmatprep.mubr.f32.mxu0 0.0
    %v4005 = vand.u32 %v3930, 4294901760
    %v4006 = vsub.f32 %v3930, %v4005
    %v4007 = vand.u32 %v4006, 4294901760
    %v4008 = vsub.f32 %v4006, %v4007
    %v4009 = vand.u32 %v4008, 4294901760
    %4010 = vmatmul.mubr.f32.gmra.mrb[0].mxu0 %v4009
    %v4011 = vpop.f32.mrb[0].mxu0
    %v4012 = vadd.f32 0.0, %v4011
    %v4013 = vpop.f32.mrb[0].mxu0
    %4014 = vdwg.mxu0
    %4015 = vmatprep.subr.mxu0 0.0
    %v4016 = vand.u32 %v680, 4294901760
    %v4017 = vsub.f32 %v680, %v4016
    %v4018 = vand.u32 %v4017, 4294901760
    %v4019 = vsub.f32 %v4017, %v4018
    %v4020 = vand.u32 %v4019, 4294901760
    %4021 = vmatpush1.msra.mxu0 %v4020
    %4022 = vmatprep.subr.mxu0 0.0
    %v4023 = vand.u32 %v681, 4294901760
    %v4024 = vsub.f32 %v681, %v4023
    %v4025 = vand.u32 %v4024, 4294901760
    %v4026 = vsub.f32 %v4024, %v4025
    %v4027 = vand.u32 %v4026, 4294901760
    %4028 = vmatpush1.msra.mxu0 %v4027
    %4029 = vmatprep.subr.mxu0 0.0
    %v4030 = vand.u32 %v682, 4294901760
    %v4031 = vsub.f32 %v682, %v4030
    %v4032 = vand.u32 %v4031, 4294901760
    %v4033 = vsub.f32 %v4031, %v4032
    %v4034 = vand.u32 %v4033, 4294901760
    %4035 = vmatpush1.msra.mxu0 %v4034
    %4036 = vmatprep.subr.mxu0 0.0
    %v4037 = vand.u32 %v683, 4294901760
    %v4038 = vsub.f32 %v683, %v4037
    %v4039 = vand.u32 %v4038, 4294901760
    %v4040 = vsub.f32 %v4038, %v4039
    %v4041 = vand.u32 %v4040, 4294901760
    %4042 = vmatpush1.msra.mxu0 %v4041
    %4043 = vmatprep.subr.mxu0 0.0
    %v4044 = vand.u32 %v684, 4294901760
    %v4045 = vsub.f32 %v684, %v4044
    %v4046 = vand.u32 %v4045, 4294901760
    %v4047 = vsub.f32 %v4045, %v4046
    %v4048 = vand.u32 %v4047, 4294901760
    %4049 = vmatpush1.msra.mxu0 %v4048
    %4050 = vmatprep.subr.mxu0 0.0
    %v4051 = vand.u32 %v685, 4294901760
    %v4052 = vsub.f32 %v685, %v4051
    %v4053 = vand.u32 %v4052, 4294901760
    %v4054 = vsub.f32 %v4052, %v4053
    %v4055 = vand.u32 %v4054, 4294901760
    %4056 = vmatpush1.msra.mxu0 %v4055
    %4057 = vmatprep.subr.mxu0 0.0
    %v4058 = vand.u32 %v686, 4294901760
    %v4059 = vsub.f32 %v686, %v4058
    %v4060 = vand.u32 %v4059, 4294901760
    %v4061 = vsub.f32 %v4059, %v4060
    %v4062 = vand.u32 %v4061, 4294901760
    %4063 = vmatpush1.msra.mxu0 %v4062
    %4064 = vmatprep.subr.mxu0 0.0
    %v4065 = vand.u32 %v687, 4294901760
    %v4066 = vsub.f32 %v687, %v4065
    %v4067 = vand.u32 %v4066, 4294901760
    %v4068 = vsub.f32 %v4066, %v4067
    %v4069 = vand.u32 %v4068, 4294901760
    %4070 = vmatpush1.msra.mxu0 %v4069
    %4071 = vmatprep.subr.mxu0 0.0
    %4072 = vmatpush1.msra.mxu0 0.0
    %4073 = vmatprep.subr.mxu0 0.0
    %4074 = vmatpush1.msra.mxu0 0.0
    %4075 = vmatprep.subr.mxu0 0.0
    %4076 = vmatpush1.msra.mxu0 0.0
    %4077 = vmatprep.subr.mxu0 0.0
    %4078 = vmatpush1.msra.mxu0 0.0
    %4079 = vmatprep.subr.mxu0 0.0
    %4080 = vmatpush1.msra.mxu0 0.0
    %4081 = vmatprep.subr.mxu0 0.0
    %4082 = vmatpush1.msra.mxu0 0.0
    %4083 = vmatprep.subr.mxu0 0.0
    %4084 = vmatpush1.msra.mxu0 0.0
    %4085 = vmatprep.subr.mxu0 0.0
    %4086 = vmatpush1.msra.mxu0 0.0
    %4087 = vmatprep.subr.mxu0 0.0
    %4088 = vmatpush1.msra.mxu0 0.0
    %4089 = vmatprep.subr.mxu0 0.0
    %4090 = vmatpush1.msra.mxu0 0.0
    %4091 = vmatprep.subr.mxu0 0.0
    %4092 = vmatpush1.msra.mxu0 0.0
    %4093 = vmatprep.subr.mxu0 0.0
    %4094 = vmatpush1.msra.mxu0 0.0
    %4095 = vmatprep.subr.mxu0 0.0
    %4096 = vmatpush1.msra.mxu0 0.0
    %4097 = vmatprep.subr.mxu0 0.0
    %4098 = vmatpush1.msra.mxu0 0.0
    %4099 = vmatprep.subr.mxu0 0.0
    %4100 = vmatpush1.msra.mxu0 0.0
    %4101 = vmatprep.subr.mxu0 0.0
    %4102 = vmatpush1.msra.mxu0 0.0
    %4103 = vmatprep.subr.mxu0 0.0
    %4104 = vmatpush1.msra.mxu0 0.0
    %4105 = vmatprep.subr.mxu0 0.0
    %4106 = vmatpush1.msra.mxu0 0.0
    %4107 = vmatprep.subr.mxu0 0.0
    %4108 = vmatpush1.msra.mxu0 0.0
    %4109 = vmatprep.subr.mxu0 0.0
    %4110 = vmatpush1.msra.mxu0 0.0
    %4111 = vmatprep.subr.mxu0 0.0
    %4112 = vmatpush1.msra.mxu0 0.0
    %4113 = vmatprep.subr.mxu0 0.0
    %4114 = vmatpush1.msra.mxu0 0.0
    %4115 = vmatprep.subr.mxu0 0.0
    %4116 = vmatpush1.msra.mxu0 0.0
    %4117 = vmatprep.subr.mxu0 0.0
    %4118 = vmatpush1.msra.mxu0 0.0
    %4119 = vmatprep.mubr.f32.mxu0 0.0
    %v4120 = vand.u32 %v3930, 4294901760
    %4121 = vmatmul.mubr.f32.gmra.mrb[0].mxu0 %v4120
    %v4122 = vpop.f32.mrb[0].mxu0
    %v4123 = vadd.f32 %v4012, %v4122
    %v4124 = vpop.f32.mrb[0].mxu0
    %4125 = vdwg.mxu0
    %4126 = vmatprep.subr.mxu0 0.0
    %v4127 = vand.u32 %v680, 4294901760
    %v4128 = vsub.f32 %v680, %v4127
    %4129 = vmatpush1.msra.mxu0 %v4128
    %4130 = vmatprep.subr.mxu0 0.0
    %v4131 = vand.u32 %v681, 4294901760
    %v4132 = vsub.f32 %v681, %v4131
    %4133 = vmatpush1.msra.mxu0 %v4132
    %4134 = vmatprep.subr.mxu0 0.0
    %v4135 = vand.u32 %v682, 4294901760
    %v4136 = vsub.f32 %v682, %v4135
    %4137 = vmatpush1.msra.mxu0 %v4136
    %4138 = vmatprep.subr.mxu0 0.0
    %v4139 = vand.u32 %v683, 4294901760
    %v4140 = vsub.f32 %v683, %v4139
    %4141 = vmatpush1.msra.mxu0 %v4140
    %4142 = vmatprep.subr.mxu0 0.0
    %v4143 = vand.u32 %v684, 4294901760
    %v4144 = vsub.f32 %v684, %v4143
    %4145 = vmatpush1.msra.mxu0 %v4144
    %4146 = vmatprep.subr.mxu0 0.0
    %v4147 = vand.u32 %v685, 4294901760
    %v4148 = vsub.f32 %v685, %v4147
    %4149 = vmatpush1.msra.mxu0 %v4148
    %4150 = vmatprep.subr.mxu0 0.0
    %v4151 = vand.u32 %v686, 4294901760
    %v4152 = vsub.f32 %v686, %v4151
    %4153 = vmatpush1.msra.mxu0 %v4152
    %4154 = vmatprep.subr.mxu0 0.0
    %v4155 = vand.u32 %v687, 4294901760
    %v4156 = vsub.f32 %v687, %v4155
    %4157 = vmatpush1.msra.mxu0 %v4156
    %4158 = vmatprep.subr.mxu0 0.0
    %4159 = vmatpush1.msra.mxu0 0.0
    %4160 = vmatprep.subr.mxu0 0.0
    %4161 = vmatpush1.msra.mxu0 0.0
    %4162 = vmatprep.subr.mxu0 0.0
    %4163 = vmatpush1.msra.mxu0 0.0
    %4164 = vmatprep.subr.mxu0 0.0
    %4165 = vmatpush1.msra.mxu0 0.0
    %4166 = vmatprep.subr.mxu0 0.0
    %4167 = vmatpush1.msra.mxu0 0.0
    %4168 = vmatprep.subr.mxu0 0.0
    %4169 = vmatpush1.msra.mxu0 0.0
    %4170 = vmatprep.subr.mxu0 0.0
    %4171 = vmatpush1.msra.mxu0 0.0
    %4172 = vmatprep.subr.mxu0 0.0
    %4173 = vmatpush1.msra.mxu0 0.0
    %4174 = vmatprep.subr.mxu0 0.0
    %4175 = vmatpush1.msra.mxu0 0.0
    %4176 = vmatprep.subr.mxu0 0.0
    %4177 = vmatpush1.msra.mxu0 0.0
    %4178 = vmatprep.subr.mxu0 0.0
    %4179 = vmatpush1.msra.mxu0 0.0
    %4180 = vmatprep.subr.mxu0 0.0
    %4181 = vmatpush1.msra.mxu0 0.0
    %4182 = vmatprep.subr.mxu0 0.0
    %4183 = vmatpush1.msra.mxu0 0.0
    %4184 = vmatprep.subr.mxu0 0.0
    %4185 = vmatpush1.msra.mxu0 0.0
    %4186 = vmatprep.subr.mxu0 0.0
    %4187 = vmatpush1.msra.mxu0 0.0
    %4188 = vmatprep.subr.mxu0 0.0
    %4189 = vmatpush1.msra.mxu0 0.0
    %4190 = vmatprep.subr.mxu0 0.0
    %4191 = vmatpush1.msra.mxu0 0.0
    %4192 = vmatprep.subr.mxu0 0.0
    %4193 = vmatpush1.msra.mxu0 0.0
    %4194 = vmatprep.subr.mxu0 0.0
    %4195 = vmatpush1.msra.mxu0 0.0
    %4196 = vmatprep.subr.mxu0 0.0
    %4197 = vmatpush1.msra.mxu0 0.0
    %4198 = vmatprep.subr.mxu0 0.0
    %4199 = vmatpush1.msra.mxu0 0.0
    %4200 = vmatprep.subr.mxu0 0.0
    %4201 = vmatpush1.msra.mxu0 0.0
    %4202 = vmatprep.subr.mxu0 0.0
    %4203 = vmatpush1.msra.mxu0 0.0
    %4204 = vmatprep.subr.mxu0 0.0
    %4205 = vmatpush1.msra.mxu0 0.0
    %4206 = vmatprep.mubr.f32.mxu0 0.0
    %v4207 = vand.u32 %v3930, 4294901760
    %v4208 = vsub.f32 %v3930, %v4207
    %4209 = vmatmul.mubr.f32.gmra.mrb[0].mxu0 %v4208
    %v4210 = vpop.f32.mrb[0].mxu0
    %v4211 = vadd.f32 %v4123, %v4210
    %v4212 = vpop.f32.mrb[0].mxu0
    %4213 = vdwg.mxu0
    %4214 = vmatprep.subr.mxu0 0.0
    %v4215 = vand.u32 %v680, 4294901760
    %4216 = vmatpush1.msra.mxu0 %v4215
    %4217 = vmatprep.subr.mxu0 0.0
    %v4218 = vand.u32 %v681, 4294901760
    %4219 = vmatpush1.msra.mxu0 %v4218
    %4220 = vmatprep.subr.mxu0 0.0
    %v4221 = vand.u32 %v682, 4294901760
    %4222 = vmatpush1.msra.mxu0 %v4221
    %4223 = vmatprep.subr.mxu0 0.0
    %v4224 = vand.u32 %v683, 4294901760
    %4225 = vmatpush1.msra.mxu0 %v4224
    %4226 = vmatprep.subr.mxu0 0.0
    %v4227 = vand.u32 %v684, 4294901760
    %4228 = vmatpush1.msra.mxu0 %v4227
    %4229 = vmatprep.subr.mxu0 0.0
    %v4230 = vand.u32 %v685, 4294901760
    %4231 = vmatpush1.msra.mxu0 %v4230
    %4232 = vmatprep.subr.mxu0 0.0
    %v4233 = vand.u32 %v686, 4294901760
    %4234 = vmatpush1.msra.mxu0 %v4233
    %4235 = vmatprep.subr.mxu0 0.0
    %v4236 = vand.u32 %v687, 4294901760
    %4237 = vmatpush1.msra.mxu0 %v4236
    %4238 = vmatprep.subr.mxu0 0.0
    %4239 = vmatpush1.msra.mxu0 0.0
    %4240 = vmatprep.subr.mxu0 0.0
    %4241 = vmatpush1.msra.mxu0 0.0
    %4242 = vmatprep.subr.mxu0 0.0
    %4243 = vmatpush1.msra.mxu0 0.0
    %4244 = vmatprep.subr.mxu0 0.0
    %4245 = vmatpush1.msra.mxu0 0.0
    %4246 = vmatprep.subr.mxu0 0.0
    %4247 = vmatpush1.msra.mxu0 0.0
    %4248 = vmatprep.subr.mxu0 0.0
    %4249 = vmatpush1.msra.mxu0 0.0
    %4250 = vmatprep.subr.mxu0 0.0
    %4251 = vmatpush1.msra.mxu0 0.0
    %4252 = vmatprep.subr.mxu0 0.0
    %4253 = vmatpush1.msra.mxu0 0.0
    %4254 = vmatprep.subr.mxu0 0.0
    %4255 = vmatpush1.msra.mxu0 0.0
    %4256 = vmatprep.subr.mxu0 0.0
    %4257 = vmatpush1.msra.mxu0 0.0
    %4258 = vmatprep.subr.mxu0 0.0
    %4259 = vmatpush1.msra.mxu0 0.0
    %4260 = vmatprep.subr.mxu0 0.0
    %4261 = vmatpush1.msra.mxu0 0.0
    %4262 = vmatprep.subr.mxu0 0.0
    %4263 = vmatpush1.msra.mxu0 0.0
    %4264 = vmatprep.subr.mxu0 0.0
    %4265 = vmatpush1.msra.mxu0 0.0
    %4266 = vmatprep.subr.mxu0 0.0
    %4267 = vmatpush1.msra.mxu0 0.0
    %4268 = vmatprep.subr.mxu0 0.0
    %4269 = vmatpush1.msra.mxu0 0.0
    %4270 = vmatprep.subr.mxu0 0.0
    %4271 = vmatpush1.msra.mxu0 0.0
    %4272 = vmatprep.subr.mxu0 0.0
    %4273 = vmatpush1.msra.mxu0 0.0
    %4274 = vmatprep.subr.mxu0 0.0
    %4275 = vmatpush1.msra.mxu0 0.0
    %4276 = vmatprep.subr.mxu0 0.0
    %4277 = vmatpush1.msra.mxu0 0.0
    %4278 = vmatprep.subr.mxu0 0.0
    %4279 = vmatpush1.msra.mxu0 0.0
    %4280 = vmatprep.subr.mxu0 0.0
    %4281 = vmatpush1.msra.mxu0 0.0
    %4282 = vmatprep.subr.mxu0 0.0
    %4283 = vmatpush1.msra.mxu0 0.0
    %4284 = vmatprep.subr.mxu0 0.0
    %4285 = vmatpush1.msra.mxu0 0.0
    %4286 = vmatprep.mubr.f32.mxu0 0.0
    %v4287 = vand.u32 %v3930, 4294901760
    %v4288 = vsub.f32 %v3930, %v4287
    %v4289 = vand.u32 %v4288, 4294901760
    %4290 = vmatmul.mubr.f32.gmra.mrb[0].mxu0 %v4289
    %v4291 = vpop.f32.mrb[0].mxu0
    %v4292 = vadd.f32 %v4211, %v4291
    %v4293 = vpop.f32.mrb[0].mxu0
    %4294 = vdwg.mxu0
    %4295 = vmatprep.subr.mxu0 0.0
    %v4296 = vand.u32 %v680, 4294901760
    %v4297 = vsub.f32 %v680, %v4296
    %v4298 = vand.u32 %v4297, 4294901760
    %4299 = vmatpush1.msra.mxu0 %v4298
    %4300 = vmatprep.subr.mxu0 0.0
    %v4301 = vand.u32 %v681, 4294901760
    %v4302 = vsub.f32 %v681, %v4301
    %v4303 = vand.u32 %v4302, 4294901760
    %4304 = vmatpush1.msra.mxu0 %v4303
    %4305 = vmatprep.subr.mxu0 0.0
    %v4306 = vand.u32 %v682, 4294901760
    %v4307 = vsub.f32 %v682, %v4306
    %v4308 = vand.u32 %v4307, 4294901760
    %4309 = vmatpush1.msra.mxu0 %v4308
    %4310 = vmatprep.subr.mxu0 0.0
    %v4311 = vand.u32 %v683, 4294901760
    %v4312 = vsub.f32 %v683, %v4311
    %v4313 = vand.u32 %v4312, 4294901760
    %4314 = vmatpush1.msra.mxu0 %v4313
    %4315 = vmatprep.subr.mxu0 0.0
    %v4316 = vand.u32 %v684, 4294901760
    %v4317 = vsub.f32 %v684, %v4316
    %v4318 = vand.u32 %v4317, 4294901760
    %4319 = vmatpush1.msra.mxu0 %v4318
    %4320 = vmatprep.subr.mxu0 0.0
    %v4321 = vand.u32 %v685, 4294901760
    %v4322 = vsub.f32 %v685, %v4321
    %v4323 = vand.u32 %v4322, 4294901760
    %4324 = vmatpush1.msra.mxu0 %v4323
    %4325 = vmatprep.subr.mxu0 0.0
    %v4326 = vand.u32 %v686, 4294901760
    %v4327 = vsub.f32 %v686, %v4326
    %v4328 = vand.u32 %v4327, 4294901760
    %4329 = vmatpush1.msra.mxu0 %v4328
    %4330 = vmatprep.subr.mxu0 0.0
    %v4331 = vand.u32 %v687, 4294901760
    %v4332 = vsub.f32 %v687, %v4331
    %v4333 = vand.u32 %v4332, 4294901760
    %4334 = vmatpush1.msra.mxu0 %v4333
    %4335 = vmatprep.subr.mxu0 0.0
    %4336 = vmatpush1.msra.mxu0 0.0
    %4337 = vmatprep.subr.mxu0 0.0
    %4338 = vmatpush1.msra.mxu0 0.0
    %4339 = vmatprep.subr.mxu0 0.0
    %4340 = vmatpush1.msra.mxu0 0.0
    %4341 = vmatprep.subr.mxu0 0.0
    %4342 = vmatpush1.msra.mxu0 0.0
    %4343 = vmatprep.subr.mxu0 0.0
    %4344 = vmatpush1.msra.mxu0 0.0
    %4345 = vmatprep.subr.mxu0 0.0
    %4346 = vmatpush1.msra.mxu0 0.0
    %4347 = vmatprep.subr.mxu0 0.0
    %4348 = vmatpush1.msra.mxu0 0.0
    %4349 = vmatprep.subr.mxu0 0.0
    %4350 = vmatpush1.msra.mxu0 0.0
    %4351 = vmatprep.subr.mxu0 0.0
    %4352 = vmatpush1.msra.mxu0 0.0
    %4353 = vmatprep.subr.mxu0 0.0
    %4354 = vmatpush1.msra.mxu0 0.0
    %4355 = vmatprep.subr.mxu0 0.0
    %4356 = vmatpush1.msra.mxu0 0.0
    %4357 = vmatprep.subr.mxu0 0.0
    %4358 = vmatpush1.msra.mxu0 0.0
    %4359 = vmatprep.subr.mxu0 0.0
    %4360 = vmatpush1.msra.mxu0 0.0
    %4361 = vmatprep.subr.mxu0 0.0
    %4362 = vmatpush1.msra.mxu0 0.0
    %4363 = vmatprep.subr.mxu0 0.0
    %4364 = vmatpush1.msra.mxu0 0.0
    %4365 = vmatprep.subr.mxu0 0.0
    %4366 = vmatpush1.msra.mxu0 0.0
    %4367 = vmatprep.subr.mxu0 0.0
    %4368 = vmatpush1.msra.mxu0 0.0
    %4369 = vmatprep.subr.mxu0 0.0
    %4370 = vmatpush1.msra.mxu0 0.0
    %4371 = vmatprep.subr.mxu0 0.0
    %4372 = vmatpush1.msra.mxu0 0.0
    %4373 = vmatprep.subr.mxu0 0.0
    %4374 = vmatpush1.msra.mxu0 0.0
    %4375 = vmatprep.subr.mxu0 0.0
    %4376 = vmatpush1.msra.mxu0 0.0
    %4377 = vmatprep.subr.mxu0 0.0
    %4378 = vmatpush1.msra.mxu0 0.0
    %4379 = vmatprep.subr.mxu0 0.0
    %4380 = vmatpush1.msra.mxu0 0.0
    %4381 = vmatprep.subr.mxu0 0.0
    %4382 = vmatpush1.msra.mxu0 0.0
    %4383 = vmatprep.mubr.f32.mxu0 0.0
    %v4384 = vand.u32 %v3930, 4294901760
    %4385 = vmatmul.mubr.f32.gmra.mrb[0].mxu0 %v4384
    %v4386 = vpop.f32.mrb[0].mxu0
    %v4387 = vadd.f32 %v4292, %v4386
    %v4388 = vpop.f32.mrb[0].mxu0
    %4389 = vdwg.mxu0
    %4390 = vmatprep.subr.mxu0 0.0
    %v4391 = vand.u32 %v680, 4294901760
    %4392 = vmatpush1.msra.mxu0 %v4391
    %4393 = vmatprep.subr.mxu0 0.0
    %v4394 = vand.u32 %v681, 4294901760
    %4395 = vmatpush1.msra.mxu0 %v4394
    %4396 = vmatprep.subr.mxu0 0.0
    %v4397 = vand.u32 %v682, 4294901760
    %4398 = vmatpush1.msra.mxu0 %v4397
    %4399 = vmatprep.subr.mxu0 0.0
    %v4400 = vand.u32 %v683, 4294901760
    %4401 = vmatpush1.msra.mxu0 %v4400
    %4402 = vmatprep.subr.mxu0 0.0
    %v4403 = vand.u32 %v684, 4294901760
    %4404 = vmatpush1.msra.mxu0 %v4403
    %4405 = vmatprep.subr.mxu0 0.0
    %v4406 = vand.u32 %v685, 4294901760
    %4407 = vmatpush1.msra.mxu0 %v4406
    %4408 = vmatprep.subr.mxu0 0.0
    %v4409 = vand.u32 %v686, 4294901760
    %4410 = vmatpush1.msra.mxu0 %v4409
    %4411 = vmatprep.subr.mxu0 0.0
    %v4412 = vand.u32 %v687, 4294901760
    %4413 = vmatpush1.msra.mxu0 %v4412
    %4414 = vmatprep.subr.mxu0 0.0
    %4415 = vmatpush1.msra.mxu0 0.0
    %4416 = vmatprep.subr.mxu0 0.0
    %4417 = vmatpush1.msra.mxu0 0.0
    %4418 = vmatprep.subr.mxu0 0.0
    %4419 = vmatpush1.msra.mxu0 0.0
    %4420 = vmatprep.subr.mxu0 0.0
    %4421 = vmatpush1.msra.mxu0 0.0
    %4422 = vmatprep.subr.mxu0 0.0
    %4423 = vmatpush1.msra.mxu0 0.0
    %4424 = vmatprep.subr.mxu0 0.0
    %4425 = vmatpush1.msra.mxu0 0.0
    %4426 = vmatprep.subr.mxu0 0.0
    %4427 = vmatpush1.msra.mxu0 0.0
    %4428 = vmatprep.subr.mxu0 0.0
    %4429 = vmatpush1.msra.mxu0 0.0
    %4430 = vmatprep.subr.mxu0 0.0
    %4431 = vmatpush1.msra.mxu0 0.0
    %4432 = vmatprep.subr.mxu0 0.0
    %4433 = vmatpush1.msra.mxu0 0.0
    %4434 = vmatprep.subr.mxu0 0.0
    %4435 = vmatpush1.msra.mxu0 0.0
    %4436 = vmatprep.subr.mxu0 0.0
    %4437 = vmatpush1.msra.mxu0 0.0
    %4438 = vmatprep.subr.mxu0 0.0
    %4439 = vmatpush1.msra.mxu0 0.0
    %4440 = vmatprep.subr.mxu0 0.0
    %4441 = vmatpush1.msra.mxu0 0.0
    %4442 = vmatprep.subr.mxu0 0.0
    %4443 = vmatpush1.msra.mxu0 0.0
    %4444 = vmatprep.subr.mxu0 0.0
    %4445 = vmatpush1.msra.mxu0 0.0
    %4446 = vmatprep.subr.mxu0 0.0
    %4447 = vmatpush1.msra.mxu0 0.0
    %4448 = vmatprep.subr.mxu0 0.0
    %4449 = vmatpush1.msra.mxu0 0.0
    %4450 = vmatprep.subr.mxu0 0.0
    %4451 = vmatpush1.msra.mxu0 0.0
    %4452 = vmatprep.subr.mxu0 0.0
    %4453 = vmatpush1.msra.mxu0 0.0
    %4454 = vmatprep.subr.mxu0 0.0
    %4455 = vmatpush1.msra.mxu0 0.0
    %4456 = vmatprep.subr.mxu0 0.0
    %4457 = vmatpush1.msra.mxu0 0.0
    %4458 = vmatprep.subr.mxu0 0.0
    %4459 = vmatpush1.msra.mxu0 0.0
    %4460 = vmatprep.subr.mxu0 0.0
    %4461 = vmatpush1.msra.mxu0 0.0
    %4462 = vmatprep.mubr.f32.mxu0 0.0
    %v4463 = vand.u32 %v3930, 4294901760
    %4464 = vmatmul.mubr.f32.gmra.mrb[0].mxu0 %v4463
    %v4465 = vpop.f32.mrb[0].mxu0
    %v4466 = vadd.f32 %v4387, %v4465
    %v4467 = vpop.f32.mrb[0].mxu0
    %4468 = vdwg.mxu0
    %v4469 = vsel %vm23, %v631, 0
    %4471 = vmatprep.subr.mxu0 0.0
    %v4472 = vand.u32 %v688, 4294901760
    %4473 = vmatpush1.msra.mxu0 %v4472
    %4474 = vmatprep.subr.mxu0 0.0
    %v4475 = vand.u32 %v689, 4294901760
    %4476 = vmatpush1.msra.mxu0 %v4475
    %4477 = vmatprep.subr.mxu0 0.0
    %v4478 = vand.u32 %v690, 4294901760
    %4479 = vmatpush1.msra.mxu0 %v4478
    %4480 = vmatprep.subr.mxu0 0.0
    %v4481 = vand.u32 %v691, 4294901760
    %4482 = vmatpush1.msra.mxu0 %v4481
    %4483 = vmatprep.subr.mxu0 0.0
    %v4484 = vand.u32 %v692, 4294901760
    %4485 = vmatpush1.msra.mxu0 %v4484
    %4486 = vmatprep.subr.mxu0 0.0
    %v4487 = vand.u32 %v693, 4294901760
    %4488 = vmatpush1.msra.mxu0 %v4487
    %4489 = vmatprep.subr.mxu0 0.0
    %v4490 = vand.u32 %v694, 4294901760
    %4491 = vmatpush1.msra.mxu0 %v4490
    %4492 = vmatprep.subr.mxu0 0.0
    %v4493 = vand.u32 %v695, 4294901760
    %4494 = vmatpush1.msra.mxu0 %v4493
    %4495 = vmatprep.subr.mxu0 0.0
    %4496 = vmatpush1.msra.mxu0 0.0
    %4497 = vmatprep.subr.mxu0 0.0
    %4498 = vmatpush1.msra.mxu0 0.0
    %4499 = vmatprep.subr.mxu0 0.0
    %4500 = vmatpush1.msra.mxu0 0.0
    %4501 = vmatprep.subr.mxu0 0.0
    %4502 = vmatpush1.msra.mxu0 0.0
    %4503 = vmatprep.subr.mxu0 0.0
    %4504 = vmatpush1.msra.mxu0 0.0
    %4505 = vmatprep.subr.mxu0 0.0
    %4506 = vmatpush1.msra.mxu0 0.0
    %4507 = vmatprep.subr.mxu0 0.0
    %4508 = vmatpush1.msra.mxu0 0.0
    %4509 = vmatprep.subr.mxu0 0.0
    %4510 = vmatpush1.msra.mxu0 0.0
    %4511 = vmatprep.subr.mxu0 0.0
    %4512 = vmatpush1.msra.mxu0 0.0
    %4513 = vmatprep.subr.mxu0 0.0
    %4514 = vmatpush1.msra.mxu0 0.0
    %4515 = vmatprep.subr.mxu0 0.0
    %4516 = vmatpush1.msra.mxu0 0.0
    %4517 = vmatprep.subr.mxu0 0.0
    %4518 = vmatpush1.msra.mxu0 0.0
    %4519 = vmatprep.subr.mxu0 0.0
    %4520 = vmatpush1.msra.mxu0 0.0
    %4521 = vmatprep.subr.mxu0 0.0
    %4522 = vmatpush1.msra.mxu0 0.0
    %4523 = vmatprep.subr.mxu0 0.0
    %4524 = vmatpush1.msra.mxu0 0.0
    %4525 = vmatprep.subr.mxu0 0.0
    %4526 = vmatpush1.msra.mxu0 0.0
    %4527 = vmatprep.subr.mxu0 0.0
    %4528 = vmatpush1.msra.mxu0 0.0
    %4529 = vmatprep.subr.mxu0 0.0
    %4530 = vmatpush1.msra.mxu0 0.0
    %4531 = vmatprep.subr.mxu0 0.0
    %4532 = vmatpush1.msra.mxu0 0.0
    %4533 = vmatprep.subr.mxu0 0.0
    %4534 = vmatpush1.msra.mxu0 0.0
    %4535 = vmatprep.subr.mxu0 0.0
    %4536 = vmatpush1.msra.mxu0 0.0
    %4537 = vmatprep.subr.mxu0 0.0
    %4538 = vmatpush1.msra.mxu0 0.0
    %4539 = vmatprep.subr.mxu0 0.0
    %4540 = vmatpush1.msra.mxu0 0.0
    %4541 = vmatprep.subr.mxu0 0.0
    %4542 = vmatpush1.msra.mxu0 0.0
    %4543 = vmatprep.mubr.f32.mxu0 0.0
    %v4544 = vand.u32 %v4469, 4294901760
    %v4545 = vsub.f32 %v4469, %v4544
    %v4546 = vand.u32 %v4545, 4294901760
    %v4547 = vsub.f32 %v4545, %v4546
    %v4548 = vand.u32 %v4547, 4294901760
    %4549 = vmatmul.mubr.f32.gmra.mrb[0].mxu0 %v4548
    %v4550 = vpop.f32.mrb[0].mxu0
    %v4551 = vadd.f32 0.0, %v4550
    %v4552 = vpop.f32.mrb[0].mxu0
    %4553 = vdwg.mxu0
    %4554 = vmatprep.subr.mxu0 0.0
    %v4555 = vand.u32 %v688, 4294901760
    %v4556 = vsub.f32 %v688, %v4555
    %v4557 = vand.u32 %v4556, 4294901760
    %v4558 = vsub.f32 %v4556, %v4557
    %v4559 = vand.u32 %v4558, 4294901760
    %4560 = vmatpush1.msra.mxu0 %v4559
    %4561 = vmatprep.subr.mxu0 0.0
    %v4562 = vand.u32 %v689, 4294901760
    %v4563 = vsub.f32 %v689, %v4562
    %v4564 = vand.u32 %v4563, 4294901760
    %v4565 = vsub.f32 %v4563, %v4564
    %v4566 = vand.u32 %v4565, 4294901760
    %4567 = vmatpush1.msra.mxu0 %v4566
    %4568 = vmatprep.subr.mxu0 0.0
    %v4569 = vand.u32 %v690, 4294901760
    %v4570 = vsub.f32 %v690, %v4569
    %v4571 = vand.u32 %v4570, 4294901760
    %v4572 = vsub.f32 %v4570, %v4571
    %v4573 = vand.u32 %v4572, 4294901760
    %4574 = vmatpush1.msra.mxu0 %v4573
    %4575 = vmatprep.subr.mxu0 0.0
    %v4576 = vand.u32 %v691, 4294901760
    %v4577 = vsub.f32 %v691, %v4576
    %v4578 = vand.u32 %v4577, 4294901760
    %v4579 = vsub.f32 %v4577, %v4578
    %v4580 = vand.u32 %v4579, 4294901760
    %4581 = vmatpush1.msra.mxu0 %v4580
    %4582 = vmatprep.subr.mxu0 0.0
    %v4583 = vand.u32 %v692, 4294901760
    %v4584 = vsub.f32 %v692, %v4583
    %v4585 = vand.u32 %v4584, 4294901760
    %v4586 = vsub.f32 %v4584, %v4585
    %v4587 = vand.u32 %v4586, 4294901760
    %4588 = vmatpush1.msra.mxu0 %v4587
    %4589 = vmatprep.subr.mxu0 0.0
    %v4590 = vand.u32 %v693, 4294901760
    %v4591 = vsub.f32 %v693, %v4590
    %v4592 = vand.u32 %v4591, 4294901760
    %v4593 = vsub.f32 %v4591, %v4592
    %v4594 = vand.u32 %v4593, 4294901760
    %4595 = vmatpush1.msra.mxu0 %v4594
    %4596 = vmatprep.subr.mxu0 0.0
    %v4597 = vand.u32 %v694, 4294901760
    %v4598 = vsub.f32 %v694, %v4597
    %v4599 = vand.u32 %v4598, 4294901760
    %v4600 = vsub.f32 %v4598, %v4599
    %v4601 = vand.u32 %v4600, 4294901760
    %4602 = vmatpush1.msra.mxu0 %v4601
    %4603 = vmatprep.subr.mxu0 0.0
    %v4604 = vand.u32 %v695, 4294901760
    %v4605 = vsub.f32 %v695, %v4604
    %v4606 = vand.u32 %v4605, 4294901760
    %v4607 = vsub.f32 %v4605, %v4606
    %v4608 = vand.u32 %v4607, 4294901760
    %4609 = vmatpush1.msra.mxu0 %v4608
    %4610 = vmatprep.subr.mxu0 0.0
    %4611 = vmatpush1.msra.mxu0 0.0
    %4612 = vmatprep.subr.mxu0 0.0
    %4613 = vmatpush1.msra.mxu0 0.0
    %4614 = vmatprep.subr.mxu0 0.0
    %4615 = vmatpush1.msra.mxu0 0.0
    %4616 = vmatprep.subr.mxu0 0.0
    %4617 = vmatpush1.msra.mxu0 0.0
    %4618 = vmatprep.subr.mxu0 0.0
    %4619 = vmatpush1.msra.mxu0 0.0
    %4620 = vmatprep.subr.mxu0 0.0
    %4621 = vmatpush1.msra.mxu0 0.0
    %4622 = vmatprep.subr.mxu0 0.0
    %4623 = vmatpush1.msra.mxu0 0.0
    %4624 = vmatprep.subr.mxu0 0.0
    %4625 = vmatpush1.msra.mxu0 0.0
    %4626 = vmatprep.subr.mxu0 0.0
    %4627 = vmatpush1.msra.mxu0 0.0
    %4628 = vmatprep.subr.mxu0 0.0
    %4629 = vmatpush1.msra.mxu0 0.0
    %4630 = vmatprep.subr.mxu0 0.0
    %4631 = vmatpush1.msra.mxu0 0.0
    %4632 = vmatprep.subr.mxu0 0.0
    %4633 = vmatpush1.msra.mxu0 0.0
    %4634 = vmatprep.subr.mxu0 0.0
    %4635 = vmatpush1.msra.mxu0 0.0
    %4636 = vmatprep.subr.mxu0 0.0
    %4637 = vmatpush1.msra.mxu0 0.0
    %4638 = vmatprep.subr.mxu0 0.0
    %4639 = vmatpush1.msra.mxu0 0.0
    %4640 = vmatprep.subr.mxu0 0.0
    %4641 = vmatpush1.msra.mxu0 0.0
    %4642 = vmatprep.subr.mxu0 0.0
    %4643 = vmatpush1.msra.mxu0 0.0
    %4644 = vmatprep.subr.mxu0 0.0
    %4645 = vmatpush1.msra.mxu0 0.0
    %4646 = vmatprep.subr.mxu0 0.0
    %4647 = vmatpush1.msra.mxu0 0.0
    %4648 = vmatprep.subr.mxu0 0.0
    %4649 = vmatpush1.msra.mxu0 0.0
    %4650 = vmatprep.subr.mxu0 0.0
    %4651 = vmatpush1.msra.mxu0 0.0
    %4652 = vmatprep.subr.mxu0 0.0
    %4653 = vmatpush1.msra.mxu0 0.0
    %4654 = vmatprep.subr.mxu0 0.0
    %4655 = vmatpush1.msra.mxu0 0.0
    %4656 = vmatprep.subr.mxu0 0.0
    %4657 = vmatpush1.msra.mxu0 0.0
    %4658 = vmatprep.mubr.f32.mxu0 0.0
    %v4659 = vand.u32 %v4469, 4294901760
    %4660 = vmatmul.mubr.f32.gmra.mrb[0].mxu0 %v4659
    %v4661 = vpop.f32.mrb[0].mxu0
    %v4662 = vadd.f32 %v4551, %v4661
    %v4663 = vpop.f32.mrb[0].mxu0
    %4664 = vdwg.mxu0
    %4665 = vmatprep.subr.mxu0 0.0
    %v4666 = vand.u32 %v688, 4294901760
    %v4667 = vsub.f32 %v688, %v4666
    %4668 = vmatpush1.msra.mxu0 %v4667
    %4669 = vmatprep.subr.mxu0 0.0
    %v4670 = vand.u32 %v689, 4294901760
    %v4671 = vsub.f32 %v689, %v4670
    %4672 = vmatpush1.msra.mxu0 %v4671
    %4673 = vmatprep.subr.mxu0 0.0
    %v4674 = vand.u32 %v690, 4294901760
    %v4675 = vsub.f32 %v690, %v4674
    %4676 = vmatpush1.msra.mxu0 %v4675
    %4677 = vmatprep.subr.mxu0 0.0
    %v4678 = vand.u32 %v691, 4294901760
    %v4679 = vsub.f32 %v691, %v4678
    %4680 = vmatpush1.msra.mxu0 %v4679
    %4681 = vmatprep.subr.mxu0 0.0
    %v4682 = vand.u32 %v692, 4294901760
    %v4683 = vsub.f32 %v692, %v4682
    %4684 = vmatpush1.msra.mxu0 %v4683
    %4685 = vmatprep.subr.mxu0 0.0
    %v4686 = vand.u32 %v693, 4294901760
    %v4687 = vsub.f32 %v693, %v4686
    %4688 = vmatpush1.msra.mxu0 %v4687
    %4689 = vmatprep.subr.mxu0 0.0
    %v4690 = vand.u32 %v694, 4294901760
    %v4691 = vsub.f32 %v694, %v4690
    %4692 = vmatpush1.msra.mxu0 %v4691
    %4693 = vmatprep.subr.mxu0 0.0
    %v4694 = vand.u32 %v695, 4294901760
    %v4695 = vsub.f32 %v695, %v4694
    %4696 = vmatpush1.msra.mxu0 %v4695
    %4697 = vmatprep.subr.mxu0 0.0
    %4698 = vmatpush1.msra.mxu0 0.0
    %4699 = vmatprep.subr.mxu0 0.0
    %4700 = vmatpush1.msra.mxu0 0.0
    %4701 = vmatprep.subr.mxu0 0.0
    %4702 = vmatpush1.msra.mxu0 0.0
    %4703 = vmatprep.subr.mxu0 0.0
    %4704 = vmatpush1.msra.mxu0 0.0
    %4705 = vmatprep.subr.mxu0 0.0
    %4706 = vmatpush1.msra.mxu0 0.0
    %4707 = vmatprep.subr.mxu0 0.0
    %4708 = vmatpush1.msra.mxu0 0.0
    %4709 = vmatprep.subr.mxu0 0.0
    %4710 = vmatpush1.msra.mxu0 0.0
    %4711 = vmatprep.subr.mxu0 0.0
    %4712 = vmatpush1.msra.mxu0 0.0
    %4713 = vmatprep.subr.mxu0 0.0
    %4714 = vmatpush1.msra.mxu0 0.0
    %4715 = vmatprep.subr.mxu0 0.0
    %4716 = vmatpush1.msra.mxu0 0.0
    %4717 = vmatprep.subr.mxu0 0.0
    %4718 = vmatpush1.msra.mxu0 0.0
    %4719 = vmatprep.subr.mxu0 0.0
    %4720 = vmatpush1.msra.mxu0 0.0
    %4721 = vmatprep.subr.mxu0 0.0
    %4722 = vmatpush1.msra.mxu0 0.0
    %4723 = vmatprep.subr.mxu0 0.0
    %4724 = vmatpush1.msra.mxu0 0.0
    %4725 = vmatprep.subr.mxu0 0.0
    %4726 = vmatpush1.msra.mxu0 0.0
    %4727 = vmatprep.subr.mxu0 0.0
    %4728 = vmatpush1.msra.mxu0 0.0
    %4729 = vmatprep.subr.mxu0 0.0
    %4730 = vmatpush1.msra.mxu0 0.0
    %4731 = vmatprep.subr.mxu0 0.0
    %4732 = vmatpush1.msra.mxu0 0.0
    %4733 = vmatprep.subr.mxu0 0.0
    %4734 = vmatpush1.msra.mxu0 0.0
    %4735 = vmatprep.subr.mxu0 0.0
    %4736 = vmatpush1.msra.mxu0 0.0
    %4737 = vmatprep.subr.mxu0 0.0
    %4738 = vmatpush1.msra.mxu0 0.0
    %4739 = vmatprep.subr.mxu0 0.0
    %4740 = vmatpush1.msra.mxu0 0.0
    %4741 = vmatprep.subr.mxu0 0.0
    %4742 = vmatpush1.msra.mxu0 0.0
    %4743 = vmatprep.subr.mxu0 0.0
    %4744 = vmatpush1.msra.mxu0 0.0
    %4745 = vmatprep.mubr.f32.mxu0 0.0
    %v4746 = vand.u32 %v4469, 4294901760
    %v4747 = vsub.f32 %v4469, %v4746
    %4748 = vmatmul.mubr.f32.gmra.mrb[0].mxu0 %v4747
    %v4749 = vpop.f32.mrb[0].mxu0
    %v4750 = vadd.f32 %v4662, %v4749
    %v4751 = vpop.f32.mrb[0].mxu0
    %4752 = vdwg.mxu0
    %4753 = vmatprep.subr.mxu0 0.0
    %v4754 = vand.u32 %v688, 4294901760
    %4755 = vmatpush1.msra.mxu0 %v4754
    %4756 = vmatprep.subr.mxu0 0.0
    %v4757 = vand.u32 %v689, 4294901760
    %4758 = vmatpush1.msra.mxu0 %v4757
    %4759 = vmatprep.subr.mxu0 0.0
    %v4760 = vand.u32 %v690, 4294901760
    %4761 = vmatpush1.msra.mxu0 %v4760
    %4762 = vmatprep.subr.mxu0 0.0
    %v4763 = vand.u32 %v691, 4294901760
    %4764 = vmatpush1.msra.mxu0 %v4763
    %4765 = vmatprep.subr.mxu0 0.0
    %v4766 = vand.u32 %v692, 4294901760
    %4767 = vmatpush1.msra.mxu0 %v4766
    %4768 = vmatprep.subr.mxu0 0.0
    %v4769 = vand.u32 %v693, 4294901760
    %4770 = vmatpush1.msra.mxu0 %v4769
    %4771 = vmatprep.subr.mxu0 0.0
    %v4772 = vand.u32 %v694, 4294901760
    %4773 = vmatpush1.msra.mxu0 %v4772
    %4774 = vmatprep.subr.mxu0 0.0
    %v4775 = vand.u32 %v695, 4294901760
    %4776 = vmatpush1.msra.mxu0 %v4775
    %4777 = vmatprep.subr.mxu0 0.0
    %4778 = vmatpush1.msra.mxu0 0.0
    %4779 = vmatprep.subr.mxu0 0.0
    %4780 = vmatpush1.msra.mxu0 0.0
    %4781 = vmatprep.subr.mxu0 0.0
    %4782 = vmatpush1.msra.mxu0 0.0
    %4783 = vmatprep.subr.mxu0 0.0
    %4784 = vmatpush1.msra.mxu0 0.0
    %4785 = vmatprep.subr.mxu0 0.0
    %4786 = vmatpush1.msra.mxu0 0.0
    %4787 = vmatprep.subr.mxu0 0.0
    %4788 = vmatpush1.msra.mxu0 0.0
    %4789 = vmatprep.subr.mxu0 0.0
    %4790 = vmatpush1.msra.mxu0 0.0
    %4791 = vmatprep.subr.mxu0 0.0
    %4792 = vmatpush1.msra.mxu0 0.0
    %4793 = vmatprep.subr.mxu0 0.0
    %4794 = vmatpush1.msra.mxu0 0.0
    %4795 = vmatprep.subr.mxu0 0.0
    %4796 = vmatpush1.msra.mxu0 0.0
    %4797 = vmatprep.subr.mxu0 0.0
    %4798 = vmatpush1.msra.mxu0 0.0
    %4799 = vmatprep.subr.mxu0 0.0
    %4800 = vmatpush1.msra.mxu0 0.0
    %4801 = vmatprep.subr.mxu0 0.0
    %4802 = vmatpush1.msra.mxu0 0.0
    %4803 = vmatprep.subr.mxu0 0.0
    %4804 = vmatpush1.msra.mxu0 0.0
    %4805 = vmatprep.subr.mxu0 0.0
    %4806 = vmatpush1.msra.mxu0 0.0
    %4807 = vmatprep.subr.mxu0 0.0
    %4808 = vmatpush1.msra.mxu0 0.0
    %4809 = vmatprep.subr.mxu0 0.0
    %4810 = vmatpush1.msra.mxu0 0.0
    %4811 = vmatprep.subr.mxu0 0.0
    %4812 = vmatpush1.msra.mxu0 0.0
    %4813 = vmatprep.subr.mxu0 0.0
    %4814 = vmatpush1.msra.mxu0 0.0
    %4815 = vmatprep.subr.mxu0 0.0
    %4816 = vmatpush1.msra.mxu0 0.0
    %4817 = vmatprep.subr.mxu0 0.0
    %4818 = vmatpush1.msra.mxu0 0.0
    %4819 = vmatprep.subr.mxu0 0.0
    %4820 = vmatpush1.msra.mxu0 0.0
    %4821 = vmatprep.subr.mxu0 0.0
    %4822 = vmatpush1.msra.mxu0 0.0
    %4823 = vmatprep.subr.mxu0 0.0
    %4824 = vmatpush1.msra.mxu0 0.0
    %4825 = vmatprep.mubr.f32.mxu0 0.0
    %v4826 = vand.u32 %v4469, 4294901760
    %v4827 = vsub.f32 %v4469, %v4826
    %v4828 = vand.u32 %v4827, 4294901760
    %4829 = vmatmul.mubr.f32.gmra.mrb[0].mxu0 %v4828
    %v4830 = vpop.f32.mrb[0].mxu0
    %v4831 = vadd.f32 %v4750, %v4830
    %v4832 = vpop.f32.mrb[0].mxu0
    %4833 = vdwg.mxu0
    %4834 = vmatprep.subr.mxu0 0.0
    %v4835 = vand.u32 %v688, 4294901760
    %v4836 = vsub.f32 %v688, %v4835
    %v4837 = vand.u32 %v4836, 4294901760
    %4838 = vmatpush1.msra.mxu0 %v4837
    %4839 = vmatprep.subr.mxu0 0.0
    %v4840 = vand.u32 %v689, 4294901760
    %v4841 = vsub.f32 %v689, %v4840
    %v4842 = vand.u32 %v4841, 4294901760
    %4843 = vmatpush1.msra.mxu0 %v4842
    %4844 = vmatprep.subr.mxu0 0.0
    %v4845 = vand.u32 %v690, 4294901760
    %v4846 = vsub.f32 %v690, %v4845
    %v4847 = vand.u32 %v4846, 4294901760
    %4848 = vmatpush1.msra.mxu0 %v4847
    %4849 = vmatprep.subr.mxu0 0.0
    %v4850 = vand.u32 %v691, 4294901760
    %v4851 = vsub.f32 %v691, %v4850
    %v4852 = vand.u32 %v4851, 4294901760
    %4853 = vmatpush1.msra.mxu0 %v4852
    %4854 = vmatprep.subr.mxu0 0.0
    %v4855 = vand.u32 %v692, 4294901760
    %v4856 = vsub.f32 %v692, %v4855
    %v4857 = vand.u32 %v4856, 4294901760
    %4858 = vmatpush1.msra.mxu0 %v4857
    %4859 = vmatprep.subr.mxu0 0.0
    %v4860 = vand.u32 %v693, 4294901760
    %v4861 = vsub.f32 %v693, %v4860
    %v4862 = vand.u32 %v4861, 4294901760
    %4863 = vmatpush1.msra.mxu0 %v4862
    %4864 = vmatprep.subr.mxu0 0.0
    %v4865 = vand.u32 %v694, 4294901760
    %v4866 = vsub.f32 %v694, %v4865
    %v4867 = vand.u32 %v4866, 4294901760
    %4868 = vmatpush1.msra.mxu0 %v4867
    %4869 = vmatprep.subr.mxu0 0.0
    %v4870 = vand.u32 %v695, 4294901760
    %v4871 = vsub.f32 %v695, %v4870
    %v4872 = vand.u32 %v4871, 4294901760
    %4873 = vmatpush1.msra.mxu0 %v4872
    %4874 = vmatprep.subr.mxu0 0.0
    %4875 = vmatpush1.msra.mxu0 0.0
    %4876 = vmatprep.subr.mxu0 0.0
    %4877 = vmatpush1.msra.mxu0 0.0
    %4878 = vmatprep.subr.mxu0 0.0
    %4879 = vmatpush1.msra.mxu0 0.0
    %4880 = vmatprep.subr.mxu0 0.0
    %4881 = vmatpush1.msra.mxu0 0.0
    %4882 = vmatprep.subr.mxu0 0.0
    %4883 = vmatpush1.msra.mxu0 0.0
    %4884 = vmatprep.subr.mxu0 0.0
    %4885 = vmatpush1.msra.mxu0 0.0
    %4886 = vmatprep.subr.mxu0 0.0
    %4887 = vmatpush1.msra.mxu0 0.0
    %4888 = vmatprep.subr.mxu0 0.0
    %4889 = vmatpush1.msra.mxu0 0.0
    %4890 = vmatprep.subr.mxu0 0.0
    %4891 = vmatpush1.msra.mxu0 0.0
    %4892 = vmatprep.subr.mxu0 0.0
    %4893 = vmatpush1.msra.mxu0 0.0
    %4894 = vmatprep.subr.mxu0 0.0
    %4895 = vmatpush1.msra.mxu0 0.0
    %4896 = vmatprep.subr.mxu0 0.0
    %4897 = vmatpush1.msra.mxu0 0.0
    %4898 = vmatprep.subr.mxu0 0.0
    %4899 = vmatpush1.msra.mxu0 0.0
    %4900 = vmatprep.subr.mxu0 0.0
    %4901 = vmatpush1.msra.mxu0 0.0
    %4902 = vmatprep.subr.mxu0 0.0
    %4903 = vmatpush1.msra.mxu0 0.0
    %4904 = vmatprep.subr.mxu0 0.0
    %4905 = vmatpush1.msra.mxu0 0.0
    %4906 = vmatprep.subr.mxu0 0.0
    %4907 = vmatpush1.msra.mxu0 0.0
    %4908 = vmatprep.subr.mxu0 0.0
    %4909 = vmatpush1.msra.mxu0 0.0
    %4910 = vmatprep.subr.mxu0 0.0
    %4911 = vmatpush1.msra.mxu0 0.0
    %4912 = vmatprep.subr.mxu0 0.0
    %4913 = vmatpush1.msra.mxu0 0.0
    %4914 = vmatprep.subr.mxu0 0.0
    %4915 = vmatpush1.msra.mxu0 0.0
    %4916 = vmatprep.subr.mxu0 0.0
    %4917 = vmatpush1.msra.mxu0 0.0
    %4918 = vmatprep.subr.mxu0 0.0
    %4919 = vmatpush1.msra.mxu0 0.0
    %4920 = vmatprep.subr.mxu0 0.0
    %4921 = vmatpush1.msra.mxu0 0.0
    %4922 = vmatprep.mubr.f32.mxu0 0.0
    %v4923 = vand.u32 %v4469, 4294901760
    %4924 = vmatmul.mubr.f32.gmra.mrb[0].mxu0 %v4923
    %v4925 = vpop.f32.mrb[0].mxu0
    %v4926 = vadd.f32 %v4831, %v4925
    %v4927 = vpop.f32.mrb[0].mxu0
    %4928 = vdwg.mxu0
    %4929 = vmatprep.subr.mxu0 0.0
    %v4930 = vand.u32 %v688, 4294901760
    %4931 = vmatpush1.msra.mxu0 %v4930
    %4932 = vmatprep.subr.mxu0 0.0
    %v4933 = vand.u32 %v689, 4294901760
    %4934 = vmatpush1.msra.mxu0 %v4933
    %4935 = vmatprep.subr.mxu0 0.0
    %v4936 = vand.u32 %v690, 4294901760
    %4937 = vmatpush1.msra.mxu0 %v4936
    %4938 = vmatprep.subr.mxu0 0.0
    %v4939 = vand.u32 %v691, 4294901760
    %4940 = vmatpush1.msra.mxu0 %v4939
    %4941 = vmatprep.subr.mxu0 0.0
    %v4942 = vand.u32 %v692, 4294901760
    %4943 = vmatpush1.msra.mxu0 %v4942
    %4944 = vmatprep.subr.mxu0 0.0
    %v4945 = vand.u32 %v693, 4294901760
    %4946 = vmatpush1.msra.mxu0 %v4945
    %4947 = vmatprep.subr.mxu0 0.0
    %v4948 = vand.u32 %v694, 4294901760
    %4949 = vmatpush1.msra.mxu0 %v4948
    %4950 = vmatprep.subr.mxu0 0.0
    %v4951 = vand.u32 %v695, 4294901760
    %4952 = vmatpush1.msra.mxu0 %v4951
    %4953 = vmatprep.subr.mxu0 0.0
    %4954 = vmatpush1.msra.mxu0 0.0
    %4955 = vmatprep.subr.mxu0 0.0
    %4956 = vmatpush1.msra.mxu0 0.0
    %4957 = vmatprep.subr.mxu0 0.0
    %4958 = vmatpush1.msra.mxu0 0.0
    %4959 = vmatprep.subr.mxu0 0.0
    %4960 = vmatpush1.msra.mxu0 0.0
    %4961 = vmatprep.subr.mxu0 0.0
    %4962 = vmatpush1.msra.mxu0 0.0
    %4963 = vmatprep.subr.mxu0 0.0
    %4964 = vmatpush1.msra.mxu0 0.0
    %4965 = vmatprep.subr.mxu0 0.0
    %4966 = vmatpush1.msra.mxu0 0.0
    %4967 = vmatprep.subr.mxu0 0.0
    %4968 = vmatpush1.msra.mxu0 0.0
    %4969 = vmatprep.subr.mxu0 0.0
    %4970 = vmatpush1.msra.mxu0 0.0
    %4971 = vmatprep.subr.mxu0 0.0
    %4972 = vmatpush1.msra.mxu0 0.0
    %4973 = vmatprep.subr.mxu0 0.0
    %4974 = vmatpush1.msra.mxu0 0.0
    %4975 = vmatprep.subr.mxu0 0.0
    %4976 = vmatpush1.msra.mxu0 0.0
    %4977 = vmatprep.subr.mxu0 0.0
    %4978 = vmatpush1.msra.mxu0 0.0
    %4979 = vmatprep.subr.mxu0 0.0
    %4980 = vmatpush1.msra.mxu0 0.0
    %4981 = vmatprep.subr.mxu0 0.0
    %4982 = vmatpush1.msra.mxu0 0.0
    %4983 = vmatprep.subr.mxu0 0.0
    %4984 = vmatpush1.msra.mxu0 0.0
    %4985 = vmatprep.subr.mxu0 0.0
    %4986 = vmatpush1.msra.mxu0 0.0
    %4987 = vmatprep.subr.mxu0 0.0
    %4988 = vmatpush1.msra.mxu0 0.0
    %4989 = vmatprep.subr.mxu0 0.0
    %4990 = vmatpush1.msra.mxu0 0.0
    %4991 = vmatprep.subr.mxu0 0.0
    %4992 = vmatpush1.msra.mxu0 0.0
    %4993 = vmatprep.subr.mxu0 0.0
    %4994 = vmatpush1.msra.mxu0 0.0
    %4995 = vmatprep.subr.mxu0 0.0
    %4996 = vmatpush1.msra.mxu0 0.0
    %4997 = vmatprep.subr.mxu0 0.0
    %4998 = vmatpush1.msra.mxu0 0.0
    %4999 = vmatprep.subr.mxu0 0.0
    %5000 = vmatpush1.msra.mxu0 0.0
    %5001 = vmatprep.mubr.f32.mxu0 0.0
    %v5002 = vand.u32 %v4469, 4294901760
    %5003 = vmatmul.mubr.f32.gmra.mrb[0].mxu0 %v5002
    %v5004 = vpop.f32.mrb[0].mxu0
    %v5005 = vadd.f32 %v4926, %v5004
    %v5006 = vpop.f32.mrb[0].mxu0
    %5007 = vdwg.mxu0
    %v5008 = vld [vmem:[%s2] sm:$0xff]
    %v5009 = vld [vmem:[%s2 + $0x8] sm:$0xff]
    %v5010 = vld [vmem:[%s2 + $0x10] sm:$0xff]
    %v5011 = vld [vmem:[%s2 + $0x18] sm:$0xff]
    %v5012 = vld [vmem:[%s2 + $0x20] sm:$0xff]
    %v5013 = vld [vmem:[%s2 + $0x28] sm:$0xff]
    %v5014 = vld [vmem:[%s2 + $0x30] sm:$0xff]
    %v5015 = vld [vmem:[%s2 + $0x38] sm:$0xff]
    %v5016 = vld [vmem:[%s2 + $0x40] sm:$0xff]
    %v5017 = vld [vmem:[%s2 + $0x48] sm:$0xff]
    %v5018 = vld [vmem:[%s2 + $0x50] sm:$0xff]
    %v5019 = vld [vmem:[%s2 + $0x58] sm:$0xff]
    %v5020 = vld [vmem:[%s2 + $0x60] sm:$0xff]
    %v5021 = vld [vmem:[%s2 + $0x68] sm:$0xff]
    %v5022 = vld [vmem:[%s2 + $0x70] sm:$0xff]
    %v5023 = vld [vmem:[%s2 + $0x78] sm:$0xff]
    %v5024 = vld [vmem:[%s2 + $0x80] sm:$0xff]
    %v5025 = vld [vmem:[%s2 + $0x88] sm:$0xff]
    %v5026 = vld [vmem:[%s2 + $0x90] sm:$0xff]
    %v5027 = vld [vmem:[%s2 + $0x98] sm:$0xff]
    %v5028 = vld [vmem:[%s2 + $0xa0] sm:$0xff]
    %v5029 = vld [vmem:[%s2 + $0xa8] sm:$0xff]
    %v5030 = vld [vmem:[%s2 + $0xb0] sm:$0xff]
    %v5031 = vld [vmem:[%s2 + $0xb8] sm:$0xff]
    %v5032 = vld [vmem:[%s2 + $0xc0] sm:$0xff]
    %v5033 = vld [vmem:[%s2 + $0xc8] sm:$0xff]
    %v5034 = vld [vmem:[%s2 + $0xd0] sm:$0xff]
    %v5035 = vld [vmem:[%s2 + $0xd8] sm:$0xff]
    %v5036 = vld [vmem:[%s2 + $0xe0] sm:$0xff]
    %v5037 = vld [vmem:[%s2 + $0xe8] sm:$0xff]
    %v5038 = vld [vmem:[%s2 + $0xf0] sm:$0xff]
    %v5039 = vld [vmem:[%s2 + $0xf8] sm:$0xff]
    %v5040 = vld [vmem:[%s2 + $0x100] sm:$0xff]
    %v5041 = vld [vmem:[%s2 + $0x108] sm:$0xff]
    %v5042 = vld [vmem:[%s2 + $0x110] sm:$0xff]
    %v5043 = vld [vmem:[%s2 + $0x118] sm:$0xff]
    %v5044 = vld [vmem:[%s2 + $0x120] sm:$0xff]
    %v5045 = vld [vmem:[%s2 + $0x128] sm:$0xff]
    %v5046 = vld [vmem:[%s2 + $0x130] sm:$0xff]
    %v5047 = vld [vmem:[%s2 + $0x138] sm:$0xff]
    %v5048 = vld [vmem:[%s2 + $0x140] sm:$0xff]
    %v5049 = vld [vmem:[%s2 + $0x148] sm:$0xff]
    %v5050 = vld [vmem:[%s2 + $0x150] sm:$0xff]
    %v5051 = vld [vmem:[%s2 + $0x158] sm:$0xff]
    %v5052 = vld [vmem:[%s2 + $0x160] sm:$0xff]
    %v5053 = vld [vmem:[%s2 + $0x168] sm:$0xff]
    %v5054 = vld [vmem:[%s2 + $0x170] sm:$0xff]
    %v5055 = vld [vmem:[%s2 + $0x178] sm:$0xff]
    %v5056 = vld [vmem:[%s2 + $0x180] sm:$0xff]
    %v5057 = vld [vmem:[%s2 + $0x188] sm:$0xff]
    %v5058 = vld [vmem:[%s2 + $0x190] sm:$0xff]
    %v5059 = vld [vmem:[%s2 + $0x198] sm:$0xff]
    %v5060 = vld [vmem:[%s2 + $0x1a0] sm:$0xff]
    %v5061 = vld [vmem:[%s2 + $0x1a8] sm:$0xff]
    %v5062 = vld [vmem:[%s2 + $0x1b0] sm:$0xff]
    %v5063 = vld [vmem:[%s2 + $0x1b8] sm:$0xff]
    %v5064 = vld [vmem:[%s2 + $0x1c0] sm:$0xff]
    %v5065 = vld [vmem:[%s2 + $0x1c8] sm:$0xff]
    %v5066 = vld [vmem:[%s2 + $0x1d0] sm:$0xff]
    %v5067 = vld [vmem:[%s2 + $0x1d8] sm:$0xff]
    %v5068 = vld [vmem:[%s2 + $0x1e0] sm:$0xff]
    %v5069 = vld [vmem:[%s2 + $0x1e8] sm:$0xff]
    %v5070 = vld [vmem:[%s2 + $0x1f0] sm:$0xff]
    %v5071 = vld [vmem:[%s2 + $0x1f8] sm:$0xff]
    %vm5072 = vcmask 261120
    %v5074 = vsel %vm5072, %v1232, 0
    %v5077 = vsel %vm5072, %v5008, 0
    %v5080 = vsel %vm5072, %v5009, 0
    %v5083 = vsel %vm5072, %v5010, 0
    %v5086 = vsel %vm5072, %v5011, 0
    %v5089 = vsel %vm5072, %v5012, 0
    %v5092 = vsel %vm5072, %v5013, 0
    %v5095 = vsel %vm5072, %v5014, 0
    %v5098 = vsel %vm5072, %v5015, 0
    %5100 = vmatprep.subr.mxu0 0.0
    %v5101 = vand.u32 %v5077, 4294901760
    %5102 = vmatpush1.xpose.msra.mxu0 %v5101
    %5103 = vmatprep.subr.mxu0 0.0
    %v5104 = vand.u32 %v5080, 4294901760
    %5105 = vmatpush1.xpose.msra.mxu0 %v5104
    %5106 = vmatprep.subr.mxu0 0.0
    %v5107 = vand.u32 %v5083, 4294901760
    %5108 = vmatpush1.xpose.msra.mxu0 %v5107
    %5109 = vmatprep.subr.mxu0 0.0
    %v5110 = vand.u32 %v5086, 4294901760
    %5111 = vmatpush1.xpose.msra.mxu0 %v5110
    %5112 = vmatprep.subr.mxu0 0.0
    %v5113 = vand.u32 %v5089, 4294901760
    %5114 = vmatpush1.xpose.msra.mxu0 %v5113
    %5115 = vmatprep.subr.mxu0 0.0
    %v5116 = vand.u32 %v5092, 4294901760
    %5117 = vmatpush1.xpose.msra.mxu0 %v5116
    %5118 = vmatprep.subr.mxu0 0.0
    %v5119 = vand.u32 %v5095, 4294901760
    %5120 = vmatpush1.xpose.msra.mxu0 %v5119
    %5121 = vmatprep.subr.mxu0 0.0
    %v5122 = vand.u32 %v5098, 4294901760
    %5123 = vmatpush1.xpose.msra.mxu0 %v5122
    %5124 = vmatprep.subr.mxu0 0.0
    %5125 = vmatpush1.xpose.msra.mxu0 0.0
    %5126 = vmatprep.subr.mxu0 0.0
    %5127 = vmatpush1.xpose.msra.mxu0 0.0
    %5128 = vmatprep.subr.mxu0 0.0
    %5129 = vmatpush1.xpose.msra.mxu0 0.0
    %5130 = vmatprep.subr.mxu0 0.0
    %5131 = vmatpush1.xpose.msra.mxu0 0.0
    %5132 = vmatprep.subr.mxu0 0.0
    %5133 = vmatpush1.xpose.msra.mxu0 0.0
    %5134 = vmatprep.subr.mxu0 0.0
    %5135 = vmatpush1.xpose.msra.mxu0 0.0
    %5136 = vmatprep.subr.mxu0 0.0
    %5137 = vmatpush1.xpose.msra.mxu0 0.0
    %5138 = vmatprep.subr.mxu0 0.0
    %5139 = vmatpush1.xpose.msra.mxu0 0.0
    %5140 = vmatprep.subr.mxu0 0.0
    %5141 = vmatpush1.xpose.msra.mxu0 0.0
    %5142 = vmatprep.subr.mxu0 0.0
    %5143 = vmatpush1.xpose.msra.mxu0 0.0
    %5144 = vmatprep.subr.mxu0 0.0
    %5145 = vmatpush1.xpose.msra.mxu0 0.0
    %5146 = vmatprep.subr.mxu0 0.0
    %5147 = vmatpush1.xpose.msra.mxu0 0.0
    %5148 = vmatprep.subr.mxu0 0.0
    %5149 = vmatpush1.xpose.msra.mxu0 0.0
    %5150 = vmatprep.subr.mxu0 0.0
    %5151 = vmatpush1.xpose.msra.mxu0 0.0
    %5152 = vmatprep.subr.mxu0 0.0
    %5153 = vmatpush1.xpose.msra.mxu0 0.0
    %5154 = vmatprep.subr.mxu0 0.0
    %5155 = vmatpush1.xpose.msra.mxu0 0.0
    %5156 = vmatprep.subr.mxu0 0.0
    %5157 = vmatpush1.xpose.msra.mxu0 0.0
    %5158 = vmatprep.subr.mxu0 0.0
    %5159 = vmatpush1.xpose.msra.mxu0 0.0
    %5160 = vmatprep.subr.mxu0 0.0
    %5161 = vmatpush1.xpose.msra.mxu0 0.0
    %5162 = vmatprep.subr.mxu0 0.0
    %5163 = vmatpush1.xpose.msra.mxu0 0.0
    %5164 = vmatprep.subr.mxu0 0.0
    %5165 = vmatpush1.xpose.msra.mxu0 0.0
    %5166 = vmatprep.subr.mxu0 0.0
    %5167 = vmatpush1.xpose.msra.mxu0 0.0
    %5168 = vmatprep.subr.mxu0 0.0
    %5169 = vmatpush1.xpose.msra.mxu0 0.0
    %5170 = vmatprep.subr.mxu0 0.0
    %5171 = vmatpush1.xpose.msra.mxu0 0.0
    %5172 = vmatprep.mubr.f32.mxu0 0.0
    %v5173 = vand.u32 %v5074, 4294901760
    %v5174 = vsub.f32 %v5074, %v5173
    %v5175 = vand.u32 %v5174, 4294901760
    %v5176 = vsub.f32 %v5174, %v5175
    %v5177 = vand.u32 %v5176, 4294901760
    %5178 = vmatmul.mubr.f32.gmra.mrb[0].mxu0 %v5177
    %v5179 = vpop.f32.mrb[0].mxu0
    %v5180 = vadd.f32 0.0, %v5179
    %v5181 = vpop.f32.mrb[0].mxu0
    %5182 = vdwg.mxu0
    %5183 = vmatprep.subr.mxu0 0.0
    %v5184 = vand.u32 %v5077, 4294901760
    %v5185 = vsub.f32 %v5077, %v5184
    %v5186 = vand.u32 %v5185, 4294901760
    %v5187 = vsub.f32 %v5185, %v5186
    %v5188 = vand.u32 %v5187, 4294901760
    %5189 = vmatpush1.xpose.msra.mxu0 %v5188
    %5190 = vmatprep.subr.mxu0 0.0
    %v5191 = vand.u32 %v5080, 4294901760
    %v5192 = vsub.f32 %v5080, %v5191
    %v5193 = vand.u32 %v5192, 4294901760
    %v5194 = vsub.f32 %v5192, %v5193
    %v5195 = vand.u32 %v5194, 4294901760
    %5196 = vmatpush1.xpose.msra.mxu0 %v5195
    %5197 = vmatprep.subr.mxu0 0.0
    %v5198 = vand.u32 %v5083, 4294901760
    %v5199 = vsub.f32 %v5083, %v5198
    %v5200 = vand.u32 %v5199, 4294901760
    %v5201 = vsub.f32 %v5199, %v5200
    %v5202 = vand.u32 %v5201, 4294901760
    %5203 = vmatpush1.xpose.msra.mxu0 %v5202
    %5204 = vmatprep.subr.mxu0 0.0
    %v5205 = vand.u32 %v5086, 4294901760
    %v5206 = vsub.f32 %v5086, %v5205
    %v5207 = vand.u32 %v5206, 4294901760
    %v5208 = vsub.f32 %v5206, %v5207
    %v5209 = vand.u32 %v5208, 4294901760
    %5210 = vmatpush1.xpose.msra.mxu0 %v5209
    %5211 = vmatprep.subr.mxu0 0.0
    %v5212 = vand.u32 %v5089, 4294901760
    %v5213 = vsub.f32 %v5089, %v5212
    %v5214 = vand.u32 %v5213, 4294901760
    %v5215 = vsub.f32 %v5213, %v5214
    %v5216 = vand.u32 %v5215, 4294901760
    %5217 = vmatpush1.xpose.msra.mxu0 %v5216
    %5218 = vmatprep.subr.mxu0 0.0
    %v5219 = vand.u32 %v5092, 4294901760
    %v5220 = vsub.f32 %v5092, %v5219
    %v5221 = vand.u32 %v5220, 4294901760
    %v5222 = vsub.f32 %v5220, %v5221
    %v5223 = vand.u32 %v5222, 4294901760
    %5224 = vmatpush1.xpose.msra.mxu0 %v5223
    %5225 = vmatprep.subr.mxu0 0.0
    %v5226 = vand.u32 %v5095, 4294901760
    %v5227 = vsub.f32 %v5095, %v5226
    %v5228 = vand.u32 %v5227, 4294901760
    %v5229 = vsub.f32 %v5227, %v5228
    %v5230 = vand.u32 %v5229, 4294901760
    %5231 = vmatpush1.xpose.msra.mxu0 %v5230
    %5232 = vmatprep.subr.mxu0 0.0
    %v5233 = vand.u32 %v5098, 4294901760
    %v5234 = vsub.f32 %v5098, %v5233
    %v5235 = vand.u32 %v5234, 4294901760
    %v5236 = vsub.f32 %v5234, %v5235
    %v5237 = vand.u32 %v5236, 4294901760
    %5238 = vmatpush1.xpose.msra.mxu0 %v5237
    %5239 = vmatprep.subr.mxu0 0.0
    %5240 = vmatpush1.xpose.msra.mxu0 0.0
    %5241 = vmatprep.subr.mxu0 0.0
    %5242 = vmatpush1.xpose.msra.mxu0 0.0
    %5243 = vmatprep.subr.mxu0 0.0
    %5244 = vmatpush1.xpose.msra.mxu0 0.0
    %5245 = vmatprep.subr.mxu0 0.0
    %5246 = vmatpush1.xpose.msra.mxu0 0.0
    %5247 = vmatprep.subr.mxu0 0.0
    %5248 = vmatpush1.xpose.msra.mxu0 0.0
    %5249 = vmatprep.subr.mxu0 0.0
    %5250 = vmatpush1.xpose.msra.mxu0 0.0
    %5251 = vmatprep.subr.mxu0 0.0
    %5252 = vmatpush1.xpose.msra.mxu0 0.0
    %5253 = vmatprep.subr.mxu0 0.0
    %5254 = vmatpush1.xpose.msra.mxu0 0.0
    %5255 = vmatprep.subr.mxu0 0.0
    %5256 = vmatpush1.xpose.msra.mxu0 0.0
    %5257 = vmatprep.subr.mxu0 0.0
    %5258 = vmatpush1.xpose.msra.mxu0 0.0
    %5259 = vmatprep.subr.mxu0 0.0
    %5260 = vmatpush1.xpose.msra.mxu0 0.0
    %5261 = vmatprep.subr.mxu0 0.0
    %5262 = vmatpush1.xpose.msra.mxu0 0.0
    %5263 = vmatprep.subr.mxu0 0.0
    %5264 = vmatpush1.xpose.msra.mxu0 0.0
    %5265 = vmatprep.subr.mxu0 0.0
    %5266 = vmatpush1.xpose.msra.mxu0 0.0
    %5267 = vmatprep.subr.mxu0 0.0
    %5268 = vmatpush1.xpose.msra.mxu0 0.0
    %5269 = vmatprep.subr.mxu0 0.0
    %5270 = vmatpush1.xpose.msra.mxu0 0.0
    %5271 = vmatprep.subr.mxu0 0.0
    %5272 = vmatpush1.xpose.msra.mxu0 0.0
    %5273 = vmatprep.subr.mxu0 0.0
    %5274 = vmatpush1.xpose.msra.mxu0 0.0
    %5275 = vmatprep.subr.mxu0 0.0
    %5276 = vmatpush1.xpose.msra.mxu0 0.0
    %5277 = vmatprep.subr.mxu0 0.0
    %5278 = vmatpush1.xpose.msra.mxu0 0.0
    %5279 = vmatprep.subr.mxu0 0.0
    %5280 = vmatpush1.xpose.msra.mxu0 0.0
    %5281 = vmatprep.subr.mxu0 0.0
    %5282 = vmatpush1.xpose.msra.mxu0 0.0
    %5283 = vmatprep.subr.mxu0 0.0
    %5284 = vmatpush1.xpose.msra.mxu0 0.0
    %5285 = vmatprep.subr.mxu0 0.0
    %5286 = vmatpush1.xpose.msra.mxu0 0.0
    %5287 = vmatprep.mubr.f32.mxu0 0.0
    %v5288 = vand.u32 %v5074, 4294901760
    %5289 = vmatmul.mubr.f32.gmra.mrb[0].mxu0 %v5288
    %v5290 = vpop.f32.mrb[0].mxu0
    %v5291 = vadd.f32 %v5180, %v5290
    %v5292 = vpop.f32.mrb[0].mxu0
    %5293 = vdwg.mxu0
    %5294 = vmatprep.subr.mxu0 0.0
    %v5295 = vand.u32 %v5077, 4294901760
    %v5296 = vsub.f32 %v5077, %v5295
    %5297 = vmatpush1.xpose.msra.mxu0 %v5296
    %5298 = vmatprep.subr.mxu0 0.0
    %v5299 = vand.u32 %v5080, 4294901760
    %v5300 = vsub.f32 %v5080, %v5299
    %5301 = vmatpush1.xpose.msra.mxu0 %v5300
    %5302 = vmatprep.subr.mxu0 0.0
    %v5303 = vand.u32 %v5083, 4294901760
    %v5304 = vsub.f32 %v5083, %v5303
    %5305 = vmatpush1.xpose.msra.mxu0 %v5304
    %5306 = vmatprep.subr.mxu0 0.0
    %v5307 = vand.u32 %v5086, 4294901760
    %v5308 = vsub.f32 %v5086, %v5307
    %5309 = vmatpush1.xpose.msra.mxu0 %v5308
    %5310 = vmatprep.subr.mxu0 0.0
    %v5311 = vand.u32 %v5089, 4294901760
    %v5312 = vsub.f32 %v5089, %v5311
    %5313 = vmatpush1.xpose.msra.mxu0 %v5312
    %5314 = vmatprep.subr.mxu0 0.0
    %v5315 = vand.u32 %v5092, 4294901760
    %v5316 = vsub.f32 %v5092, %v5315
    %5317 = vmatpush1.xpose.msra.mxu0 %v5316
    %5318 = vmatprep.subr.mxu0 0.0
    %v5319 = vand.u32 %v5095, 4294901760
    %v5320 = vsub.f32 %v5095, %v5319
    %5321 = vmatpush1.xpose.msra.mxu0 %v5320
    %5322 = vmatprep.subr.mxu0 0.0
    %v5323 = vand.u32 %v5098, 4294901760
    %v5324 = vsub.f32 %v5098, %v5323
    %5325 = vmatpush1.xpose.msra.mxu0 %v5324
    %5326 = vmatprep.subr.mxu0 0.0
    %5327 = vmatpush1.xpose.msra.mxu0 0.0
    %5328 = vmatprep.subr.mxu0 0.0
    %5329 = vmatpush1.xpose.msra.mxu0 0.0
    %5330 = vmatprep.subr.mxu0 0.0
    %5331 = vmatpush1.xpose.msra.mxu0 0.0
    %5332 = vmatprep.subr.mxu0 0.0
    %5333 = vmatpush1.xpose.msra.mxu0 0.0
    %5334 = vmatprep.subr.mxu0 0.0
    %5335 = vmatpush1.xpose.msra.mxu0 0.0
    %5336 = vmatprep.subr.mxu0 0.0
    %5337 = vmatpush1.xpose.msra.mxu0 0.0
    %5338 = vmatprep.subr.mxu0 0.0
    %5339 = vmatpush1.xpose.msra.mxu0 0.0
    %5340 = vmatprep.subr.mxu0 0.0
    %5341 = vmatpush1.xpose.msra.mxu0 0.0
    %5342 = vmatprep.subr.mxu0 0.0
    %5343 = vmatpush1.xpose.msra.mxu0 0.0
    %5344 = vmatprep.subr.mxu0 0.0
    %5345 = vmatpush1.xpose.msra.mxu0 0.0
    %5346 = vmatprep.subr.mxu0 0.0
    %5347 = vmatpush1.xpose.msra.mxu0 0.0
    %5348 = vmatprep.subr.mxu0 0.0
    %5349 = vmatpush1.xpose.msra.mxu0 0.0
    %5350 = vmatprep.subr.mxu0 0.0
    %5351 = vmatpush1.xpose.msra.mxu0 0.0
    %5352 = vmatprep.subr.mxu0 0.0
    %5353 = vmatpush1.xpose.msra.mxu0 0.0
    %5354 = vmatprep.subr.mxu0 0.0
    %5355 = vmatpush1.xpose.msra.mxu0 0.0
    %5356 = vmatprep.subr.mxu0 0.0
    %5357 = vmatpush1.xpose.msra.mxu0 0.0
    %5358 = vmatprep.subr.mxu0 0.0
    %5359 = vmatpush1.xpose.msra.mxu0 0.0
    %5360 = vmatprep.subr.mxu0 0.0
    %5361 = vmatpush1.xpose.msra.mxu0 0.0
    %5362 = vmatprep.subr.mxu0 0.0
    %5363 = vmatpush1.xpose.msra.mxu0 0.0
    %5364 = vmatprep.subr.mxu0 0.0
    %5365 = vmatpush1.xpose.msra.mxu0 0.0
    %5366 = vmatprep.subr.mxu0 0.0
    %5367 = vmatpush1.xpose.msra.mxu0 0.0
    %5368 = vmatprep.subr.mxu0 0.0
    %5369 = vmatpush1.xpose.msra.mxu0 0.0
    %5370 = vmatprep.subr.mxu0 0.0
    %5371 = vmatpush1.xpose.msra.mxu0 0.0
    %5372 = vmatprep.subr.mxu0 0.0
    %5373 = vmatpush1.xpose.msra.mxu0 0.0
    %5374 = vmatprep.mubr.f32.mxu0 0.0
    %v5375 = vand.u32 %v5074, 4294901760
    %v5376 = vsub.f32 %v5074, %v5375
    %5377 = vmatmul.mubr.f32.gmra.mrb[0].mxu0 %v5376
    %v5378 = vpop.f32.mrb[0].mxu0
    %v5379 = vadd.f32 %v5291, %v5378
    %v5380 = vpop.f32.mrb[0].mxu0
    %5381 = vdwg.mxu0
    %5382 = vmatprep.subr.mxu0 0.0
    %v5383 = vand.u32 %v5077, 4294901760
    %5384 = vmatpush1.xpose.msra.mxu0 %v5383
    %5385 = vmatprep.subr.mxu0 0.0
    %v5386 = vand.u32 %v5080, 4294901760
    %5387 = vmatpush1.xpose.msra.mxu0 %v5386
    %5388 = vmatprep.subr.mxu0 0.0
    %v5389 = vand.u32 %v5083, 4294901760
    %5390 = vmatpush1.xpose.msra.mxu0 %v5389
    %5391 = vmatprep.subr.mxu0 0.0
    %v5392 = vand.u32 %v5086, 4294901760
    %5393 = vmatpush1.xpose.msra.mxu0 %v5392
    %5394 = vmatprep.subr.mxu0 0.0
    %v5395 = vand.u32 %v5089, 4294901760
    %5396 = vmatpush1.xpose.msra.mxu0 %v5395
    %5397 = vmatprep.subr.mxu0 0.0
    %v5398 = vand.u32 %v5092, 4294901760
    %5399 = vmatpush1.xpose.msra.mxu0 %v5398
    %5400 = vmatprep.subr.mxu0 0.0
    %v5401 = vand.u32 %v5095, 4294901760
    %5402 = vmatpush1.xpose.msra.mxu0 %v5401
    %5403 = vmatprep.subr.mxu0 0.0
    %v5404 = vand.u32 %v5098, 4294901760
    %5405 = vmatpush1.xpose.msra.mxu0 %v5404
    %5406 = vmatprep.subr.mxu0 0.0
    %5407 = vmatpush1.xpose.msra.mxu0 0.0
    %5408 = vmatprep.subr.mxu0 0.0
    %5409 = vmatpush1.xpose.msra.mxu0 0.0
    %5410 = vmatprep.subr.mxu0 0.0
    %5411 = vmatpush1.xpose.msra.mxu0 0.0
    %5412 = vmatprep.subr.mxu0 0.0
    %5413 = vmatpush1.xpose.msra.mxu0 0.0
    %5414 = vmatprep.subr.mxu0 0.0
    %5415 = vmatpush1.xpose.msra.mxu0 0.0
    %5416 = vmatprep.subr.mxu0 0.0
    %5417 = vmatpush1.xpose.msra.mxu0 0.0
    %5418 = vmatprep.subr.mxu0 0.0
    %5419 = vmatpush1.xpose.msra.mxu0 0.0
    %5420 = vmatprep.subr.mxu0 0.0
    %5421 = vmatpush1.xpose.msra.mxu0 0.0
    %5422 = vmatprep.subr.mxu0 0.0
    %5423 = vmatpush1.xpose.msra.mxu0 0.0
    %5424 = vmatprep.subr.mxu0 0.0
    %5425 = vmatpush1.xpose.msra.mxu0 0.0
    %5426 = vmatprep.subr.mxu0 0.0
    %5427 = vmatpush1.xpose.msra.mxu0 0.0
    %5428 = vmatprep.subr.mxu0 0.0
    %5429 = vmatpush1.xpose.msra.mxu0 0.0
    %5430 = vmatprep.subr.mxu0 0.0
    %5431 = vmatpush1.xpose.msra.mxu0 0.0
    %5432 = vmatprep.subr.mxu0 0.0
    %5433 = vmatpush1.xpose.msra.mxu0 0.0
    %5434 = vmatprep.subr.mxu0 0.0
    %5435 = vmatpush1.xpose.msra.mxu0 0.0
    %5436 = vmatprep.subr.mxu0 0.0
    %5437 = vmatpush1.xpose.msra.mxu0 0.0
    %5438 = vmatprep.subr.mxu0 0.0
    %5439 = vmatpush1.xpose.msra.mxu0 0.0
    %5440 = vmatprep.subr.mxu0 0.0
    %5441 = vmatpush1.xpose.msra.mxu0 0.0
    %5442 = vmatprep.subr.mxu0 0.0
    %5443 = vmatpush1.xpose.msra.mxu0 0.0
    %5444 = vmatprep.subr.mxu0 0.0
    %5445 = vmatpush1.xpose.msra.mxu0 0.0
    %5446 = vmatprep.subr.mxu0 0.0
    %5447 = vmatpush1.xpose.msra.mxu0 0.0
    %5448 = vmatprep.subr.mxu0 0.0
    %5449 = vmatpush1.xpose.msra.mxu0 0.0
    %5450 = vmatprep.subr.mxu0 0.0
    %5451 = vmatpush1.xpose.msra.mxu0 0.0
    %5452 = vmatprep.subr.mxu0 0.0
    %5453 = vmatpush1.xpose.msra.mxu0 0.0
    %5454 = vmatprep.mubr.f32.mxu0 0.0
    %v5455 = vand.u32 %v5074, 4294901760
    %v5456 = vsub.f32 %v5074, %v5455
    %v5457 = vand.u32 %v5456, 4294901760
    %5458 = vmatmul.mubr.f32.gmra.mrb[0].mxu0 %v5457
    %v5459 = vpop.f32.mrb[0].mxu0
    %v5460 = vadd.f32 %v5379, %v5459
    %v5461 = vpop.f32.mrb[0].mxu0
    %5462 = vdwg.mxu0
    %5463 = vmatprep.subr.mxu0 0.0
    %v5464 = vand.u32 %v5077, 4294901760
    %v5465 = vsub.f32 %v5077, %v5464
    %v5466 = vand.u32 %v5465, 4294901760
    %5467 = vmatpush1.xpose.msra.mxu0 %v5466
    %5468 = vmatprep.subr.mxu0 0.0
    %v5469 = vand.u32 %v5080, 4294901760
    %v5470 = vsub.f32 %v5080, %v5469
    %v5471 = vand.u32 %v5470, 4294901760
    %5472 = vmatpush1.xpose.msra.mxu0 %v5471
    %5473 = vmatprep.subr.mxu0 0.0
    %v5474 = vand.u32 %v5083, 4294901760
    %v5475 = vsub.f32 %v5083, %v5474
    %v5476 = vand.u32 %v5475, 4294901760
    %5477 = vmatpush1.xpose.msra.mxu0 %v5476
    %5478 = vmatprep.subr.mxu0 0.0
    %v5479 = vand.u32 %v5086, 4294901760
    %v5480 = vsub.f32 %v5086, %v5479
    %v5481 = vand.u32 %v5480, 4294901760
    %5482 = vmatpush1.xpose.msra.mxu0 %v5481
    %5483 = vmatprep.subr.mxu0 0.0
    %v5484 = vand.u32 %v5089, 4294901760
    %v5485 = vsub.f32 %v5089, %v5484
    %v5486 = vand.u32 %v5485, 4294901760
    %5487 = vmatpush1.xpose.msra.mxu0 %v5486
    %5488 = vmatprep.subr.mxu0 0.0
    %v5489 = vand.u32 %v5092, 4294901760
    %v5490 = vsub.f32 %v5092, %v5489
    %v5491 = vand.u32 %v5490, 4294901760
    %5492 = vmatpush1.xpose.msra.mxu0 %v5491
    %5493 = vmatprep.subr.mxu0 0.0
    %v5494 = vand.u32 %v5095, 4294901760
    %v5495 = vsub.f32 %v5095, %v5494
    %v5496 = vand.u32 %v5495, 4294901760
    %5497 = vmatpush1.xpose.msra.mxu0 %v5496
    %5498 = vmatprep.subr.mxu0 0.0
    %v5499 = vand.u32 %v5098, 4294901760
    %v5500 = vsub.f32 %v5098, %v5499
    %v5501 = vand.u32 %v5500, 4294901760
    %5502 = vmatpush1.xpose.msra.mxu0 %v5501
    %5503 = vmatprep.subr.mxu0 0.0
    %5504 = vmatpush1.xpose.msra.mxu0 0.0
    %5505 = vmatprep.subr.mxu0 0.0
    %5506 = vmatpush1.xpose.msra.mxu0 0.0
    %5507 = vmatprep.subr.mxu0 0.0
    %5508 = vmatpush1.xpose.msra.mxu0 0.0
    %5509 = vmatprep.subr.mxu0 0.0
    %5510 = vmatpush1.xpose.msra.mxu0 0.0
    %5511 = vmatprep.subr.mxu0 0.0
    %5512 = vmatpush1.xpose.msra.mxu0 0.0
    %5513 = vmatprep.subr.mxu0 0.0
    %5514 = vmatpush1.xpose.msra.mxu0 0.0
    %5515 = vmatprep.subr.mxu0 0.0
    %5516 = vmatpush1.xpose.msra.mxu0 0.0
    %5517 = vmatprep.subr.mxu0 0.0
    %5518 = vmatpush1.xpose.msra.mxu0 0.0
    %5519 = vmatprep.subr.mxu0 0.0
    %5520 = vmatpush1.xpose.msra.mxu0 0.0
    %5521 = vmatprep.subr.mxu0 0.0
    %5522 = vmatpush1.xpose.msra.mxu0 0.0
    %5523 = vmatprep.subr.mxu0 0.0
    %5524 = vmatpush1.xpose.msra.mxu0 0.0
    %5525 = vmatprep.subr.mxu0 0.0
    %5526 = vmatpush1.xpose.msra.mxu0 0.0
    %5527 = vmatprep.subr.mxu0 0.0
    %5528 = vmatpush1.xpose.msra.mxu0 0.0
    %5529 = vmatprep.subr.mxu0 0.0
    %5530 = vmatpush1.xpose.msra.mxu0 0.0
    %5531 = vmatprep.subr.mxu0 0.0
    %5532 = vmatpush1.xpose.msra.mxu0 0.0
    %5533 = vmatprep.subr.mxu0 0.0
    %5534 = vmatpush1.xpose.msra.mxu0 0.0
    %5535 = vmatprep.subr.mxu0 0.0
    %5536 = vmatpush1.xpose.msra.mxu0 0.0
    %5537 = vmatprep.subr.mxu0 0.0
    %5538 = vmatpush1.xpose.msra.mxu0 0.0
    %5539 = vmatprep.subr.mxu0 0.0
    %5540 = vmatpush1.xpose.msra.mxu0 0.0
    %5541 = vmatprep.subr.mxu0 0.0
    %5542 = vmatpush1.xpose.msra.mxu0 0.0
    %5543 = vmatprep.subr.mxu0 0.0
    %5544 = vmatpush1.xpose.msra.mxu0 0.0
    %5545 = vmatprep.subr.mxu0 0.0
    %5546 = vmatpush1.xpose.msra.mxu0 0.0
    %5547 = vmatprep.subr.mxu0 0.0
    %5548 = vmatpush1.xpose.msra.mxu0 0.0
    %5549 = vmatprep.subr.mxu0 0.0
    %5550 = vmatpush1.xpose.msra.mxu0 0.0
    %5551 = vmatprep.mubr.f32.mxu0 0.0
    %v5552 = vand.u32 %v5074, 4294901760
    %5553 = vmatmul.mubr.f32.gmra.mrb[0].mxu0 %v5552
    %v5554 = vpop.f32.mrb[0].mxu0
    %v5555 = vadd.f32 %v5460, %v5554
    %v5556 = vpop.f32.mrb[0].mxu0
    %5557 = vdwg.mxu0
    %5558 = vmatprep.subr.mxu0 0.0
    %v5559 = vand.u32 %v5077, 4294901760
    %5560 = vmatpush1.xpose.msra.mxu0 %v5559
    %5561 = vmatprep.subr.mxu0 0.0
    %v5562 = vand.u32 %v5080, 4294901760
    %5563 = vmatpush1.xpose.msra.mxu0 %v5562
    %5564 = vmatprep.subr.mxu0 0.0
    %v5565 = vand.u32 %v5083, 4294901760
    %5566 = vmatpush1.xpose.msra.mxu0 %v5565
    %5567 = vmatprep.subr.mxu0 0.0
    %v5568 = vand.u32 %v5086, 4294901760
    %5569 = vmatpush1.xpose.msra.mxu0 %v5568
    %5570 = vmatprep.subr.mxu0 0.0
    %v5571 = vand.u32 %v5089, 4294901760
    %5572 = vmatpush1.xpose.msra.mxu0 %v5571
    %5573 = vmatprep.subr.mxu0 0.0
    %v5574 = vand.u32 %v5092, 4294901760
    %5575 = vmatpush1.xpose.msra.mxu0 %v5574
    %5576 = vmatprep.subr.mxu0 0.0
    %v5577 = vand.u32 %v5095, 4294901760
    %5578 = vmatpush1.xpose.msra.mxu0 %v5577
    %5579 = vmatprep.subr.mxu0 0.0
    %v5580 = vand.u32 %v5098, 4294901760
    %5581 = vmatpush1.xpose.msra.mxu0 %v5580
    %5582 = vmatprep.subr.mxu0 0.0
    %5583 = vmatpush1.xpose.msra.mxu0 0.0
    %5584 = vmatprep.subr.mxu0 0.0
    %5585 = vmatpush1.xpose.msra.mxu0 0.0
    %5586 = vmatprep.subr.mxu0 0.0
    %5587 = vmatpush1.xpose.msra.mxu0 0.0
    %5588 = vmatprep.subr.mxu0 0.0
    %5589 = vmatpush1.xpose.msra.mxu0 0.0
    %5590 = vmatprep.subr.mxu0 0.0
    %5591 = vmatpush1.xpose.msra.mxu0 0.0
    %5592 = vmatprep.subr.mxu0 0.0
    %5593 = vmatpush1.xpose.msra.mxu0 0.0
    %5594 = vmatprep.subr.mxu0 0.0
    %5595 = vmatpush1.xpose.msra.mxu0 0.0
    %5596 = vmatprep.subr.mxu0 0.0
    %5597 = vmatpush1.xpose.msra.mxu0 0.0
    %5598 = vmatprep.subr.mxu0 0.0
    %5599 = vmatpush1.xpose.msra.mxu0 0.0
    %5600 = vmatprep.subr.mxu0 0.0
    %5601 = vmatpush1.xpose.msra.mxu0 0.0
    %5602 = vmatprep.subr.mxu0 0.0
    %5603 = vmatpush1.xpose.msra.mxu0 0.0
    %5604 = vmatprep.subr.mxu0 0.0
    %5605 = vmatpush1.xpose.msra.mxu0 0.0
    %5606 = vmatprep.subr.mxu0 0.0
    %5607 = vmatpush1.xpose.msra.mxu0 0.0
    %5608 = vmatprep.subr.mxu0 0.0
    %5609 = vmatpush1.xpose.msra.mxu0 0.0
    %5610 = vmatprep.subr.mxu0 0.0
    %5611 = vmatpush1.xpose.msra.mxu0 0.0
    %5612 = vmatprep.subr.mxu0 0.0
    %5613 = vmatpush1.xpose.msra.mxu0 0.0
    %5614 = vmatprep.subr.mxu0 0.0
    %5615 = vmatpush1.xpose.msra.mxu0 0.0
    %5616 = vmatprep.subr.mxu0 0.0
    %5617 = vmatpush1.xpose.msra.mxu0 0.0
    %5618 = vmatprep.subr.mxu0 0.0
    %5619 = vmatpush1.xpose.msra.mxu0 0.0
    %5620 = vmatprep.subr.mxu0 0.0
    %5621 = vmatpush1.xpose.msra.mxu0 0.0
    %5622 = vmatprep.subr.mxu0 0.0
    %5623 = vmatpush1.xpose.msra.mxu0 0.0
    %5624 = vmatprep.subr.mxu0 0.0
    %5625 = vmatpush1.xpose.msra.mxu0 0.0
    %5626 = vmatprep.subr.mxu0 0.0
    %5627 = vmatpush1.xpose.msra.mxu0 0.0
    %5628 = vmatprep.subr.mxu0 0.0
    %5629 = vmatpush1.xpose.msra.mxu0 0.0
    %5630 = vmatprep.mubr.f32.mxu0 0.0
    %v5631 = vand.u32 %v5074, 4294901760
    %5632 = vmatmul.mubr.f32.gmra.mrb[0].mxu0 %v5631
    %v5633 = vpop.f32.mrb[0].mxu0
    %v5634 = vadd.f32 %v5555, %v5633
    %v5635 = vpop.f32.mrb[0].mxu0
    %5636 = vdwg.mxu0
    %v5638 = vsel %vm5072, %v1771, 0
    %v5641 = vsel %vm5072, %v5016, 0
    %v5644 = vsel %vm5072, %v5017, 0
    %v5647 = vsel %vm5072, %v5018, 0
    %v5650 = vsel %vm5072, %v5019, 0
    %v5653 = vsel %vm5072, %v5020, 0
    %v5656 = vsel %vm5072, %v5021, 0
    %v5659 = vsel %vm5072, %v5022, 0
    %v5662 = vsel %vm5072, %v5023, 0
    %5664 = vmatprep.subr.mxu0 0.0
    %v5665 = vand.u32 %v5641, 4294901760
    %5666 = vmatpush1.xpose.msra.mxu0 %v5665
    %5667 = vmatprep.subr.mxu0 0.0
    %v5668 = vand.u32 %v5644, 4294901760
    %5669 = vmatpush1.xpose.msra.mxu0 %v5668
    %5670 = vmatprep.subr.mxu0 0.0
    %v5671 = vand.u32 %v5647, 4294901760
    %5672 = vmatpush1.xpose.msra.mxu0 %v5671
    %5673 = vmatprep.subr.mxu0 0.0
    %v5674 = vand.u32 %v5650, 4294901760
    %5675 = vmatpush1.xpose.msra.mxu0 %v5674
    %5676 = vmatprep.subr.mxu0 0.0
    %v5677 = vand.u32 %v5653, 4294901760
    %5678 = vmatpush1.xpose.msra.mxu0 %v5677
    %5679 = vmatprep.subr.mxu0 0.0
    %v5680 = vand.u32 %v5656, 4294901760
    %5681 = vmatpush1.xpose.msra.mxu0 %v5680
    %5682 = vmatprep.subr.mxu0 0.0
    %v5683 = vand.u32 %v5659, 4294901760
    %5684 = vmatpush1.xpose.msra.mxu0 %v5683
    %5685 = vmatprep.subr.mxu0 0.0
    %v5686 = vand.u32 %v5662, 4294901760
    %5687 = vmatpush1.xpose.msra.mxu0 %v5686
    %5688 = vmatprep.subr.mxu0 0.0
    %5689 = vmatpush1.xpose.msra.mxu0 0.0
    %5690 = vmatprep.subr.mxu0 0.0
    %5691 = vmatpush1.xpose.msra.mxu0 0.0
    %5692 = vmatprep.subr.mxu0 0.0
    %5693 = vmatpush1.xpose.msra.mxu0 0.0
    %5694 = vmatprep.subr.mxu0 0.0
    %5695 = vmatpush1.xpose.msra.mxu0 0.0
    %5696 = vmatprep.subr.mxu0 0.0
    %5697 = vmatpush1.xpose.msra.mxu0 0.0
    %5698 = vmatprep.subr.mxu0 0.0
    %5699 = vmatpush1.xpose.msra.mxu0 0.0
    %5700 = vmatprep.subr.mxu0 0.0
    %5701 = vmatpush1.xpose.msra.mxu0 0.0
    %5702 = vmatprep.subr.mxu0 0.0
    %5703 = vmatpush1.xpose.msra.mxu0 0.0
    %5704 = vmatprep.subr.mxu0 0.0
    %5705 = vmatpush1.xpose.msra.mxu0 0.0
    %5706 = vmatprep.subr.mxu0 0.0
    %5707 = vmatpush1.xpose.msra.mxu0 0.0
    %5708 = vmatprep.subr.mxu0 0.0
    %5709 = vmatpush1.xpose.msra.mxu0 0.0
    %5710 = vmatprep.subr.mxu0 0.0
    %5711 = vmatpush1.xpose.msra.mxu0 0.0
    %5712 = vmatprep.subr.mxu0 0.0
    %5713 = vmatpush1.xpose.msra.mxu0 0.0
    %5714 = vmatprep.subr.mxu0 0.0
    %5715 = vmatpush1.xpose.msra.mxu0 0.0
    %5716 = vmatprep.subr.mxu0 0.0
    %5717 = vmatpush1.xpose.msra.mxu0 0.0
    %5718 = vmatprep.subr.mxu0 0.0
    %5719 = vmatpush1.xpose.msra.mxu0 0.0
    %5720 = vmatprep.subr.mxu0 0.0
    %5721 = vmatpush1.xpose.msra.mxu0 0.0
    %5722 = vmatprep.subr.mxu0 0.0
    %5723 = vmatpush1.xpose.msra.mxu0 0.0
    %5724 = vmatprep.subr.mxu0 0.0
    %5725 = vmatpush1.xpose.msra.mxu0 0.0
    %5726 = vmatprep.subr.mxu0 0.0
    %5727 = vmatpush1.xpose.msra.mxu0 0.0
    %5728 = vmatprep.subr.mxu0 0.0
    %5729 = vmatpush1.xpose.msra.mxu0 0.0
    %5730 = vmatprep.subr.mxu0 0.0
    %5731 = vmatpush1.xpose.msra.mxu0 0.0
    %5732 = vmatprep.subr.mxu0 0.0
    %5733 = vmatpush1.xpose.msra.mxu0 0.0
    %5734 = vmatprep.subr.mxu0 0.0
    %5735 = vmatpush1.xpose.msra.mxu0 0.0
    %5736 = vmatprep.mubr.f32.mxu0 0.0
    %v5737 = vand.u32 %v5638, 4294901760
    %v5738 = vsub.f32 %v5638, %v5737
    %v5739 = vand.u32 %v5738, 4294901760
    %v5740 = vsub.f32 %v5738, %v5739
    %v5741 = vand.u32 %v5740, 4294901760
    %5742 = vmatmul.mubr.f32.gmra.mrb[0].mxu0 %v5741
    %v5743 = vpop.f32.mrb[0].mxu0
    %v5744 = vadd.f32 0.0, %v5743
    %v5745 = vpop.f32.mrb[0].mxu0
    %5746 = vdwg.mxu0
    %5747 = vmatprep.subr.mxu0 0.0
    %v5748 = vand.u32 %v5641, 4294901760
    %v5749 = vsub.f32 %v5641, %v5748
    %v5750 = vand.u32 %v5749, 4294901760
    %v5751 = vsub.f32 %v5749, %v5750
    %v5752 = vand.u32 %v5751, 4294901760
    %5753 = vmatpush1.xpose.msra.mxu0 %v5752
    %5754 = vmatprep.subr.mxu0 0.0
    %v5755 = vand.u32 %v5644, 4294901760
    %v5756 = vsub.f32 %v5644, %v5755
    %v5757 = vand.u32 %v5756, 4294901760
    %v5758 = vsub.f32 %v5756, %v5757
    %v5759 = vand.u32 %v5758, 4294901760
    %5760 = vmatpush1.xpose.msra.mxu0 %v5759
    %5761 = vmatprep.subr.mxu0 0.0
    %v5762 = vand.u32 %v5647, 4294901760
    %v5763 = vsub.f32 %v5647, %v5762
    %v5764 = vand.u32 %v5763, 4294901760
    %v5765 = vsub.f32 %v5763, %v5764
    %v5766 = vand.u32 %v5765, 4294901760
    %5767 = vmatpush1.xpose.msra.mxu0 %v5766
    %5768 = vmatprep.subr.mxu0 0.0
    %v5769 = vand.u32 %v5650, 4294901760
    %v5770 = vsub.f32 %v5650, %v5769
    %v5771 = vand.u32 %v5770, 4294901760
    %v5772 = vsub.f32 %v5770, %v5771
    %v5773 = vand.u32 %v5772, 4294901760
    %5774 = vmatpush1.xpose.msra.mxu0 %v5773
    %5775 = vmatprep.subr.mxu0 0.0
    %v5776 = vand.u32 %v5653, 4294901760
    %v5777 = vsub.f32 %v5653, %v5776
    %v5778 = vand.u32 %v5777, 4294901760
    %v5779 = vsub.f32 %v5777, %v5778
    %v5780 = vand.u32 %v5779, 4294901760
    %5781 = vmatpush1.xpose.msra.mxu0 %v5780
    %5782 = vmatprep.subr.mxu0 0.0
    %v5783 = vand.u32 %v5656, 4294901760
    %v5784 = vsub.f32 %v5656, %v5783
    %v5785 = vand.u32 %v5784, 4294901760
    %v5786 = vsub.f32 %v5784, %v5785
    %v5787 = vand.u32 %v5786, 4294901760
    %5788 = vmatpush1.xpose.msra.mxu0 %v5787
    %5789 = vmatprep.subr.mxu0 0.0
    %v5790 = vand.u32 %v5659, 4294901760
    %v5791 = vsub.f32 %v5659, %v5790
    %v5792 = vand.u32 %v5791, 4294901760
    %v5793 = vsub.f32 %v5791, %v5792
    %v5794 = vand.u32 %v5793, 4294901760
    %5795 = vmatpush1.xpose.msra.mxu0 %v5794
    %5796 = vmatprep.subr.mxu0 0.0
    %v5797 = vand.u32 %v5662, 4294901760
    %v5798 = vsub.f32 %v5662, %v5797
    %v5799 = vand.u32 %v5798, 4294901760
    %v5800 = vsub.f32 %v5798, %v5799
    %v5801 = vand.u32 %v5800, 4294901760
    %5802 = vmatpush1.xpose.msra.mxu0 %v5801
    %5803 = vmatprep.subr.mxu0 0.0
    %5804 = vmatpush1.xpose.msra.mxu0 0.0
    %5805 = vmatprep.subr.mxu0 0.0
    %5806 = vmatpush1.xpose.msra.mxu0 0.0
    %5807 = vmatprep.subr.mxu0 0.0
    %5808 = vmatpush1.xpose.msra.mxu0 0.0
    %5809 = vmatprep.subr.mxu0 0.0
    %5810 = vmatpush1.xpose.msra.mxu0 0.0
    %5811 = vmatprep.subr.mxu0 0.0
    %5812 = vmatpush1.xpose.msra.mxu0 0.0
    %5813 = vmatprep.subr.mxu0 0.0
    %5814 = vmatpush1.xpose.msra.mxu0 0.0
    %5815 = vmatprep.subr.mxu0 0.0
    %5816 = vmatpush1.xpose.msra.mxu0 0.0
    %5817 = vmatprep.subr.mxu0 0.0
    %5818 = vmatpush1.xpose.msra.mxu0 0.0
    %5819 = vmatprep.subr.mxu0 0.0
    %5820 = vmatpush1.xpose.msra.mxu0 0.0
    %5821 = vmatprep.subr.mxu0 0.0
    %5822 = vmatpush1.xpose.msra.mxu0 0.0
    %5823 = vmatprep.subr.mxu0 0.0
    %5824 = vmatpush1.xpose.msra.mxu0 0.0
    %5825 = vmatprep.subr.mxu0 0.0
    %5826 = vmatpush1.xpose.msra.mxu0 0.0
    %5827 = vmatprep.subr.mxu0 0.0
    %5828 = vmatpush1.xpose.msra.mxu0 0.0
    %5829 = vmatprep.subr.mxu0 0.0
    %5830 = vmatpush1.xpose.msra.mxu0 0.0
    %5831 = vmatprep.subr.mxu0 0.0
    %5832 = vmatpush1.xpose.msra.mxu0 0.0
    %5833 = vmatprep.subr.mxu0 0.0
    %5834 = vmatpush1.xpose.msra.mxu0 0.0
    %5835 = vmatprep.subr.mxu0 0.0
    %5836 = vmatpush1.xpose.msra.mxu0 0.0
    %5837 = vmatprep.subr.mxu0 0.0
    %5838 = vmatpush1.xpose.msra.mxu0 0.0
    %5839 = vmatprep.subr.mxu0 0.0
    %5840 = vmatpush1.xpose.msra.mxu0 0.0
    %5841 = vmatprep.subr.mxu0 0.0
    %5842 = vmatpush1.xpose.msra.mxu0 0.0
    %5843 = vmatprep.subr.mxu0 0.0
    %5844 = vmatpush1.xpose.msra.mxu0 0.0
    %5845 = vmatprep.subr.mxu0 0.0
    %5846 = vmatpush1.xpose.msra.mxu0 0.0
    %5847 = vmatprep.subr.mxu0 0.0
    %5848 = vmatpush1.xpose.msra.mxu0 0.0
    %5849 = vmatprep.subr.mxu0 0.0
    %5850 = vmatpush1.xpose.msra.mxu0 0.0
    %5851 = vmatprep.mubr.f32.mxu0 0.0
    %v5852 = vand.u32 %v5638, 4294901760
    %5853 = vmatmul.mubr.f32.gmra.mrb[0].mxu0 %v5852
    %v5854 = vpop.f32.mrb[0].mxu0
    %v5855 = vadd.f32 %v5744, %v5854
    %v5856 = vpop.f32.mrb[0].mxu0
    %5857 = vdwg.mxu0
    %5858 = vmatprep.subr.mxu0 0.0
    %v5859 = vand.u32 %v5641, 4294901760
    %v5860 = vsub.f32 %v5641, %v5859
    %5861 = vmatpush1.xpose.msra.mxu0 %v5860
    %5862 = vmatprep.subr.mxu0 0.0
    %v5863 = vand.u32 %v5644, 4294901760
    %v5864 = vsub.f32 %v5644, %v5863
    %5865 = vmatpush1.xpose.msra.mxu0 %v5864
    %5866 = vmatprep.subr.mxu0 0.0
    %v5867 = vand.u32 %v5647, 4294901760
    %v5868 = vsub.f32 %v5647, %v5867
    %5869 = vmatpush1.xpose.msra.mxu0 %v5868
    %5870 = vmatprep.subr.mxu0 0.0
    %v5871 = vand.u32 %v5650, 4294901760
    %v5872 = vsub.f32 %v5650, %v5871
    %5873 = vmatpush1.xpose.msra.mxu0 %v5872
    %5874 = vmatprep.subr.mxu0 0.0
    %v5875 = vand.u32 %v5653, 4294901760
    %v5876 = vsub.f32 %v5653, %v5875
    %5877 = vmatpush1.xpose.msra.mxu0 %v5876
    %5878 = vmatprep.subr.mxu0 0.0
    %v5879 = vand.u32 %v5656, 4294901760
    %v5880 = vsub.f32 %v5656, %v5879
    %5881 = vmatpush1.xpose.msra.mxu0 %v5880
    %5882 = vmatprep.subr.mxu0 0.0
    %v5883 = vand.u32 %v5659, 4294901760
    %v5884 = vsub.f32 %v5659, %v5883
    %5885 = vmatpush1.xpose.msra.mxu0 %v5884
    %5886 = vmatprep.subr.mxu0 0.0
    %v5887 = vand.u32 %v5662, 4294901760
    %v5888 = vsub.f32 %v5662, %v5887
    %5889 = vmatpush1.xpose.msra.mxu0 %v5888
    %5890 = vmatprep.subr.mxu0 0.0
    %5891 = vmatpush1.xpose.msra.mxu0 0.0
    %5892 = vmatprep.subr.mxu0 0.0
    %5893 = vmatpush1.xpose.msra.mxu0 0.0
    %5894 = vmatprep.subr.mxu0 0.0
    %5895 = vmatpush1.xpose.msra.mxu0 0.0
    %5896 = vmatprep.subr.mxu0 0.0
    %5897 = vmatpush1.xpose.msra.mxu0 0.0
    %5898 = vmatprep.subr.mxu0 0.0
    %5899 = vmatpush1.xpose.msra.mxu0 0.0
    %5900 = vmatprep.subr.mxu0 0.0
    %5901 = vmatpush1.xpose.msra.mxu0 0.0
    %5902 = vmatprep.subr.mxu0 0.0
    %5903 = vmatpush1.xpose.msra.mxu0 0.0
    %5904 = vmatprep.subr.mxu0 0.0
    %5905 = vmatpush1.xpose.msra.mxu0 0.0
    %5906 = vmatprep.subr.mxu0 0.0
    %5907 = vmatpush1.xpose.msra.mxu0 0.0
    %5908 = vmatprep.subr.mxu0 0.0
    %5909 = vmatpush1.xpose.msra.mxu0 0.0
    %5910 = vmatprep.subr.mxu0 0.0
    %5911 = vmatpush1.xpose.msra.mxu0 0.0
    %5912 = vmatprep.subr.mxu0 0.0
    %5913 = vmatpush1.xpose.msra.mxu0 0.0
    %5914 = vmatprep.subr.mxu0 0.0
    %5915 = vmatpush1.xpose.msra.mxu0 0.0
    %5916 = vmatprep.subr.mxu0 0.0
    %5917 = vmatpush1.xpose.msra.mxu0 0.0
    %5918 = vmatprep.subr.mxu0 0.0
    %5919 = vmatpush1.xpose.msra.mxu0 0.0
    %5920 = vmatprep.subr.mxu0 0.0
    %5921 = vmatpush1.xpose.msra.mxu0 0.0
    %5922 = vmatprep.subr.mxu0 0.0
    %5923 = vmatpush1.xpose.msra.mxu0 0.0
    %5924 = vmatprep.subr.mxu0 0.0
    %5925 = vmatpush1.xpose.msra.mxu0 0.0
    %5926 = vmatprep.subr.mxu0 0.0
    %5927 = vmatpush1.xpose.msra.mxu0 0.0
    %5928 = vmatprep.subr.mxu0 0.0
    %5929 = vmatpush1.xpose.msra.mxu0 0.0
    %5930 = vmatprep.subr.mxu0 0.0
    %5931 = vmatpush1.xpose.msra.mxu0 0.0
    %5932 = vmatprep.subr.mxu0 0.0
    %5933 = vmatpush1.xpose.msra.mxu0 0.0
    %5934 = vmatprep.subr.mxu0 0.0
    %5935 = vmatpush1.xpose.msra.mxu0 0.0
    %5936 = vmatprep.subr.mxu0 0.0
    %5937 = vmatpush1.xpose.msra.mxu0 0.0
    %5938 = vmatprep.mubr.f32.mxu0 0.0
    %v5939 = vand.u32 %v5638, 4294901760
    %v5940 = vsub.f32 %v5638, %v5939
    %5941 = vmatmul.mubr.f32.gmra.mrb[0].mxu0 %v5940
    %v5942 = vpop.f32.mrb[0].mxu0
    %v5943 = vadd.f32 %v5855, %v5942
    %v5944 = vpop.f32.mrb[0].mxu0
    %5945 = vdwg.mxu0
    %5946 = vmatprep.subr.mxu0 0.0
    %v5947 = vand.u32 %v5641, 4294901760
    %5948 = vmatpush1.xpose.msra.mxu0 %v5947
    %5949 = vmatprep.subr.mxu0 0.0
    %v5950 = vand.u32 %v5644, 4294901760
    %5951 = vmatpush1.xpose.msra.mxu0 %v5950
    %5952 = vmatprep.subr.mxu0 0.0
    %v5953 = vand.u32 %v5647, 4294901760
    %5954 = vmatpush1.xpose.msra.mxu0 %v5953
    %5955 = vmatprep.subr.mxu0 0.0
    %v5956 = vand.u32 %v5650, 4294901760
    %5957 = vmatpush1.xpose.msra.mxu0 %v5956
    %5958 = vmatprep.subr.mxu0 0.0
    %v5959 = vand.u32 %v5653, 4294901760
    %5960 = vmatpush1.xpose.msra.mxu0 %v5959
    %5961 = vmatprep.subr.mxu0 0.0
    %v5962 = vand.u32 %v5656, 4294901760
    %5963 = vmatpush1.xpose.msra.mxu0 %v5962
    %5964 = vmatprep.subr.mxu0 0.0
    %v5965 = vand.u32 %v5659, 4294901760
    %5966 = vmatpush1.xpose.msra.mxu0 %v5965
    %5967 = vmatprep.subr.mxu0 0.0
    %v5968 = vand.u32 %v5662, 4294901760
    %5969 = vmatpush1.xpose.msra.mxu0 %v5968
    %5970 = vmatprep.subr.mxu0 0.0
    %5971 = vmatpush1.xpose.msra.mxu0 0.0
    %5972 = vmatprep.subr.mxu0 0.0
    %5973 = vmatpush1.xpose.msra.mxu0 0.0
    %5974 = vmatprep.subr.mxu0 0.0
    %5975 = vmatpush1.xpose.msra.mxu0 0.0
    %5976 = vmatprep.subr.mxu0 0.0
    %5977 = vmatpush1.xpose.msra.mxu0 0.0
    %5978 = vmatprep.subr.mxu0 0.0
    %5979 = vmatpush1.xpose.msra.mxu0 0.0
    %5980 = vmatprep.subr.mxu0 0.0
    %5981 = vmatpush1.xpose.msra.mxu0 0.0
    %5982 = vmatprep.subr.mxu0 0.0
    %5983 = vmatpush1.xpose.msra.mxu0 0.0
    %5984 = vmatprep.subr.mxu0 0.0
    %5985 = vmatpush1.xpose.msra.mxu0 0.0
    %5986 = vmatprep.subr.mxu0 0.0
    %5987 = vmatpush1.xpose.msra.mxu0 0.0
    %5988 = vmatprep.subr.mxu0 0.0
    %5989 = vmatpush1.xpose.msra.mxu0 0.0
    %5990 = vmatprep.subr.mxu0 0.0
    %5991 = vmatpush1.xpose.msra.mxu0 0.0
    %5992 = vmatprep.subr.mxu0 0.0
    %5993 = vmatpush1.xpose.msra.mxu0 0.0
    %5994 = vmatprep.subr.mxu0 0.0
    %5995 = vmatpush1.xpose.msra.mxu0 0.0
    %5996 = vmatprep.subr.mxu0 0.0
    %5997 = vmatpush1.xpose.msra.mxu0 0.0
    %5998 = vmatprep.subr.mxu0 0.0
    %5999 = vmatpush1.xpose.msra.mxu0 0.0
    %6000 = vmatprep.subr.mxu0 0.0
    %6001 = vmatpush1.xpose.msra.mxu0 0.0
    %6002 = vmatprep.subr.mxu0 0.0
    %6003 = vmatpush1.xpose.msra.mxu0 0.0
    %6004 = vmatprep.subr.mxu0 0.0
    %6005 = vmatpush1.xpose.msra.mxu0 0.0
    %6006 = vmatprep.subr.mxu0 0.0
    %6007 = vmatpush1.xpose.msra.mxu0 0.0
    %6008 = vmatprep.subr.mxu0 0.0
    %6009 = vmatpush1.xpose.msra.mxu0 0.0
    %6010 = vmatprep.subr.mxu0 0.0
    %6011 = vmatpush1.xpose.msra.mxu0 0.0
    %6012 = vmatprep.subr.mxu0 0.0
    %6013 = vmatpush1.xpose.msra.mxu0 0.0
    %6014 = vmatprep.subr.mxu0 0.0
    %6015 = vmatpush1.xpose.msra.mxu0 0.0
    %6016 = vmatprep.subr.mxu0 0.0
    %6017 = vmatpush1.xpose.msra.mxu0 0.0
    %6018 = vmatprep.mubr.f32.mxu0 0.0
    %v6019 = vand.u32 %v5638, 4294901760
    %v6020 = vsub.f32 %v5638, %v6019
    %v6021 = vand.u32 %v6020, 4294901760
    %6022 = vmatmul.mubr.f32.gmra.mrb[0].mxu0 %v6021
    %v6023 = vpop.f32.mrb[0].mxu0
    %v6024 = vadd.f32 %v5943, %v6023
    %v6025 = vpop.f32.mrb[0].mxu0
    %6026 = vdwg.mxu0
    %6027 = vmatprep.subr.mxu0 0.0
    %v6028 = vand.u32 %v5641, 4294901760
    %v6029 = vsub.f32 %v5641, %v6028
    %v6030 = vand.u32 %v6029, 4294901760
    %6031 = vmatpush1.xpose.msra.mxu0 %v6030
    %6032 = vmatprep.subr.mxu0 0.0
    %v6033 = vand.u32 %v5644, 4294901760
    %v6034 = vsub.f32 %v5644, %v6033
    %v6035 = vand.u32 %v6034, 4294901760
    %6036 = vmatpush1.xpose.msra.mxu0 %v6035
    %6037 = vmatprep.subr.mxu0 0.0
    %v6038 = vand.u32 %v5647, 4294901760
    %v6039 = vsub.f32 %v5647, %v6038
    %v6040 = vand.u32 %v6039, 4294901760
    %6041 = vmatpush1.xpose.msra.mxu0 %v6040
    %6042 = vmatprep.subr.mxu0 0.0
    %v6043 = vand.u32 %v5650, 4294901760
    %v6044 = vsub.f32 %v5650, %v6043
    %v6045 = vand.u32 %v6044, 4294901760
    %6046 = vmatpush1.xpose.msra.mxu0 %v6045
    %6047 = vmatprep.subr.mxu0 0.0
    %v6048 = vand.u32 %v5653, 4294901760
    %v6049 = vsub.f32 %v5653, %v6048
    %v6050 = vand.u32 %v6049, 4294901760
    %6051 = vmatpush1.xpose.msra.mxu0 %v6050
    %6052 = vmatprep.subr.mxu0 0.0
    %v6053 = vand.u32 %v5656, 4294901760
    %v6054 = vsub.f32 %v5656, %v6053
    %v6055 = vand.u32 %v6054, 4294901760
    %6056 = vmatpush1.xpose.msra.mxu0 %v6055
    %6057 = vmatprep.subr.mxu0 0.0
    %v6058 = vand.u32 %v5659, 4294901760
    %v6059 = vsub.f32 %v5659, %v6058
    %v6060 = vand.u32 %v6059, 4294901760
    %6061 = vmatpush1.xpose.msra.mxu0 %v6060
    %6062 = vmatprep.subr.mxu0 0.0
    %v6063 = vand.u32 %v5662, 4294901760
    %v6064 = vsub.f32 %v5662, %v6063
    %v6065 = vand.u32 %v6064, 4294901760
    %6066 = vmatpush1.xpose.msra.mxu0 %v6065
    %6067 = vmatprep.subr.mxu0 0.0
    %6068 = vmatpush1.xpose.msra.mxu0 0.0
    %6069 = vmatprep.subr.mxu0 0.0
    %6070 = vmatpush1.xpose.msra.mxu0 0.0
    %6071 = vmatprep.subr.mxu0 0.0
    %6072 = vmatpush1.xpose.msra.mxu0 0.0
    %6073 = vmatprep.subr.mxu0 0.0
    %6074 = vmatpush1.xpose.msra.mxu0 0.0
    %6075 = vmatprep.subr.mxu0 0.0
    %6076 = vmatpush1.xpose.msra.mxu0 0.0
    %6077 = vmatprep.subr.mxu0 0.0
    %6078 = vmatpush1.xpose.msra.mxu0 0.0
    %6079 = vmatprep.subr.mxu0 0.0
    %6080 = vmatpush1.xpose.msra.mxu0 0.0
    %6081 = vmatprep.subr.mxu0 0.0
    %6082 = vmatpush1.xpose.msra.mxu0 0.0
    %6083 = vmatprep.subr.mxu0 0.0
    %6084 = vmatpush1.xpose.msra.mxu0 0.0
    %6085 = vmatprep.subr.mxu0 0.0
    %6086 = vmatpush1.xpose.msra.mxu0 0.0
    %6087 = vmatprep.subr.mxu0 0.0
    %6088 = vmatpush1.xpose.msra.mxu0 0.0
    %6089 = vmatprep.subr.mxu0 0.0
    %6090 = vmatpush1.xpose.msra.mxu0 0.0
    %6091 = vmatprep.subr.mxu0 0.0
    %6092 = vmatpush1.xpose.msra.mxu0 0.0
    %6093 = vmatprep.subr.mxu0 0.0
    %6094 = vmatpush1.xpose.msra.mxu0 0.0
    %6095 = vmatprep.subr.mxu0 0.0
    %6096 = vmatpush1.xpose.msra.mxu0 0.0
    %6097 = vmatprep.subr.mxu0 0.0
    %6098 = vmatpush1.xpose.msra.mxu0 0.0
    %6099 = vmatprep.subr.mxu0 0.0
    %6100 = vmatpush1.xpose.msra.mxu0 0.0
    %6101 = vmatprep.subr.mxu0 0.0
    %6102 = vmatpush1.xpose.msra.mxu0 0.0
    %6103 = vmatprep.subr.mxu0 0.0
    %6104 = vmatpush1.xpose.msra.mxu0 0.0
    %6105 = vmatprep.subr.mxu0 0.0
    %6106 = vmatpush1.xpose.msra.mxu0 0.0
    %6107 = vmatprep.subr.mxu0 0.0
    %6108 = vmatpush1.xpose.msra.mxu0 0.0
    %6109 = vmatprep.subr.mxu0 0.0
    %6110 = vmatpush1.xpose.msra.mxu0 0.0
    %6111 = vmatprep.subr.mxu0 0.0
    %6112 = vmatpush1.xpose.msra.mxu0 0.0
    %6113 = vmatprep.subr.mxu0 0.0
    %6114 = vmatpush1.xpose.msra.mxu0 0.0
    %6115 = vmatprep.mubr.f32.mxu0 0.0
    %v6116 = vand.u32 %v5638, 4294901760
    %6117 = vmatmul.mubr.f32.gmra.mrb[0].mxu0 %v6116
    %v6118 = vpop.f32.mrb[0].mxu0
    %v6119 = vadd.f32 %v6024, %v6118
    %v6120 = vpop.f32.mrb[0].mxu0
    %6121 = vdwg.mxu0
    %6122 = vmatprep.subr.mxu0 0.0
    %v6123 = vand.u32 %v5641, 4294901760
    %6124 = vmatpush1.xpose.msra.mxu0 %v6123
    %6125 = vmatprep.subr.mxu0 0.0
    %v6126 = vand.u32 %v5644, 4294901760
    %6127 = vmatpush1.xpose.msra.mxu0 %v6126
    %6128 = vmatprep.subr.mxu0 0.0
    %v6129 = vand.u32 %v5647, 4294901760
    %6130 = vmatpush1.xpose.msra.mxu0 %v6129
    %6131 = vmatprep.subr.mxu0 0.0
    %v6132 = vand.u32 %v5650, 4294901760
    %6133 = vmatpush1.xpose.msra.mxu0 %v6132
    %6134 = vmatprep.subr.mxu0 0.0
    %v6135 = vand.u32 %v5653, 4294901760
    %6136 = vmatpush1.xpose.msra.mxu0 %v6135
    %6137 = vmatprep.subr.mxu0 0.0
    %v6138 = vand.u32 %v5656, 4294901760
    %6139 = vmatpush1.xpose.msra.mxu0 %v6138
    %6140 = vmatprep.subr.mxu0 0.0
    %v6141 = vand.u32 %v5659, 4294901760
    %6142 = vmatpush1.xpose.msra.mxu0 %v6141
    %6143 = vmatprep.subr.mxu0 0.0
    %v6144 = vand.u32 %v5662, 4294901760
    %6145 = vmatpush1.xpose.msra.mxu0 %v6144
    %6146 = vmatprep.subr.mxu0 0.0
    %6147 = vmatpush1.xpose.msra.mxu0 0.0
    %6148 = vmatprep.subr.mxu0 0.0
    %6149 = vmatpush1.xpose.msra.mxu0 0.0
    %6150 = vmatprep.subr.mxu0 0.0
    %6151 = vmatpush1.xpose.msra.mxu0 0.0
    %6152 = vmatprep.subr.mxu0 0.0
    %6153 = vmatpush1.xpose.msra.mxu0 0.0
    %6154 = vmatprep.subr.mxu0 0.0
    %6155 = vmatpush1.xpose.msra.mxu0 0.0
    %6156 = vmatprep.subr.mxu0 0.0
    %6157 = vmatpush1.xpose.msra.mxu0 0.0
    %6158 = vmatprep.subr.mxu0 0.0
    %6159 = vmatpush1.xpose.msra.mxu0 0.0
    %6160 = vmatprep.subr.mxu0 0.0
    %6161 = vmatpush1.xpose.msra.mxu0 0.0
    %6162 = vmatprep.subr.mxu0 0.0
    %6163 = vmatpush1.xpose.msra.mxu0 0.0
    %6164 = vmatprep.subr.mxu0 0.0
    %6165 = vmatpush1.xpose.msra.mxu0 0.0
    %6166 = vmatprep.subr.mxu0 0.0
    %6167 = vmatpush1.xpose.msra.mxu0 0.0
    %6168 = vmatprep.subr.mxu0 0.0
    %6169 = vmatpush1.xpose.msra.mxu0 0.0
    %6170 = vmatprep.subr.mxu0 0.0
    %6171 = vmatpush1.xpose.msra.mxu0 0.0
    %6172 = vmatprep.subr.mxu0 0.0
    %6173 = vmatpush1.xpose.msra.mxu0 0.0
    %6174 = vmatprep.subr.mxu0 0.0
    %6175 = vmatpush1.xpose.msra.mxu0 0.0
    %6176 = vmatprep.subr.mxu0 0.0
    %6177 = vmatpush1.xpose.msra.mxu0 0.0
    %6178 = vmatprep.subr.mxu0 0.0
    %6179 = vmatpush1.xpose.msra.mxu0 0.0
    %6180 = vmatprep.subr.mxu0 0.0
    %6181 = vmatpush1.xpose.msra.mxu0 0.0
    %6182 = vmatprep.subr.mxu0 0.0
    %6183 = vmatpush1.xpose.msra.mxu0 0.0
    %6184 = vmatprep.subr.mxu0 0.0
    %6185 = vmatpush1.xpose.msra.mxu0 0.0
    %6186 = vmatprep.subr.mxu0 0.0
    %6187 = vmatpush1.xpose.msra.mxu0 0.0
    %6188 = vmatprep.subr.mxu0 0.0
    %6189 = vmatpush1.xpose.msra.mxu0 0.0
    %6190 = vmatprep.subr.mxu0 0.0
    %6191 = vmatpush1.xpose.msra.mxu0 0.0
    %6192 = vmatprep.subr.mxu0 0.0
    %6193 = vmatpush1.xpose.msra.mxu0 0.0
    %6194 = vmatprep.mubr.f32.mxu0 0.0
    %v6195 = vand.u32 %v5638, 4294901760
    %6196 = vmatmul.mubr.f32.gmra.mrb[0].mxu0 %v6195
    %v6197 = vpop.f32.mrb[0].mxu0
    %v6198 = vadd.f32 %v6119, %v6197
    %v6199 = vpop.f32.mrb[0].mxu0
    %6200 = vdwg.mxu0
    %v6202 = vsel %vm5072, %v2310, 0
    %v6205 = vsel %vm5072, %v5024, 0
    %v6208 = vsel %vm5072, %v5025, 0
    %v6211 = vsel %vm5072, %v5026, 0
    %v6214 = vsel %vm5072, %v5027, 0
    %v6217 = vsel %vm5072, %v5028, 0
    %v6220 = vsel %vm5072, %v5029, 0
    %v6223 = vsel %vm5072, %v5030, 0
    %v6226 = vsel %vm5072, %v5031, 0
    %6228 = vmatprep.subr.mxu0 0.0
    %v6229 = vand.u32 %v6205, 4294901760
    %6230 = vmatpush1.xpose.msra.mxu0 %v6229
    %6231 = vmatprep.subr.mxu0 0.0
    %v6232 = vand.u32 %v6208, 4294901760
    %6233 = vmatpush1.xpose.msra.mxu0 %v6232
    %6234 = vmatprep.subr.mxu0 0.0
    %v6235 = vand.u32 %v6211, 4294901760
    %6236 = vmatpush1.xpose.msra.mxu0 %v6235
    %6237 = vmatprep.subr.mxu0 0.0
    %v6238 = vand.u32 %v6214, 4294901760
    %6239 = vmatpush1.xpose.msra.mxu0 %v6238
    %6240 = vmatprep.subr.mxu0 0.0
    %v6241 = vand.u32 %v6217, 4294901760
    %6242 = vmatpush1.xpose.msra.mxu0 %v6241
    %6243 = vmatprep.subr.mxu0 0.0
    %v6244 = vand.u32 %v6220, 4294901760
    %6245 = vmatpush1.xpose.msra.mxu0 %v6244
    %6246 = vmatprep.subr.mxu0 0.0
    %v6247 = vand.u32 %v6223, 4294901760
    %6248 = vmatpush1.xpose.msra.mxu0 %v6247
    %6249 = vmatprep.subr.mxu0 0.0
    %v6250 = vand.u32 %v6226, 4294901760
    %6251 = vmatpush1.xpose.msra.mxu0 %v6250
    %6252 = vmatprep.subr.mxu0 0.0
    %6253 = vmatpush1.xpose.msra.mxu0 0.0
    %6254 = vmatprep.subr.mxu0 0.0
    %6255 = vmatpush1.xpose.msra.mxu0 0.0
    %6256 = vmatprep.subr.mxu0 0.0
    %6257 = vmatpush1.xpose.msra.mxu0 0.0
    %6258 = vmatprep.subr.mxu0 0.0
    %6259 = vmatpush1.xpose.msra.mxu0 0.0
    %6260 = vmatprep.subr.mxu0 0.0
    %6261 = vmatpush1.xpose.msra.mxu0 0.0
    %6262 = vmatprep.subr.mxu0 0.0
    %6263 = vmatpush1.xpose.msra.mxu0 0.0
    %6264 = vmatprep.subr.mxu0 0.0
    %6265 = vmatpush1.xpose.msra.mxu0 0.0
    %6266 = vmatprep.subr.mxu0 0.0
    %6267 = vmatpush1.xpose.msra.mxu0 0.0
    %6268 = vmatprep.subr.mxu0 0.0
    %6269 = vmatpush1.xpose.msra.mxu0 0.0
    %6270 = vmatprep.subr.mxu0 0.0
    %6271 = vmatpush1.xpose.msra.mxu0 0.0
    %6272 = vmatprep.subr.mxu0 0.0
    %6273 = vmatpush1.xpose.msra.mxu0 0.0
    %6274 = vmatprep.subr.mxu0 0.0
    %6275 = vmatpush1.xpose.msra.mxu0 0.0
    %6276 = vmatprep.subr.mxu0 0.0
    %6277 = vmatpush1.xpose.msra.mxu0 0.0
    %6278 = vmatprep.subr.mxu0 0.0
    %6279 = vmatpush1.xpose.msra.mxu0 0.0
    %6280 = vmatprep.subr.mxu0 0.0
    %6281 = vmatpush1.xpose.msra.mxu0 0.0
    %6282 = vmatprep.subr.mxu0 0.0
    %6283 = vmatpush1.xpose.msra.mxu0 0.0
    %6284 = vmatprep.subr.mxu0 0.0
    %6285 = vmatpush1.xpose.msra.mxu0 0.0
    %6286 = vmatprep.subr.mxu0 0.0
    %6287 = vmatpush1.xpose.msra.mxu0 0.0
    %6288 = vmatprep.subr.mxu0 0.0
    %6289 = vmatpush1.xpose.msra.mxu0 0.0
    %6290 = vmatprep.subr.mxu0 0.0
    %6291 = vmatpush1.xpose.msra.mxu0 0.0
    %6292 = vmatprep.subr.mxu0 0.0
    %6293 = vmatpush1.xpose.msra.mxu0 0.0
    %6294 = vmatprep.subr.mxu0 0.0
    %6295 = vmatpush1.xpose.msra.mxu0 0.0
    %6296 = vmatprep.subr.mxu0 0.0
    %6297 = vmatpush1.xpose.msra.mxu0 0.0
    %6298 = vmatprep.subr.mxu0 0.0
    %6299 = vmatpush1.xpose.msra.mxu0 0.0
    %6300 = vmatprep.mubr.f32.mxu0 0.0
    %v6301 = vand.u32 %v6202, 4294901760
    %v6302 = vsub.f32 %v6202, %v6301
    %v6303 = vand.u32 %v6302, 4294901760
    %v6304 = vsub.f32 %v6302, %v6303
    %v6305 = vand.u32 %v6304, 4294901760
    %6306 = vmatmul.mubr.f32.gmra.mrb[0].mxu0 %v6305
    %v6307 = vpop.f32.mrb[0].mxu0
    %v6308 = vadd.f32 0.0, %v6307
    %v6309 = vpop.f32.mrb[0].mxu0
    %6310 = vdwg.mxu0
    %6311 = vmatprep.subr.mxu0 0.0
    %v6312 = vand.u32 %v6205, 4294901760
    %v6313 = vsub.f32 %v6205, %v6312
    %v6314 = vand.u32 %v6313, 4294901760
    %v6315 = vsub.f32 %v6313, %v6314
    %v6316 = vand.u32 %v6315, 4294901760
    %6317 = vmatpush1.xpose.msra.mxu0 %v6316
    %6318 = vmatprep.subr.mxu0 0.0
    %v6319 = vand.u32 %v6208, 4294901760
    %v6320 = vsub.f32 %v6208, %v6319
    %v6321 = vand.u32 %v6320, 4294901760
    %v6322 = vsub.f32 %v6320, %v6321
    %v6323 = vand.u32 %v6322, 4294901760
    %6324 = vmatpush1.xpose.msra.mxu0 %v6323
    %6325 = vmatprep.subr.mxu0 0.0
    %v6326 = vand.u32 %v6211, 4294901760
    %v6327 = vsub.f32 %v6211, %v6326
    %v6328 = vand.u32 %v6327, 4294901760
    %v6329 = vsub.f32 %v6327, %v6328
    %v6330 = vand.u32 %v6329, 4294901760
    %6331 = vmatpush1.xpose.msra.mxu0 %v6330
    %6332 = vmatprep.subr.mxu0 0.0
    %v6333 = vand.u32 %v6214, 4294901760
    %v6334 = vsub.f32 %v6214, %v6333
    %v6335 = vand.u32 %v6334, 4294901760
    %v6336 = vsub.f32 %v6334, %v6335
    %v6337 = vand.u32 %v6336, 4294901760
    %6338 = vmatpush1.xpose.msra.mxu0 %v6337
    %6339 = vmatprep.subr.mxu0 0.0
    %v6340 = vand.u32 %v6217, 4294901760
    %v6341 = vsub.f32 %v6217, %v6340
    %v6342 = vand.u32 %v6341, 4294901760
    %v6343 = vsub.f32 %v6341, %v6342
    %v6344 = vand.u32 %v6343, 4294901760
    %6345 = vmatpush1.xpose.msra.mxu0 %v6344
    %6346 = vmatprep.subr.mxu0 0.0
    %v6347 = vand.u32 %v6220, 4294901760
    %v6348 = vsub.f32 %v6220, %v6347
    %v6349 = vand.u32 %v6348, 4294901760
    %v6350 = vsub.f32 %v6348, %v6349
    %v6351 = vand.u32 %v6350, 4294901760
    %6352 = vmatpush1.xpose.msra.mxu0 %v6351
    %6353 = vmatprep.subr.mxu0 0.0
    %v6354 = vand.u32 %v6223, 4294901760
    %v6355 = vsub.f32 %v6223, %v6354
    %v6356 = vand.u32 %v6355, 4294901760
    %v6357 = vsub.f32 %v6355, %v6356
    %v6358 = vand.u32 %v6357, 4294901760
    %6359 = vmatpush1.xpose.msra.mxu0 %v6358
    %6360 = vmatprep.subr.mxu0 0.0
    %v6361 = vand.u32 %v6226, 4294901760
    %v6362 = vsub.f32 %v6226, %v6361
    %v6363 = vand.u32 %v6362, 4294901760
    %v6364 = vsub.f32 %v6362, %v6363
    %v6365 = vand.u32 %v6364, 4294901760
    %6366 = vmatpush1.xpose.msra.mxu0 %v6365
    %6367 = vmatprep.subr.mxu0 0.0
    %6368 = vmatpush1.xpose.msra.mxu0 0.0
    %6369 = vmatprep.subr.mxu0 0.0
    %6370 = vmatpush1.xpose.msra.mxu0 0.0
    %6371 = vmatprep.subr.mxu0 0.0
    %6372 = vmatpush1.xpose.msra.mxu0 0.0
    %6373 = vmatprep.subr.mxu0 0.0
    %6374 = vmatpush1.xpose.msra.mxu0 0.0
    %6375 = vmatprep.subr.mxu0 0.0
    %6376 = vmatpush1.xpose.msra.mxu0 0.0
    %6377 = vmatprep.subr.mxu0 0.0
    %6378 = vmatpush1.xpose.msra.mxu0 0.0
    %6379 = vmatprep.subr.mxu0 0.0
    %6380 = vmatpush1.xpose.msra.mxu0 0.0
    %6381 = vmatprep.subr.mxu0 0.0
    %6382 = vmatpush1.xpose.msra.mxu0 0.0
    %6383 = vmatprep.subr.mxu0 0.0
    %6384 = vmatpush1.xpose.msra.mxu0 0.0
    %6385 = vmatprep.subr.mxu0 0.0
    %6386 = vmatpush1.xpose.msra.mxu0 0.0
    %6387 = vmatprep.subr.mxu0 0.0
    %6388 = vmatpush1.xpose.msra.mxu0 0.0
    %6389 = vmatprep.subr.mxu0 0.0
    %6390 = vmatpush1.xpose.msra.mxu0 0.0
    %6391 = vmatprep.subr.mxu0 0.0
    %6392 = vmatpush1.xpose.msra.mxu0 0.0
    %6393 = vmatprep.subr.mxu0 0.0
    %6394 = vmatpush1.xpose.msra.mxu0 0.0
    %6395 = vmatprep.subr.mxu0 0.0
    %6396 = vmatpush1.xpose.msra.mxu0 0.0
    %6397 = vmatprep.subr.mxu0 0.0
    %6398 = vmatpush1.xpose.msra.mxu0 0.0
    %6399 = vmatprep.subr.mxu0 0.0
    %6400 = vmatpush1.xpose.msra.mxu0 0.0
    %6401 = vmatprep.subr.mxu0 0.0
    %6402 = vmatpush1.xpose.msra.mxu0 0.0
    %6403 = vmatprep.subr.mxu0 0.0
    %6404 = vmatpush1.xpose.msra.mxu0 0.0
    %6405 = vmatprep.subr.mxu0 0.0
    %6406 = vmatpush1.xpose.msra.mxu0 0.0
    %6407 = vmatprep.subr.mxu0 0.0
    %6408 = vmatpush1.xpose.msra.mxu0 0.0
    %6409 = vmatprep.subr.mxu0 0.0
    %6410 = vmatpush1.xpose.msra.mxu0 0.0
    %6411 = vmatprep.subr.mxu0 0.0
    %6412 = vmatpush1.xpose.msra.mxu0 0.0
    %6413 = vmatprep.subr.mxu0 0.0
    %6414 = vmatpush1.xpose.msra.mxu0 0.0
    %6415 = vmatprep.mubr.f32.mxu0 0.0
    %v6416 = vand.u32 %v6202, 4294901760
    %6417 = vmatmul.mubr.f32.gmra.mrb[0].mxu0 %v6416
    %v6418 = vpop.f32.mrb[0].mxu0
    %v6419 = vadd.f32 %v6308, %v6418
    %v6420 = vpop.f32.mrb[0].mxu0
    %6421 = vdwg.mxu0
    %6422 = vmatprep.subr.mxu0 0.0
    %v6423 = vand.u32 %v6205, 4294901760
    %v6424 = vsub.f32 %v6205, %v6423
    %6425 = vmatpush1.xpose.msra.mxu0 %v6424
    %6426 = vmatprep.subr.mxu0 0.0
    %v6427 = vand.u32 %v6208, 4294901760
    %v6428 = vsub.f32 %v6208, %v6427
    %6429 = vmatpush1.xpose.msra.mxu0 %v6428
    %6430 = vmatprep.subr.mxu0 0.0
    %v6431 = vand.u32 %v6211, 4294901760
    %v6432 = vsub.f32 %v6211, %v6431
    %6433 = vmatpush1.xpose.msra.mxu0 %v6432
    %6434 = vmatprep.subr.mxu0 0.0
    %v6435 = vand.u32 %v6214, 4294901760
    %v6436 = vsub.f32 %v6214, %v6435
    %6437 = vmatpush1.xpose.msra.mxu0 %v6436
    %6438 = vmatprep.subr.mxu0 0.0
    %v6439 = vand.u32 %v6217, 4294901760
    %v6440 = vsub.f32 %v6217, %v6439
    %6441 = vmatpush1.xpose.msra.mxu0 %v6440
    %6442 = vmatprep.subr.mxu0 0.0
    %v6443 = vand.u32 %v6220, 4294901760
    %v6444 = vsub.f32 %v6220, %v6443
    %6445 = vmatpush1.xpose.msra.mxu0 %v6444
    %6446 = vmatprep.subr.mxu0 0.0
    %v6447 = vand.u32 %v6223, 4294901760
    %v6448 = vsub.f32 %v6223, %v6447
    %6449 = vmatpush1.xpose.msra.mxu0 %v6448
    %6450 = vmatprep.subr.mxu0 0.0
    %v6451 = vand.u32 %v6226, 4294901760
    %v6452 = vsub.f32 %v6226, %v6451
    %6453 = vmatpush1.xpose.msra.mxu0 %v6452
    %6454 = vmatprep.subr.mxu0 0.0
    %6455 = vmatpush1.xpose.msra.mxu0 0.0
    %6456 = vmatprep.subr.mxu0 0.0
    %6457 = vmatpush1.xpose.msra.mxu0 0.0
    %6458 = vmatprep.subr.mxu0 0.0
    %6459 = vmatpush1.xpose.msra.mxu0 0.0
    %6460 = vmatprep.subr.mxu0 0.0
    %6461 = vmatpush1.xpose.msra.mxu0 0.0
    %6462 = vmatprep.subr.mxu0 0.0
    %6463 = vmatpush1.xpose.msra.mxu0 0.0
    %6464 = vmatprep.subr.mxu0 0.0
    %6465 = vmatpush1.xpose.msra.mxu0 0.0
    %6466 = vmatprep.subr.mxu0 0.0
    %6467 = vmatpush1.xpose.msra.mxu0 0.0
    %6468 = vmatprep.subr.mxu0 0.0
    %6469 = vmatpush1.xpose.msra.mxu0 0.0
    %6470 = vmatprep.subr.mxu0 0.0
    %6471 = vmatpush1.xpose.msra.mxu0 0.0
    %6472 = vmatprep.subr.mxu0 0.0
    %6473 = vmatpush1.xpose.msra.mxu0 0.0
    %6474 = vmatprep.subr.mxu0 0.0
    %6475 = vmatpush1.xpose.msra.mxu0 0.0
    %6476 = vmatprep.subr.mxu0 0.0
    %6477 = vmatpush1.xpose.msra.mxu0 0.0
    %6478 = vmatprep.subr.mxu0 0.0
    %6479 = vmatpush1.xpose.msra.mxu0 0.0
    %6480 = vmatprep.subr.mxu0 0.0
    %6481 = vmatpush1.xpose.msra.mxu0 0.0
    %6482 = vmatprep.subr.mxu0 0.0
    %6483 = vmatpush1.xpose.msra.mxu0 0.0
    %6484 = vmatprep.subr.mxu0 0.0
    %6485 = vmatpush1.xpose.msra.mxu0 0.0
    %6486 = vmatprep.subr.mxu0 0.0
    %6487 = vmatpush1.xpose.msra.mxu0 0.0
    %6488 = vmatprep.subr.mxu0 0.0
    %6489 = vmatpush1.xpose.msra.mxu0 0.0
    %6490 = vmatprep.subr.mxu0 0.0
    %6491 = vmatpush1.xpose.msra.mxu0 0.0
    %6492 = vmatprep.subr.mxu0 0.0
    %6493 = vmatpush1.xpose.msra.mxu0 0.0
    %6494 = vmatprep.subr.mxu0 0.0
    %6495 = vmatpush1.xpose.msra.mxu0 0.0
    %6496 = vmatprep.subr.mxu0 0.0
    %6497 = vmatpush1.xpose.msra.mxu0 0.0
    %6498 = vmatprep.subr.mxu0 0.0
    %6499 = vmatpush1.xpose.msra.mxu0 0.0
    %6500 = vmatprep.subr.mxu0 0.0
    %6501 = vmatpush1.xpose.msra.mxu0 0.0
    %6502 = vmatprep.mubr.f32.mxu0 0.0
    %v6503 = vand.u32 %v6202, 4294901760
    %v6504 = vsub.f32 %v6202, %v6503
    %6505 = vmatmul.mubr.f32.gmra.mrb[0].mxu0 %v6504
    %v6506 = vpop.f32.mrb[0].mxu0
    %v6507 = vadd.f32 %v6419, %v6506
    %v6508 = vpop.f32.mrb[0].mxu0
    %6509 = vdwg.mxu0
    %6510 = vmatprep.subr.mxu0 0.0
    %v6511 = vand.u32 %v6205, 4294901760
    %6512 = vmatpush1.xpose.msra.mxu0 %v6511
    %6513 = vmatprep.subr.mxu0 0.0
    %v6514 = vand.u32 %v6208, 4294901760
    %6515 = vmatpush1.xpose.msra.mxu0 %v6514
    %6516 = vmatprep.subr.mxu0 0.0
    %v6517 = vand.u32 %v6211, 4294901760
    %6518 = vmatpush1.xpose.msra.mxu0 %v6517
    %6519 = vmatprep.subr.mxu0 0.0
    %v6520 = vand.u32 %v6214, 4294901760
    %6521 = vmatpush1.xpose.msra.mxu0 %v6520
    %6522 = vmatprep.subr.mxu0 0.0
    %v6523 = vand.u32 %v6217, 4294901760
    %6524 = vmatpush1.xpose.msra.mxu0 %v6523
    %6525 = vmatprep.subr.mxu0 0.0
    %v6526 = vand.u32 %v6220, 4294901760
    %6527 = vmatpush1.xpose.msra.mxu0 %v6526
    %6528 = vmatprep.subr.mxu0 0.0
    %v6529 = vand.u32 %v6223, 4294901760
    %6530 = vmatpush1.xpose.msra.mxu0 %v6529
    %6531 = vmatprep.subr.mxu0 0.0
    %v6532 = vand.u32 %v6226, 4294901760
    %6533 = vmatpush1.xpose.msra.mxu0 %v6532
    %6534 = vmatprep.subr.mxu0 0.0
    %6535 = vmatpush1.xpose.msra.mxu0 0.0
    %6536 = vmatprep.subr.mxu0 0.0
    %6537 = vmatpush1.xpose.msra.mxu0 0.0
    %6538 = vmatprep.subr.mxu0 0.0
    %6539 = vmatpush1.xpose.msra.mxu0 0.0
    %6540 = vmatprep.subr.mxu0 0.0
    %6541 = vmatpush1.xpose.msra.mxu0 0.0
    %6542 = vmatprep.subr.mxu0 0.0
    %6543 = vmatpush1.xpose.msra.mxu0 0.0
    %6544 = vmatprep.subr.mxu0 0.0
    %6545 = vmatpush1.xpose.msra.mxu0 0.0
    %6546 = vmatprep.subr.mxu0 0.0
    %6547 = vmatpush1.xpose.msra.mxu0 0.0
    %6548 = vmatprep.subr.mxu0 0.0
    %6549 = vmatpush1.xpose.msra.mxu0 0.0
    %6550 = vmatprep.subr.mxu0 0.0
    %6551 = vmatpush1.xpose.msra.mxu0 0.0
    %6552 = vmatprep.subr.mxu0 0.0
    %6553 = vmatpush1.xpose.msra.mxu0 0.0
    %6554 = vmatprep.subr.mxu0 0.0
    %6555 = vmatpush1.xpose.msra.mxu0 0.0
    %6556 = vmatprep.subr.mxu0 0.0
    %6557 = vmatpush1.xpose.msra.mxu0 0.0
    %6558 = vmatprep.subr.mxu0 0.0
    %6559 = vmatpush1.xpose.msra.mxu0 0.0
    %6560 = vmatprep.subr.mxu0 0.0
    %6561 = vmatpush1.xpose.msra.mxu0 0.0
    %6562 = vmatprep.subr.mxu0 0.0
    %6563 = vmatpush1.xpose.msra.mxu0 0.0
    %6564 = vmatprep.subr.mxu0 0.0
    %6565 = vmatpush1.xpose.msra.mxu0 0.0
    %6566 = vmatprep.subr.mxu0 0.0
    %6567 = vmatpush1.xpose.msra.mxu0 0.0
    %6568 = vmatprep.subr.mxu0 0.0
    %6569 = vmatpush1.xpose.msra.mxu0 0.0
    %6570 = vmatprep.subr.mxu0 0.0
    %6571 = vmatpush1.xpose.msra.mxu0 0.0
    %6572 = vmatprep.subr.mxu0 0.0
    %6573 = vmatpush1.xpose.msra.mxu0 0.0
    %6574 = vmatprep.subr.mxu0 0.0
    %6575 = vmatpush1.xpose.msra.mxu0 0.0
    %6576 = vmatprep.subr.mxu0 0.0
    %6577 = vmatpush1.xpose.msra.mxu0 0.0
    %6578 = vmatprep.subr.mxu0 0.0
    %6579 = vmatpush1.xpose.msra.mxu0 0.0
    %6580 = vmatprep.subr.mxu0 0.0
    %6581 = vmatpush1.xpose.msra.mxu0 0.0
    %6582 = vmatprep.mubr.f32.mxu0 0.0
    %v6583 = vand.u32 %v6202, 4294901760
    %v6584 = vsub.f32 %v6202, %v6583
    %v6585 = vand.u32 %v6584, 4294901760
    %6586 = vmatmul.mubr.f32.gmra.mrb[0].mxu0 %v6585
    %v6587 = vpop.f32.mrb[0].mxu0
    %v6588 = vadd.f32 %v6507, %v6587
    %v6589 = vpop.f32.mrb[0].mxu0
    %6590 = vdwg.mxu0
    %6591 = vmatprep.subr.mxu0 0.0
    %v6592 = vand.u32 %v6205, 4294901760
    %v6593 = vsub.f32 %v6205, %v6592
    %v6594 = vand.u32 %v6593, 4294901760
    %6595 = vmatpush1.xpose.msra.mxu0 %v6594
    %6596 = vmatprep.subr.mxu0 0.0
    %v6597 = vand.u32 %v6208, 4294901760
    %v6598 = vsub.f32 %v6208, %v6597
    %v6599 = vand.u32 %v6598, 4294901760
    %6600 = vmatpush1.xpose.msra.mxu0 %v6599
    %6601 = vmatprep.subr.mxu0 0.0
    %v6602 = vand.u32 %v6211, 4294901760
    %v6603 = vsub.f32 %v6211, %v6602
    %v6604 = vand.u32 %v6603, 4294901760
    %6605 = vmatpush1.xpose.msra.mxu0 %v6604
    %6606 = vmatprep.subr.mxu0 0.0
    %v6607 = vand.u32 %v6214, 4294901760
    %v6608 = vsub.f32 %v6214, %v6607
    %v6609 = vand.u32 %v6608, 4294901760
    %6610 = vmatpush1.xpose.msra.mxu0 %v6609
    %6611 = vmatprep.subr.mxu0 0.0
    %v6612 = vand.u32 %v6217, 4294901760
    %v6613 = vsub.f32 %v6217, %v6612
    %v6614 = vand.u32 %v6613, 4294901760
    %6615 = vmatpush1.xpose.msra.mxu0 %v6614
    %6616 = vmatprep.subr.mxu0 0.0
    %v6617 = vand.u32 %v6220, 4294901760
    %v6618 = vsub.f32 %v6220, %v6617
    %v6619 = vand.u32 %v6618, 4294901760
    %6620 = vmatpush1.xpose.msra.mxu0 %v6619
    %6621 = vmatprep.subr.mxu0 0.0
    %v6622 = vand.u32 %v6223, 4294901760
    %v6623 = vsub.f32 %v6223, %v6622
    %v6624 = vand.u32 %v6623, 4294901760
    %6625 = vmatpush1.xpose.msra.mxu0 %v6624
    %6626 = vmatprep.subr.mxu0 0.0
    %v6627 = vand.u32 %v6226, 4294901760
    %v6628 = vsub.f32 %v6226, %v6627
    %v6629 = vand.u32 %v6628, 4294901760
    %6630 = vmatpush1.xpose.msra.mxu0 %v6629
    %6631 = vmatprep.subr.mxu0 0.0
    %6632 = vmatpush1.xpose.msra.mxu0 0.0
    %6633 = vmatprep.subr.mxu0 0.0
    %6634 = vmatpush1.xpose.msra.mxu0 0.0
    %6635 = vmatprep.subr.mxu0 0.0
    %6636 = vmatpush1.xpose.msra.mxu0 0.0
    %6637 = vmatprep.subr.mxu0 0.0
    %6638 = vmatpush1.xpose.msra.mxu0 0.0
    %6639 = vmatprep.subr.mxu0 0.0
    %6640 = vmatpush1.xpose.msra.mxu0 0.0
    %6641 = vmatprep.subr.mxu0 0.0
    %6642 = vmatpush1.xpose.msra.mxu0 0.0
    %6643 = vmatprep.subr.mxu0 0.0
    %6644 = vmatpush1.xpose.msra.mxu0 0.0
    %6645 = vmatprep.subr.mxu0 0.0
    %6646 = vmatpush1.xpose.msra.mxu0 0.0
    %6647 = vmatprep.subr.mxu0 0.0
    %6648 = vmatpush1.xpose.msra.mxu0 0.0
    %6649 = vmatprep.subr.mxu0 0.0
    %6650 = vmatpush1.xpose.msra.mxu0 0.0
    %6651 = vmatprep.subr.mxu0 0.0
    %6652 = vmatpush1.xpose.msra.mxu0 0.0
    %6653 = vmatprep.subr.mxu0 0.0
    %6654 = vmatpush1.xpose.msra.mxu0 0.0
    %6655 = vmatprep.subr.mxu0 0.0
    %6656 = vmatpush1.xpose.msra.mxu0 0.0
    %6657 = vmatprep.subr.mxu0 0.0
    %6658 = vmatpush1.xpose.msra.mxu0 0.0
    %6659 = vmatprep.subr.mxu0 0.0
    %6660 = vmatpush1.xpose.msra.mxu0 0.0
    %6661 = vmatprep.subr.mxu0 0.0
    %6662 = vmatpush1.xpose.msra.mxu0 0.0
    %6663 = vmatprep.subr.mxu0 0.0
    %6664 = vmatpush1.xpose.msra.mxu0 0.0
    %6665 = vmatprep.subr.mxu0 0.0
    %6666 = vmatpush1.xpose.msra.mxu0 0.0
    %6667 = vmatprep.subr.mxu0 0.0
    %6668 = vmatpush1.xpose.msra.mxu0 0.0
    %6669 = vmatprep.subr.mxu0 0.0
    %6670 = vmatpush1.xpose.msra.mxu0 0.0
    %6671 = vmatprep.subr.mxu0 0.0
    %6672 = vmatpush1.xpose.msra.mxu0 0.0
    %6673 = vmatprep.subr.mxu0 0.0
    %6674 = vmatpush1.xpose.msra.mxu0 0.0
    %6675 = vmatprep.subr.mxu0 0.0
    %6676 = vmatpush1.xpose.msra.mxu0 0.0
    %6677 = vmatprep.subr.mxu0 0.0
    %6678 = vmatpush1.xpose.msra.mxu0 0.0
    %6679 = vmatprep.mubr.f32.mxu0 0.0
    %v6680 = vand.u32 %v6202, 4294901760
    %6681 = vmatmul.mubr.f32.gmra.mrb[0].mxu0 %v6680
    %v6682 = vpop.f32.mrb[0].mxu0
    %v6683 = vadd.f32 %v6588, %v6682
    %v6684 = vpop.f32.mrb[0].mxu0
    %6685 = vdwg.mxu0
    %6686 = vmatprep.subr.mxu0 0.0
    %v6687 = vand.u32 %v6205, 4294901760
    %6688 = vmatpush1.xpose.msra.mxu0 %v6687
    %6689 = vmatprep.subr.mxu0 0.0
    %v6690 = vand.u32 %v6208, 4294901760
    %6691 = vmatpush1.xpose.msra.mxu0 %v6690
    %6692 = vmatprep.subr.mxu0 0.0
    %v6693 = vand.u32 %v6211, 4294901760
    %6694 = vmatpush1.xpose.msra.mxu0 %v6693
    %6695 = vmatprep.subr.mxu0 0.0
    %v6696 = vand.u32 %v6214, 4294901760
    %6697 = vmatpush1.xpose.msra.mxu0 %v6696
    %6698 = vmatprep.subr.mxu0 0.0
    %v6699 = vand.u32 %v6217, 4294901760
    %6700 = vmatpush1.xpose.msra.mxu0 %v6699
    %6701 = vmatprep.subr.mxu0 0.0
    %v6702 = vand.u32 %v6220, 4294901760
    %6703 = vmatpush1.xpose.msra.mxu0 %v6702
    %6704 = vmatprep.subr.mxu0 0.0
    %v6705 = vand.u32 %v6223, 4294901760
    %6706 = vmatpush1.xpose.msra.mxu0 %v6705
    %6707 = vmatprep.subr.mxu0 0.0
    %v6708 = vand.u32 %v6226, 4294901760
    %6709 = vmatpush1.xpose.msra.mxu0 %v6708
    %6710 = vmatprep.subr.mxu0 0.0
    %6711 = vmatpush1.xpose.msra.mxu0 0.0
    %6712 = vmatprep.subr.mxu0 0.0
    %6713 = vmatpush1.xpose.msra.mxu0 0.0
    %6714 = vmatprep.subr.mxu0 0.0
    %6715 = vmatpush1.xpose.msra.mxu0 0.0
    %6716 = vmatprep.subr.mxu0 0.0
    %6717 = vmatpush1.xpose.msra.mxu0 0.0
    %6718 = vmatprep.subr.mxu0 0.0
    %6719 = vmatpush1.xpose.msra.mxu0 0.0
    %6720 = vmatprep.subr.mxu0 0.0
    %6721 = vmatpush1.xpose.msra.mxu0 0.0
    %6722 = vmatprep.subr.mxu0 0.0
    %6723 = vmatpush1.xpose.msra.mxu0 0.0
    %6724 = vmatprep.subr.mxu0 0.0
    %6725 = vmatpush1.xpose.msra.mxu0 0.0
    %6726 = vmatprep.subr.mxu0 0.0
    %6727 = vmatpush1.xpose.msra.mxu0 0.0
    %6728 = vmatprep.subr.mxu0 0.0
    %6729 = vmatpush1.xpose.msra.mxu0 0.0
    %6730 = vmatprep.subr.mxu0 0.0
    %6731 = vmatpush1.xpose.msra.mxu0 0.0
    %6732 = vmatprep.subr.mxu0 0.0
    %6733 = vmatpush1.xpose.msra.mxu0 0.0
    %6734 = vmatprep.subr.mxu0 0.0
    %6735 = vmatpush1.xpose.msra.mxu0 0.0
    %6736 = vmatprep.subr.mxu0 0.0
    %6737 = vmatpush1.xpose.msra.mxu0 0.0
    %6738 = vmatprep.subr.mxu0 0.0
    %6739 = vmatpush1.xpose.msra.mxu0 0.0
    %6740 = vmatprep.subr.mxu0 0.0
    %6741 = vmatpush1.xpose.msra.mxu0 0.0
    %6742 = vmatprep.subr.mxu0 0.0
    %6743 = vmatpush1.xpose.msra.mxu0 0.0
    %6744 = vmatprep.subr.mxu0 0.0
    %6745 = vmatpush1.xpose.msra.mxu0 0.0
    %6746 = vmatprep.subr.mxu0 0.0
    %6747 = vmatpush1.xpose.msra.mxu0 0.0
    %6748 = vmatprep.subr.mxu0 0.0
    %6749 = vmatpush1.xpose.msra.mxu0 0.0
    %6750 = vmatprep.subr.mxu0 0.0
    %6751 = vmatpush1.xpose.msra.mxu0 0.0
    %6752 = vmatprep.subr.mxu0 0.0
    %6753 = vmatpush1.xpose.msra.mxu0 0.0
    %6754 = vmatprep.subr.mxu0 0.0
    %6755 = vmatpush1.xpose.msra.mxu0 0.0
    %6756 = vmatprep.subr.mxu0 0.0
    %6757 = vmatpush1.xpose.msra.mxu0 0.0
    %6758 = vmatprep.mubr.f32.mxu0 0.0
    %v6759 = vand.u32 %v6202, 4294901760
    %6760 = vmatmul.mubr.f32.gmra.mrb[0].mxu0 %v6759
    %v6761 = vpop.f32.mrb[0].mxu0
    %v6762 = vadd.f32 %v6683, %v6761
    %v6763 = vpop.f32.mrb[0].mxu0
    %6764 = vdwg.mxu0
    %v6766 = vsel %vm5072, %v2849, 0
    %v6769 = vsel %vm5072, %v5032, 0
    %v6772 = vsel %vm5072, %v5033, 0
    %v6775 = vsel %vm5072, %v5034, 0
    %v6778 = vsel %vm5072, %v5035, 0
    %v6781 = vsel %vm5072, %v5036, 0
    %v6784 = vsel %vm5072, %v5037, 0
    %v6787 = vsel %vm5072, %v5038, 0
    %v6790 = vsel %vm5072, %v5039, 0
    %6792 = vmatprep.subr.mxu0 0.0
    %v6793 = vand.u32 %v6769, 4294901760
    %6794 = vmatpush1.xpose.msra.mxu0 %v6793
    %6795 = vmatprep.subr.mxu0 0.0
    %v6796 = vand.u32 %v6772, 4294901760
    %6797 = vmatpush1.xpose.msra.mxu0 %v6796
    %6798 = vmatprep.subr.mxu0 0.0
    %v6799 = vand.u32 %v6775, 4294901760
    %6800 = vmatpush1.xpose.msra.mxu0 %v6799
    %6801 = vmatprep.subr.mxu0 0.0
    %v6802 = vand.u32 %v6778, 4294901760
    %6803 = vmatpush1.xpose.msra.mxu0 %v6802
    %6804 = vmatprep.subr.mxu0 0.0
    %v6805 = vand.u32 %v6781, 4294901760
    %6806 = vmatpush1.xpose.msra.mxu0 %v6805
    %6807 = vmatprep.subr.mxu0 0.0
    %v6808 = vand.u32 %v6784, 4294901760
    %6809 = vmatpush1.xpose.msra.mxu0 %v6808
    %6810 = vmatprep.subr.mxu0 0.0
    %v6811 = vand.u32 %v6787, 4294901760
    %6812 = vmatpush1.xpose.msra.mxu0 %v6811
    %6813 = vmatprep.subr.mxu0 0.0
    %v6814 = vand.u32 %v6790, 4294901760
    %6815 = vmatpush1.xpose.msra.mxu0 %v6814
    %6816 = vmatprep.subr.mxu0 0.0
    %6817 = vmatpush1.xpose.msra.mxu0 0.0
    %6818 = vmatprep.subr.mxu0 0.0
    %6819 = vmatpush1.xpose.msra.mxu0 0.0
    %6820 = vmatprep.subr.mxu0 0.0
    %6821 = vmatpush1.xpose.msra.mxu0 0.0
    %6822 = vmatprep.subr.mxu0 0.0
    %6823 = vmatpush1.xpose.msra.mxu0 0.0
    %6824 = vmatprep.subr.mxu0 0.0
    %6825 = vmatpush1.xpose.msra.mxu0 0.0
    %6826 = vmatprep.subr.mxu0 0.0
    %6827 = vmatpush1.xpose.msra.mxu0 0.0
    %6828 = vmatprep.subr.mxu0 0.0
    %6829 = vmatpush1.xpose.msra.mxu0 0.0
    %6830 = vmatprep.subr.mxu0 0.0
    %6831 = vmatpush1.xpose.msra.mxu0 0.0
    %6832 = vmatprep.subr.mxu0 0.0
    %6833 = vmatpush1.xpose.msra.mxu0 0.0
    %6834 = vmatprep.subr.mxu0 0.0
    %6835 = vmatpush1.xpose.msra.mxu0 0.0
    %6836 = vmatprep.subr.mxu0 0.0
    %6837 = vmatpush1.xpose.msra.mxu0 0.0
    %6838 = vmatprep.subr.mxu0 0.0
    %6839 = vmatpush1.xpose.msra.mxu0 0.0
    %6840 = vmatprep.subr.mxu0 0.0
    %6841 = vmatpush1.xpose.msra.mxu0 0.0
    %6842 = vmatprep.subr.mxu0 0.0
    %6843 = vmatpush1.xpose.msra.mxu0 0.0
    %6844 = vmatprep.subr.mxu0 0.0
    %6845 = vmatpush1.xpose.msra.mxu0 0.0
    %6846 = vmatprep.subr.mxu0 0.0
    %6847 = vmatpush1.xpose.msra.mxu0 0.0
    %6848 = vmatprep.subr.mxu0 0.0
    %6849 = vmatpush1.xpose.msra.mxu0 0.0
    %6850 = vmatprep.subr.mxu0 0.0
    %6851 = vmatpush1.xpose.msra.mxu0 0.0
    %6852 = vmatprep.subr.mxu0 0.0
    %6853 = vmatpush1.xpose.msra.mxu0 0.0
    %6854 = vmatprep.subr.mxu0 0.0
    %6855 = vmatpush1.xpose.msra.mxu0 0.0
    %6856 = vmatprep.subr.mxu0 0.0
    %6857 = vmatpush1.xpose.msra.mxu0 0.0
    %6858 = vmatprep.subr.mxu0 0.0
    %6859 = vmatpush1.xpose.msra.mxu0 0.0
    %6860 = vmatprep.subr.mxu0 0.0
    %6861 = vmatpush1.xpose.msra.mxu0 0.0
    %6862 = vmatprep.subr.mxu0 0.0
    %6863 = vmatpush1.xpose.msra.mxu0 0.0
    %6864 = vmatprep.mubr.f32.mxu0 0.0
    %v6865 = vand.u32 %v6766, 4294901760
    %v6866 = vsub.f32 %v6766, %v6865
    %v6867 = vand.u32 %v6866, 4294901760
    %v6868 = vsub.f32 %v6866, %v6867
    %v6869 = vand.u32 %v6868, 4294901760
    %6870 = vmatmul.mubr.f32.gmra.mrb[0].mxu0 %v6869
    %v6871 = vpop.f32.mrb[0].mxu0
    %v6872 = vadd.f32 0.0, %v6871
    %v6873 = vpop.f32.mrb[0].mxu0
    %6874 = vdwg.mxu0
    %6875 = vmatprep.subr.mxu0 0.0
    %v6876 = vand.u32 %v6769, 4294901760
    %v6877 = vsub.f32 %v6769, %v6876
    %v6878 = vand.u32 %v6877, 4294901760
    %v6879 = vsub.f32 %v6877, %v6878
    %v6880 = vand.u32 %v6879, 4294901760
    %6881 = vmatpush1.xpose.msra.mxu0 %v6880
    %6882 = vmatprep.subr.mxu0 0.0
    %v6883 = vand.u32 %v6772, 4294901760
    %v6884 = vsub.f32 %v6772, %v6883
    %v6885 = vand.u32 %v6884, 4294901760
    %v6886 = vsub.f32 %v6884, %v6885
    %v6887 = vand.u32 %v6886, 4294901760
    %6888 = vmatpush1.xpose.msra.mxu0 %v6887
    %6889 = vmatprep.subr.mxu0 0.0
    %v6890 = vand.u32 %v6775, 4294901760
    %v6891 = vsub.f32 %v6775, %v6890
    %v6892 = vand.u32 %v6891, 4294901760
    %v6893 = vsub.f32 %v6891, %v6892
    %v6894 = vand.u32 %v6893, 4294901760
    %6895 = vmatpush1.xpose.msra.mxu0 %v6894
    %6896 = vmatprep.subr.mxu0 0.0
    %v6897 = vand.u32 %v6778, 4294901760
    %v6898 = vsub.f32 %v6778, %v6897
    %v6899 = vand.u32 %v6898, 4294901760
    %v6900 = vsub.f32 %v6898, %v6899
    %v6901 = vand.u32 %v6900, 4294901760
    %6902 = vmatpush1.xpose.msra.mxu0 %v6901
    %6903 = vmatprep.subr.mxu0 0.0
    %v6904 = vand.u32 %v6781, 4294901760
    %v6905 = vsub.f32 %v6781, %v6904
    %v6906 = vand.u32 %v6905, 4294901760
    %v6907 = vsub.f32 %v6905, %v6906
    %v6908 = vand.u32 %v6907, 4294901760
    %6909 = vmatpush1.xpose.msra.mxu0 %v6908
    %6910 = vmatprep.subr.mxu0 0.0
    %v6911 = vand.u32 %v6784, 4294901760
    %v6912 = vsub.f32 %v6784, %v6911
    %v6913 = vand.u32 %v6912, 4294901760
    %v6914 = vsub.f32 %v6912, %v6913
    %v6915 = vand.u32 %v6914, 4294901760
    %6916 = vmatpush1.xpose.msra.mxu0 %v6915
    %6917 = vmatprep.subr.mxu0 0.0
    %v6918 = vand.u32 %v6787, 4294901760
    %v6919 = vsub.f32 %v6787, %v6918
    %v6920 = vand.u32 %v6919, 4294901760
    %v6921 = vsub.f32 %v6919, %v6920
    %v6922 = vand.u32 %v6921, 4294901760
    %6923 = vmatpush1.xpose.msra.mxu0 %v6922
    %6924 = vmatprep.subr.mxu0 0.0
    %v6925 = vand.u32 %v6790, 4294901760
    %v6926 = vsub.f32 %v6790, %v6925
    %v6927 = vand.u32 %v6926, 4294901760
    %v6928 = vsub.f32 %v6926, %v6927
    %v6929 = vand.u32 %v6928, 4294901760
    %6930 = vmatpush1.xpose.msra.mxu0 %v6929
    %6931 = vmatprep.subr.mxu0 0.0
    %6932 = vmatpush1.xpose.msra.mxu0 0.0
    %6933 = vmatprep.subr.mxu0 0.0
    %6934 = vmatpush1.xpose.msra.mxu0 0.0
    %6935 = vmatprep.subr.mxu0 0.0
    %6936 = vmatpush1.xpose.msra.mxu0 0.0
    %6937 = vmatprep.subr.mxu0 0.0
    %6938 = vmatpush1.xpose.msra.mxu0 0.0
    %6939 = vmatprep.subr.mxu0 0.0
    %6940 = vmatpush1.xpose.msra.mxu0 0.0
    %6941 = vmatprep.subr.mxu0 0.0
    %6942 = vmatpush1.xpose.msra.mxu0 0.0
    %6943 = vmatprep.subr.mxu0 0.0
    %6944 = vmatpush1.xpose.msra.mxu0 0.0
    %6945 = vmatprep.subr.mxu0 0.0
    %6946 = vmatpush1.xpose.msra.mxu0 0.0
    %6947 = vmatprep.subr.mxu0 0.0
    %6948 = vmatpush1.xpose.msra.mxu0 0.0
    %6949 = vmatprep.subr.mxu0 0.0
    %6950 = vmatpush1.xpose.msra.mxu0 0.0
    %6951 = vmatprep.subr.mxu0 0.0
    %6952 = vmatpush1.xpose.msra.mxu0 0.0
    %6953 = vmatprep.subr.mxu0 0.0
    %6954 = vmatpush1.xpose.msra.mxu0 0.0
    %6955 = vmatprep.subr.mxu0 0.0
    %6956 = vmatpush1.xpose.msra.mxu0 0.0
    %6957 = vmatprep.subr.mxu0 0.0
    %6958 = vmatpush1.xpose.msra.mxu0 0.0
    %6959 = vmatprep.subr.mxu0 0.0
    %6960 = vmatpush1.xpose.msra.mxu0 0.0
    %6961 = vmatprep.subr.mxu0 0.0
    %6962 = vmatpush1.xpose.msra.mxu0 0.0
    %6963 = vmatprep.subr.mxu0 0.0
    %6964 = vmatpush1.xpose.msra.mxu0 0.0
    %6965 = vmatprep.subr.mxu0 0.0
    %6966 = vmatpush1.xpose.msra.mxu0 0.0
    %6967 = vmatprep.subr.mxu0 0.0
    %6968 = vmatpush1.xpose.msra.mxu0 0.0
    %6969 = vmatprep.subr.mxu0 0.0
    %6970 = vmatpush1.xpose.msra.mxu0 0.0
    %6971 = vmatprep.subr.mxu0 0.0
    %6972 = vmatpush1.xpose.msra.mxu0 0.0
    %6973 = vmatprep.subr.mxu0 0.0
    %6974 = vmatpush1.xpose.msra.mxu0 0.0
    %6975 = vmatprep.subr.mxu0 0.0
    %6976 = vmatpush1.xpose.msra.mxu0 0.0
    %6977 = vmatprep.subr.mxu0 0.0
    %6978 = vmatpush1.xpose.msra.mxu0 0.0
    %6979 = vmatprep.mubr.f32.mxu0 0.0
    %v6980 = vand.u32 %v6766, 4294901760
    %6981 = vmatmul.mubr.f32.gmra.mrb[0].mxu0 %v6980
    %v6982 = vpop.f32.mrb[0].mxu0
    %v6983 = vadd.f32 %v6872, %v6982
    %v6984 = vpop.f32.mrb[0].mxu0
    %6985 = vdwg.mxu0
    %6986 = vmatprep.subr.mxu0 0.0
    %v6987 = vand.u32 %v6769, 4294901760
    %v6988 = vsub.f32 %v6769, %v6987
    %6989 = vmatpush1.xpose.msra.mxu0 %v6988
    %6990 = vmatprep.subr.mxu0 0.0
    %v6991 = vand.u32 %v6772, 4294901760
    %v6992 = vsub.f32 %v6772, %v6991
    %6993 = vmatpush1.xpose.msra.mxu0 %v6992
    %6994 = vmatprep.subr.mxu0 0.0
    %v6995 = vand.u32 %v6775, 4294901760
    %v6996 = vsub.f32 %v6775, %v6995
    %6997 = vmatpush1.xpose.msra.mxu0 %v6996
    %6998 = vmatprep.subr.mxu0 0.0
    %v6999 = vand.u32 %v6778, 4294901760
    %v7000 = vsub.f32 %v6778, %v6999
    %7001 = vmatpush1.xpose.msra.mxu0 %v7000
    %7002 = vmatprep.subr.mxu0 0.0
    %v7003 = vand.u32 %v6781, 4294901760
    %v7004 = vsub.f32 %v6781, %v7003
    %7005 = vmatpush1.xpose.msra.mxu0 %v7004
    %7006 = vmatprep.subr.mxu0 0.0
    %v7007 = vand.u32 %v6784, 4294901760
    %v7008 = vsub.f32 %v6784, %v7007
    %7009 = vmatpush1.xpose.msra.mxu0 %v7008
    %7010 = vmatprep.subr.mxu0 0.0
    %v7011 = vand.u32 %v6787, 4294901760
    %v7012 = vsub.f32 %v6787, %v7011
    %7013 = vmatpush1.xpose.msra.mxu0 %v7012
    %7014 = vmatprep.subr.mxu0 0.0
    %v7015 = vand.u32 %v6790, 4294901760
    %v7016 = vsub.f32 %v6790, %v7015
    %7017 = vmatpush1.xpose.msra.mxu0 %v7016
    %7018 = vmatprep.subr.mxu0 0.0
    %7019 = vmatpush1.xpose.msra.mxu0 0.0
    %7020 = vmatprep.subr.mxu0 0.0
    %7021 = vmatpush1.xpose.msra.mxu0 0.0
    %7022 = vmatprep.subr.mxu0 0.0
    %7023 = vmatpush1.xpose.msra.mxu0 0.0
    %7024 = vmatprep.subr.mxu0 0.0
    %7025 = vmatpush1.xpose.msra.mxu0 0.0
    %7026 = vmatprep.subr.mxu0 0.0
    %7027 = vmatpush1.xpose.msra.mxu0 0.0
    %7028 = vmatprep.subr.mxu0 0.0
    %7029 = vmatpush1.xpose.msra.mxu0 0.0
    %7030 = vmatprep.subr.mxu0 0.0
    %7031 = vmatpush1.xpose.msra.mxu0 0.0
    %7032 = vmatprep.subr.mxu0 0.0
    %7033 = vmatpush1.xpose.msra.mxu0 0.0
    %7034 = vmatprep.subr.mxu0 0.0
    %7035 = vmatpush1.xpose.msra.mxu0 0.0
    %7036 = vmatprep.subr.mxu0 0.0
    %7037 = vmatpush1.xpose.msra.mxu0 0.0
    %7038 = vmatprep.subr.mxu0 0.0
    %7039 = vmatpush1.xpose.msra.mxu0 0.0
    %7040 = vmatprep.subr.mxu0 0.0
    %7041 = vmatpush1.xpose.msra.mxu0 0.0
    %7042 = vmatprep.subr.mxu0 0.0
    %7043 = vmatpush1.xpose.msra.mxu0 0.0
    %7044 = vmatprep.subr.mxu0 0.0
    %7045 = vmatpush1.xpose.msra.mxu0 0.0
    %7046 = vmatprep.subr.mxu0 0.0
    %7047 = vmatpush1.xpose.msra.mxu0 0.0
    %7048 = vmatprep.subr.mxu0 0.0
    %7049 = vmatpush1.xpose.msra.mxu0 0.0
    %7050 = vmatprep.subr.mxu0 0.0
    %7051 = vmatpush1.xpose.msra.mxu0 0.0
    %7052 = vmatprep.subr.mxu0 0.0
    %7053 = vmatpush1.xpose.msra.mxu0 0.0
    %7054 = vmatprep.subr.mxu0 0.0
    %7055 = vmatpush1.xpose.msra.mxu0 0.0
    %7056 = vmatprep.subr.mxu0 0.0
    %7057 = vmatpush1.xpose.msra.mxu0 0.0
    %7058 = vmatprep.subr.mxu0 0.0
    %7059 = vmatpush1.xpose.msra.mxu0 0.0
    %7060 = vmatprep.subr.mxu0 0.0
    %7061 = vmatpush1.xpose.msra.mxu0 0.0
    %7062 = vmatprep.subr.mxu0 0.0
    %7063 = vmatpush1.xpose.msra.mxu0 0.0
    %7064 = vmatprep.subr.mxu0 0.0
    %7065 = vmatpush1.xpose.msra.mxu0 0.0
    %7066 = vmatprep.mubr.f32.mxu0 0.0
    %v7067 = vand.u32 %v6766, 4294901760
    %v7068 = vsub.f32 %v6766, %v7067
    %7069 = vmatmul.mubr.f32.gmra.mrb[0].mxu0 %v7068
    %v7070 = vpop.f32.mrb[0].mxu0
    %v7071 = vadd.f32 %v6983, %v7070
    %v7072 = vpop.f32.mrb[0].mxu0
    %7073 = vdwg.mxu0
    %7074 = vmatprep.subr.mxu0 0.0
    %v7075 = vand.u32 %v6769, 4294901760
    %7076 = vmatpush1.xpose.msra.mxu0 %v7075
    %7077 = vmatprep.subr.mxu0 0.0
    %v7078 = vand.u32 %v6772, 4294901760
    %7079 = vmatpush1.xpose.msra.mxu0 %v7078
    %7080 = vmatprep.subr.mxu0 0.0
    %v7081 = vand.u32 %v6775, 4294901760
    %7082 = vmatpush1.xpose.msra.mxu0 %v7081
    %7083 = vmatprep.subr.mxu0 0.0
    %v7084 = vand.u32 %v6778, 4294901760
    %7085 = vmatpush1.xpose.msra.mxu0 %v7084
    %7086 = vmatprep.subr.mxu0 0.0
    %v7087 = vand.u32 %v6781, 4294901760
    %7088 = vmatpush1.xpose.msra.mxu0 %v7087
    %7089 = vmatprep.subr.mxu0 0.0
    %v7090 = vand.u32 %v6784, 4294901760
    %7091 = vmatpush1.xpose.msra.mxu0 %v7090
    %7092 = vmatprep.subr.mxu0 0.0
    %v7093 = vand.u32 %v6787, 4294901760
    %7094 = vmatpush1.xpose.msra.mxu0 %v7093
    %7095 = vmatprep.subr.mxu0 0.0
    %v7096 = vand.u32 %v6790, 4294901760
    %7097 = vmatpush1.xpose.msra.mxu0 %v7096
    %7098 = vmatprep.subr.mxu0 0.0
    %7099 = vmatpush1.xpose.msra.mxu0 0.0
    %7100 = vmatprep.subr.mxu0 0.0
    %7101 = vmatpush1.xpose.msra.mxu0 0.0
    %7102 = vmatprep.subr.mxu0 0.0
    %7103 = vmatpush1.xpose.msra.mxu0 0.0
    %7104 = vmatprep.subr.mxu0 0.0
    %7105 = vmatpush1.xpose.msra.mxu0 0.0
    %7106 = vmatprep.subr.mxu0 0.0
    %7107 = vmatpush1.xpose.msra.mxu0 0.0
    %7108 = vmatprep.subr.mxu0 0.0
    %7109 = vmatpush1.xpose.msra.mxu0 0.0
    %7110 = vmatprep.subr.mxu0 0.0
    %7111 = vmatpush1.xpose.msra.mxu0 0.0
    %7112 = vmatprep.subr.mxu0 0.0
    %7113 = vmatpush1.xpose.msra.mxu0 0.0
    %7114 = vmatprep.subr.mxu0 0.0
    %7115 = vmatpush1.xpose.msra.mxu0 0.0
    %7116 = vmatprep.subr.mxu0 0.0
    %7117 = vmatpush1.xpose.msra.mxu0 0.0
    %7118 = vmatprep.subr.mxu0 0.0
    %7119 = vmatpush1.xpose.msra.mxu0 0.0
    %7120 = vmatprep.subr.mxu0 0.0
    %7121 = vmatpush1.xpose.msra.mxu0 0.0
    %7122 = vmatprep.subr.mxu0 0.0
    %7123 = vmatpush1.xpose.msra.mxu0 0.0
    %7124 = vmatprep.subr.mxu0 0.0
    %7125 = vmatpush1.xpose.msra.mxu0 0.0
    %7126 = vmatprep.subr.mxu0 0.0
    %7127 = vmatpush1.xpose.msra.mxu0 0.0
    %7128 = vmatprep.subr.mxu0 0.0
    %7129 = vmatpush1.xpose.msra.mxu0 0.0
    %7130 = vmatprep.subr.mxu0 0.0
    %7131 = vmatpush1.xpose.msra.mxu0 0.0
    %7132 = vmatprep.subr.mxu0 0.0
    %7133 = vmatpush1.xpose.msra.mxu0 0.0
    %7134 = vmatprep.subr.mxu0 0.0
    %7135 = vmatpush1.xpose.msra.mxu0 0.0
    %7136 = vmatprep.subr.mxu0 0.0
    %7137 = vmatpush1.xpose.msra.mxu0 0.0
    %7138 = vmatprep.subr.mxu0 0.0
    %7139 = vmatpush1.xpose.msra.mxu0 0.0
    %7140 = vmatprep.subr.mxu0 0.0
    %7141 = vmatpush1.xpose.msra.mxu0 0.0
    %7142 = vmatprep.subr.mxu0 0.0
    %7143 = vmatpush1.xpose.msra.mxu0 0.0
    %7144 = vmatprep.subr.mxu0 0.0
    %7145 = vmatpush1.xpose.msra.mxu0 0.0
    %7146 = vmatprep.mubr.f32.mxu0 0.0
    %v7147 = vand.u32 %v6766, 4294901760
    %v7148 = vsub.f32 %v6766, %v7147
    %v7149 = vand.u32 %v7148, 4294901760
    %7150 = vmatmul.mubr.f32.gmra.mrb[0].mxu0 %v7149
    %v7151 = vpop.f32.mrb[0].mxu0
    %v7152 = vadd.f32 %v7071, %v7151
    %v7153 = vpop.f32.mrb[0].mxu0
    %7154 = vdwg.mxu0
    %7155 = vmatprep.subr.mxu0 0.0
    %v7156 = vand.u32 %v6769, 4294901760
    %v7157 = vsub.f32 %v6769, %v7156
    %v7158 = vand.u32 %v7157, 4294901760
    %7159 = vmatpush1.xpose.msra.mxu0 %v7158
    %7160 = vmatprep.subr.mxu0 0.0
    %v7161 = vand.u32 %v6772, 4294901760
    %v7162 = vsub.f32 %v6772, %v7161
    %v7163 = vand.u32 %v7162, 4294901760
    %7164 = vmatpush1.xpose.msra.mxu0 %v7163
    %7165 = vmatprep.subr.mxu0 0.0
    %v7166 = vand.u32 %v6775, 4294901760
    %v7167 = vsub.f32 %v6775, %v7166
    %v7168 = vand.u32 %v7167, 4294901760
    %7169 = vmatpush1.xpose.msra.mxu0 %v7168
    %7170 = vmatprep.subr.mxu0 0.0
    %v7171 = vand.u32 %v6778, 4294901760
    %v7172 = vsub.f32 %v6778, %v7171
    %v7173 = vand.u32 %v7172, 4294901760
    %7174 = vmatpush1.xpose.msra.mxu0 %v7173
    %7175 = vmatprep.subr.mxu0 0.0
    %v7176 = vand.u32 %v6781, 4294901760
    %v7177 = vsub.f32 %v6781, %v7176
    %v7178 = vand.u32 %v7177, 4294901760
    %7179 = vmatpush1.xpose.msra.mxu0 %v7178
    %7180 = vmatprep.subr.mxu0 0.0
    %v7181 = vand.u32 %v6784, 4294901760
    %v7182 = vsub.f32 %v6784, %v7181
    %v7183 = vand.u32 %v7182, 4294901760
    %7184 = vmatpush1.xpose.msra.mxu0 %v7183
    %7185 = vmatprep.subr.mxu0 0.0
    %v7186 = vand.u32 %v6787, 4294901760
    %v7187 = vsub.f32 %v6787, %v7186
    %v7188 = vand.u32 %v7187, 4294901760
    %7189 = vmatpush1.xpose.msra.mxu0 %v7188
    %7190 = vmatprep.subr.mxu0 0.0
    %v7191 = vand.u32 %v6790, 4294901760
    %v7192 = vsub.f32 %v6790, %v7191
    %v7193 = vand.u32 %v7192, 4294901760
    %7194 = vmatpush1.xpose.msra.mxu0 %v7193
    %7195 = vmatprep.subr.mxu0 0.0
    %7196 = vmatpush1.xpose.msra.mxu0 0.0
    %7197 = vmatprep.subr.mxu0 0.0
    %7198 = vmatpush1.xpose.msra.mxu0 0.0
    %7199 = vmatprep.subr.mxu0 0.0
    %7200 = vmatpush1.xpose.msra.mxu0 0.0
    %7201 = vmatprep.subr.mxu0 0.0
    %7202 = vmatpush1.xpose.msra.mxu0 0.0
    %7203 = vmatprep.subr.mxu0 0.0
    %7204 = vmatpush1.xpose.msra.mxu0 0.0
    %7205 = vmatprep.subr.mxu0 0.0
    %7206 = vmatpush1.xpose.msra.mxu0 0.0
    %7207 = vmatprep.subr.mxu0 0.0
    %7208 = vmatpush1.xpose.msra.mxu0 0.0
    %7209 = vmatprep.subr.mxu0 0.0
    %7210 = vmatpush1.xpose.msra.mxu0 0.0
    %7211 = vmatprep.subr.mxu0 0.0
    %7212 = vmatpush1.xpose.msra.mxu0 0.0
    %7213 = vmatprep.subr.mxu0 0.0
    %7214 = vmatpush1.xpose.msra.mxu0 0.0
    %7215 = vmatprep.subr.mxu0 0.0
    %7216 = vmatpush1.xpose.msra.mxu0 0.0
    %7217 = vmatprep.subr.mxu0 0.0
    %7218 = vmatpush1.xpose.msra.mxu0 0.0
    %7219 = vmatprep.subr.mxu0 0.0
    %7220 = vmatpush1.xpose.msra.mxu0 0.0
    %7221 = vmatprep.subr.mxu0 0.0
    %7222 = vmatpush1.xpose.msra.mxu0 0.0
    %7223 = vmatprep.subr.mxu0 0.0
    %7224 = vmatpush1.xpose.msra.mxu0 0.0
    %7225 = vmatprep.subr.mxu0 0.0
    %7226 = vmatpush1.xpose.msra.mxu0 0.0
    %7227 = vmatprep.subr.mxu0 0.0
    %7228 = vmatpush1.xpose.msra.mxu0 0.0
    %7229 = vmatprep.subr.mxu0 0.0
    %7230 = vmatpush1.xpose.msra.mxu0 0.0
    %7231 = vmatprep.subr.mxu0 0.0
    %7232 = vmatpush1.xpose.msra.mxu0 0.0
    %7233 = vmatprep.subr.mxu0 0.0
    %7234 = vmatpush1.xpose.msra.mxu0 0.0
    %7235 = vmatprep.subr.mxu0 0.0
    %7236 = vmatpush1.xpose.msra.mxu0 0.0
    %7237 = vmatprep.subr.mxu0 0.0
    %7238 = vmatpush1.xpose.msra.mxu0 0.0
    %7239 = vmatprep.subr.mxu0 0.0
    %7240 = vmatpush1.xpose.msra.mxu0 0.0
    %7241 = vmatprep.subr.mxu0 0.0
    %7242 = vmatpush1.xpose.msra.mxu0 0.0
    %7243 = vmatprep.mubr.f32.mxu0 0.0
    %v7244 = vand.u32 %v6766, 4294901760
    %7245 = vmatmul.mubr.f32.gmra.mrb[0].mxu0 %v7244
    %v7246 = vpop.f32.mrb[0].mxu0
    %v7247 = vadd.f32 %v7152, %v7246
    %v7248 = vpop.f32.mrb[0].mxu0
    %7249 = vdwg.mxu0
    %7250 = vmatprep.subr.mxu0 0.0
    %v7251 = vand.u32 %v6769, 4294901760
    %7252 = vmatpush1.xpose.msra.mxu0 %v7251
    %7253 = vmatprep.subr.mxu0 0.0
    %v7254 = vand.u32 %v6772, 4294901760
    %7255 = vmatpush1.xpose.msra.mxu0 %v7254
    %7256 = vmatprep.subr.mxu0 0.0
    %v7257 = vand.u32 %v6775, 4294901760
    %7258 = vmatpush1.xpose.msra.mxu0 %v7257
    %7259 = vmatprep.subr.mxu0 0.0
    %v7260 = vand.u32 %v6778, 4294901760
    %7261 = vmatpush1.xpose.msra.mxu0 %v7260
    %7262 = vmatprep.subr.mxu0 0.0
    %v7263 = vand.u32 %v6781, 4294901760
    %7264 = vmatpush1.xpose.msra.mxu0 %v7263
    %7265 = vmatprep.subr.mxu0 0.0
    %v7266 = vand.u32 %v6784, 4294901760
    %7267 = vmatpush1.xpose.msra.mxu0 %v7266
    %7268 = vmatprep.subr.mxu0 0.0
    %v7269 = vand.u32 %v6787, 4294901760
    %7270 = vmatpush1.xpose.msra.mxu0 %v7269
    %7271 = vmatprep.subr.mxu0 0.0
    %v7272 = vand.u32 %v6790, 4294901760
    %7273 = vmatpush1.xpose.msra.mxu0 %v7272
    %7274 = vmatprep.subr.mxu0 0.0
    %7275 = vmatpush1.xpose.msra.mxu0 0.0
    %7276 = vmatprep.subr.mxu0 0.0
    %7277 = vmatpush1.xpose.msra.mxu0 0.0
    %7278 = vmatprep.subr.mxu0 0.0
    %7279 = vmatpush1.xpose.msra.mxu0 0.0
    %7280 = vmatprep.subr.mxu0 0.0
    %7281 = vmatpush1.xpose.msra.mxu0 0.0
    %7282 = vmatprep.subr.mxu0 0.0
    %7283 = vmatpush1.xpose.msra.mxu0 0.0
    %7284 = vmatprep.subr.mxu0 0.0
    %7285 = vmatpush1.xpose.msra.mxu0 0.0
    %7286 = vmatprep.subr.mxu0 0.0
    %7287 = vmatpush1.xpose.msra.mxu0 0.0
    %7288 = vmatprep.subr.mxu0 0.0
    %7289 = vmatpush1.xpose.msra.mxu0 0.0
    %7290 = vmatprep.subr.mxu0 0.0
    %7291 = vmatpush1.xpose.msra.mxu0 0.0
    %7292 = vmatprep.subr.mxu0 0.0
    %7293 = vmatpush1.xpose.msra.mxu0 0.0
    %7294 = vmatprep.subr.mxu0 0.0
    %7295 = vmatpush1.xpose.msra.mxu0 0.0
    %7296 = vmatprep.subr.mxu0 0.0
    %7297 = vmatpush1.xpose.msra.mxu0 0.0
    %7298 = vmatprep.subr.mxu0 0.0
    %7299 = vmatpush1.xpose.msra.mxu0 0.0
    %7300 = vmatprep.subr.mxu0 0.0
    %7301 = vmatpush1.xpose.msra.mxu0 0.0
    %7302 = vmatprep.subr.mxu0 0.0
    %7303 = vmatpush1.xpose.msra.mxu0 0.0
    %7304 = vmatprep.subr.mxu0 0.0
    %7305 = vmatpush1.xpose.msra.mxu0 0.0
    %7306 = vmatprep.subr.mxu0 0.0
    %7307 = vmatpush1.xpose.msra.mxu0 0.0
    %7308 = vmatprep.subr.mxu0 0.0
    %7309 = vmatpush1.xpose.msra.mxu0 0.0
    %7310 = vmatprep.subr.mxu0 0.0
    %7311 = vmatpush1.xpose.msra.mxu0 0.0
    %7312 = vmatprep.subr.mxu0 0.0
    %7313 = vmatpush1.xpose.msra.mxu0 0.0
    %7314 = vmatprep.subr.mxu0 0.0
    %7315 = vmatpush1.xpose.msra.mxu0 0.0
    %7316 = vmatprep.subr.mxu0 0.0
    %7317 = vmatpush1.xpose.msra.mxu0 0.0
    %7318 = vmatprep.subr.mxu0 0.0
    %7319 = vmatpush1.xpose.msra.mxu0 0.0
    %7320 = vmatprep.subr.mxu0 0.0
    %7321 = vmatpush1.xpose.msra.mxu0 0.0
    %7322 = vmatprep.mubr.f32.mxu0 0.0
    %v7323 = vand.u32 %v6766, 4294901760
    %7324 = vmatmul.mubr.f32.gmra.mrb[0].mxu0 %v7323
    %v7325 = vpop.f32.mrb[0].mxu0
    %v7326 = vadd.f32 %v7247, %v7325
    %v7327 = vpop.f32.mrb[0].mxu0
    %7328 = vdwg.mxu0
    %v7330 = vsel %vm5072, %v3388, 0
    %v7333 = vsel %vm5072, %v5040, 0
    %v7336 = vsel %vm5072, %v5041, 0
    %v7339 = vsel %vm5072, %v5042, 0
    %v7342 = vsel %vm5072, %v5043, 0
    %v7345 = vsel %vm5072, %v5044, 0
    %v7348 = vsel %vm5072, %v5045, 0
    %v7351 = vsel %vm5072, %v5046, 0
    %v7354 = vsel %vm5072, %v5047, 0
    %7356 = vmatprep.subr.mxu0 0.0
    %v7357 = vand.u32 %v7333, 4294901760
    %7358 = vmatpush1.xpose.msra.mxu0 %v7357
    %7359 = vmatprep.subr.mxu0 0.0
    %v7360 = vand.u32 %v7336, 4294901760
    %7361 = vmatpush1.xpose.msra.mxu0 %v7360
    %7362 = vmatprep.subr.mxu0 0.0
    %v7363 = vand.u32 %v7339, 4294901760
    %7364 = vmatpush1.xpose.msra.mxu0 %v7363
    %7365 = vmatprep.subr.mxu0 0.0
    %v7366 = vand.u32 %v7342, 4294901760
    %7367 = vmatpush1.xpose.msra.mxu0 %v7366
    %7368 = vmatprep.subr.mxu0 0.0
    %v7369 = vand.u32 %v7345, 4294901760
    %7370 = vmatpush1.xpose.msra.mxu0 %v7369
    %7371 = vmatprep.subr.mxu0 0.0
    %v7372 = vand.u32 %v7348, 4294901760
    %7373 = vmatpush1.xpose.msra.mxu0 %v7372
    %7374 = vmatprep.subr.mxu0 0.0
    %v7375 = vand.u32 %v7351, 4294901760
    %7376 = vmatpush1.xpose.msra.mxu0 %v7375
    %7377 = vmatprep.subr.mxu0 0.0
    %v7378 = vand.u32 %v7354, 4294901760
    %7379 = vmatpush1.xpose.msra.mxu0 %v7378
    %7380 = vmatprep.subr.mxu0 0.0
    %7381 = vmatpush1.xpose.msra.mxu0 0.0
    %7382 = vmatprep.subr.mxu0 0.0
    %7383 = vmatpush1.xpose.msra.mxu0 0.0
    %7384 = vmatprep.subr.mxu0 0.0
    %7385 = vmatpush1.xpose.msra.mxu0 0.0
    %7386 = vmatprep.subr.mxu0 0.0
    %7387 = vmatpush1.xpose.msra.mxu0 0.0
    %7388 = vmatprep.subr.mxu0 0.0
    %7389 = vmatpush1.xpose.msra.mxu0 0.0
    %7390 = vmatprep.subr.mxu0 0.0
    %7391 = vmatpush1.xpose.msra.mxu0 0.0
    %7392 = vmatprep.subr.mxu0 0.0
    %7393 = vmatpush1.xpose.msra.mxu0 0.0
    %7394 = vmatprep.subr.mxu0 0.0
    %7395 = vmatpush1.xpose.msra.mxu0 0.0
    %7396 = vmatprep.subr.mxu0 0.0
    %7397 = vmatpush1.xpose.msra.mxu0 0.0
    %7398 = vmatprep.subr.mxu0 0.0
    %7399 = vmatpush1.xpose.msra.mxu0 0.0
    %7400 = vmatprep.subr.mxu0 0.0
    %7401 = vmatpush1.xpose.msra.mxu0 0.0
    %7402 = vmatprep.subr.mxu0 0.0
    %7403 = vmatpush1.xpose.msra.mxu0 0.0
    %7404 = vmatprep.subr.mxu0 0.0
    %7405 = vmatpush1.xpose.msra.mxu0 0.0
    %7406 = vmatprep.subr.mxu0 0.0
    %7407 = vmatpush1.xpose.msra.mxu0 0.0
    %7408 = vmatprep.subr.mxu0 0.0
    %7409 = vmatpush1.xpose.msra.mxu0 0.0
    %7410 = vmatprep.subr.mxu0 0.0
    %7411 = vmatpush1.xpose.msra.mxu0 0.0
    %7412 = vmatprep.subr.mxu0 0.0
    %7413 = vmatpush1.xpose.msra.mxu0 0.0
    %7414 = vmatprep.subr.mxu0 0.0
    %7415 = vmatpush1.xpose.msra.mxu0 0.0
    %7416 = vmatprep.subr.mxu0 0.0
    %7417 = vmatpush1.xpose.msra.mxu0 0.0
    %7418 = vmatprep.subr.mxu0 0.0
    %7419 = vmatpush1.xpose.msra.mxu0 0.0
    %7420 = vmatprep.subr.mxu0 0.0
    %7421 = vmatpush1.xpose.msra.mxu0 0.0
    %7422 = vmatprep.subr.mxu0 0.0
    %7423 = vmatpush1.xpose.msra.mxu0 0.0
    %7424 = vmatprep.subr.mxu0 0.0
    %7425 = vmatpush1.xpose.msra.mxu0 0.0
    %7426 = vmatprep.subr.mxu0 0.0
    %7427 = vmatpush1.xpose.msra.mxu0 0.0
    %7428 = vmatprep.mubr.f32.mxu0 0.0
    %v7429 = vand.u32 %v7330, 4294901760
    %v7430 = vsub.f32 %v7330, %v7429
    %v7431 = vand.u32 %v7430, 4294901760
    %v7432 = vsub.f32 %v7430, %v7431
    %v7433 = vand.u32 %v7432, 4294901760
    %7434 = vmatmul.mubr.f32.gmra.mrb[0].mxu0 %v7433
    %v7435 = vpop.f32.mrb[0].mxu0
    %v7436 = vadd.f32 0.0, %v7435
    %v7437 = vpop.f32.mrb[0].mxu0
    %7438 = vdwg.mxu0
    %7439 = vmatprep.subr.mxu0 0.0
    %v7440 = vand.u32 %v7333, 4294901760
    %v7441 = vsub.f32 %v7333, %v7440
    %v7442 = vand.u32 %v7441, 4294901760
    %v7443 = vsub.f32 %v7441, %v7442
    %v7444 = vand.u32 %v7443, 4294901760
    %7445 = vmatpush1.xpose.msra.mxu0 %v7444
    %7446 = vmatprep.subr.mxu0 0.0
    %v7447 = vand.u32 %v7336, 4294901760
    %v7448 = vsub.f32 %v7336, %v7447
    %v7449 = vand.u32 %v7448, 4294901760
    %v7450 = vsub.f32 %v7448, %v7449
    %v7451 = vand.u32 %v7450, 4294901760
    %7452 = vmatpush1.xpose.msra.mxu0 %v7451
    %7453 = vmatprep.subr.mxu0 0.0
    %v7454 = vand.u32 %v7339, 4294901760
    %v7455 = vsub.f32 %v7339, %v7454
    %v7456 = vand.u32 %v7455, 4294901760
    %v7457 = vsub.f32 %v7455, %v7456
    %v7458 = vand.u32 %v7457, 4294901760
    %7459 = vmatpush1.xpose.msra.mxu0 %v7458
    %7460 = vmatprep.subr.mxu0 0.0
    %v7461 = vand.u32 %v7342, 4294901760
    %v7462 = vsub.f32 %v7342, %v7461
    %v7463 = vand.u32 %v7462, 4294901760
    %v7464 = vsub.f32 %v7462, %v7463
    %v7465 = vand.u32 %v7464, 4294901760
    %7466 = vmatpush1.xpose.msra.mxu0 %v7465
    %7467 = vmatprep.subr.mxu0 0.0
    %v7468 = vand.u32 %v7345, 4294901760
    %v7469 = vsub.f32 %v7345, %v7468
    %v7470 = vand.u32 %v7469, 4294901760
    %v7471 = vsub.f32 %v7469, %v7470
    %v7472 = vand.u32 %v7471, 4294901760
    %7473 = vmatpush1.xpose.msra.mxu0 %v7472
    %7474 = vmatprep.subr.mxu0 0.0
    %v7475 = vand.u32 %v7348, 4294901760
    %v7476 = vsub.f32 %v7348, %v7475
    %v7477 = vand.u32 %v7476, 4294901760
    %v7478 = vsub.f32 %v7476, %v7477
    %v7479 = vand.u32 %v7478, 4294901760
    %7480 = vmatpush1.xpose.msra.mxu0 %v7479
    %7481 = vmatprep.subr.mxu0 0.0
    %v7482 = vand.u32 %v7351, 4294901760
    %v7483 = vsub.f32 %v7351, %v7482
    %v7484 = vand.u32 %v7483, 4294901760
    %v7485 = vsub.f32 %v7483, %v7484
    %v7486 = vand.u32 %v7485, 4294901760
    %7487 = vmatpush1.xpose.msra.mxu0 %v7486
    %7488 = vmatprep.subr.mxu0 0.0
    %v7489 = vand.u32 %v7354, 4294901760
    %v7490 = vsub.f32 %v7354, %v7489
    %v7491 = vand.u32 %v7490, 4294901760
    %v7492 = vsub.f32 %v7490, %v7491
    %v7493 = vand.u32 %v7492, 4294901760
    %7494 = vmatpush1.xpose.msra.mxu0 %v7493
    %7495 = vmatprep.subr.mxu0 0.0
    %7496 = vmatpush1.xpose.msra.mxu0 0.0
    %7497 = vmatprep.subr.mxu0 0.0
    %7498 = vmatpush1.xpose.msra.mxu0 0.0
    %7499 = vmatprep.subr.mxu0 0.0
    %7500 = vmatpush1.xpose.msra.mxu0 0.0
    %7501 = vmatprep.subr.mxu0 0.0
    %7502 = vmatpush1.xpose.msra.mxu0 0.0
    %7503 = vmatprep.subr.mxu0 0.0
    %7504 = vmatpush1.xpose.msra.mxu0 0.0
    %7505 = vmatprep.subr.mxu0 0.0
    %7506 = vmatpush1.xpose.msra.mxu0 0.0
    %7507 = vmatprep.subr.mxu0 0.0
    %7508 = vmatpush1.xpose.msra.mxu0 0.0
    %7509 = vmatprep.subr.mxu0 0.0
    %7510 = vmatpush1.xpose.msra.mxu0 0.0
    %7511 = vmatprep.subr.mxu0 0.0
    %7512 = vmatpush1.xpose.msra.mxu0 0.0
    %7513 = vmatprep.subr.mxu0 0.0
    %7514 = vmatpush1.xpose.msra.mxu0 0.0
    %7515 = vmatprep.subr.mxu0 0.0
    %7516 = vmatpush1.xpose.msra.mxu0 0.0
    %7517 = vmatprep.subr.mxu0 0.0
    %7518 = vmatpush1.xpose.msra.mxu0 0.0
    %7519 = vmatprep.subr.mxu0 0.0
    %7520 = vmatpush1.xpose.msra.mxu0 0.0
    %7521 = vmatprep.subr.mxu0 0.0
    %7522 = vmatpush1.xpose.msra.mxu0 0.0
    %7523 = vmatprep.subr.mxu0 0.0
    %7524 = vmatpush1.xpose.msra.mxu0 0.0
    %7525 = vmatprep.subr.mxu0 0.0
    %7526 = vmatpush1.xpose.msra.mxu0 0.0
    %7527 = vmatprep.subr.mxu0 0.0
    %7528 = vmatpush1.xpose.msra.mxu0 0.0
    %7529 = vmatprep.subr.mxu0 0.0
    %7530 = vmatpush1.xpose.msra.mxu0 0.0
    %7531 = vmatprep.subr.mxu0 0.0
    %7532 = vmatpush1.xpose.msra.mxu0 0.0
    %7533 = vmatprep.subr.mxu0 0.0
    %7534 = vmatpush1.xpose.msra.mxu0 0.0
    %7535 = vmatprep.subr.mxu0 0.0
    %7536 = vmatpush1.xpose.msra.mxu0 0.0
    %7537 = vmatprep.subr.mxu0 0.0
    %7538 = vmatpush1.xpose.msra.mxu0 0.0
    %7539 = vmatprep.subr.mxu0 0.0
    %7540 = vmatpush1.xpose.msra.mxu0 0.0
    %7541 = vmatprep.subr.mxu0 0.0
    %7542 = vmatpush1.xpose.msra.mxu0 0.0
    %7543 = vmatprep.mubr.f32.mxu0 0.0
    %v7544 = vand.u32 %v7330, 4294901760
    %7545 = vmatmul.mubr.f32.gmra.mrb[0].mxu0 %v7544
    %v7546 = vpop.f32.mrb[0].mxu0
    %v7547 = vadd.f32 %v7436, %v7546
    %v7548 = vpop.f32.mrb[0].mxu0
    %7549 = vdwg.mxu0
    %7550 = vmatprep.subr.mxu0 0.0
    %v7551 = vand.u32 %v7333, 4294901760
    %v7552 = vsub.f32 %v7333, %v7551
    %7553 = vmatpush1.xpose.msra.mxu0 %v7552
    %7554 = vmatprep.subr.mxu0 0.0
    %v7555 = vand.u32 %v7336, 4294901760
    %v7556 = vsub.f32 %v7336, %v7555
    %7557 = vmatpush1.xpose.msra.mxu0 %v7556
    %7558 = vmatprep.subr.mxu0 0.0
    %v7559 = vand.u32 %v7339, 4294901760
    %v7560 = vsub.f32 %v7339, %v7559
    %7561 = vmatpush1.xpose.msra.mxu0 %v7560
    %7562 = vmatprep.subr.mxu0 0.0
    %v7563 = vand.u32 %v7342, 4294901760
    %v7564 = vsub.f32 %v7342, %v7563
    %7565 = vmatpush1.xpose.msra.mxu0 %v7564
    %7566 = vmatprep.subr.mxu0 0.0
    %v7567 = vand.u32 %v7345, 4294901760
    %v7568 = vsub.f32 %v7345, %v7567
    %7569 = vmatpush1.xpose.msra.mxu0 %v7568
    %7570 = vmatprep.subr.mxu0 0.0
    %v7571 = vand.u32 %v7348, 4294901760
    %v7572 = vsub.f32 %v7348, %v7571
    %7573 = vmatpush1.xpose.msra.mxu0 %v7572
    %7574 = vmatprep.subr.mxu0 0.0
    %v7575 = vand.u32 %v7351, 4294901760
    %v7576 = vsub.f32 %v7351, %v7575
    %7577 = vmatpush1.xpose.msra.mxu0 %v7576
    %7578 = vmatprep.subr.mxu0 0.0
    %v7579 = vand.u32 %v7354, 4294901760
    %v7580 = vsub.f32 %v7354, %v7579
    %7581 = vmatpush1.xpose.msra.mxu0 %v7580
    %7582 = vmatprep.subr.mxu0 0.0
    %7583 = vmatpush1.xpose.msra.mxu0 0.0
    %7584 = vmatprep.subr.mxu0 0.0
    %7585 = vmatpush1.xpose.msra.mxu0 0.0
    %7586 = vmatprep.subr.mxu0 0.0
    %7587 = vmatpush1.xpose.msra.mxu0 0.0
    %7588 = vmatprep.subr.mxu0 0.0
    %7589 = vmatpush1.xpose.msra.mxu0 0.0
    %7590 = vmatprep.subr.mxu0 0.0
    %7591 = vmatpush1.xpose.msra.mxu0 0.0
    %7592 = vmatprep.subr.mxu0 0.0
    %7593 = vmatpush1.xpose.msra.mxu0 0.0
    %7594 = vmatprep.subr.mxu0 0.0
    %7595 = vmatpush1.xpose.msra.mxu0 0.0
    %7596 = vmatprep.subr.mxu0 0.0
    %7597 = vmatpush1.xpose.msra.mxu0 0.0
    %7598 = vmatprep.subr.mxu0 0.0
    %7599 = vmatpush1.xpose.msra.mxu0 0.0
    %7600 = vmatprep.subr.mxu0 0.0
    %7601 = vmatpush1.xpose.msra.mxu0 0.0
    %7602 = vmatprep.subr.mxu0 0.0
    %7603 = vmatpush1.xpose.msra.mxu0 0.0
    %7604 = vmatprep.subr.mxu0 0.0
    %7605 = vmatpush1.xpose.msra.mxu0 0.0
    %7606 = vmatprep.subr.mxu0 0.0
    %7607 = vmatpush1.xpose.msra.mxu0 0.0
    %7608 = vmatprep.subr.mxu0 0.0
    %7609 = vmatpush1.xpose.msra.mxu0 0.0
    %7610 = vmatprep.subr.mxu0 0.0
    %7611 = vmatpush1.xpose.msra.mxu0 0.0
    %7612 = vmatprep.subr.mxu0 0.0
    %7613 = vmatpush1.xpose.msra.mxu0 0.0
    %7614 = vmatprep.subr.mxu0 0.0
    %7615 = vmatpush1.xpose.msra.mxu0 0.0
    %7616 = vmatprep.subr.mxu0 0.0
    %7617 = vmatpush1.xpose.msra.mxu0 0.0
    %7618 = vmatprep.subr.mxu0 0.0
    %7619 = vmatpush1.xpose.msra.mxu0 0.0
    %7620 = vmatprep.subr.mxu0 0.0
    %7621 = vmatpush1.xpose.msra.mxu0 0.0
    %7622 = vmatprep.subr.mxu0 0.0
    %7623 = vmatpush1.xpose.msra.mxu0 0.0
    %7624 = vmatprep.subr.mxu0 0.0
    %7625 = vmatpush1.xpose.msra.mxu0 0.0
    %7626 = vmatprep.subr.mxu0 0.0
    %7627 = vmatpush1.xpose.msra.mxu0 0.0
    %7628 = vmatprep.subr.mxu0 0.0
    %7629 = vmatpush1.xpose.msra.mxu0 0.0
    %7630 = vmatprep.mubr.f32.mxu0 0.0
    %v7631 = vand.u32 %v7330, 4294901760
    %v7632 = vsub.f32 %v7330, %v7631
    %7633 = vmatmul.mubr.f32.gmra.mrb[0].mxu0 %v7632
    %v7634 = vpop.f32.mrb[0].mxu0
    %v7635 = vadd.f32 %v7547, %v7634
    %v7636 = vpop.f32.mrb[0].mxu0
    %7637 = vdwg.mxu0
    %7638 = vmatprep.subr.mxu0 0.0
    %v7639 = vand.u32 %v7333, 4294901760
    %7640 = vmatpush1.xpose.msra.mxu0 %v7639
    %7641 = vmatprep.subr.mxu0 0.0
    %v7642 = vand.u32 %v7336, 4294901760
    %7643 = vmatpush1.xpose.msra.mxu0 %v7642
    %7644 = vmatprep.subr.mxu0 0.0
    %v7645 = vand.u32 %v7339, 4294901760
    %7646 = vmatpush1.xpose.msra.mxu0 %v7645
    %7647 = vmatprep.subr.mxu0 0.0
    %v7648 = vand.u32 %v7342, 4294901760
    %7649 = vmatpush1.xpose.msra.mxu0 %v7648
    %7650 = vmatprep.subr.mxu0 0.0
    %v7651 = vand.u32 %v7345, 4294901760
    %7652 = vmatpush1.xpose.msra.mxu0 %v7651
    %7653 = vmatprep.subr.mxu0 0.0
    %v7654 = vand.u32 %v7348, 4294901760
    %7655 = vmatpush1.xpose.msra.mxu0 %v7654
    %7656 = vmatprep.subr.mxu0 0.0
    %v7657 = vand.u32 %v7351, 4294901760
    %7658 = vmatpush1.xpose.msra.mxu0 %v7657
    %7659 = vmatprep.subr.mxu0 0.0
    %v7660 = vand.u32 %v7354, 4294901760
    %7661 = vmatpush1.xpose.msra.mxu0 %v7660
    %7662 = vmatprep.subr.mxu0 0.0
    %7663 = vmatpush1.xpose.msra.mxu0 0.0
    %7664 = vmatprep.subr.mxu0 0.0
    %7665 = vmatpush1.xpose.msra.mxu0 0.0
    %7666 = vmatprep.subr.mxu0 0.0
    %7667 = vmatpush1.xpose.msra.mxu0 0.0
    %7668 = vmatprep.subr.mxu0 0.0
    %7669 = vmatpush1.xpose.msra.mxu0 0.0
    %7670 = vmatprep.subr.mxu0 0.0
    %7671 = vmatpush1.xpose.msra.mxu0 0.0
    %7672 = vmatprep.subr.mxu0 0.0
    %7673 = vmatpush1.xpose.msra.mxu0 0.0
    %7674 = vmatprep.subr.mxu0 0.0
    %7675 = vmatpush1.xpose.msra.mxu0 0.0
    %7676 = vmatprep.subr.mxu0 0.0
    %7677 = vmatpush1.xpose.msra.mxu0 0.0
    %7678 = vmatprep.subr.mxu0 0.0
    %7679 = vmatpush1.xpose.msra.mxu0 0.0
    %7680 = vmatprep.subr.mxu0 0.0
    %7681 = vmatpush1.xpose.msra.mxu0 0.0
    %7682 = vmatprep.subr.mxu0 0.0
    %7683 = vmatpush1.xpose.msra.mxu0 0.0
    %7684 = vmatprep.subr.mxu0 0.0
    %7685 = vmatpush1.xpose.msra.mxu0 0.0
    %7686 = vmatprep.subr.mxu0 0.0
    %7687 = vmatpush1.xpose.msra.mxu0 0.0
    %7688 = vmatprep.subr.mxu0 0.0
    %7689 = vmatpush1.xpose.msra.mxu0 0.0
    %7690 = vmatprep.subr.mxu0 0.0
    %7691 = vmatpush1.xpose.msra.mxu0 0.0
    %7692 = vmatprep.subr.mxu0 0.0
    %7693 = vmatpush1.xpose.msra.mxu0 0.0
    %7694 = vmatprep.subr.mxu0 0.0
    %7695 = vmatpush1.xpose.msra.mxu0 0.0
    %7696 = vmatprep.subr.mxu0 0.0
    %7697 = vmatpush1.xpose.msra.mxu0 0.0
    %7698 = vmatprep.subr.mxu0 0.0
    %7699 = vmatpush1.xpose.msra.mxu0 0.0
    %7700 = vmatprep.subr.mxu0 0.0
    %7701 = vmatpush1.xpose.msra.mxu0 0.0
    %7702 = vmatprep.subr.mxu0 0.0
    %7703 = vmatpush1.xpose.msra.mxu0 0.0
    %7704 = vmatprep.subr.mxu0 0.0
    %7705 = vmatpush1.xpose.msra.mxu0 0.0
    %7706 = vmatprep.subr.mxu0 0.0
    %7707 = vmatpush1.xpose.msra.mxu0 0.0
    %7708 = vmatprep.subr.mxu0 0.0
    %7709 = vmatpush1.xpose.msra.mxu0 0.0
    %7710 = vmatprep.mubr.f32.mxu0 0.0
    %v7711 = vand.u32 %v7330, 4294901760
    %v7712 = vsub.f32 %v7330, %v7711
    %v7713 = vand.u32 %v7712, 4294901760
    %7714 = vmatmul.mubr.f32.gmra.mrb[0].mxu0 %v7713
    %v7715 = vpop.f32.mrb[0].mxu0
    %v7716 = vadd.f32 %v7635, %v7715
    %v7717 = vpop.f32.mrb[0].mxu0
    %7718 = vdwg.mxu0
    %7719 = vmatprep.subr.mxu0 0.0
    %v7720 = vand.u32 %v7333, 4294901760
    %v7721 = vsub.f32 %v7333, %v7720
    %v7722 = vand.u32 %v7721, 4294901760
    %7723 = vmatpush1.xpose.msra.mxu0 %v7722
    %7724 = vmatprep.subr.mxu0 0.0
    %v7725 = vand.u32 %v7336, 4294901760
    %v7726 = vsub.f32 %v7336, %v7725
    %v7727 = vand.u32 %v7726, 4294901760
    %7728 = vmatpush1.xpose.msra.mxu0 %v7727
    %7729 = vmatprep.subr.mxu0 0.0
    %v7730 = vand.u32 %v7339, 4294901760
    %v7731 = vsub.f32 %v7339, %v7730
    %v7732 = vand.u32 %v7731, 4294901760
    %7733 = vmatpush1.xpose.msra.mxu0 %v7732
    %7734 = vmatprep.subr.mxu0 0.0
    %v7735 = vand.u32 %v7342, 4294901760
    %v7736 = vsub.f32 %v7342, %v7735
    %v7737 = vand.u32 %v7736, 4294901760
    %7738 = vmatpush1.xpose.msra.mxu0 %v7737
    %7739 = vmatprep.subr.mxu0 0.0
    %v7740 = vand.u32 %v7345, 4294901760
    %v7741 = vsub.f32 %v7345, %v7740
    %v7742 = vand.u32 %v7741, 4294901760
    %7743 = vmatpush1.xpose.msra.mxu0 %v7742
    %7744 = vmatprep.subr.mxu0 0.0
    %v7745 = vand.u32 %v7348, 4294901760
    %v7746 = vsub.f32 %v7348, %v7745
    %v7747 = vand.u32 %v7746, 4294901760
    %7748 = vmatpush1.xpose.msra.mxu0 %v7747
    %7749 = vmatprep.subr.mxu0 0.0
    %v7750 = vand.u32 %v7351, 4294901760
    %v7751 = vsub.f32 %v7351, %v7750
    %v7752 = vand.u32 %v7751, 4294901760
    %7753 = vmatpush1.xpose.msra.mxu0 %v7752
    %7754 = vmatprep.subr.mxu0 0.0
    %v7755 = vand.u32 %v7354, 4294901760
    %v7756 = vsub.f32 %v7354, %v7755
    %v7757 = vand.u32 %v7756, 4294901760
    %7758 = vmatpush1.xpose.msra.mxu0 %v7757
    %7759 = vmatprep.subr.mxu0 0.0
    %7760 = vmatpush1.xpose.msra.mxu0 0.0
    %7761 = vmatprep.subr.mxu0 0.0
    %7762 = vmatpush1.xpose.msra.mxu0 0.0
    %7763 = vmatprep.subr.mxu0 0.0
    %7764 = vmatpush1.xpose.msra.mxu0 0.0
    %7765 = vmatprep.subr.mxu0 0.0
    %7766 = vmatpush1.xpose.msra.mxu0 0.0
    %7767 = vmatprep.subr.mxu0 0.0
    %7768 = vmatpush1.xpose.msra.mxu0 0.0
    %7769 = vmatprep.subr.mxu0 0.0
    %7770 = vmatpush1.xpose.msra.mxu0 0.0
    %7771 = vmatprep.subr.mxu0 0.0
    %7772 = vmatpush1.xpose.msra.mxu0 0.0
    %7773 = vmatprep.subr.mxu0 0.0
    %7774 = vmatpush1.xpose.msra.mxu0 0.0
    %7775 = vmatprep.subr.mxu0 0.0
    %7776 = vmatpush1.xpose.msra.mxu0 0.0
    %7777 = vmatprep.subr.mxu0 0.0
    %7778 = vmatpush1.xpose.msra.mxu0 0.0
    %7779 = vmatprep.subr.mxu0 0.0
    %7780 = vmatpush1.xpose.msra.mxu0 0.0
    %7781 = vmatprep.subr.mxu0 0.0
    %7782 = vmatpush1.xpose.msra.mxu0 0.0
    %7783 = vmatprep.subr.mxu0 0.0
    %7784 = vmatpush1.xpose.msra.mxu0 0.0
    %7785 = vmatprep.subr.mxu0 0.0
    %7786 = vmatpush1.xpose.msra.mxu0 0.0
    %7787 = vmatprep.subr.mxu0 0.0
    %7788 = vmatpush1.xpose.msra.mxu0 0.0
    %7789 = vmatprep.subr.mxu0 0.0
    %7790 = vmatpush1.xpose.msra.mxu0 0.0
    %7791 = vmatprep.subr.mxu0 0.0
    %7792 = vmatpush1.xpose.msra.mxu0 0.0
    %7793 = vmatprep.subr.mxu0 0.0
    %7794 = vmatpush1.xpose.msra.mxu0 0.0
    %7795 = vmatprep.subr.mxu0 0.0
    %7796 = vmatpush1.xpose.msra.mxu0 0.0
    %7797 = vmatprep.subr.mxu0 0.0
    %7798 = vmatpush1.xpose.msra.mxu0 0.0
    %7799 = vmatprep.subr.mxu0 0.0
    %7800 = vmatpush1.xpose.msra.mxu0 0.0
    %7801 = vmatprep.subr.mxu0 0.0
    %7802 = vmatpush1.xpose.msra.mxu0 0.0
    %7803 = vmatprep.subr.mxu0 0.0
    %7804 = vmatpush1.xpose.msra.mxu0 0.0
    %7805 = vmatprep.subr.mxu0 0.0
    %7806 = vmatpush1.xpose.msra.mxu0 0.0
    %7807 = vmatprep.mubr.f32.mxu0 0.0
    %v7808 = vand.u32 %v7330, 4294901760
    %7809 = vmatmul.mubr.f32.gmra.mrb[0].mxu0 %v7808
    %v7810 = vpop.f32.mrb[0].mxu0
    %v7811 = vadd.f32 %v7716, %v7810
    %v7812 = vpop.f32.mrb[0].mxu0
    %7813 = vdwg.mxu0
    %7814 = vmatprep.subr.mxu0 0.0
    %v7815 = vand.u32 %v7333, 4294901760
    %7816 = vmatpush1.xpose.msra.mxu0 %v7815
    %7817 = vmatprep.subr.mxu0 0.0
    %v7818 = vand.u32 %v7336, 4294901760
    %7819 = vmatpush1.xpose.msra.mxu0 %v7818
    %7820 = vmatprep.subr.mxu0 0.0
    %v7821 = vand.u32 %v7339, 4294901760
    %7822 = vmatpush1.xpose.msra.mxu0 %v7821
    %7823 = vmatprep.subr.mxu0 0.0
    %v7824 = vand.u32 %v7342, 4294901760
    %7825 = vmatpush1.xpose.msra.mxu0 %v7824
    %7826 = vmatprep.subr.mxu0 0.0
    %v7827 = vand.u32 %v7345, 4294901760
    %7828 = vmatpush1.xpose.msra.mxu0 %v7827
    %7829 = vmatprep.subr.mxu0 0.0
    %v7830 = vand.u32 %v7348, 4294901760
    %7831 = vmatpush1.xpose.msra.mxu0 %v7830
    %7832 = vmatprep.subr.mxu0 0.0
    %v7833 = vand.u32 %v7351, 4294901760
    %7834 = vmatpush1.xpose.msra.mxu0 %v7833
    %7835 = vmatprep.subr.mxu0 0.0
    %v7836 = vand.u32 %v7354, 4294901760
    %7837 = vmatpush1.xpose.msra.mxu0 %v7836
    %7838 = vmatprep.subr.mxu0 0.0
    %7839 = vmatpush1.xpose.msra.mxu0 0.0
    %7840 = vmatprep.subr.mxu0 0.0
    %7841 = vmatpush1.xpose.msra.mxu0 0.0
    %7842 = vmatprep.subr.mxu0 0.0
    %7843 = vmatpush1.xpose.msra.mxu0 0.0
    %7844 = vmatprep.subr.mxu0 0.0
    %7845 = vmatpush1.xpose.msra.mxu0 0.0
    %7846 = vmatprep.subr.mxu0 0.0
    %7847 = vmatpush1.xpose.msra.mxu0 0.0
    %7848 = vmatprep.subr.mxu0 0.0
    %7849 = vmatpush1.xpose.msra.mxu0 0.0
    %7850 = vmatprep.subr.mxu0 0.0
    %7851 = vmatpush1.xpose.msra.mxu0 0.0
    %7852 = vmatprep.subr.mxu0 0.0
    %7853 = vmatpush1.xpose.msra.mxu0 0.0
    %7854 = vmatprep.subr.mxu0 0.0
    %7855 = vmatpush1.xpose.msra.mxu0 0.0
    %7856 = vmatprep.subr.mxu0 0.0
    %7857 = vmatpush1.xpose.msra.mxu0 0.0
    %7858 = vmatprep.subr.mxu0 0.0
    %7859 = vmatpush1.xpose.msra.mxu0 0.0
    %7860 = vmatprep.subr.mxu0 0.0
    %7861 = vmatpush1.xpose.msra.mxu0 0.0
    %7862 = vmatprep.subr.mxu0 0.0
    %7863 = vmatpush1.xpose.msra.mxu0 0.0
    %7864 = vmatprep.subr.mxu0 0.0
    %7865 = vmatpush1.xpose.msra.mxu0 0.0
    %7866 = vmatprep.subr.mxu0 0.0
    %7867 = vmatpush1.xpose.msra.mxu0 0.0
    %7868 = vmatprep.subr.mxu0 0.0
    %7869 = vmatpush1.xpose.msra.mxu0 0.0
    %7870 = vmatprep.subr.mxu0 0.0
    %7871 = vmatpush1.xpose.msra.mxu0 0.0
    %7872 = vmatprep.subr.mxu0 0.0
    %7873 = vmatpush1.xpose.msra.mxu0 0.0
    %7874 = vmatprep.subr.mxu0 0.0
    %7875 = vmatpush1.xpose.msra.mxu0 0.0
    %7876 = vmatprep.subr.mxu0 0.0
    %7877 = vmatpush1.xpose.msra.mxu0 0.0
    %7878 = vmatprep.subr.mxu0 0.0
    %7879 = vmatpush1.xpose.msra.mxu0 0.0
    %7880 = vmatprep.subr.mxu0 0.0
    %7881 = vmatpush1.xpose.msra.mxu0 0.0
    %7882 = vmatprep.subr.mxu0 0.0
    %7883 = vmatpush1.xpose.msra.mxu0 0.0
    %7884 = vmatprep.subr.mxu0 0.0
    %7885 = vmatpush1.xpose.msra.mxu0 0.0
    %7886 = vmatprep.mubr.f32.mxu0 0.0
    %v7887 = vand.u32 %v7330, 4294901760
    %7888 = vmatmul.mubr.f32.gmra.mrb[0].mxu0 %v7887
    %v7889 = vpop.f32.mrb[0].mxu0
    %v7890 = vadd.f32 %v7811, %v7889
    %v7891 = vpop.f32.mrb[0].mxu0
    %7892 = vdwg.mxu0
    %v7894 = vsel %vm5072, %v3927, 0
    %v7897 = vsel %vm5072, %v5048, 0
    %v7900 = vsel %vm5072, %v5049, 0
    %v7903 = vsel %vm5072, %v5050, 0
    %v7906 = vsel %vm5072, %v5051, 0
    %v7909 = vsel %vm5072, %v5052, 0
    %v7912 = vsel %vm5072, %v5053, 0
    %v7915 = vsel %vm5072, %v5054, 0
    %v7918 = vsel %vm5072, %v5055, 0
    %7920 = vmatprep.subr.mxu0 0.0
    %v7921 = vand.u32 %v7897, 4294901760
    %7922 = vmatpush1.xpose.msra.mxu0 %v7921
    %7923 = vmatprep.subr.mxu0 0.0
    %v7924 = vand.u32 %v7900, 4294901760
    %7925 = vmatpush1.xpose.msra.mxu0 %v7924
    %7926 = vmatprep.subr.mxu0 0.0
    %v7927 = vand.u32 %v7903, 4294901760
    %7928 = vmatpush1.xpose.msra.mxu0 %v7927
    %7929 = vmatprep.subr.mxu0 0.0
    %v7930 = vand.u32 %v7906, 4294901760
    %7931 = vmatpush1.xpose.msra.mxu0 %v7930
    %7932 = vmatprep.subr.mxu0 0.0
    %v7933 = vand.u32 %v7909, 4294901760
    %7934 = vmatpush1.xpose.msra.mxu0 %v7933
    %7935 = vmatprep.subr.mxu0 0.0
    %v7936 = vand.u32 %v7912, 4294901760
    %7937 = vmatpush1.xpose.msra.mxu0 %v7936
    %7938 = vmatprep.subr.mxu0 0.0
    %v7939 = vand.u32 %v7915, 4294901760
    %7940 = vmatpush1.xpose.msra.mxu0 %v7939
    %7941 = vmatprep.subr.mxu0 0.0
    %v7942 = vand.u32 %v7918, 4294901760
    %7943 = vmatpush1.xpose.msra.mxu0 %v7942
    %7944 = vmatprep.subr.mxu0 0.0
    %7945 = vmatpush1.xpose.msra.mxu0 0.0
    %7946 = vmatprep.subr.mxu0 0.0
    %7947 = vmatpush1.xpose.msra.mxu0 0.0
    %7948 = vmatprep.subr.mxu0 0.0
    %7949 = vmatpush1.xpose.msra.mxu0 0.0
    %7950 = vmatprep.subr.mxu0 0.0
    %7951 = vmatpush1.xpose.msra.mxu0 0.0
    %7952 = vmatprep.subr.mxu0 0.0
    %7953 = vmatpush1.xpose.msra.mxu0 0.0
    %7954 = vmatprep.subr.mxu0 0.0
    %7955 = vmatpush1.xpose.msra.mxu0 0.0
    %7956 = vmatprep.subr.mxu0 0.0
    %7957 = vmatpush1.xpose.msra.mxu0 0.0
    %7958 = vmatprep.subr.mxu0 0.0
    %7959 = vmatpush1.xpose.msra.mxu0 0.0
    %7960 = vmatprep.subr.mxu0 0.0
    %7961 = vmatpush1.xpose.msra.mxu0 0.0
    %7962 = vmatprep.subr.mxu0 0.0
    %7963 = vmatpush1.xpose.msra.mxu0 0.0
    %7964 = vmatprep.subr.mxu0 0.0
    %7965 = vmatpush1.xpose.msra.mxu0 0.0
    %7966 = vmatprep.subr.mxu0 0.0
    %7967 = vmatpush1.xpose.msra.mxu0 0.0
    %7968 = vmatprep.subr.mxu0 0.0
    %7969 = vmatpush1.xpose.msra.mxu0 0.0
    %7970 = vmatprep.subr.mxu0 0.0
    %7971 = vmatpush1.xpose.msra.mxu0 0.0
    %7972 = vmatprep.subr.mxu0 0.0
    %7973 = vmatpush1.xpose.msra.mxu0 0.0
    %7974 = vmatprep.subr.mxu0 0.0
    %7975 = vmatpush1.xpose.msra.mxu0 0.0
    %7976 = vmatprep.subr.mxu0 0.0
    %7977 = vmatpush1.xpose.msra.mxu0 0.0
    %7978 = vmatprep.subr.mxu0 0.0
    %7979 = vmatpush1.xpose.msra.mxu0 0.0
    %7980 = vmatprep.subr.mxu0 0.0
    %7981 = vmatpush1.xpose.msra.mxu0 0.0
    %7982 = vmatprep.subr.mxu0 0.0
    %7983 = vmatpush1.xpose.msra.mxu0 0.0
    %7984 = vmatprep.subr.mxu0 0.0
    %7985 = vmatpush1.xpose.msra.mxu0 0.0
    %7986 = vmatprep.subr.mxu0 0.0
    %7987 = vmatpush1.xpose.msra.mxu0 0.0
    %7988 = vmatprep.subr.mxu0 0.0
    %7989 = vmatpush1.xpose.msra.mxu0 0.0
    %7990 = vmatprep.subr.mxu0 0.0
    %7991 = vmatpush1.xpose.msra.mxu0 0.0
    %7992 = vmatprep.mubr.f32.mxu0 0.0
    %v7993 = vand.u32 %v7894, 4294901760
    %v7994 = vsub.f32 %v7894, %v7993
    %v7995 = vand.u32 %v7994, 4294901760
    %v7996 = vsub.f32 %v7994, %v7995
    %v7997 = vand.u32 %v7996, 4294901760
    %7998 = vmatmul.mubr.f32.gmra.mrb[0].mxu0 %v7997
    %v7999 = vpop.f32.mrb[0].mxu0
    %v8000 = vadd.f32 0.0, %v7999
    %v8001 = vpop.f32.mrb[0].mxu0
    %8002 = vdwg.mxu0
    %8003 = vmatprep.subr.mxu0 0.0
    %v8004 = vand.u32 %v7897, 4294901760
    %v8005 = vsub.f32 %v7897, %v8004
    %v8006 = vand.u32 %v8005, 4294901760
    %v8007 = vsub.f32 %v8005, %v8006
    %v8008 = vand.u32 %v8007, 4294901760
    %8009 = vmatpush1.xpose.msra.mxu0 %v8008
    %8010 = vmatprep.subr.mxu0 0.0
    %v8011 = vand.u32 %v7900, 4294901760
    %v8012 = vsub.f32 %v7900, %v8011
    %v8013 = vand.u32 %v8012, 4294901760
    %v8014 = vsub.f32 %v8012, %v8013
    %v8015 = vand.u32 %v8014, 4294901760
    %8016 = vmatpush1.xpose.msra.mxu0 %v8015
    %8017 = vmatprep.subr.mxu0 0.0
    %v8018 = vand.u32 %v7903, 4294901760
    %v8019 = vsub.f32 %v7903, %v8018
    %v8020 = vand.u32 %v8019, 4294901760
    %v8021 = vsub.f32 %v8019, %v8020
    %v8022 = vand.u32 %v8021, 4294901760
    %8023 = vmatpush1.xpose.msra.mxu0 %v8022
    %8024 = vmatprep.subr.mxu0 0.0
    %v8025 = vand.u32 %v7906, 4294901760
    %v8026 = vsub.f32 %v7906, %v8025
    %v8027 = vand.u32 %v8026, 4294901760
    %v8028 = vsub.f32 %v8026, %v8027
    %v8029 = vand.u32 %v8028, 4294901760
    %8030 = vmatpush1.xpose.msra.mxu0 %v8029
    %8031 = vmatprep.subr.mxu0 0.0
    %v8032 = vand.u32 %v7909, 4294901760
    %v8033 = vsub.f32 %v7909, %v8032
    %v8034 = vand.u32 %v8033, 4294901760
    %v8035 = vsub.f32 %v8033, %v8034
    %v8036 = vand.u32 %v8035, 4294901760
    %8037 = vmatpush1.xpose.msra.mxu0 %v8036
    %8038 = vmatprep.subr.mxu0 0.0
    %v8039 = vand.u32 %v7912, 4294901760
    %v8040 = vsub.f32 %v7912, %v8039
    %v8041 = vand.u32 %v8040, 4294901760
    %v8042 = vsub.f32 %v8040, %v8041
    %v8043 = vand.u32 %v8042, 4294901760
    %8044 = vmatpush1.xpose.msra.mxu0 %v8043
    %8045 = vmatprep.subr.mxu0 0.0
    %v8046 = vand.u32 %v7915, 4294901760
    %v8047 = vsub.f32 %v7915, %v8046
    %v8048 = vand.u32 %v8047, 4294901760
    %v8049 = vsub.f32 %v8047, %v8048
    %v8050 = vand.u32 %v8049, 4294901760
    %8051 = vmatpush1.xpose.msra.mxu0 %v8050
    %8052 = vmatprep.subr.mxu0 0.0
    %v8053 = vand.u32 %v7918, 4294901760
    %v8054 = vsub.f32 %v7918, %v8053
    %v8055 = vand.u32 %v8054, 4294901760
    %v8056 = vsub.f32 %v8054, %v8055
    %v8057 = vand.u32 %v8056, 4294901760
    %8058 = vmatpush1.xpose.msra.mxu0 %v8057
    %8059 = vmatprep.subr.mxu0 0.0
    %8060 = vmatpush1.xpose.msra.mxu0 0.0
    %8061 = vmatprep.subr.mxu0 0.0
    %8062 = vmatpush1.xpose.msra.mxu0 0.0
    %8063 = vmatprep.subr.mxu0 0.0
    %8064 = vmatpush1.xpose.msra.mxu0 0.0
    %8065 = vmatprep.subr.mxu0 0.0
    %8066 = vmatpush1.xpose.msra.mxu0 0.0
    %8067 = vmatprep.subr.mxu0 0.0
    %8068 = vmatpush1.xpose.msra.mxu0 0.0
    %8069 = vmatprep.subr.mxu0 0.0
    %8070 = vmatpush1.xpose.msra.mxu0 0.0
    %8071 = vmatprep.subr.mxu0 0.0
    %8072 = vmatpush1.xpose.msra.mxu0 0.0
    %8073 = vmatprep.subr.mxu0 0.0
    %8074 = vmatpush1.xpose.msra.mxu0 0.0
    %8075 = vmatprep.subr.mxu0 0.0
    %8076 = vmatpush1.xpose.msra.mxu0 0.0
    %8077 = vmatprep.subr.mxu0 0.0
    %8078 = vmatpush1.xpose.msra.mxu0 0.0
    %8079 = vmatprep.subr.mxu0 0.0
    %8080 = vmatpush1.xpose.msra.mxu0 0.0
    %8081 = vmatprep.subr.mxu0 0.0
    %8082 = vmatpush1.xpose.msra.mxu0 0.0
    %8083 = vmatprep.subr.mxu0 0.0
    %8084 = vmatpush1.xpose.msra.mxu0 0.0
    %8085 = vmatprep.subr.mxu0 0.0
    %8086 = vmatpush1.xpose.msra.mxu0 0.0
    %8087 = vmatprep.subr.mxu0 0.0
    %8088 = vmatpush1.xpose.msra.mxu0 0.0
    %8089 = vmatprep.subr.mxu0 0.0
    %8090 = vmatpush1.xpose.msra.mxu0 0.0
    %8091 = vmatprep.subr.mxu0 0.0
    %8092 = vmatpush1.xpose.msra.mxu0 0.0
    %8093 = vmatprep.subr.mxu0 0.0
    %8094 = vmatpush1.xpose.msra.mxu0 0.0
    %8095 = vmatprep.subr.mxu0 0.0
    %8096 = vmatpush1.xpose.msra.mxu0 0.0
    %8097 = vmatprep.subr.mxu0 0.0
    %8098 = vmatpush1.xpose.msra.mxu0 0.0
    %8099 = vmatprep.subr.mxu0 0.0
    %8100 = vmatpush1.xpose.msra.mxu0 0.0
    %8101 = vmatprep.subr.mxu0 0.0
    %8102 = vmatpush1.xpose.msra.mxu0 0.0
    %8103 = vmatprep.subr.mxu0 0.0
    %8104 = vmatpush1.xpose.msra.mxu0 0.0
    %8105 = vmatprep.subr.mxu0 0.0
    %8106 = vmatpush1.xpose.msra.mxu0 0.0
    %8107 = vmatprep.mubr.f32.mxu0 0.0
    %v8108 = vand.u32 %v7894, 4294901760
    %8109 = vmatmul.mubr.f32.gmra.mrb[0].mxu0 %v8108
    %v8110 = vpop.f32.mrb[0].mxu0
    %v8111 = vadd.f32 %v8000, %v8110
    %v8112 = vpop.f32.mrb[0].mxu0
    %8113 = vdwg.mxu0
    %8114 = vmatprep.subr.mxu0 0.0
    %v8115 = vand.u32 %v7897, 4294901760
    %v8116 = vsub.f32 %v7897, %v8115
    %8117 = vmatpush1.xpose.msra.mxu0 %v8116
    %8118 = vmatprep.subr.mxu0 0.0
    %v8119 = vand.u32 %v7900, 4294901760
    %v8120 = vsub.f32 %v7900, %v8119
    %8121 = vmatpush1.xpose.msra.mxu0 %v8120
    %8122 = vmatprep.subr.mxu0 0.0
    %v8123 = vand.u32 %v7903, 4294901760
    %v8124 = vsub.f32 %v7903, %v8123
    %8125 = vmatpush1.xpose.msra.mxu0 %v8124
    %8126 = vmatprep.subr.mxu0 0.0
    %v8127 = vand.u32 %v7906, 4294901760
    %v8128 = vsub.f32 %v7906, %v8127
    %8129 = vmatpush1.xpose.msra.mxu0 %v8128
    %8130 = vmatprep.subr.mxu0 0.0
    %v8131 = vand.u32 %v7909, 4294901760
    %v8132 = vsub.f32 %v7909, %v8131
    %8133 = vmatpush1.xpose.msra.mxu0 %v8132
    %8134 = vmatprep.subr.mxu0 0.0
    %v8135 = vand.u32 %v7912, 4294901760
    %v8136 = vsub.f32 %v7912, %v8135
    %8137 = vmatpush1.xpose.msra.mxu0 %v8136
    %8138 = vmatprep.subr.mxu0 0.0
    %v8139 = vand.u32 %v7915, 4294901760
    %v8140 = vsub.f32 %v7915, %v8139
    %8141 = vmatpush1.xpose.msra.mxu0 %v8140
    %8142 = vmatprep.subr.mxu0 0.0
    %v8143 = vand.u32 %v7918, 4294901760
    %v8144 = vsub.f32 %v7918, %v8143
    %8145 = vmatpush1.xpose.msra.mxu0 %v8144
    %8146 = vmatprep.subr.mxu0 0.0
    %8147 = vmatpush1.xpose.msra.mxu0 0.0
    %8148 = vmatprep.subr.mxu0 0.0
    %8149 = vmatpush1.xpose.msra.mxu0 0.0
    %8150 = vmatprep.subr.mxu0 0.0
    %8151 = vmatpush1.xpose.msra.mxu0 0.0
    %8152 = vmatprep.subr.mxu0 0.0
    %8153 = vmatpush1.xpose.msra.mxu0 0.0
    %8154 = vmatprep.subr.mxu0 0.0
    %8155 = vmatpush1.xpose.msra.mxu0 0.0
    %8156 = vmatprep.subr.mxu0 0.0
    %8157 = vmatpush1.xpose.msra.mxu0 0.0
    %8158 = vmatprep.subr.mxu0 0.0
    %8159 = vmatpush1.xpose.msra.mxu0 0.0
    %8160 = vmatprep.subr.mxu0 0.0
    %8161 = vmatpush1.xpose.msra.mxu0 0.0
    %8162 = vmatprep.subr.mxu0 0.0
    %8163 = vmatpush1.xpose.msra.mxu0 0.0
    %8164 = vmatprep.subr.mxu0 0.0
    %8165 = vmatpush1.xpose.msra.mxu0 0.0
    %8166 = vmatprep.subr.mxu0 0.0
    %8167 = vmatpush1.xpose.msra.mxu0 0.0
    %8168 = vmatprep.subr.mxu0 0.0
    %8169 = vmatpush1.xpose.msra.mxu0 0.0
    %8170 = vmatprep.subr.mxu0 0.0
    %8171 = vmatpush1.xpose.msra.mxu0 0.0
    %8172 = vmatprep.subr.mxu0 0.0
    %8173 = vmatpush1.xpose.msra.mxu0 0.0
    %8174 = vmatprep.subr.mxu0 0.0
    %8175 = vmatpush1.xpose.msra.mxu0 0.0
    %8176 = vmatprep.subr.mxu0 0.0
    %8177 = vmatpush1.xpose.msra.mxu0 0.0
    %8178 = vmatprep.subr.mxu0 0.0
    %8179 = vmatpush1.xpose.msra.mxu0 0.0
    %8180 = vmatprep.subr.mxu0 0.0
    %8181 = vmatpush1.xpose.msra.mxu0 0.0
    %8182 = vmatprep.subr.mxu0 0.0
    %8183 = vmatpush1.xpose.msra.mxu0 0.0
    %8184 = vmatprep.subr.mxu0 0.0
    %8185 = vmatpush1.xpose.msra.mxu0 0.0
    %8186 = vmatprep.subr.mxu0 0.0
    %8187 = vmatpush1.xpose.msra.mxu0 0.0
    %8188 = vmatprep.subr.mxu0 0.0
    %8189 = vmatpush1.xpose.msra.mxu0 0.0
    %8190 = vmatprep.subr.mxu0 0.0
    %8191 = vmatpush1.xpose.msra.mxu0 0.0
    %8192 = vmatprep.subr.mxu0 0.0
    %8193 = vmatpush1.xpose.msra.mxu0 0.0
    %8194 = vmatprep.mubr.f32.mxu0 0.0
    %v8195 = vand.u32 %v7894, 4294901760
    %v8196 = vsub.f32 %v7894, %v8195
    %8197 = vmatmul.mubr.f32.gmra.mrb[0].mxu0 %v8196
    %v8198 = vpop.f32.mrb[0].mxu0
    %v8199 = vadd.f32 %v8111, %v8198
    %v8200 = vpop.f32.mrb[0].mxu0
    %8201 = vdwg.mxu0
    %8202 = vmatprep.subr.mxu0 0.0
    %v8203 = vand.u32 %v7897, 4294901760
    %8204 = vmatpush1.xpose.msra.mxu0 %v8203
    %8205 = vmatprep.subr.mxu0 0.0
    %v8206 = vand.u32 %v7900, 4294901760
    %8207 = vmatpush1.xpose.msra.mxu0 %v8206
    %8208 = vmatprep.subr.mxu0 0.0
    %v8209 = vand.u32 %v7903, 4294901760
    %8210 = vmatpush1.xpose.msra.mxu0 %v8209
    %8211 = vmatprep.subr.mxu0 0.0
    %v8212 = vand.u32 %v7906, 4294901760
    %8213 = vmatpush1.xpose.msra.mxu0 %v8212
    %8214 = vmatprep.subr.mxu0 0.0
    %v8215 = vand.u32 %v7909, 4294901760
    %8216 = vmatpush1.xpose.msra.mxu0 %v8215
    %8217 = vmatprep.subr.mxu0 0.0
    %v8218 = vand.u32 %v7912, 4294901760
    %8219 = vmatpush1.xpose.msra.mxu0 %v8218
    %8220 = vmatprep.subr.mxu0 0.0
    %v8221 = vand.u32 %v7915, 4294901760
    %8222 = vmatpush1.xpose.msra.mxu0 %v8221
    %8223 = vmatprep.subr.mxu0 0.0
    %v8224 = vand.u32 %v7918, 4294901760
    %8225 = vmatpush1.xpose.msra.mxu0 %v8224
    %8226 = vmatprep.subr.mxu0 0.0
    %8227 = vmatpush1.xpose.msra.mxu0 0.0
    %8228 = vmatprep.subr.mxu0 0.0
    %8229 = vmatpush1.xpose.msra.mxu0 0.0
    %8230 = vmatprep.subr.mxu0 0.0
    %8231 = vmatpush1.xpose.msra.mxu0 0.0
    %8232 = vmatprep.subr.mxu0 0.0
    %8233 = vmatpush1.xpose.msra.mxu0 0.0
    %8234 = vmatprep.subr.mxu0 0.0
    %8235 = vmatpush1.xpose.msra.mxu0 0.0
    %8236 = vmatprep.subr.mxu0 0.0
    %8237 = vmatpush1.xpose.msra.mxu0 0.0
    %8238 = vmatprep.subr.mxu0 0.0
    %8239 = vmatpush1.xpose.msra.mxu0 0.0
    %8240 = vmatprep.subr.mxu0 0.0
    %8241 = vmatpush1.xpose.msra.mxu0 0.0
    %8242 = vmatprep.subr.mxu0 0.0
    %8243 = vmatpush1.xpose.msra.mxu0 0.0
    %8244 = vmatprep.subr.mxu0 0.0
    %8245 = vmatpush1.xpose.msra.mxu0 0.0
    %8246 = vmatprep.subr.mxu0 0.0
    %8247 = vmatpush1.xpose.msra.mxu0 0.0
    %8248 = vmatprep.subr.mxu0 0.0
    %8249 = vmatpush1.xpose.msra.mxu0 0.0
    %8250 = vmatprep.subr.mxu0 0.0
    %8251 = vmatpush1.xpose.msra.mxu0 0.0
    %8252 = vmatprep.subr.mxu0 0.0
    %8253 = vmatpush1.xpose.msra.mxu0 0.0
    %8254 = vmatprep.subr.mxu0 0.0
    %8255 = vmatpush1.xpose.msra.mxu0 0.0
    %8256 = vmatprep.subr.mxu0 0.0
    %8257 = vmatpush1.xpose.msra.mxu0 0.0
    %8258 = vmatprep.subr.mxu0 0.0
    %8259 = vmatpush1.xpose.msra.mxu0 0.0
    %8260 = vmatprep.subr.mxu0 0.0
    %8261 = vmatpush1.xpose.msra.mxu0 0.0
    %8262 = vmatprep.subr.mxu0 0.0
    %8263 = vmatpush1.xpose.msra.mxu0 0.0
    %8264 = vmatprep.subr.mxu0 0.0
    %8265 = vmatpush1.xpose.msra.mxu0 0.0
    %8266 = vmatprep.subr.mxu0 0.0
    %8267 = vmatpush1.xpose.msra.mxu0 0.0
    %8268 = vmatprep.subr.mxu0 0.0
    %8269 = vmatpush1.xpose.msra.mxu0 0.0
    %8270 = vmatprep.subr.mxu0 0.0
    %8271 = vmatpush1.xpose.msra.mxu0 0.0
    %8272 = vmatprep.subr.mxu0 0.0
    %8273 = vmatpush1.xpose.msra.mxu0 0.0
    %8274 = vmatprep.mubr.f32.mxu0 0.0
    %v8275 = vand.u32 %v7894, 4294901760
    %v8276 = vsub.f32 %v7894, %v8275
    %v8277 = vand.u32 %v8276, 4294901760
    %8278 = vmatmul.mubr.f32.gmra.mrb[0].mxu0 %v8277
    %v8279 = vpop.f32.mrb[0].mxu0
    %v8280 = vadd.f32 %v8199, %v8279
    %v8281 = vpop.f32.mrb[0].mxu0
    %8282 = vdwg.mxu0
    %8283 = vmatprep.subr.mxu0 0.0
    %v8284 = vand.u32 %v7897, 4294901760
    %v8285 = vsub.f32 %v7897, %v8284
    %v8286 = vand.u32 %v8285, 4294901760
    %8287 = vmatpush1.xpose.msra.mxu0 %v8286
    %8288 = vmatprep.subr.mxu0 0.0
    %v8289 = vand.u32 %v7900, 4294901760
    %v8290 = vsub.f32 %v7900, %v8289
    %v8291 = vand.u32 %v8290, 4294901760
    %8292 = vmatpush1.xpose.msra.mxu0 %v8291
    %8293 = vmatprep.subr.mxu0 0.0
    %v8294 = vand.u32 %v7903, 4294901760
    %v8295 = vsub.f32 %v7903, %v8294
    %v8296 = vand.u32 %v8295, 4294901760
    %8297 = vmatpush1.xpose.msra.mxu0 %v8296
    %8298 = vmatprep.subr.mxu0 0.0
    %v8299 = vand.u32 %v7906, 4294901760
    %v8300 = vsub.f32 %v7906, %v8299
    %v8301 = vand.u32 %v8300, 4294901760
    %8302 = vmatpush1.xpose.msra.mxu0 %v8301
    %8303 = vmatprep.subr.mxu0 0.0
    %v8304 = vand.u32 %v7909, 4294901760
    %v8305 = vsub.f32 %v7909, %v8304
    %v8306 = vand.u32 %v8305, 4294901760
    %8307 = vmatpush1.xpose.msra.mxu0 %v8306
    %8308 = vmatprep.subr.mxu0 0.0
    %v8309 = vand.u32 %v7912, 4294901760
    %v8310 = vsub.f32 %v7912, %v8309
    %v8311 = vand.u32 %v8310, 4294901760
    %8312 = vmatpush1.xpose.msra.mxu0 %v8311
    %8313 = vmatprep.subr.mxu0 0.0
    %v8314 = vand.u32 %v7915, 4294901760
    %v8315 = vsub.f32 %v7915, %v8314
    %v8316 = vand.u32 %v8315, 4294901760
    %8317 = vmatpush1.xpose.msra.mxu0 %v8316
    %8318 = vmatprep.subr.mxu0 0.0
    %v8319 = vand.u32 %v7918, 4294901760
    %v8320 = vsub.f32 %v7918, %v8319
    %v8321 = vand.u32 %v8320, 4294901760
    %8322 = vmatpush1.xpose.msra.mxu0 %v8321
    %8323 = vmatprep.subr.mxu0 0.0
    %8324 = vmatpush1.xpose.msra.mxu0 0.0
    %8325 = vmatprep.subr.mxu0 0.0
    %8326 = vmatpush1.xpose.msra.mxu0 0.0
    %8327 = vmatprep.subr.mxu0 0.0
    %8328 = vmatpush1.xpose.msra.mxu0 0.0
    %8329 = vmatprep.subr.mxu0 0.0
    %8330 = vmatpush1.xpose.msra.mxu0 0.0
    %8331 = vmatprep.subr.mxu0 0.0
    %8332 = vmatpush1.xpose.msra.mxu0 0.0
    %8333 = vmatprep.subr.mxu0 0.0
    %8334 = vmatpush1.xpose.msra.mxu0 0.0
    %8335 = vmatprep.subr.mxu0 0.0
    %8336 = vmatpush1.xpose.msra.mxu0 0.0
    %8337 = vmatprep.subr.mxu0 0.0
    %8338 = vmatpush1.xpose.msra.mxu0 0.0
    %8339 = vmatprep.subr.mxu0 0.0
    %8340 = vmatpush1.xpose.msra.mxu0 0.0
    %8341 = vmatprep.subr.mxu0 0.0
    %8342 = vmatpush1.xpose.msra.mxu0 0.0
    %8343 = vmatprep.subr.mxu0 0.0
    %8344 = vmatpush1.xpose.msra.mxu0 0.0
    %8345 = vmatprep.subr.mxu0 0.0
    %8346 = vmatpush1.xpose.msra.mxu0 0.0
    %8347 = vmatprep.subr.mxu0 0.0
    %8348 = vmatpush1.xpose.msra.mxu0 0.0
    %8349 = vmatprep.subr.mxu0 0.0
    %8350 = vmatpush1.xpose.msra.mxu0 0.0
    %8351 = vmatprep.subr.mxu0 0.0
    %8352 = vmatpush1.xpose.msra.mxu0 0.0
    %8353 = vmatprep.subr.mxu0 0.0
    %8354 = vmatpush1.xpose.msra.mxu0 0.0
    %8355 = vmatprep.subr.mxu0 0.0
    %8356 = vmatpush1.xpose.msra.mxu0 0.0
    %8357 = vmatprep.subr.mxu0 0.0
    %8358 = vmatpush1.xpose.msra.mxu0 0.0
    %8359 = vmatprep.subr.mxu0 0.0
    %8360 = vmatpush1.xpose.msra.mxu0 0.0
    %8361 = vmatprep.subr.mxu0 0.0
    %8362 = vmatpush1.xpose.msra.mxu0 0.0
    %8363 = vmatprep.subr.mxu0 0.0
    %8364 = vmatpush1.xpose.msra.mxu0 0.0
    %8365 = vmatprep.subr.mxu0 0.0
    %8366 = vmatpush1.xpose.msra.mxu0 0.0
    %8367 = vmatprep.subr.mxu0 0.0
    %8368 = vmatpush1.xpose.msra.mxu0 0.0
    %8369 = vmatprep.subr.mxu0 0.0
    %8370 = vmatpush1.xpose.msra.mxu0 0.0
    %8371 = vmatprep.mubr.f32.mxu0 0.0
    %v8372 = vand.u32 %v7894, 4294901760
    %8373 = vmatmul.mubr.f32.gmra.mrb[0].mxu0 %v8372
    %v8374 = vpop.f32.mrb[0].mxu0
    %v8375 = vadd.f32 %v8280, %v8374
    %v8376 = vpop.f32.mrb[0].mxu0
    %8377 = vdwg.mxu0
    %8378 = vmatprep.subr.mxu0 0.0
    %v8379 = vand.u32 %v7897, 4294901760
    %8380 = vmatpush1.xpose.msra.mxu0 %v8379
    %8381 = vmatprep.subr.mxu0 0.0
    %v8382 = vand.u32 %v7900, 4294901760
    %8383 = vmatpush1.xpose.msra.mxu0 %v8382
    %8384 = vmatprep.subr.mxu0 0.0
    %v8385 = vand.u32 %v7903, 4294901760
    %8386 = vmatpush1.xpose.msra.mxu0 %v8385
    %8387 = vmatprep.subr.mxu0 0.0
    %v8388 = vand.u32 %v7906, 4294901760
    %8389 = vmatpush1.xpose.msra.mxu0 %v8388
    %8390 = vmatprep.subr.mxu0 0.0
    %v8391 = vand.u32 %v7909, 4294901760
    %8392 = vmatpush1.xpose.msra.mxu0 %v8391
    %8393 = vmatprep.subr.mxu0 0.0
    %v8394 = vand.u32 %v7912, 4294901760
    %8395 = vmatpush1.xpose.msra.mxu0 %v8394
    %8396 = vmatprep.subr.mxu0 0.0
    %v8397 = vand.u32 %v7915, 4294901760
    %8398 = vmatpush1.xpose.msra.mxu0 %v8397
    %8399 = vmatprep.subr.mxu0 0.0
    %v8400 = vand.u32 %v7918, 4294901760
    %8401 = vmatpush1.xpose.msra.mxu0 %v8400
    %8402 = vmatprep.subr.mxu0 0.0
    %8403 = vmatpush1.xpose.msra.mxu0 0.0
    %8404 = vmatprep.subr.mxu0 0.0
    %8405 = vmatpush1.xpose.msra.mxu0 0.0
    %8406 = vmatprep.subr.mxu0 0.0
    %8407 = vmatpush1.xpose.msra.mxu0 0.0
    %8408 = vmatprep.subr.mxu0 0.0
    %8409 = vmatpush1.xpose.msra.mxu0 0.0
    %8410 = vmatprep.subr.mxu0 0.0
    %8411 = vmatpush1.xpose.msra.mxu0 0.0
    %8412 = vmatprep.subr.mxu0 0.0
    %8413 = vmatpush1.xpose.msra.mxu0 0.0
    %8414 = vmatprep.subr.mxu0 0.0
    %8415 = vmatpush1.xpose.msra.mxu0 0.0
    %8416 = vmatprep.subr.mxu0 0.0
    %8417 = vmatpush1.xpose.msra.mxu0 0.0
    %8418 = vmatprep.subr.mxu0 0.0
    %8419 = vmatpush1.xpose.msra.mxu0 0.0
    %8420 = vmatprep.subr.mxu0 0.0
    %8421 = vmatpush1.xpose.msra.mxu0 0.0
    %8422 = vmatprep.subr.mxu0 0.0
    %8423 = vmatpush1.xpose.msra.mxu0 0.0
    %8424 = vmatprep.subr.mxu0 0.0
    %8425 = vmatpush1.xpose.msra.mxu0 0.0
    %8426 = vmatprep.subr.mxu0 0.0
    %8427 = vmatpush1.xpose.msra.mxu0 0.0
    %8428 = vmatprep.subr.mxu0 0.0
    %8429 = vmatpush1.xpose.msra.mxu0 0.0
    %8430 = vmatprep.subr.mxu0 0.0
    %8431 = vmatpush1.xpose.msra.mxu0 0.0
    %8432 = vmatprep.subr.mxu0 0.0
    %8433 = vmatpush1.xpose.msra.mxu0 0.0
    %8434 = vmatprep.subr.mxu0 0.0
    %8435 = vmatpush1.xpose.msra.mxu0 0.0
    %8436 = vmatprep.subr.mxu0 0.0
    %8437 = vmatpush1.xpose.msra.mxu0 0.0
    %8438 = vmatprep.subr.mxu0 0.0
    %8439 = vmatpush1.xpose.msra.mxu0 0.0
    %8440 = vmatprep.subr.mxu0 0.0
    %8441 = vmatpush1.xpose.msra.mxu0 0.0
    %8442 = vmatprep.subr.mxu0 0.0
    %8443 = vmatpush1.xpose.msra.mxu0 0.0
    %8444 = vmatprep.subr.mxu0 0.0
    %8445 = vmatpush1.xpose.msra.mxu0 0.0
    %8446 = vmatprep.subr.mxu0 0.0
    %8447 = vmatpush1.xpose.msra.mxu0 0.0
    %8448 = vmatprep.subr.mxu0 0.0
    %8449 = vmatpush1.xpose.msra.mxu0 0.0
    %8450 = vmatprep.mubr.f32.mxu0 0.0
    %v8451 = vand.u32 %v7894, 4294901760
    %8452 = vmatmul.mubr.f32.gmra.mrb[0].mxu0 %v8451
    %v8453 = vpop.f32.mrb[0].mxu0
    %v8454 = vadd.f32 %v8375, %v8453
    %v8455 = vpop.f32.mrb[0].mxu0
    %8456 = vdwg.mxu0
    %v8458 = vsel %vm5072, %v4466, 0
    %v8461 = vsel %vm5072, %v5056, 0
    %v8464 = vsel %vm5072, %v5057, 0
    %v8467 = vsel %vm5072, %v5058, 0
    %v8470 = vsel %vm5072, %v5059, 0
    %v8473 = vsel %vm5072, %v5060, 0
    %v8476 = vsel %vm5072, %v5061, 0
    %v8479 = vsel %vm5072, %v5062, 0
    %v8482 = vsel %vm5072, %v5063, 0
    %8484 = vmatprep.subr.mxu0 0.0
    %v8485 = vand.u32 %v8461, 4294901760
    %8486 = vmatpush1.xpose.msra.mxu0 %v8485
    %8487 = vmatprep.subr.mxu0 0.0
    %v8488 = vand.u32 %v8464, 4294901760
    %8489 = vmatpush1.xpose.msra.mxu0 %v8488
    %8490 = vmatprep.subr.mxu0 0.0
    %v8491 = vand.u32 %v8467, 4294901760
    %8492 = vmatpush1.xpose.msra.mxu0 %v8491
    %8493 = vmatprep.subr.mxu0 0.0
    %v8494 = vand.u32 %v8470, 4294901760
    %8495 = vmatpush1.xpose.msra.mxu0 %v8494
    %8496 = vmatprep.subr.mxu0 0.0
    %v8497 = vand.u32 %v8473, 4294901760
    %8498 = vmatpush1.xpose.msra.mxu0 %v8497
    %8499 = vmatprep.subr.mxu0 0.0
    %v8500 = vand.u32 %v8476, 4294901760
    %8501 = vmatpush1.xpose.msra.mxu0 %v8500
    %8502 = vmatprep.subr.mxu0 0.0
    %v8503 = vand.u32 %v8479, 4294901760
    %8504 = vmatpush1.xpose.msra.mxu0 %v8503
    %8505 = vmatprep.subr.mxu0 0.0
    %v8506 = vand.u32 %v8482, 4294901760
    %8507 = vmatpush1.xpose.msra.mxu0 %v8506
    %8508 = vmatprep.subr.mxu0 0.0
    %8509 = vmatpush1.xpose.msra.mxu0 0.0
    %8510 = vmatprep.subr.mxu0 0.0
    %8511 = vmatpush1.xpose.msra.mxu0 0.0
    %8512 = vmatprep.subr.mxu0 0.0
    %8513 = vmatpush1.xpose.msra.mxu0 0.0
    %8514 = vmatprep.subr.mxu0 0.0
    %8515 = vmatpush1.xpose.msra.mxu0 0.0
    %8516 = vmatprep.subr.mxu0 0.0
    %8517 = vmatpush1.xpose.msra.mxu0 0.0
    %8518 = vmatprep.subr.mxu0 0.0
    %8519 = vmatpush1.xpose.msra.mxu0 0.0
    %8520 = vmatprep.subr.mxu0 0.0
    %8521 = vmatpush1.xpose.msra.mxu0 0.0
    %8522 = vmatprep.subr.mxu0 0.0
    %8523 = vmatpush1.xpose.msra.mxu0 0.0
    %8524 = vmatprep.subr.mxu0 0.0
    %8525 = vmatpush1.xpose.msra.mxu0 0.0
    %8526 = vmatprep.subr.mxu0 0.0
    %8527 = vmatpush1.xpose.msra.mxu0 0.0
    %8528 = vmatprep.subr.mxu0 0.0
    %8529 = vmatpush1.xpose.msra.mxu0 0.0
    %8530 = vmatprep.subr.mxu0 0.0
    %8531 = vmatpush1.xpose.msra.mxu0 0.0
    %8532 = vmatprep.subr.mxu0 0.0
    %8533 = vmatpush1.xpose.msra.mxu0 0.0
    %8534 = vmatprep.subr.mxu0 0.0
    %8535 = vmatpush1.xpose.msra.mxu0 0.0
    %8536 = vmatprep.subr.mxu0 0.0
    %8537 = vmatpush1.xpose.msra.mxu0 0.0
    %8538 = vmatprep.subr.mxu0 0.0
    %8539 = vmatpush1.xpose.msra.mxu0 0.0
    %8540 = vmatprep.subr.mxu0 0.0
    %8541 = vmatpush1.xpose.msra.mxu0 0.0
    %8542 = vmatprep.subr.mxu0 0.0
    %8543 = vmatpush1.xpose.msra.mxu0 0.0
    %8544 = vmatprep.subr.mxu0 0.0
    %8545 = vmatpush1.xpose.msra.mxu0 0.0
    %8546 = vmatprep.subr.mxu0 0.0
    %8547 = vmatpush1.xpose.msra.mxu0 0.0
    %8548 = vmatprep.subr.mxu0 0.0
    %8549 = vmatpush1.xpose.msra.mxu0 0.0
    %8550 = vmatprep.subr.mxu0 0.0
    %8551 = vmatpush1.xpose.msra.mxu0 0.0
    %8552 = vmatprep.subr.mxu0 0.0
    %8553 = vmatpush1.xpose.msra.mxu0 0.0
    %8554 = vmatprep.subr.mxu0 0.0
    %8555 = vmatpush1.xpose.msra.mxu0 0.0
    %8556 = vmatprep.mubr.f32.mxu0 0.0
    %v8557 = vand.u32 %v8458, 4294901760
    %v8558 = vsub.f32 %v8458, %v8557
    %v8559 = vand.u32 %v8558, 4294901760
    %v8560 = vsub.f32 %v8558, %v8559
    %v8561 = vand.u32 %v8560, 4294901760
    %8562 = vmatmul.mubr.f32.gmra.mrb[0].mxu0 %v8561
    %v8563 = vpop.f32.mrb[0].mxu0
    %v8564 = vadd.f32 0.0, %v8563
    %v8565 = vpop.f32.mrb[0].mxu0
    %8566 = vdwg.mxu0
    %8567 = vmatprep.subr.mxu0 0.0
    %v8568 = vand.u32 %v8461, 4294901760
    %v8569 = vsub.f32 %v8461, %v8568
    %v8570 = vand.u32 %v8569, 4294901760
    %v8571 = vsub.f32 %v8569, %v8570
    %v8572 = vand.u32 %v8571, 4294901760
    %8573 = vmatpush1.xpose.msra.mxu0 %v8572
    %8574 = vmatprep.subr.mxu0 0.0
    %v8575 = vand.u32 %v8464, 4294901760
    %v8576 = vsub.f32 %v8464, %v8575
    %v8577 = vand.u32 %v8576, 4294901760
    %v8578 = vsub.f32 %v8576, %v8577
    %v8579 = vand.u32 %v8578, 4294901760
    %8580 = vmatpush1.xpose.msra.mxu0 %v8579
    %8581 = vmatprep.subr.mxu0 0.0
    %v8582 = vand.u32 %v8467, 4294901760
    %v8583 = vsub.f32 %v8467, %v8582
    %v8584 = vand.u32 %v8583, 4294901760
    %v8585 = vsub.f32 %v8583, %v8584
    %v8586 = vand.u32 %v8585, 4294901760
    %8587 = vmatpush1.xpose.msra.mxu0 %v8586
    %8588 = vmatprep.subr.mxu0 0.0
    %v8589 = vand.u32 %v8470, 4294901760
    %v8590 = vsub.f32 %v8470, %v8589
    %v8591 = vand.u32 %v8590, 4294901760
    %v8592 = vsub.f32 %v8590, %v8591
    %v8593 = vand.u32 %v8592, 4294901760
    %8594 = vmatpush1.xpose.msra.mxu0 %v8593
    %8595 = vmatprep.subr.mxu0 0.0
    %v8596 = vand.u32 %v8473, 4294901760
    %v8597 = vsub.f32 %v8473, %v8596
    %v8598 = vand.u32 %v8597, 4294901760
    %v8599 = vsub.f32 %v8597, %v8598
    %v8600 = vand.u32 %v8599, 4294901760
    %8601 = vmatpush1.xpose.msra.mxu0 %v8600
    %8602 = vmatprep.subr.mxu0 0.0
    %v8603 = vand.u32 %v8476, 4294901760
    %v8604 = vsub.f32 %v8476, %v8603
    %v8605 = vand.u32 %v8604, 4294901760
    %v8606 = vsub.f32 %v8604, %v8605
    %v8607 = vand.u32 %v8606, 4294901760
    %8608 = vmatpush1.xpose.msra.mxu0 %v8607
    %8609 = vmatprep.subr.mxu0 0.0
    %v8610 = vand.u32 %v8479, 4294901760
    %v8611 = vsub.f32 %v8479, %v8610
    %v8612 = vand.u32 %v8611, 4294901760
    %v8613 = vsub.f32 %v8611, %v8612
    %v8614 = vand.u32 %v8613, 4294901760
    %8615 = vmatpush1.xpose.msra.mxu0 %v8614
    %8616 = vmatprep.subr.mxu0 0.0
    %v8617 = vand.u32 %v8482, 4294901760
    %v8618 = vsub.f32 %v8482, %v8617
    %v8619 = vand.u32 %v8618, 4294901760
    %v8620 = vsub.f32 %v8618, %v8619
    %v8621 = vand.u32 %v8620, 4294901760
    %8622 = vmatpush1.xpose.msra.mxu0 %v8621
    %8623 = vmatprep.subr.mxu0 0.0
    %8624 = vmatpush1.xpose.msra.mxu0 0.0
    %8625 = vmatprep.subr.mxu0 0.0
    %8626 = vmatpush1.xpose.msra.mxu0 0.0
    %8627 = vmatprep.subr.mxu0 0.0
    %8628 = vmatpush1.xpose.msra.mxu0 0.0
    %8629 = vmatprep.subr.mxu0 0.0
    %8630 = vmatpush1.xpose.msra.mxu0 0.0
    %8631 = vmatprep.subr.mxu0 0.0
    %8632 = vmatpush1.xpose.msra.mxu0 0.0
    %8633 = vmatprep.subr.mxu0 0.0
    %8634 = vmatpush1.xpose.msra.mxu0 0.0
    %8635 = vmatprep.subr.mxu0 0.0
    %8636 = vmatpush1.xpose.msra.mxu0 0.0
    %8637 = vmatprep.subr.mxu0 0.0
    %8638 = vmatpush1.xpose.msra.mxu0 0.0
    %8639 = vmatprep.subr.mxu0 0.0
    %8640 = vmatpush1.xpose.msra.mxu0 0.0
    %8641 = vmatprep.subr.mxu0 0.0
    %8642 = vmatpush1.xpose.msra.mxu0 0.0
    %8643 = vmatprep.subr.mxu0 0.0
    %8644 = vmatpush1.xpose.msra.mxu0 0.0
    %8645 = vmatprep.subr.mxu0 0.0
    %8646 = vmatpush1.xpose.msra.mxu0 0.0
    %8647 = vmatprep.subr.mxu0 0.0
    %8648 = vmatpush1.xpose.msra.mxu0 0.0
    %8649 = vmatprep.subr.mxu0 0.0
    %8650 = vmatpush1.xpose.msra.mxu0 0.0
    %8651 = vmatprep.subr.mxu0 0.0
    %8652 = vmatpush1.xpose.msra.mxu0 0.0
    %8653 = vmatprep.subr.mxu0 0.0
    %8654 = vmatpush1.xpose.msra.mxu0 0.0
    %8655 = vmatprep.subr.mxu0 0.0
    %8656 = vmatpush1.xpose.msra.mxu0 0.0
    %8657 = vmatprep.subr.mxu0 0.0
    %8658 = vmatpush1.xpose.msra.mxu0 0.0
    %8659 = vmatprep.subr.mxu0 0.0
    %8660 = vmatpush1.xpose.msra.mxu0 0.0
    %8661 = vmatprep.subr.mxu0 0.0
    %8662 = vmatpush1.xpose.msra.mxu0 0.0
    %8663 = vmatprep.subr.mxu0 0.0
    %8664 = vmatpush1.xpose.msra.mxu0 0.0
    %8665 = vmatprep.subr.mxu0 0.0
    %8666 = vmatpush1.xpose.msra.mxu0 0.0
    %8667 = vmatprep.subr.mxu0 0.0
    %8668 = vmatpush1.xpose.msra.mxu0 0.0
    %8669 = vmatprep.subr.mxu0 0.0
    %8670 = vmatpush1.xpose.msra.mxu0 0.0
    %8671 = vmatprep.mubr.f32.mxu0 0.0
    %v8672 = vand.u32 %v8458, 4294901760
    %8673 = vmatmul.mubr.f32.gmra.mrb[0].mxu0 %v8672
    %v8674 = vpop.f32.mrb[0].mxu0
    %v8675 = vadd.f32 %v8564, %v8674
    %v8676 = vpop.f32.mrb[0].mxu0
    %8677 = vdwg.mxu0
    %8678 = vmatprep.subr.mxu0 0.0
    %v8679 = vand.u32 %v8461, 4294901760
    %v8680 = vsub.f32 %v8461, %v8679
    %8681 = vmatpush1.xpose.msra.mxu0 %v8680
    %8682 = vmatprep.subr.mxu0 0.0
    %v8683 = vand.u32 %v8464, 4294901760
    %v8684 = vsub.f32 %v8464, %v8683
    %8685 = vmatpush1.xpose.msra.mxu0 %v8684
    %8686 = vmatprep.subr.mxu0 0.0
    %v8687 = vand.u32 %v8467, 4294901760
    %v8688 = vsub.f32 %v8467, %v8687
    %8689 = vmatpush1.xpose.msra.mxu0 %v8688
    %8690 = vmatprep.subr.mxu0 0.0
    %v8691 = vand.u32 %v8470, 4294901760
    %v8692 = vsub.f32 %v8470, %v8691
    %8693 = vmatpush1.xpose.msra.mxu0 %v8692
    %8694 = vmatprep.subr.mxu0 0.0
    %v8695 = vand.u32 %v8473, 4294901760
    %v8696 = vsub.f32 %v8473, %v8695
    %8697 = vmatpush1.xpose.msra.mxu0 %v8696
    %8698 = vmatprep.subr.mxu0 0.0
    %v8699 = vand.u32 %v8476, 4294901760
    %v8700 = vsub.f32 %v8476, %v8699
    %8701 = vmatpush1.xpose.msra.mxu0 %v8700
    %8702 = vmatprep.subr.mxu0 0.0
    %v8703 = vand.u32 %v8479, 4294901760
    %v8704 = vsub.f32 %v8479, %v8703
    %8705 = vmatpush1.xpose.msra.mxu0 %v8704
    %8706 = vmatprep.subr.mxu0 0.0
    %v8707 = vand.u32 %v8482, 4294901760
    %v8708 = vsub.f32 %v8482, %v8707
    %8709 = vmatpush1.xpose.msra.mxu0 %v8708
    %8710 = vmatprep.subr.mxu0 0.0
    %8711 = vmatpush1.xpose.msra.mxu0 0.0
    %8712 = vmatprep.subr.mxu0 0.0
    %8713 = vmatpush1.xpose.msra.mxu0 0.0
    %8714 = vmatprep.subr.mxu0 0.0
    %8715 = vmatpush1.xpose.msra.mxu0 0.0
    %8716 = vmatprep.subr.mxu0 0.0
    %8717 = vmatpush1.xpose.msra.mxu0 0.0
    %8718 = vmatprep.subr.mxu0 0.0
    %8719 = vmatpush1.xpose.msra.mxu0 0.0
    %8720 = vmatprep.subr.mxu0 0.0
    %8721 = vmatpush1.xpose.msra.mxu0 0.0
    %8722 = vmatprep.subr.mxu0 0.0
    %8723 = vmatpush1.xpose.msra.mxu0 0.0
    %8724 = vmatprep.subr.mxu0 0.0
    %8725 = vmatpush1.xpose.msra.mxu0 0.0
    %8726 = vmatprep.subr.mxu0 0.0
    %8727 = vmatpush1.xpose.msra.mxu0 0.0
    %8728 = vmatprep.subr.mxu0 0.0
    %8729 = vmatpush1.xpose.msra.mxu0 0.0
    %8730 = vmatprep.subr.mxu0 0.0
    %8731 = vmatpush1.xpose.msra.mxu0 0.0
    %8732 = vmatprep.subr.mxu0 0.0
    %8733 = vmatpush1.xpose.msra.mxu0 0.0
    %8734 = vmatprep.subr.mxu0 0.0
    %8735 = vmatpush1.xpose.msra.mxu0 0.0
    %8736 = vmatprep.subr.mxu0 0.0
    %8737 = vmatpush1.xpose.msra.mxu0 0.0
    %8738 = vmatprep.subr.mxu0 0.0
    %8739 = vmatpush1.xpose.msra.mxu0 0.0
    %8740 = vmatprep.subr.mxu0 0.0
    %8741 = vmatpush1.xpose.msra.mxu0 0.0
    %8742 = vmatprep.subr.mxu0 0.0
    %8743 = vmatpush1.xpose.msra.mxu0 0.0
    %8744 = vmatprep.subr.mxu0 0.0
    %8745 = vmatpush1.xpose.msra.mxu0 0.0
    %8746 = vmatprep.subr.mxu0 0.0
    %8747 = vmatpush1.xpose.msra.mxu0 0.0
    %8748 = vmatprep.subr.mxu0 0.0
    %8749 = vmatpush1.xpose.msra.mxu0 0.0
    %8750 = vmatprep.subr.mxu0 0.0
    %8751 = vmatpush1.xpose.msra.mxu0 0.0
    %8752 = vmatprep.subr.mxu0 0.0
    %8753 = vmatpush1.xpose.msra.mxu0 0.0
    %8754 = vmatprep.subr.mxu0 0.0
    %8755 = vmatpush1.xpose.msra.mxu0 0.0
    %8756 = vmatprep.subr.mxu0 0.0
    %8757 = vmatpush1.xpose.msra.mxu0 0.0
    %8758 = vmatprep.mubr.f32.mxu0 0.0
    %v8759 = vand.u32 %v8458, 4294901760
    %v8760 = vsub.f32 %v8458, %v8759
    %8761 = vmatmul.mubr.f32.gmra.mrb[0].mxu0 %v8760
    %v8762 = vpop.f32.mrb[0].mxu0
    %v8763 = vadd.f32 %v8675, %v8762
    %v8764 = vpop.f32.mrb[0].mxu0
    %8765 = vdwg.mxu0
    %8766 = vmatprep.subr.mxu0 0.0
    %v8767 = vand.u32 %v8461, 4294901760
    %8768 = vmatpush1.xpose.msra.mxu0 %v8767
    %8769 = vmatprep.subr.mxu0 0.0
    %v8770 = vand.u32 %v8464, 4294901760
    %8771 = vmatpush1.xpose.msra.mxu0 %v8770
    %8772 = vmatprep.subr.mxu0 0.0
    %v8773 = vand.u32 %v8467, 4294901760
    %8774 = vmatpush1.xpose.msra.mxu0 %v8773
    %8775 = vmatprep.subr.mxu0 0.0
    %v8776 = vand.u32 %v8470, 4294901760
    %8777 = vmatpush1.xpose.msra.mxu0 %v8776
    %8778 = vmatprep.subr.mxu0 0.0
    %v8779 = vand.u32 %v8473, 4294901760
    %8780 = vmatpush1.xpose.msra.mxu0 %v8779
    %8781 = vmatprep.subr.mxu0 0.0
    %v8782 = vand.u32 %v8476, 4294901760
    %8783 = vmatpush1.xpose.msra.mxu0 %v8782
    %8784 = vmatprep.subr.mxu0 0.0
    %v8785 = vand.u32 %v8479, 4294901760
    %8786 = vmatpush1.xpose.msra.mxu0 %v8785
    %8787 = vmatprep.subr.mxu0 0.0
    %v8788 = vand.u32 %v8482, 4294901760
    %8789 = vmatpush1.xpose.msra.mxu0 %v8788
    %8790 = vmatprep.subr.mxu0 0.0
    %8791 = vmatpush1.xpose.msra.mxu0 0.0
    %8792 = vmatprep.subr.mxu0 0.0
    %8793 = vmatpush1.xpose.msra.mxu0 0.0
    %8794 = vmatprep.subr.mxu0 0.0
    %8795 = vmatpush1.xpose.msra.mxu0 0.0
    %8796 = vmatprep.subr.mxu0 0.0
    %8797 = vmatpush1.xpose.msra.mxu0 0.0
    %8798 = vmatprep.subr.mxu0 0.0
    %8799 = vmatpush1.xpose.msra.mxu0 0.0
    %8800 = vmatprep.subr.mxu0 0.0
    %8801 = vmatpush1.xpose.msra.mxu0 0.0
    %8802 = vmatprep.subr.mxu0 0.0
    %8803 = vmatpush1.xpose.msra.mxu0 0.0
    %8804 = vmatprep.subr.mxu0 0.0
    %8805 = vmatpush1.xpose.msra.mxu0 0.0
    %8806 = vmatprep.subr.mxu0 0.0
    %8807 = vmatpush1.xpose.msra.mxu0 0.0
    %8808 = vmatprep.subr.mxu0 0.0
    %8809 = vmatpush1.xpose.msra.mxu0 0.0
    %8810 = vmatprep.subr.mxu0 0.0
    %8811 = vmatpush1.xpose.msra.mxu0 0.0
    %8812 = vmatprep.subr.mxu0 0.0
    %8813 = vmatpush1.xpose.msra.mxu0 0.0
    %8814 = vmatprep.subr.mxu0 0.0
    %8815 = vmatpush1.xpose.msra.mxu0 0.0
    %8816 = vmatprep.subr.mxu0 0.0
    %8817 = vmatpush1.xpose.msra.mxu0 0.0
    %8818 = vmatprep.subr.mxu0 0.0
    %8819 = vmatpush1.xpose.msra.mxu0 0.0
    %8820 = vmatprep.subr.mxu0 0.0
    %8821 = vmatpush1.xpose.msra.mxu0 0.0
    %8822 = vmatprep.subr.mxu0 0.0
    %8823 = vmatpush1.xpose.msra.mxu0 0.0
    %8824 = vmatprep.subr.mxu0 0.0
    %8825 = vmatpush1.xpose.msra.mxu0 0.0
    %8826 = vmatprep.subr.mxu0 0.0
    %8827 = vmatpush1.xpose.msra.mxu0 0.0
    %8828 = vmatprep.subr.mxu0 0.0
    %8829 = vmatpush1.xpose.msra.mxu0 0.0
    %8830 = vmatprep.subr.mxu0 0.0
    %8831 = vmatpush1.xpose.msra.mxu0 0.0
    %8832 = vmatprep.subr.mxu0 0.0
    %8833 = vmatpush1.xpose.msra.mxu0 0.0
    %8834 = vmatprep.subr.mxu0 0.0
    %8835 = vmatpush1.xpose.msra.mxu0 0.0
    %8836 = vmatprep.subr.mxu0 0.0
    %8837 = vmatpush1.xpose.msra.mxu0 0.0
    %8838 = vmatprep.mubr.f32.mxu0 0.0
    %v8839 = vand.u32 %v8458, 4294901760
    %v8840 = vsub.f32 %v8458, %v8839
    %v8841 = vand.u32 %v8840, 4294901760
    %8842 = vmatmul.mubr.f32.gmra.mrb[0].mxu0 %v8841
    %v8843 = vpop.f32.mrb[0].mxu0
    %v8844 = vadd.f32 %v8763, %v8843
    %v8845 = vpop.f32.mrb[0].mxu0
    %8846 = vdwg.mxu0
    %8847 = vmatprep.subr.mxu0 0.0
    %v8848 = vand.u32 %v8461, 4294901760
    %v8849 = vsub.f32 %v8461, %v8848
    %v8850 = vand.u32 %v8849, 4294901760
    %8851 = vmatpush1.xpose.msra.mxu0 %v8850
    %8852 = vmatprep.subr.mxu0 0.0
    %v8853 = vand.u32 %v8464, 4294901760
    %v8854 = vsub.f32 %v8464, %v8853
    %v8855 = vand.u32 %v8854, 4294901760
    %8856 = vmatpush1.xpose.msra.mxu0 %v8855
    %8857 = vmatprep.subr.mxu0 0.0
    %v8858 = vand.u32 %v8467, 4294901760
    %v8859 = vsub.f32 %v8467, %v8858
    %v8860 = vand.u32 %v8859, 4294901760
    %8861 = vmatpush1.xpose.msra.mxu0 %v8860
    %8862 = vmatprep.subr.mxu0 0.0
    %v8863 = vand.u32 %v8470, 4294901760
    %v8864 = vsub.f32 %v8470, %v8863
    %v8865 = vand.u32 %v8864, 4294901760
    %8866 = vmatpush1.xpose.msra.mxu0 %v8865
    %8867 = vmatprep.subr.mxu0 0.0
    %v8868 = vand.u32 %v8473, 4294901760
    %v8869 = vsub.f32 %v8473, %v8868
    %v8870 = vand.u32 %v8869, 4294901760
    %8871 = vmatpush1.xpose.msra.mxu0 %v8870
    %8872 = vmatprep.subr.mxu0 0.0
    %v8873 = vand.u32 %v8476, 4294901760
    %v8874 = vsub.f32 %v8476, %v8873
    %v8875 = vand.u32 %v8874, 4294901760
    %8876 = vmatpush1.xpose.msra.mxu0 %v8875
    %8877 = vmatprep.subr.mxu0 0.0
    %v8878 = vand.u32 %v8479, 4294901760
    %v8879 = vsub.f32 %v8479, %v8878
    %v8880 = vand.u32 %v8879, 4294901760
    %8881 = vmatpush1.xpose.msra.mxu0 %v8880
    %8882 = vmatprep.subr.mxu0 0.0
    %v8883 = vand.u32 %v8482, 4294901760
    %v8884 = vsub.f32 %v8482, %v8883
    %v8885 = vand.u32 %v8884, 4294901760
    %8886 = vmatpush1.xpose.msra.mxu0 %v8885
    %8887 = vmatprep.subr.mxu0 0.0
    %8888 = vmatpush1.xpose.msra.mxu0 0.0
    %8889 = vmatprep.subr.mxu0 0.0
    %8890 = vmatpush1.xpose.msra.mxu0 0.0
    %8891 = vmatprep.subr.mxu0 0.0
    %8892 = vmatpush1.xpose.msra.mxu0 0.0
    %8893 = vmatprep.subr.mxu0 0.0
    %8894 = vmatpush1.xpose.msra.mxu0 0.0
    %8895 = vmatprep.subr.mxu0 0.0
    %8896 = vmatpush1.xpose.msra.mxu0 0.0
    %8897 = vmatprep.subr.mxu0 0.0
    %8898 = vmatpush1.xpose.msra.mxu0 0.0
    %8899 = vmatprep.subr.mxu0 0.0
    %8900 = vmatpush1.xpose.msra.mxu0 0.0
    %8901 = vmatprep.subr.mxu0 0.0
    %8902 = vmatpush1.xpose.msra.mxu0 0.0
    %8903 = vmatprep.subr.mxu0 0.0
    %8904 = vmatpush1.xpose.msra.mxu0 0.0
    %8905 = vmatprep.subr.mxu0 0.0
    %8906 = vmatpush1.xpose.msra.mxu0 0.0
    %8907 = vmatprep.subr.mxu0 0.0
    %8908 = vmatpush1.xpose.msra.mxu0 0.0
    %8909 = vmatprep.subr.mxu0 0.0
    %8910 = vmatpush1.xpose.msra.mxu0 0.0
    %8911 = vmatprep.subr.mxu0 0.0
    %8912 = vmatpush1.xpose.msra.mxu0 0.0
    %8913 = vmatprep.subr.mxu0 0.0
    %8914 = vmatpush1.xpose.msra.mxu0 0.0
    %8915 = vmatprep.subr.mxu0 0.0
    %8916 = vmatpush1.xpose.msra.mxu0 0.0
    %8917 = vmatprep.subr.mxu0 0.0
    %8918 = vmatpush1.xpose.msra.mxu0 0.0
    %8919 = vmatprep.subr.mxu0 0.0
    %8920 = vmatpush1.xpose.msra.mxu0 0.0
    %8921 = vmatprep.subr.mxu0 0.0
    %8922 = vmatpush1.xpose.msra.mxu0 0.0
    %8923 = vmatprep.subr.mxu0 0.0
    %8924 = vmatpush1.xpose.msra.mxu0 0.0
    %8925 = vmatprep.subr.mxu0 0.0
    %8926 = vmatpush1.xpose.msra.mxu0 0.0
    %8927 = vmatprep.subr.mxu0 0.0
    %8928 = vmatpush1.xpose.msra.mxu0 0.0
    %8929 = vmatprep.subr.mxu0 0.0
    %8930 = vmatpush1.xpose.msra.mxu0 0.0
    %8931 = vmatprep.subr.mxu0 0.0
    %8932 = vmatpush1.xpose.msra.mxu0 0.0
    %8933 = vmatprep.subr.mxu0 0.0
    %8934 = vmatpush1.xpose.msra.mxu0 0.0
    %8935 = vmatprep.mubr.f32.mxu0 0.0
    %v8936 = vand.u32 %v8458, 4294901760
    %8937 = vmatmul.mubr.f32.gmra.mrb[0].mxu0 %v8936
    %v8938 = vpop.f32.mrb[0].mxu0
    %v8939 = vadd.f32 %v8844, %v8938
    %v8940 = vpop.f32.mrb[0].mxu0
    %8941 = vdwg.mxu0
    %8942 = vmatprep.subr.mxu0 0.0
    %v8943 = vand.u32 %v8461, 4294901760
    %8944 = vmatpush1.xpose.msra.mxu0 %v8943
    %8945 = vmatprep.subr.mxu0 0.0
    %v8946 = vand.u32 %v8464, 4294901760
    %8947 = vmatpush1.xpose.msra.mxu0 %v8946
    %8948 = vmatprep.subr.mxu0 0.0
    %v8949 = vand.u32 %v8467, 4294901760
    %8950 = vmatpush1.xpose.msra.mxu0 %v8949
    %8951 = vmatprep.subr.mxu0 0.0
    %v8952 = vand.u32 %v8470, 4294901760
    %8953 = vmatpush1.xpose.msra.mxu0 %v8952
    %8954 = vmatprep.subr.mxu0 0.0
    %v8955 = vand.u32 %v8473, 4294901760
    %8956 = vmatpush1.xpose.msra.mxu0 %v8955
    %8957 = vmatprep.subr.mxu0 0.0
    %v8958 = vand.u32 %v8476, 4294901760
    %8959 = vmatpush1.xpose.msra.mxu0 %v8958
    %8960 = vmatprep.subr.mxu0 0.0
    %v8961 = vand.u32 %v8479, 4294901760
    %8962 = vmatpush1.xpose.msra.mxu0 %v8961
    %8963 = vmatprep.subr.mxu0 0.0
    %v8964 = vand.u32 %v8482, 4294901760
    %8965 = vmatpush1.xpose.msra.mxu0 %v8964
    %8966 = vmatprep.subr.mxu0 0.0
    %8967 = vmatpush1.xpose.msra.mxu0 0.0
    %8968 = vmatprep.subr.mxu0 0.0
    %8969 = vmatpush1.xpose.msra.mxu0 0.0
    %8970 = vmatprep.subr.mxu0 0.0
    %8971 = vmatpush1.xpose.msra.mxu0 0.0
    %8972 = vmatprep.subr.mxu0 0.0
    %8973 = vmatpush1.xpose.msra.mxu0 0.0
    %8974 = vmatprep.subr.mxu0 0.0
    %8975 = vmatpush1.xpose.msra.mxu0 0.0
    %8976 = vmatprep.subr.mxu0 0.0
    %8977 = vmatpush1.xpose.msra.mxu0 0.0
    %8978 = vmatprep.subr.mxu0 0.0
    %8979 = vmatpush1.xpose.msra.mxu0 0.0
    %8980 = vmatprep.subr.mxu0 0.0
    %8981 = vmatpush1.xpose.msra.mxu0 0.0
    %8982 = vmatprep.subr.mxu0 0.0
    %8983 = vmatpush1.xpose.msra.mxu0 0.0
    %8984 = vmatprep.subr.mxu0 0.0
    %8985 = vmatpush1.xpose.msra.mxu0 0.0
    %8986 = vmatprep.subr.mxu0 0.0
    %8987 = vmatpush1.xpose.msra.mxu0 0.0
    %8988 = vmatprep.subr.mxu0 0.0
    %8989 = vmatpush1.xpose.msra.mxu0 0.0
    %8990 = vmatprep.subr.mxu0 0.0
    %8991 = vmatpush1.xpose.msra.mxu0 0.0
    %8992 = vmatprep.subr.mxu0 0.0
    %8993 = vmatpush1.xpose.msra.mxu0 0.0
    %8994 = vmatprep.subr.mxu0 0.0
    %8995 = vmatpush1.xpose.msra.mxu0 0.0
    %8996 = vmatprep.subr.mxu0 0.0
    %8997 = vmatpush1.xpose.msra.mxu0 0.0
    %8998 = vmatprep.subr.mxu0 0.0
    %8999 = vmatpush1.xpose.msra.mxu0 0.0
    %9000 = vmatprep.subr.mxu0 0.0
    %9001 = vmatpush1.xpose.msra.mxu0 0.0
    %9002 = vmatprep.subr.mxu0 0.0
    %9003 = vmatpush1.xpose.msra.mxu0 0.0
    %9004 = vmatprep.subr.mxu0 0.0
    %9005 = vmatpush1.xpose.msra.mxu0 0.0
    %9006 = vmatprep.subr.mxu0 0.0
    %9007 = vmatpush1.xpose.msra.mxu0 0.0
    %9008 = vmatprep.subr.mxu0 0.0
    %9009 = vmatpush1.xpose.msra.mxu0 0.0
    %9010 = vmatprep.subr.mxu0 0.0
    %9011 = vmatpush1.xpose.msra.mxu0 0.0
    %9012 = vmatprep.subr.mxu0 0.0
    %9013 = vmatpush1.xpose.msra.mxu0 0.0
    %9014 = vmatprep.mubr.f32.mxu0 0.0
    %v9015 = vand.u32 %v8458, 4294901760
    %9016 = vmatmul.mubr.f32.gmra.mrb[0].mxu0 %v9015
    %v9017 = vpop.f32.mrb[0].mxu0
    %v9018 = vadd.f32 %v8939, %v9017
    %v9019 = vpop.f32.mrb[0].mxu0
    %9020 = vdwg.mxu0
    %v9022 = vsel %vm5072, %v5005, 0
    %v9025 = vsel %vm5072, %v5064, 0
    %v9028 = vsel %vm5072, %v5065, 0
    %v9031 = vsel %vm5072, %v5066, 0
    %v9034 = vsel %vm5072, %v5067, 0
    %v9037 = vsel %vm5072, %v5068, 0
    %v9040 = vsel %vm5072, %v5069, 0
    %v9043 = vsel %vm5072, %v5070, 0
    %v9046 = vsel %vm5072, %v5071, 0
    %9048 = vmatprep.subr.mxu0 0.0
    %v9049 = vand.u32 %v9025, 4294901760
    %9050 = vmatpush1.xpose.msra.mxu0 %v9049
    %9051 = vmatprep.subr.mxu0 0.0
    %v9052 = vand.u32 %v9028, 4294901760
    %9053 = vmatpush1.xpose.msra.mxu0 %v9052
    %9054 = vmatprep.subr.mxu0 0.0
    %v9055 = vand.u32 %v9031, 4294901760
    %9056 = vmatpush1.xpose.msra.mxu0 %v9055
    %9057 = vmatprep.subr.mxu0 0.0
    %v9058 = vand.u32 %v9034, 4294901760
    %9059 = vmatpush1.xpose.msra.mxu0 %v9058
    %9060 = vmatprep.subr.mxu0 0.0
    %v9061 = vand.u32 %v9037, 4294901760
    %9062 = vmatpush1.xpose.msra.mxu0 %v9061
    %9063 = vmatprep.subr.mxu0 0.0
    %v9064 = vand.u32 %v9040, 4294901760
    %9065 = vmatpush1.xpose.msra.mxu0 %v9064
    %9066 = vmatprep.subr.mxu0 0.0
    %v9067 = vand.u32 %v9043, 4294901760
    %9068 = vmatpush1.xpose.msra.mxu0 %v9067
    %9069 = vmatprep.subr.mxu0 0.0
    %v9070 = vand.u32 %v9046, 4294901760
    %9071 = vmatpush1.xpose.msra.mxu0 %v9070
    %9072 = vmatprep.subr.mxu0 0.0
    %9073 = vmatpush1.xpose.msra.mxu0 0.0
    %9074 = vmatprep.subr.mxu0 0.0
    %9075 = vmatpush1.xpose.msra.mxu0 0.0
    %9076 = vmatprep.subr.mxu0 0.0
    %9077 = vmatpush1.xpose.msra.mxu0 0.0
    %9078 = vmatprep.subr.mxu0 0.0
    %9079 = vmatpush1.xpose.msra.mxu0 0.0
    %9080 = vmatprep.subr.mxu0 0.0
    %9081 = vmatpush1.xpose.msra.mxu0 0.0
    %9082 = vmatprep.subr.mxu0 0.0
    %9083 = vmatpush1.xpose.msra.mxu0 0.0
    %9084 = vmatprep.subr.mxu0 0.0
    %9085 = vmatpush1.xpose.msra.mxu0 0.0
    %9086 = vmatprep.subr.mxu0 0.0
    %9087 = vmatpush1.xpose.msra.mxu0 0.0
    %9088 = vmatprep.subr.mxu0 0.0
    %9089 = vmatpush1.xpose.msra.mxu0 0.0
    %9090 = vmatprep.subr.mxu0 0.0
    %9091 = vmatpush1.xpose.msra.mxu0 0.0
    %9092 = vmatprep.subr.mxu0 0.0
    %9093 = vmatpush1.xpose.msra.mxu0 0.0
    %9094 = vmatprep.subr.mxu0 0.0
    %9095 = vmatpush1.xpose.msra.mxu0 0.0
    %9096 = vmatprep.subr.mxu0 0.0
    %9097 = vmatpush1.xpose.msra.mxu0 0.0
    %9098 = vmatprep.subr.mxu0 0.0
    %9099 = vmatpush1.xpose.msra.mxu0 0.0
    %9100 = vmatprep.subr.mxu0 0.0
    %9101 = vmatpush1.xpose.msra.mxu0 0.0
    %9102 = vmatprep.subr.mxu0 0.0
    %9103 = vmatpush1.xpose.msra.mxu0 0.0
    %9104 = vmatprep.subr.mxu0 0.0
    %9105 = vmatpush1.xpose.msra.mxu0 0.0
    %9106 = vmatprep.subr.mxu0 0.0
    %9107 = vmatpush1.xpose.msra.mxu0 0.0
    %9108 = vmatprep.subr.mxu0 0.0
    %9109 = vmatpush1.xpose.msra.mxu0 0.0
    %9110 = vmatprep.subr.mxu0 0.0
    %9111 = vmatpush1.xpose.msra.mxu0 0.0
    %9112 = vmatprep.subr.mxu0 0.0
    %9113 = vmatpush1.xpose.msra.mxu0 0.0
    %9114 = vmatprep.subr.mxu0 0.0
    %9115 = vmatpush1.xpose.msra.mxu0 0.0
    %9116 = vmatprep.subr.mxu0 0.0
    %9117 = vmatpush1.xpose.msra.mxu0 0.0
    %9118 = vmatprep.subr.mxu0 0.0
    %9119 = vmatpush1.xpose.msra.mxu0 0.0
    %9120 = vmatprep.mubr.f32.mxu0 0.0
    %v9121 = vand.u32 %v9022, 4294901760
    %v9122 = vsub.f32 %v9022, %v9121
    %v9123 = vand.u32 %v9122, 4294901760
    %v9124 = vsub.f32 %v9122, %v9123
    %v9125 = vand.u32 %v9124, 4294901760
    %9126 = vmatmul.mubr.f32.gmra.mrb[0].mxu0 %v9125
    %v9127 = vpop.f32.mrb[0].mxu0
    %v9128 = vadd.f32 0.0, %v9127
    %v9129 = vpop.f32.mrb[0].mxu0
    %9130 = vdwg.mxu0
    %9131 = vmatprep.subr.mxu0 0.0
    %v9132 = vand.u32 %v9025, 4294901760
    %v9133 = vsub.f32 %v9025, %v9132
    %v9134 = vand.u32 %v9133, 4294901760
    %v9135 = vsub.f32 %v9133, %v9134
    %v9136 = vand.u32 %v9135, 4294901760
    %9137 = vmatpush1.xpose.msra.mxu0 %v9136
    %9138 = vmatprep.subr.mxu0 0.0
    %v9139 = vand.u32 %v9028, 4294901760
    %v9140 = vsub.f32 %v9028, %v9139
    %v9141 = vand.u32 %v9140, 4294901760
    %v9142 = vsub.f32 %v9140, %v9141
    %v9143 = vand.u32 %v9142, 4294901760
    %9144 = vmatpush1.xpose.msra.mxu0 %v9143
    %9145 = vmatprep.subr.mxu0 0.0
    %v9146 = vand.u32 %v9031, 4294901760
    %v9147 = vsub.f32 %v9031, %v9146
    %v9148 = vand.u32 %v9147, 4294901760
    %v9149 = vsub.f32 %v9147, %v9148
    %v9150 = vand.u32 %v9149, 4294901760
    %9151 = vmatpush1.xpose.msra.mxu0 %v9150
    %9152 = vmatprep.subr.mxu0 0.0
    %v9153 = vand.u32 %v9034, 4294901760
    %v9154 = vsub.f32 %v9034, %v9153
    %v9155 = vand.u32 %v9154, 4294901760
    %v9156 = vsub.f32 %v9154, %v9155
    %v9157 = vand.u32 %v9156, 4294901760
    %9158 = vmatpush1.xpose.msra.mxu0 %v9157
    %9159 = vmatprep.subr.mxu0 0.0
    %v9160 = vand.u32 %v9037, 4294901760
    %v9161 = vsub.f32 %v9037, %v9160
    %v9162 = vand.u32 %v9161, 4294901760
    %v9163 = vsub.f32 %v9161, %v9162
    %v9164 = vand.u32 %v9163, 4294901760
    %9165 = vmatpush1.xpose.msra.mxu0 %v9164
    %9166 = vmatprep.subr.mxu0 0.0
    %v9167 = vand.u32 %v9040, 4294901760
    %v9168 = vsub.f32 %v9040, %v9167
    %v9169 = vand.u32 %v9168, 4294901760
    %v9170 = vsub.f32 %v9168, %v9169
    %v9171 = vand.u32 %v9170, 4294901760
    %9172 = vmatpush1.xpose.msra.mxu0 %v9171
    %9173 = vmatprep.subr.mxu0 0.0
    %v9174 = vand.u32 %v9043, 4294901760
    %v9175 = vsub.f32 %v9043, %v9174
    %v9176 = vand.u32 %v9175, 4294901760
    %v9177 = vsub.f32 %v9175, %v9176
    %v9178 = vand.u32 %v9177, 4294901760
    %9179 = vmatpush1.xpose.msra.mxu0 %v9178
    %9180 = vmatprep.subr.mxu0 0.0
    %v9181 = vand.u32 %v9046, 4294901760
    %v9182 = vsub.f32 %v9046, %v9181
    %v9183 = vand.u32 %v9182, 4294901760
    %v9184 = vsub.f32 %v9182, %v9183
    %v9185 = vand.u32 %v9184, 4294901760
    %9186 = vmatpush1.xpose.msra.mxu0 %v9185
    %9187 = vmatprep.subr.mxu0 0.0
    %9188 = vmatpush1.xpose.msra.mxu0 0.0
    %9189 = vmatprep.subr.mxu0 0.0
    %9190 = vmatpush1.xpose.msra.mxu0 0.0
    %9191 = vmatprep.subr.mxu0 0.0
    %9192 = vmatpush1.xpose.msra.mxu0 0.0
    %9193 = vmatprep.subr.mxu0 0.0
    %9194 = vmatpush1.xpose.msra.mxu0 0.0
    %9195 = vmatprep.subr.mxu0 0.0
    %9196 = vmatpush1.xpose.msra.mxu0 0.0
    %9197 = vmatprep.subr.mxu0 0.0
    %9198 = vmatpush1.xpose.msra.mxu0 0.0
    %9199 = vmatprep.subr.mxu0 0.0
    %9200 = vmatpush1.xpose.msra.mxu0 0.0
    %9201 = vmatprep.subr.mxu0 0.0
    %9202 = vmatpush1.xpose.msra.mxu0 0.0
    %9203 = vmatprep.subr.mxu0 0.0
    %9204 = vmatpush1.xpose.msra.mxu0 0.0
    %9205 = vmatprep.subr.mxu0 0.0
    %9206 = vmatpush1.xpose.msra.mxu0 0.0
    %9207 = vmatprep.subr.mxu0 0.0
    %9208 = vmatpush1.xpose.msra.mxu0 0.0
    %9209 = vmatprep.subr.mxu0 0.0
    %9210 = vmatpush1.xpose.msra.mxu0 0.0
    %9211 = vmatprep.subr.mxu0 0.0
    %9212 = vmatpush1.xpose.msra.mxu0 0.0
    %9213 = vmatprep.subr.mxu0 0.0
    %9214 = vmatpush1.xpose.msra.mxu0 0.0
    %9215 = vmatprep.subr.mxu0 0.0
    %9216 = vmatpush1.xpose.msra.mxu0 0.0
    %9217 = vmatprep.subr.mxu0 0.0
    %9218 = vmatpush1.xpose.msra.mxu0 0.0
    %9219 = vmatprep.subr.mxu0 0.0
    %9220 = vmatpush1.xpose.msra.mxu0 0.0
    %9221 = vmatprep.subr.mxu0 0.0
    %9222 = vmatpush1.xpose.msra.mxu0 0.0
    %9223 = vmatprep.subr.mxu0 0.0
    %9224 = vmatpush1.xpose.msra.mxu0 0.0
    %9225 = vmatprep.subr.mxu0 0.0
    %9226 = vmatpush1.xpose.msra.mxu0 0.0
    %9227 = vmatprep.subr.mxu0 0.0
    %9228 = vmatpush1.xpose.msra.mxu0 0.0
    %9229 = vmatprep.subr.mxu0 0.0
    %9230 = vmatpush1.xpose.msra.mxu0 0.0
    %9231 = vmatprep.subr.mxu0 0.0
    %9232 = vmatpush1.xpose.msra.mxu0 0.0
    %9233 = vmatprep.subr.mxu0 0.0
    %9234 = vmatpush1.xpose.msra.mxu0 0.0
    %9235 = vmatprep.mubr.f32.mxu0 0.0
    %v9236 = vand.u32 %v9022, 4294901760
    %9237 = vmatmul.mubr.f32.gmra.mrb[0].mxu0 %v9236
    %v9238 = vpop.f32.mrb[0].mxu0
    %v9239 = vadd.f32 %v9128, %v9238
    %v9240 = vpop.f32.mrb[0].mxu0
    %9241 = vdwg.mxu0
    %9242 = vmatprep.subr.mxu0 0.0
    %v9243 = vand.u32 %v9025, 4294901760
    %v9244 = vsub.f32 %v9025, %v9243
    %9245 = vmatpush1.xpose.msra.mxu0 %v9244
    %9246 = vmatprep.subr.mxu0 0.0
    %v9247 = vand.u32 %v9028, 4294901760
    %v9248 = vsub.f32 %v9028, %v9247
    %9249 = vmatpush1.xpose.msra.mxu0 %v9248
    %9250 = vmatprep.subr.mxu0 0.0
    %v9251 = vand.u32 %v9031, 4294901760
    %v9252 = vsub.f32 %v9031, %v9251
    %9253 = vmatpush1.xpose.msra.mxu0 %v9252
    %9254 = vmatprep.subr.mxu0 0.0
    %v9255 = vand.u32 %v9034, 4294901760
    %v9256 = vsub.f32 %v9034, %v9255
    %9257 = vmatpush1.xpose.msra.mxu0 %v9256
    %9258 = vmatprep.subr.mxu0 0.0
    %v9259 = vand.u32 %v9037, 4294901760
    %v9260 = vsub.f32 %v9037, %v9259
    %9261 = vmatpush1.xpose.msra.mxu0 %v9260
    %9262 = vmatprep.subr.mxu0 0.0
    %v9263 = vand.u32 %v9040, 4294901760
    %v9264 = vsub.f32 %v9040, %v9263
    %9265 = vmatpush1.xpose.msra.mxu0 %v9264
    %9266 = vmatprep.subr.mxu0 0.0
    %v9267 = vand.u32 %v9043, 4294901760
    %v9268 = vsub.f32 %v9043, %v9267
    %9269 = vmatpush1.xpose.msra.mxu0 %v9268
    %9270 = vmatprep.subr.mxu0 0.0
    %v9271 = vand.u32 %v9046, 4294901760
    %v9272 = vsub.f32 %v9046, %v9271
    %9273 = vmatpush1.xpose.msra.mxu0 %v9272
    %9274 = vmatprep.subr.mxu0 0.0
    %9275 = vmatpush1.xpose.msra.mxu0 0.0
    %9276 = vmatprep.subr.mxu0 0.0
    %9277 = vmatpush1.xpose.msra.mxu0 0.0
    %9278 = vmatprep.subr.mxu0 0.0
    %9279 = vmatpush1.xpose.msra.mxu0 0.0
    %9280 = vmatprep.subr.mxu0 0.0
    %9281 = vmatpush1.xpose.msra.mxu0 0.0
    %9282 = vmatprep.subr.mxu0 0.0
    %9283 = vmatpush1.xpose.msra.mxu0 0.0
    %9284 = vmatprep.subr.mxu0 0.0
    %9285 = vmatpush1.xpose.msra.mxu0 0.0
    %9286 = vmatprep.subr.mxu0 0.0
    %9287 = vmatpush1.xpose.msra.mxu0 0.0
    %9288 = vmatprep.subr.mxu0 0.0
    %9289 = vmatpush1.xpose.msra.mxu0 0.0
    %9290 = vmatprep.subr.mxu0 0.0
    %9291 = vmatpush1.xpose.msra.mxu0 0.0
    %9292 = vmatprep.subr.mxu0 0.0
    %9293 = vmatpush1.xpose.msra.mxu0 0.0
    %9294 = vmatprep.subr.mxu0 0.0
    %9295 = vmatpush1.xpose.msra.mxu0 0.0
    %9296 = vmatprep.subr.mxu0 0.0
    %9297 = vmatpush1.xpose.msra.mxu0 0.0
    %9298 = vmatprep.subr.mxu0 0.0
    %9299 = vmatpush1.xpose.msra.mxu0 0.0
    %9300 = vmatprep.subr.mxu0 0.0
    %9301 = vmatpush1.xpose.msra.mxu0 0.0
    %9302 = vmatprep.subr.mxu0 0.0
    %9303 = vmatpush1.xpose.msra.mxu0 0.0
    %9304 = vmatprep.subr.mxu0 0.0
    %9305 = vmatpush1.xpose.msra.mxu0 0.0
    %9306 = vmatprep.subr.mxu0 0.0
    %9307 = vmatpush1.xpose.msra.mxu0 0.0
    %9308 = vmatprep.subr.mxu0 0.0
    %9309 = vmatpush1.xpose.msra.mxu0 0.0
    %9310 = vmatprep.subr.mxu0 0.0
    %9311 = vmatpush1.xpose.msra.mxu0 0.0
    %9312 = vmatprep.subr.mxu0 0.0
    %9313 = vmatpush1.xpose.msra.mxu0 0.0
    %9314 = vmatprep.subr.mxu0 0.0
    %9315 = vmatpush1.xpose.msra.mxu0 0.0
    %9316 = vmatprep.subr.mxu0 0.0
    %9317 = vmatpush1.xpose.msra.mxu0 0.0
    %9318 = vmatprep.subr.mxu0 0.0
    %9319 = vmatpush1.xpose.msra.mxu0 0.0
    %9320 = vmatprep.subr.mxu0 0.0
    %9321 = vmatpush1.xpose.msra.mxu0 0.0
    %9322 = vmatprep.mubr.f32.mxu0 0.0
    %v9323 = vand.u32 %v9022, 4294901760
    %v9324 = vsub.f32 %v9022, %v9323
    %9325 = vmatmul.mubr.f32.gmra.mrb[0].mxu0 %v9324
    %v9326 = vpop.f32.mrb[0].mxu0
    %v9327 = vadd.f32 %v9239, %v9326
    %v9328 = vpop.f32.mrb[0].mxu0
    %9329 = vdwg.mxu0
    %9330 = vmatprep.subr.mxu0 0.0
    %v9331 = vand.u32 %v9025, 4294901760
    %9332 = vmatpush1.xpose.msra.mxu0 %v9331
    %9333 = vmatprep.subr.mxu0 0.0
    %v9334 = vand.u32 %v9028, 4294901760
    %9335 = vmatpush1.xpose.msra.mxu0 %v9334
    %9336 = vmatprep.subr.mxu0 0.0
    %v9337 = vand.u32 %v9031, 4294901760
    %9338 = vmatpush1.xpose.msra.mxu0 %v9337
    %9339 = vmatprep.subr.mxu0 0.0
    %v9340 = vand.u32 %v9034, 4294901760
    %9341 = vmatpush1.xpose.msra.mxu0 %v9340
    %9342 = vmatprep.subr.mxu0 0.0
    %v9343 = vand.u32 %v9037, 4294901760
    %9344 = vmatpush1.xpose.msra.mxu0 %v9343
    %9345 = vmatprep.subr.mxu0 0.0
    %v9346 = vand.u32 %v9040, 4294901760
    %9347 = vmatpush1.xpose.msra.mxu0 %v9346
    %9348 = vmatprep.subr.mxu0 0.0
    %v9349 = vand.u32 %v9043, 4294901760
    %9350 = vmatpush1.xpose.msra.mxu0 %v9349
    %9351 = vmatprep.subr.mxu0 0.0
    %v9352 = vand.u32 %v9046, 4294901760
    %9353 = vmatpush1.xpose.msra.mxu0 %v9352
    %9354 = vmatprep.subr.mxu0 0.0
    %9355 = vmatpush1.xpose.msra.mxu0 0.0
    %9356 = vmatprep.subr.mxu0 0.0
    %9357 = vmatpush1.xpose.msra.mxu0 0.0
    %9358 = vmatprep.subr.mxu0 0.0
    %9359 = vmatpush1.xpose.msra.mxu0 0.0
    %9360 = vmatprep.subr.mxu0 0.0
    %9361 = vmatpush1.xpose.msra.mxu0 0.0
    %9362 = vmatprep.subr.mxu0 0.0
    %9363 = vmatpush1.xpose.msra.mxu0 0.0
    %9364 = vmatprep.subr.mxu0 0.0
    %9365 = vmatpush1.xpose.msra.mxu0 0.0
    %9366 = vmatprep.subr.mxu0 0.0
    %9367 = vmatpush1.xpose.msra.mxu0 0.0
    %9368 = vmatprep.subr.mxu0 0.0
    %9369 = vmatpush1.xpose.msra.mxu0 0.0
    %9370 = vmatprep.subr.mxu0 0.0
    %9371 = vmatpush1.xpose.msra.mxu0 0.0
    %9372 = vmatprep.subr.mxu0 0.0
    %9373 = vmatpush1.xpose.msra.mxu0 0.0
    %9374 = vmatprep.subr.mxu0 0.0
    %9375 = vmatpush1.xpose.msra.mxu0 0.0
    %9376 = vmatprep.subr.mxu0 0.0
    %9377 = vmatpush1.xpose.msra.mxu0 0.0
    %9378 = vmatprep.subr.mxu0 0.0
    %9379 = vmatpush1.xpose.msra.mxu0 0.0
    %9380 = vmatprep.subr.mxu0 0.0
    %9381 = vmatpush1.xpose.msra.mxu0 0.0
    %9382 = vmatprep.subr.mxu0 0.0
    %9383 = vmatpush1.xpose.msra.mxu0 0.0
    %9384 = vmatprep.subr.mxu0 0.0
    %9385 = vmatpush1.xpose.msra.mxu0 0.0
    %9386 = vmatprep.subr.mxu0 0.0
    %9387 = vmatpush1.xpose.msra.mxu0 0.0
    %9388 = vmatprep.subr.mxu0 0.0
    %9389 = vmatpush1.xpose.msra.mxu0 0.0
    %9390 = vmatprep.subr.mxu0 0.0
    %9391 = vmatpush1.xpose.msra.mxu0 0.0
    %9392 = vmatprep.subr.mxu0 0.0
    %9393 = vmatpush1.xpose.msra.mxu0 0.0
    %9394 = vmatprep.subr.mxu0 0.0
    %9395 = vmatpush1.xpose.msra.mxu0 0.0
    %9396 = vmatprep.subr.mxu0 0.0
    %9397 = vmatpush1.xpose.msra.mxu0 0.0
    %9398 = vmatprep.subr.mxu0 0.0
    %9399 = vmatpush1.xpose.msra.mxu0 0.0
    %9400 = vmatprep.subr.mxu0 0.0
    %9401 = vmatpush1.xpose.msra.mxu0 0.0
    %9402 = vmatprep.mubr.f32.mxu0 0.0
    %v9403 = vand.u32 %v9022, 4294901760
    %v9404 = vsub.f32 %v9022, %v9403
    %v9405 = vand.u32 %v9404, 4294901760
    %9406 = vmatmul.mubr.f32.gmra.mrb[0].mxu0 %v9405
    %v9407 = vpop.f32.mrb[0].mxu0
    %v9408 = vadd.f32 %v9327, %v9407
    %v9409 = vpop.f32.mrb[0].mxu0
    %9410 = vdwg.mxu0
    %9411 = vmatprep.subr.mxu0 0.0
    %v9412 = vand.u32 %v9025, 4294901760
    %v9413 = vsub.f32 %v9025, %v9412
    %v9414 = vand.u32 %v9413, 4294901760
    %9415 = vmatpush1.xpose.msra.mxu0 %v9414
    %9416 = vmatprep.subr.mxu0 0.0
    %v9417 = vand.u32 %v9028, 4294901760
    %v9418 = vsub.f32 %v9028, %v9417
    %v9419 = vand.u32 %v9418, 4294901760
    %9420 = vmatpush1.xpose.msra.mxu0 %v9419
    %9421 = vmatprep.subr.mxu0 0.0
    %v9422 = vand.u32 %v9031, 4294901760
    %v9423 = vsub.f32 %v9031, %v9422
    %v9424 = vand.u32 %v9423, 4294901760
    %9425 = vmatpush1.xpose.msra.mxu0 %v9424
    %9426 = vmatprep.subr.mxu0 0.0
    %v9427 = vand.u32 %v9034, 4294901760
    %v9428 = vsub.f32 %v9034, %v9427
    %v9429 = vand.u32 %v9428, 4294901760
    %9430 = vmatpush1.xpose.msra.mxu0 %v9429
    %9431 = vmatprep.subr.mxu0 0.0
    %v9432 = vand.u32 %v9037, 4294901760
    %v9433 = vsub.f32 %v9037, %v9432
    %v9434 = vand.u32 %v9433, 4294901760
    %9435 = vmatpush1.xpose.msra.mxu0 %v9434
    %9436 = vmatprep.subr.mxu0 0.0
    %v9437 = vand.u32 %v9040, 4294901760
    %v9438 = vsub.f32 %v9040, %v9437
    %v9439 = vand.u32 %v9438, 4294901760
    %9440 = vmatpush1.xpose.msra.mxu0 %v9439
    %9441 = vmatprep.subr.mxu0 0.0
    %v9442 = vand.u32 %v9043, 4294901760
    %v9443 = vsub.f32 %v9043, %v9442
    %v9444 = vand.u32 %v9443, 4294901760
    %9445 = vmatpush1.xpose.msra.mxu0 %v9444
    %9446 = vmatprep.subr.mxu0 0.0
    %v9447 = vand.u32 %v9046, 4294901760
    %v9448 = vsub.f32 %v9046, %v9447
    %v9449 = vand.u32 %v9448, 4294901760
    %9450 = vmatpush1.xpose.msra.mxu0 %v9449
    %9451 = vmatprep.subr.mxu0 0.0
    %9452 = vmatpush1.xpose.msra.mxu0 0.0
    %9453 = vmatprep.subr.mxu0 0.0
    %9454 = vmatpush1.xpose.msra.mxu0 0.0
    %9455 = vmatprep.subr.mxu0 0.0
    %9456 = vmatpush1.xpose.msra.mxu0 0.0
    %9457 = vmatprep.subr.mxu0 0.0
    %9458 = vmatpush1.xpose.msra.mxu0 0.0
    %9459 = vmatprep.subr.mxu0 0.0
    %9460 = vmatpush1.xpose.msra.mxu0 0.0
    %9461 = vmatprep.subr.mxu0 0.0
    %9462 = vmatpush1.xpose.msra.mxu0 0.0
    %9463 = vmatprep.subr.mxu0 0.0
    %9464 = vmatpush1.xpose.msra.mxu0 0.0
    %9465 = vmatprep.subr.mxu0 0.0
    %9466 = vmatpush1.xpose.msra.mxu0 0.0
    %9467 = vmatprep.subr.mxu0 0.0
    %9468 = vmatpush1.xpose.msra.mxu0 0.0
    %9469 = vmatprep.subr.mxu0 0.0
    %9470 = vmatpush1.xpose.msra.mxu0 0.0
    %9471 = vmatprep.subr.mxu0 0.0
    %9472 = vmatpush1.xpose.msra.mxu0 0.0
    %9473 = vmatprep.subr.mxu0 0.0
    %9474 = vmatpush1.xpose.msra.mxu0 0.0
    %9475 = vmatprep.subr.mxu0 0.0
    %9476 = vmatpush1.xpose.msra.mxu0 0.0
    %9477 = vmatprep.subr.mxu0 0.0
    %9478 = vmatpush1.xpose.msra.mxu0 0.0
    %9479 = vmatprep.subr.mxu0 0.0
    %9480 = vmatpush1.xpose.msra.mxu0 0.0
    %9481 = vmatprep.subr.mxu0 0.0
    %9482 = vmatpush1.xpose.msra.mxu0 0.0
    %9483 = vmatprep.subr.mxu0 0.0
    %9484 = vmatpush1.xpose.msra.mxu0 0.0
    %9485 = vmatprep.subr.mxu0 0.0
    %9486 = vmatpush1.xpose.msra.mxu0 0.0
    %9487 = vmatprep.subr.mxu0 0.0
    %9488 = vmatpush1.xpose.msra.mxu0 0.0
    %9489 = vmatprep.subr.mxu0 0.0
    %9490 = vmatpush1.xpose.msra.mxu0 0.0
    %9491 = vmatprep.subr.mxu0 0.0
    %9492 = vmatpush1.xpose.msra.mxu0 0.0
    %9493 = vmatprep.subr.mxu0 0.0
    %9494 = vmatpush1.xpose.msra.mxu0 0.0
    %9495 = vmatprep.subr.mxu0 0.0
    %9496 = vmatpush1.xpose.msra.mxu0 0.0
    %9497 = vmatprep.subr.mxu0 0.0
    %9498 = vmatpush1.xpose.msra.mxu0 0.0
    %9499 = vmatprep.mubr.f32.mxu0 0.0
    %v9500 = vand.u32 %v9022, 4294901760
    %9501 = vmatmul.mubr.f32.gmra.mrb[0].mxu0 %v9500
    %v9502 = vpop.f32.mrb[0].mxu0
    %v9503 = vadd.f32 %v9408, %v9502
    %v9504 = vpop.f32.mrb[0].mxu0
    %9505 = vdwg.mxu0
    %9506 = vmatprep.subr.mxu0 0.0
    %v9507 = vand.u32 %v9025, 4294901760
    %9508 = vmatpush1.xpose.msra.mxu0 %v9507
    %9509 = vmatprep.subr.mxu0 0.0
    %v9510 = vand.u32 %v9028, 4294901760
    %9511 = vmatpush1.xpose.msra.mxu0 %v9510
    %9512 = vmatprep.subr.mxu0 0.0
    %v9513 = vand.u32 %v9031, 4294901760
    %9514 = vmatpush1.xpose.msra.mxu0 %v9513
    %9515 = vmatprep.subr.mxu0 0.0
    %v9516 = vand.u32 %v9034, 4294901760
    %9517 = vmatpush1.xpose.msra.mxu0 %v9516
    %9518 = vmatprep.subr.mxu0 0.0
    %v9519 = vand.u32 %v9037, 4294901760
    %9520 = vmatpush1.xpose.msra.mxu0 %v9519
    %9521 = vmatprep.subr.mxu0 0.0
    %v9522 = vand.u32 %v9040, 4294901760
    %9523 = vmatpush1.xpose.msra.mxu0 %v9522
    %9524 = vmatprep.subr.mxu0 0.0
    %v9525 = vand.u32 %v9043, 4294901760
    %9526 = vmatpush1.xpose.msra.mxu0 %v9525
    %9527 = vmatprep.subr.mxu0 0.0
    %v9528 = vand.u32 %v9046, 4294901760
    %9529 = vmatpush1.xpose.msra.mxu0 %v9528
    %9530 = vmatprep.subr.mxu0 0.0
    %9531 = vmatpush1.xpose.msra.mxu0 0.0
    %9532 = vmatprep.subr.mxu0 0.0
    %9533 = vmatpush1.xpose.msra.mxu0 0.0
    %9534 = vmatprep.subr.mxu0 0.0
    %9535 = vmatpush1.xpose.msra.mxu0 0.0
    %9536 = vmatprep.subr.mxu0 0.0
    %9537 = vmatpush1.xpose.msra.mxu0 0.0
    %9538 = vmatprep.subr.mxu0 0.0
    %9539 = vmatpush1.xpose.msra.mxu0 0.0
    %9540 = vmatprep.subr.mxu0 0.0
    %9541 = vmatpush1.xpose.msra.mxu0 0.0
    %9542 = vmatprep.subr.mxu0 0.0
    %9543 = vmatpush1.xpose.msra.mxu0 0.0
    %9544 = vmatprep.subr.mxu0 0.0
    %9545 = vmatpush1.xpose.msra.mxu0 0.0
    %9546 = vmatprep.subr.mxu0 0.0
    %9547 = vmatpush1.xpose.msra.mxu0 0.0
    %9548 = vmatprep.subr.mxu0 0.0
    %9549 = vmatpush1.xpose.msra.mxu0 0.0
    %9550 = vmatprep.subr.mxu0 0.0
    %9551 = vmatpush1.xpose.msra.mxu0 0.0
    %9552 = vmatprep.subr.mxu0 0.0
    %9553 = vmatpush1.xpose.msra.mxu0 0.0
    %9554 = vmatprep.subr.mxu0 0.0
    %9555 = vmatpush1.xpose.msra.mxu0 0.0
    %9556 = vmatprep.subr.mxu0 0.0
    %9557 = vmatpush1.xpose.msra.mxu0 0.0
    %9558 = vmatprep.subr.mxu0 0.0
    %9559 = vmatpush1.xpose.msra.mxu0 0.0
    %9560 = vmatprep.subr.mxu0 0.0
    %9561 = vmatpush1.xpose.msra.mxu0 0.0
    %9562 = vmatprep.subr.mxu0 0.0
    %9563 = vmatpush1.xpose.msra.mxu0 0.0
    %9564 = vmatprep.subr.mxu0 0.0
    %9565 = vmatpush1.xpose.msra.mxu0 0.0
    %9566 = vmatprep.subr.mxu0 0.0
    %9567 = vmatpush1.xpose.msra.mxu0 0.0
    %9568 = vmatprep.subr.mxu0 0.0
    %9569 = vmatpush1.xpose.msra.mxu0 0.0
    %9570 = vmatprep.subr.mxu0 0.0
    %9571 = vmatpush1.xpose.msra.mxu0 0.0
    %9572 = vmatprep.subr.mxu0 0.0
    %9573 = vmatpush1.xpose.msra.mxu0 0.0
    %9574 = vmatprep.subr.mxu0 0.0
    %9575 = vmatpush1.xpose.msra.mxu0 0.0
    %9576 = vmatprep.subr.mxu0 0.0
    %9577 = vmatpush1.xpose.msra.mxu0 0.0
    %9578 = vmatprep.mubr.f32.mxu0 0.0
    %v9579 = vand.u32 %v9022, 4294901760
    %9580 = vmatmul.mubr.f32.gmra.mrb[0].mxu0 %v9579
    %v9581 = vpop.f32.mrb[0].mxu0
    %v9582 = vadd.f32 %v9503, %v9581
    %v9583 = vpop.f32.mrb[0].mxu0
    %9584 = vdwg.mxu0
    %v9585 = vmul.f32 %v5634, 0.17677669
    %v9586 = vmul.f32 %v6198, 0.17677669
    %v9587 = vmul.f32 %v6762, 0.17677669
    %v9588 = vmul.f32 %v7326, 0.17677669
    %v9589 = vmul.f32 %v7890, 0.17677669
    %v9590 = vmul.f32 %v8454, 0.17677669
    %v9591 = vmul.f32 %v9018, 0.17677669
    %v9592 = vmul.f32 %v9582, 0.17677669
    %v9601 = vrot.slane %v9586, 7
    %vm9602 = vcmask 1041409
    %v9603 = vsel %vm9602, %v9601, %v9585
    %v9604 = vrot.slane %v9587, 6
    %vm9605 = vcmask 1042434
    %v9606 = vsel %vm9605, %v9604, %v9603
    %v9607 = vrot.slane %v9588, 5
    %vm9608 = vcmask 1043459
    %v9609 = vsel %vm9608, %v9607, %v9606
    %v9610 = vrot.slane %v9589, 4
    %vm9611 = vcmask 1044484
    %v9612 = vsel %vm9611, %v9610, %v9609
    %v9613 = vrot.slane %v9590, 3
    %vm9614 = vcmask 1045509
    %v9615 = vsel %vm9614, %v9613, %v9612
    %v9616 = vrot.slane %v9591, 2
    %vm9617 = vcmask 1046534
    %v9618 = vsel %vm9617, %v9616, %v9615
    %v9619 = vrot.slane %v9592, 1
    %vm9620 = vcmask 1047559
    %v9621 = vsel %vm9620, %v9619, %v9618
    %v9623 = vsel %vm23, %v9621, -inf
    %9624 = vmax.xlane.f32.xlu0 %v9623
    %v9625 = vpop.xlane.xlu0 %9624
    %v9627 = vrot.slane %v9625, 1
    %v9628 = vrot.slane %v9625, 2
    %v9629 = vrot.slane %v9625, 3
    %v9630 = vrot.slane %v9625, 4
    %v9631 = vrot.slane %v9625, 5
    %v9632 = vrot.slane %v9625, 6
    %v9633 = vrot.slane %v9625, 7
    %v9642 = vsub.f32 %v9585, %v9625
    %v9643 = vsub.f32 %v9586, %v9627
    %v9644 = vsub.f32 %v9587, %v9628
    %v9645 = vsub.f32 %v9588, %v9629
    %v9646 = vsub.f32 %v9589, %v9630
    %v9647 = vsub.f32 %v9590, %v9631
    %v9648 = vsub.f32 %v9591, %v9632
    %v9649 = vsub.f32 %v9592, %v9633
    %v9650 = vmul.f32 %v9642, 1.442695
    %v9651 = vpow.pop %v9650
    %v9652 = vmul.f32 %v9643, 1.442695
    %v9653 = vpow.pop %v9652
    %v9654 = vmul.f32 %v9644, 1.442695
    %v9655 = vpow.pop %v9654
    %v9656 = vmul.f32 %v9645, 1.442695
    %v9657 = vpow.pop %v9656
    %v9658 = vmul.f32 %v9646, 1.442695
    %v9659 = vpow.pop %v9658
    %v9660 = vmul.f32 %v9647, 1.442695
    %v9661 = vpow.pop %v9660
    %v9662 = vmul.f32 %v9648, 1.442695
    %v9663 = vpow.pop %v9662
    %v9664 = vmul.f32 %v9649, 1.442695
    %v9665 = vpow.pop %v9664
    %v9674 = vrot.slane %v9653, 7
    %v9675 = vsel %vm9602, %v9674, %v9651
    %v9676 = vrot.slane %v9655, 6
    %v9677 = vsel %vm9605, %v9676, %v9675
    %v9678 = vrot.slane %v9657, 5
    %v9679 = vsel %vm9608, %v9678, %v9677
    %v9680 = vrot.slane %v9659, 4
    %v9681 = vsel %vm9611, %v9680, %v9679
    %v9682 = vrot.slane %v9661, 3
    %v9683 = vsel %vm9614, %v9682, %v9681
    %v9684 = vrot.slane %v9663, 2
    %v9685 = vsel %vm9617, %v9684, %v9683
    %v9686 = vrot.slane %v9665, 1
    %v9687 = vsel %vm9620, %v9686, %v9685
    %v9689 = vsel %vm23, %v9687, 0.0
    %9690 = vadd.xlane.f32.xlu0 %v9689
    %v9691 = vpop.xlane.xlu0 %9690
    %v9693 = vrot.slane %v9691, 1
    %v9694 = vrot.slane %v9691, 2
    %v9695 = vrot.slane %v9691, 3
    %v9696 = vrot.slane %v9691, 4
    %v9697 = vrot.slane %v9691, 5
    %v9698 = vrot.slane %v9691, 6
    %v9699 = vrot.slane %v9691, 7
    %v9708 = vrcp.pop %v9691
    %v9709 = vmul.f32 %v9651, %v9708
    %v9710 = vrcp.pop %v9693
    %v9711 = vmul.f32 %v9653, %v9710
    %v9712 = vrcp.pop %v9694
    %v9713 = vmul.f32 %v9655, %v9712
    %v9714 = vrcp.pop %v9695
    %v9715 = vmul.f32 %v9657, %v9714
    %v9716 = vrcp.pop %v9696
    %v9717 = vmul.f32 %v9659, %v9716
    %v9718 = vrcp.pop %v9697
    %v9719 = vmul.f32 %v9661, %v9718
    %v9720 = vrcp.pop %v9698
    %v9721 = vmul.f32 %v9663, %v9720
    %v9722 = vrcp.pop %v9699
    %v9723 = vmul.f32 %v9665, %v9722
    %v9732 = vrot.slane %v9711, 7
    %v9733 = vsel %vm9602, %v9732, %v9709
    %v9734 = vrot.slane %v9713, 6
    %v9735 = vsel %vm9605, %v9734, %v9733
    %v9736 = vrot.slane %v9715, 5
    %v9737 = vsel %vm9608, %v9736, %v9735
    %v9738 = vrot.slane %v9717, 4
    %v9739 = vsel %vm9611, %v9738, %v9737
    %v9740 = vrot.slane %v9719, 3
    %v9741 = vsel %vm9614, %v9740, %v9739
    %v9742 = vrot.slane %v9721, 2
    %v9743 = vsel %vm9617, %v9742, %v9741
    %v9744 = vrot.slane %v9723, 1
    %v9745 = vsel %vm9620, %v9744, %v9743
    %v9747 = vsel %vm23, %v9745, -inf
    %9748 = vmax.xlane.f32.xlu0 %v9747
    %v9749 = vpop.xlane.xlu0 %9748
    %v9750 = vsel %vm23, %v9745, 0
    %9752 = vmatprep.subr.mxu0 0.0
    %v9753 = vand.u32 %v35, 4294901760
    %9754 = vmatpush1.msra.mxu0 %v9753
    %9755 = vmatprep.subr.mxu0 0.0
    %v9756 = vand.u32 %v36, 4294901760
    %9757 = vmatpush1.msra.mxu0 %v9756
    %9758 = vmatprep.subr.mxu0 0.0
    %v9759 = vand.u32 %v37, 4294901760
    %9760 = vmatpush1.msra.mxu0 %v9759
    %9761 = vmatprep.subr.mxu0 0.0
    %v9762 = vand.u32 %v38, 4294901760
    %9763 = vmatpush1.msra.mxu0 %v9762
    %9764 = vmatprep.subr.mxu0 0.0
    %v9765 = vand.u32 %v39, 4294901760
    %9766 = vmatpush1.msra.mxu0 %v9765
    %9767 = vmatprep.subr.mxu0 0.0
    %v9768 = vand.u32 %v40, 4294901760
    %9769 = vmatpush1.msra.mxu0 %v9768
    %9770 = vmatprep.subr.mxu0 0.0
    %v9771 = vand.u32 %v41, 4294901760
    %9772 = vmatpush1.msra.mxu0 %v9771
    %9773 = vmatprep.subr.mxu0 0.0
    %v9774 = vand.u32 %v42, 4294901760
    %9775 = vmatpush1.msra.mxu0 %v9774
    %9776 = vmatprep.subr.mxu0 0.0
    %9777 = vmatpush1.msra.mxu0 0.0
    %9778 = vmatprep.subr.mxu0 0.0
    %9779 = vmatpush1.msra.mxu0 0.0
    %9780 = vmatprep.subr.mxu0 0.0
    %9781 = vmatpush1.msra.mxu0 0.0
    %9782 = vmatprep.subr.mxu0 0.0
    %9783 = vmatpush1.msra.mxu0 0.0
    %9784 = vmatprep.subr.mxu0 0.0
    %9785 = vmatpush1.msra.mxu0 0.0
    %9786 = vmatprep.subr.mxu0 0.0
    %9787 = vmatpush1.msra.mxu0 0.0
    %9788 = vmatprep.subr.mxu0 0.0
    %9789 = vmatpush1.msra.mxu0 0.0
    %9790 = vmatprep.subr.mxu0 0.0
    %9791 = vmatpush1.msra.mxu0 0.0
    %9792 = vmatprep.subr.mxu0 0.0
    %9793 = vmatpush1.msra.mxu0 0.0
    %9794 = vmatprep.subr.mxu0 0.0
    %9795 = vmatpush1.msra.mxu0 0.0
    %9796 = vmatprep.subr.mxu0 0.0
    %9797 = vmatpush1.msra.mxu0 0.0
    %9798 = vmatprep.subr.mxu0 0.0
    %9799 = vmatpush1.msra.mxu0 0.0
    %9800 = vmatprep.subr.mxu0 0.0
    %9801 = vmatpush1.msra.mxu0 0.0
    %9802 = vmatprep.subr.mxu0 0.0
    %9803 = vmatpush1.msra.mxu0 0.0
    %9804 = vmatprep.subr.mxu0 0.0
    %9805 = vmatpush1.msra.mxu0 0.0
    %9806 = vmatprep.subr.mxu0 0.0
    %9807 = vmatpush1.msra.mxu0 0.0
    %9808 = vmatprep.subr.mxu0 0.0
    %9809 = vmatpush1.msra.mxu0 0.0
    %9810 = vmatprep.subr.mxu0 0.0
    %9811 = vmatpush1.msra.mxu0 0.0
    %9812 = vmatprep.subr.mxu0 0.0
    %9813 = vmatpush1.msra.mxu0 0.0
    %9814 = vmatprep.subr.mxu0 0.0
    %9815 = vmatpush1.msra.mxu0 0.0
    %9816 = vmatprep.subr.mxu0 0.0
    %9817 = vmatpush1.msra.mxu0 0.0
    %9818 = vmatprep.subr.mxu0 0.0
    %9819 = vmatpush1.msra.mxu0 0.0
    %9820 = vmatprep.subr.mxu0 0.0
    %9821 = vmatpush1.msra.mxu0 0.0
    %9822 = vmatprep.subr.mxu0 0.0
    %9823 = vmatpush1.msra.mxu0 0.0
    %9824 = vmatprep.mubr.f32.mxu0 0.0
    %v9825 = vand.u32 %v9750, 4294901760
    %v9826 = vsub.f32 %v9750, %v9825
    %v9827 = vand.u32 %v9826, 4294901760
    %v9828 = vsub.f32 %v9826, %v9827
    %v9829 = vand.u32 %v9828, 4294901760
    %9830 = vmatmul.mubr.f32.gmra.mrb[0].mxu0 %v9829
    %v9831 = vpop.f32.mrb[0].mxu0
    %v9832 = vadd.f32 0.0, %v9831
    %v9833 = vpop.f32.mrb[0].mxu0
    %9834 = vdwg.mxu0
    %9835 = vmatprep.subr.mxu0 0.0
    %v9836 = vand.u32 %v35, 4294901760
    %v9837 = vsub.f32 %v35, %v9836
    %v9838 = vand.u32 %v9837, 4294901760
    %v9839 = vsub.f32 %v9837, %v9838
    %v9840 = vand.u32 %v9839, 4294901760
    %9841 = vmatpush1.msra.mxu0 %v9840
    %9842 = vmatprep.subr.mxu0 0.0
    %v9843 = vand.u32 %v36, 4294901760
    %v9844 = vsub.f32 %v36, %v9843
    %v9845 = vand.u32 %v9844, 4294901760
    %v9846 = vsub.f32 %v9844, %v9845
    %v9847 = vand.u32 %v9846, 4294901760
    %9848 = vmatpush1.msra.mxu0 %v9847
    %9849 = vmatprep.subr.mxu0 0.0
    %v9850 = vand.u32 %v37, 4294901760
    %v9851 = vsub.f32 %v37, %v9850
    %v9852 = vand.u32 %v9851, 4294901760
    %v9853 = vsub.f32 %v9851, %v9852
    %v9854 = vand.u32 %v9853, 4294901760
    %9855 = vmatpush1.msra.mxu0 %v9854
    %9856 = vmatprep.subr.mxu0 0.0
    %v9857 = vand.u32 %v38, 4294901760
    %v9858 = vsub.f32 %v38, %v9857
    %v9859 = vand.u32 %v9858, 4294901760
    %v9860 = vsub.f32 %v9858, %v9859
    %v9861 = vand.u32 %v9860, 4294901760
    %9862 = vmatpush1.msra.mxu0 %v9861
    %9863 = vmatprep.subr.mxu0 0.0
    %v9864 = vand.u32 %v39, 4294901760
    %v9865 = vsub.f32 %v39, %v9864
    %v9866 = vand.u32 %v9865, 4294901760
    %v9867 = vsub.f32 %v9865, %v9866
    %v9868 = vand.u32 %v9867, 4294901760
    %9869 = vmatpush1.msra.mxu0 %v9868
    %9870 = vmatprep.subr.mxu0 0.0
    %v9871 = vand.u32 %v40, 4294901760
    %v9872 = vsub.f32 %v40, %v9871
    %v9873 = vand.u32 %v9872, 4294901760
    %v9874 = vsub.f32 %v9872, %v9873
    %v9875 = vand.u32 %v9874, 4294901760
    %9876 = vmatpush1.msra.mxu0 %v9875
    %9877 = vmatprep.subr.mxu0 0.0
    %v9878 = vand.u32 %v41, 4294901760
    %v9879 = vsub.f32 %v41, %v9878
    %v9880 = vand.u32 %v9879, 4294901760
    %v9881 = vsub.f32 %v9879, %v9880
    %v9882 = vand.u32 %v9881, 4294901760
    %9883 = vmatpush1.msra.mxu0 %v9882
    %9884 = vmatprep.subr.mxu0 0.0
    %v9885 = vand.u32 %v42, 4294901760
    %v9886 = vsub.f32 %v42, %v9885
    %v9887 = vand.u32 %v9886, 4294901760
    %v9888 = vsub.f32 %v9886, %v9887
    %v9889 = vand.u32 %v9888, 4294901760
    %9890 = vmatpush1.msra.mxu0 %v9889
    %9891 = vmatprep.subr.mxu0 0.0
    %9892 = vmatpush1.msra.mxu0 0.0
    %9893 = vmatprep.subr.mxu0 0.0
    %9894 = vmatpush1.msra.mxu0 0.0
    %9895 = vmatprep.subr.mxu0 0.0
    %9896 = vmatpush1.msra.mxu0 0.0
    %9897 = vmatprep.subr.mxu0 0.0
    %9898 = vmatpush1.msra.mxu0 0.0
    %9899 = vmatprep.subr.mxu0 0.0
    %9900 = vmatpush1.msra.mxu0 0.0
    %9901 = vmatprep.subr.mxu0 0.0
    %9902 = vmatpush1.msra.mxu0 0.0
    %9903 = vmatprep.subr.mxu0 0.0
    %9904 = vmatpush1.msra.mxu0 0.0
    %9905 = vmatprep.subr.mxu0 0.0
    %9906 = vmatpush1.msra.mxu0 0.0
    %9907 = vmatprep.subr.mxu0 0.0
    %9908 = vmatpush1.msra.mxu0 0.0
    %9909 = vmatprep.subr.mxu0 0.0
    %9910 = vmatpush1.msra.mxu0 0.0
    %9911 = vmatprep.subr.mxu0 0.0
    %9912 = vmatpush1.msra.mxu0 0.0
    %9913 = vmatprep.subr.mxu0 0.0
    %9914 = vmatpush1.msra.mxu0 0.0
    %9915 = vmatprep.subr.mxu0 0.0
    %9916 = vmatpush1.msra.mxu0 0.0
    %9917 = vmatprep.subr.mxu0 0.0
    %9918 = vmatpush1.msra.mxu0 0.0
    %9919 = vmatprep.subr.mxu0 0.0
    %9920 = vmatpush1.msra.mxu0 0.0
    %9921 = vmatprep.subr.mxu0 0.0
    %9922 = vmatpush1.msra.mxu0 0.0
    %9923 = vmatprep.subr.mxu0 0.0
    %9924 = vmatpush1.msra.mxu0 0.0
    %9925 = vmatprep.subr.mxu0 0.0
    %9926 = vmatpush1.msra.mxu0 0.0
    %9927 = vmatprep.subr.mxu0 0.0
    %9928 = vmatpush1.msra.mxu0 0.0
    %9929 = vmatprep.subr.mxu0 0.0
    %9930 = vmatpush1.msra.mxu0 0.0
    %9931 = vmatprep.subr.mxu0 0.0
    %9932 = vmatpush1.msra.mxu0 0.0
    %9933 = vmatprep.subr.mxu0 0.0
    %9934 = vmatpush1.msra.mxu0 0.0
    %9935 = vmatprep.subr.mxu0 0.0
    %9936 = vmatpush1.msra.mxu0 0.0
    %9937 = vmatprep.subr.mxu0 0.0
    %9938 = vmatpush1.msra.mxu0 0.0
    %9939 = vmatprep.mubr.f32.mxu0 0.0
    %v9940 = vand.u32 %v9750, 4294901760
    %9941 = vmatmul.mubr.f32.gmra.mrb[0].mxu0 %v9940
    %v9942 = vpop.f32.mrb[0].mxu0
    %v9943 = vadd.f32 %v9832, %v9942
    %v9944 = vpop.f32.mrb[0].mxu0
    %9945 = vdwg.mxu0
    %9946 = vmatprep.subr.mxu0 0.0
    %v9947 = vand.u32 %v35, 4294901760
    %v9948 = vsub.f32 %v35, %v9947
    %9949 = vmatpush1.msra.mxu0 %v9948
    %9950 = vmatprep.subr.mxu0 0.0
    %v9951 = vand.u32 %v36, 4294901760
    %v9952 = vsub.f32 %v36, %v9951
    %9953 = vmatpush1.msra.mxu0 %v9952
    %9954 = vmatprep.subr.mxu0 0.0
    %v9955 = vand.u32 %v37, 4294901760
    %v9956 = vsub.f32 %v37, %v9955
    %9957 = vmatpush1.msra.mxu0 %v9956
    %9958 = vmatprep.subr.mxu0 0.0
    %v9959 = vand.u32 %v38, 4294901760
    %v9960 = vsub.f32 %v38, %v9959
    %9961 = vmatpush1.msra.mxu0 %v9960
    %9962 = vmatprep.subr.mxu0 0.0
    %v9963 = vand.u32 %v39, 4294901760
    %v9964 = vsub.f32 %v39, %v9963
    %9965 = vmatpush1.msra.mxu0 %v9964
    %9966 = vmatprep.subr.mxu0 0.0
    %v9967 = vand.u32 %v40, 4294901760
    %v9968 = vsub.f32 %v40, %v9967
    %9969 = vmatpush1.msra.mxu0 %v9968
    %9970 = vmatprep.subr.mxu0 0.0
    %v9971 = vand.u32 %v41, 4294901760
    %v9972 = vsub.f32 %v41, %v9971
    %9973 = vmatpush1.msra.mxu0 %v9972
    %9974 = vmatprep.subr.mxu0 0.0
    %v9975 = vand.u32 %v42, 4294901760
    %v9976 = vsub.f32 %v42, %v9975
    %9977 = vmatpush1.msra.mxu0 %v9976
    %9978 = vmatprep.subr.mxu0 0.0
    %9979 = vmatpush1.msra.mxu0 0.0
    %9980 = vmatprep.subr.mxu0 0.0
    %9981 = vmatpush1.msra.mxu0 0.0
    %9982 = vmatprep.subr.mxu0 0.0
    %9983 = vmatpush1.msra.mxu0 0.0
    %9984 = vmatprep.subr.mxu0 0.0
    %9985 = vmatpush1.msra.mxu0 0.0
    %9986 = vmatprep.subr.mxu0 0.0
    %9987 = vmatpush1.msra.mxu0 0.0
    %9988 = vmatprep.subr.mxu0 0.0
    %9989 = vmatpush1.msra.mxu0 0.0
    %9990 = vmatprep.subr.mxu0 0.0
    %9991 = vmatpush1.msra.mxu0 0.0
    %9992 = vmatprep.subr.mxu0 0.0
    %9993 = vmatpush1.msra.mxu0 0.0
    %9994 = vmatprep.subr.mxu0 0.0
    %9995 = vmatpush1.msra.mxu0 0.0
    %9996 = vmatprep.subr.mxu0 0.0
    %9997 = vmatpush1.msra.mxu0 0.0
    %9998 = vmatprep.subr.mxu0 0.0
    %9999 = vmatpush1.msra.mxu0 0.0
    %10000 = vmatprep.subr.mxu0 0.0
    %10001 = vmatpush1.msra.mxu0 0.0
    %10002 = vmatprep.subr.mxu0 0.0
    %10003 = vmatpush1.msra.mxu0 0.0
    %10004 = vmatprep.subr.mxu0 0.0
    %10005 = vmatpush1.msra.mxu0 0.0
    %10006 = vmatprep.subr.mxu0 0.0
    %10007 = vmatpush1.msra.mxu0 0.0
    %10008 = vmatprep.subr.mxu0 0.0
    %10009 = vmatpush1.msra.mxu0 0.0
    %10010 = vmatprep.subr.mxu0 0.0
    %10011 = vmatpush1.msra.mxu0 0.0
    %10012 = vmatprep.subr.mxu0 0.0
    %10013 = vmatpush1.msra.mxu0 0.0
    %10014 = vmatprep.subr.mxu0 0.0
    %10015 = vmatpush1.msra.mxu0 0.0
    %10016 = vmatprep.subr.mxu0 0.0
    %10017 = vmatpush1.msra.mxu0 0.0
    %10018 = vmatprep.subr.mxu0 0.0
    %10019 = vmatpush1.msra.mxu0 0.0
    %10020 = vmatprep.subr.mxu0 0.0
    %10021 = vmatpush1.msra.mxu0 0.0
    %10022 = vmatprep.subr.mxu0 0.0
    %10023 = vmatpush1.msra.mxu0 0.0
    %10024 = vmatprep.subr.mxu0 0.0
    %10025 = vmatpush1.msra.mxu0 0.0
    %10026 = vmatprep.mubr.f32.mxu0 0.0
    %v10027 = vand.u32 %v9750, 4294901760
    %v10028 = vsub.f32 %v9750, %v10027
    %10029 = vmatmul.mubr.f32.gmra.mrb[0].mxu0 %v10028
    %v10030 = vpop.f32.mrb[0].mxu0
    %v10031 = vadd.f32 %v9943, %v10030
    %v10032 = vpop.f32.mrb[0].mxu0
    %10033 = vdwg.mxu0
    %10034 = vmatprep.subr.mxu0 0.0
    %v10035 = vand.u32 %v35, 4294901760
    %10036 = vmatpush1.msra.mxu0 %v10035
    %10037 = vmatprep.subr.mxu0 0.0
    %v10038 = vand.u32 %v36, 4294901760
    %10039 = vmatpush1.msra.mxu0 %v10038
    %10040 = vmatprep.subr.mxu0 0.0
    %v10041 = vand.u32 %v37, 4294901760
    %10042 = vmatpush1.msra.mxu0 %v10041
    %10043 = vmatprep.subr.mxu0 0.0
    %v10044 = vand.u32 %v38, 4294901760
    %10045 = vmatpush1.msra.mxu0 %v10044
    %10046 = vmatprep.subr.mxu0 0.0
    %v10047 = vand.u32 %v39, 4294901760
    %10048 = vmatpush1.msra.mxu0 %v10047
    %10049 = vmatprep.subr.mxu0 0.0
    %v10050 = vand.u32 %v40, 4294901760
    %10051 = vmatpush1.msra.mxu0 %v10050
    %10052 = vmatprep.subr.mxu0 0.0
    %v10053 = vand.u32 %v41, 4294901760
    %10054 = vmatpush1.msra.mxu0 %v10053
    %10055 = vmatprep.subr.mxu0 0.0
    %v10056 = vand.u32 %v42, 4294901760
    %10057 = vmatpush1.msra.mxu0 %v10056
    %10058 = vmatprep.subr.mxu0 0.0
    %10059 = vmatpush1.msra.mxu0 0.0
    %10060 = vmatprep.subr.mxu0 0.0
    %10061 = vmatpush1.msra.mxu0 0.0
    %10062 = vmatprep.subr.mxu0 0.0
    %10063 = vmatpush1.msra.mxu0 0.0
    %10064 = vmatprep.subr.mxu0 0.0
    %10065 = vmatpush1.msra.mxu0 0.0
    %10066 = vmatprep.subr.mxu0 0.0
    %10067 = vmatpush1.msra.mxu0 0.0
    %10068 = vmatprep.subr.mxu0 0.0
    %10069 = vmatpush1.msra.mxu0 0.0
    %10070 = vmatprep.subr.mxu0 0.0
    %10071 = vmatpush1.msra.mxu0 0.0
    %10072 = vmatprep.subr.mxu0 0.0
    %10073 = vmatpush1.msra.mxu0 0.0
    %10074 = vmatprep.subr.mxu0 0.0
    %10075 = vmatpush1.msra.mxu0 0.0
    %10076 = vmatprep.subr.mxu0 0.0
    %10077 = vmatpush1.msra.mxu0 0.0
    %10078 = vmatprep.subr.mxu0 0.0
    %10079 = vmatpush1.msra.mxu0 0.0
    %10080 = vmatprep.subr.mxu0 0.0
    %10081 = vmatpush1.msra.mxu0 0.0
    %10082 = vmatprep.subr.mxu0 0.0
    %10083 = vmatpush1.msra.mxu0 0.0
    %10084 = vmatprep.subr.mxu0 0.0
    %10085 = vmatpush1.msra.mxu0 0.0
    %10086 = vmatprep.subr.mxu0 0.0
    %10087 = vmatpush1.msra.mxu0 0.0
    %10088 = vmatprep.subr.mxu0 0.0
    %10089 = vmatpush1.msra.mxu0 0.0
    %10090 = vmatprep.subr.mxu0 0.0
    %10091 = vmatpush1.msra.mxu0 0.0
    %10092 = vmatprep.subr.mxu0 0.0
    %10093 = vmatpush1.msra.mxu0 0.0
    %10094 = vmatprep.subr.mxu0 0.0
    %10095 = vmatpush1.msra.mxu0 0.0
    %10096 = vmatprep.subr.mxu0 0.0
    %10097 = vmatpush1.msra.mxu0 0.0
    %10098 = vmatprep.subr.mxu0 0.0
    %10099 = vmatpush1.msra.mxu0 0.0
    %10100 = vmatprep.subr.mxu0 0.0
    %10101 = vmatpush1.msra.mxu0 0.0
    %10102 = vmatprep.subr.mxu0 0.0
    %10103 = vmatpush1.msra.mxu0 0.0
    %10104 = vmatprep.subr.mxu0 0.0
    %10105 = vmatpush1.msra.mxu0 0.0
    %10106 = vmatprep.mubr.f32.mxu0 0.0
    %v10107 = vand.u32 %v9750, 4294901760
    %v10108 = vsub.f32 %v9750, %v10107
    %v10109 = vand.u32 %v10108, 4294901760
    %10110 = vmatmul.mubr.f32.gmra.mrb[0].mxu0 %v10109
    %v10111 = vpop.f32.mrb[0].mxu0
    %v10112 = vadd.f32 %v10031, %v10111
    %v10113 = vpop.f32.mrb[0].mxu0
    %10114 = vdwg.mxu0
    %10115 = vmatprep.subr.mxu0 0.0
    %v10116 = vand.u32 %v35, 4294901760
    %v10117 = vsub.f32 %v35, %v10116
    %v10118 = vand.u32 %v10117, 4294901760
    %10119 = vmatpush1.msra.mxu0 %v10118
    %10120 = vmatprep.subr.mxu0 0.0
    %v10121 = vand.u32 %v36, 4294901760
    %v10122 = vsub.f32 %v36, %v10121
    %v10123 = vand.u32 %v10122, 4294901760
    %10124 = vmatpush1.msra.mxu0 %v10123
    %10125 = vmatprep.subr.mxu0 0.0
    %v10126 = vand.u32 %v37, 4294901760
    %v10127 = vsub.f32 %v37, %v10126
    %v10128 = vand.u32 %v10127, 4294901760
    %10129 = vmatpush1.msra.mxu0 %v10128
    %10130 = vmatprep.subr.mxu0 0.0
    %v10131 = vand.u32 %v38, 4294901760
    %v10132 = vsub.f32 %v38, %v10131
    %v10133 = vand.u32 %v10132, 4294901760
    %10134 = vmatpush1.msra.mxu0 %v10133
    %10135 = vmatprep.subr.mxu0 0.0
    %v10136 = vand.u32 %v39, 4294901760
    %v10137 = vsub.f32 %v39, %v10136
    %v10138 = vand.u32 %v10137, 4294901760
    %10139 = vmatpush1.msra.mxu0 %v10138
    %10140 = vmatprep.subr.mxu0 0.0
    %v10141 = vand.u32 %v40, 4294901760
    %v10142 = vsub.f32 %v40, %v10141
    %v10143 = vand.u32 %v10142, 4294901760
    %10144 = vmatpush1.msra.mxu0 %v10143
    %10145 = vmatprep.subr.mxu0 0.0
    %v10146 = vand.u32 %v41, 4294901760
    %v10147 = vsub.f32 %v41, %v10146
    %v10148 = vand.u32 %v10147, 4294901760
    %10149 = vmatpush1.msra.mxu0 %v10148
    %10150 = vmatprep.subr.mxu0 0.0
    %v10151 = vand.u32 %v42, 4294901760
    %v10152 = vsub.f32 %v42, %v10151
    %v10153 = vand.u32 %v10152, 4294901760
    %10154 = vmatpush1.msra.mxu0 %v10153
    %10155 = vmatprep.subr.mxu0 0.0
    %10156 = vmatpush1.msra.mxu0 0.0
    %10157 = vmatprep.subr.mxu0 0.0
    %10158 = vmatpush1.msra.mxu0 0.0
    %10159 = vmatprep.subr.mxu0 0.0
    %10160 = vmatpush1.msra.mxu0 0.0
    %10161 = vmatprep.subr.mxu0 0.0
    %10162 = vmatpush1.msra.mxu0 0.0
    %10163 = vmatprep.subr.mxu0 0.0
    %10164 = vmatpush1.msra.mxu0 0.0
    %10165 = vmatprep.subr.mxu0 0.0
    %10166 = vmatpush1.msra.mxu0 0.0
    %10167 = vmatprep.subr.mxu0 0.0
    %10168 = vmatpush1.msra.mxu0 0.0
    %10169 = vmatprep.subr.mxu0 0.0
    %10170 = vmatpush1.msra.mxu0 0.0
    %10171 = vmatprep.subr.mxu0 0.0
    %10172 = vmatpush1.msra.mxu0 0.0
    %10173 = vmatprep.subr.mxu0 0.0
    %10174 = vmatpush1.msra.mxu0 0.0
    %10175 = vmatprep.subr.mxu0 0.0
    %10176 = vmatpush1.msra.mxu0 0.0
    %10177 = vmatprep.subr.mxu0 0.0
    %10178 = vmatpush1.msra.mxu0 0.0
    %10179 = vmatprep.subr.mxu0 0.0
    %10180 = vmatpush1.msra.mxu0 0.0
    %10181 = vmatprep.subr.mxu0 0.0
    %10182 = vmatpush1.msra.mxu0 0.0
    %10183 = vmatprep.subr.mxu0 0.0
    %10184 = vmatpush1.msra.mxu0 0.0
    %10185 = vmatprep.subr.mxu0 0.0
    %10186 = vmatpush1.msra.mxu0 0.0
    %10187 = vmatprep.subr.mxu0 0.0
    %10188 = vmatpush1.msra.mxu0 0.0
    %10189 = vmatprep.subr.mxu0 0.0
    %10190 = vmatpush1.msra.mxu0 0.0
    %10191 = vmatprep.subr.mxu0 0.0
    %10192 = vmatpush1.msra.mxu0 0.0
    %10193 = vmatprep.subr.mxu0 0.0
    %10194 = vmatpush1.msra.mxu0 0.0
    %10195 = vmatprep.subr.mxu0 0.0
    %10196 = vmatpush1.msra.mxu0 0.0
    %10197 = vmatprep.subr.mxu0 0.0
    %10198 = vmatpush1.msra.mxu0 0.0
    %10199 = vmatprep.subr.mxu0 0.0
    %10200 = vmatpush1.msra.mxu0 0.0
    %10201 = vmatprep.subr.mxu0 0.0
    %10202 = vmatpush1.msra.mxu0 0.0
    %10203 = vmatprep.mubr.f32.mxu0 0.0
    %v10204 = vand.u32 %v9750, 4294901760
    %10205 = vmatmul.mubr.f32.gmra.mrb[0].mxu0 %v10204
    %v10206 = vpop.f32.mrb[0].mxu0
    %v10207 = vadd.f32 %v10112, %v10206
    %v10208 = vpop.f32.mrb[0].mxu0
    %10209 = vdwg.mxu0
    %10210 = vmatprep.subr.mxu0 0.0
    %v10211 = vand.u32 %v35, 4294901760
    %10212 = vmatpush1.msra.mxu0 %v10211
    %10213 = vmatprep.subr.mxu0 0.0
    %v10214 = vand.u32 %v36, 4294901760
    %10215 = vmatpush1.msra.mxu0 %v10214
    %10216 = vmatprep.subr.mxu0 0.0
    %v10217 = vand.u32 %v37, 4294901760
    %10218 = vmatpush1.msra.mxu0 %v10217
    %10219 = vmatprep.subr.mxu0 0.0
    %v10220 = vand.u32 %v38, 4294901760
    %10221 = vmatpush1.msra.mxu0 %v10220
    %10222 = vmatprep.subr.mxu0 0.0
    %v10223 = vand.u32 %v39, 4294901760
    %10224 = vmatpush1.msra.mxu0 %v10223
    %10225 = vmatprep.subr.mxu0 0.0
    %v10226 = vand.u32 %v40, 4294901760
    %10227 = vmatpush1.msra.mxu0 %v10226
    %10228 = vmatprep.subr.mxu0 0.0
    %v10229 = vand.u32 %v41, 4294901760
    %10230 = vmatpush1.msra.mxu0 %v10229
    %10231 = vmatprep.subr.mxu0 0.0
    %v10232 = vand.u32 %v42, 4294901760
    %10233 = vmatpush1.msra.mxu0 %v10232
    %10234 = vmatprep.subr.mxu0 0.0
    %10235 = vmatpush1.msra.mxu0 0.0
    %10236 = vmatprep.subr.mxu0 0.0
    %10237 = vmatpush1.msra.mxu0 0.0
    %10238 = vmatprep.subr.mxu0 0.0
    %10239 = vmatpush1.msra.mxu0 0.0
    %10240 = vmatprep.subr.mxu0 0.0
    %10241 = vmatpush1.msra.mxu0 0.0
    %10242 = vmatprep.subr.mxu0 0.0
    %10243 = vmatpush1.msra.mxu0 0.0
    %10244 = vmatprep.subr.mxu0 0.0
    %10245 = vmatpush1.msra.mxu0 0.0
    %10246 = vmatprep.subr.mxu0 0.0
    %10247 = vmatpush1.msra.mxu0 0.0
    %10248 = vmatprep.subr.mxu0 0.0
    %10249 = vmatpush1.msra.mxu0 0.0
    %10250 = vmatprep.subr.mxu0 0.0
    %10251 = vmatpush1.msra.mxu0 0.0
    %10252 = vmatprep.subr.mxu0 0.0
    %10253 = vmatpush1.msra.mxu0 0.0
    %10254 = vmatprep.subr.mxu0 0.0
    %10255 = vmatpush1.msra.mxu0 0.0
    %10256 = vmatprep.subr.mxu0 0.0
    %10257 = vmatpush1.msra.mxu0 0.0
    %10258 = vmatprep.subr.mxu0 0.0
    %10259 = vmatpush1.msra.mxu0 0.0
    %10260 = vmatprep.subr.mxu0 0.0
    %10261 = vmatpush1.msra.mxu0 0.0
    %10262 = vmatprep.subr.mxu0 0.0
    %10263 = vmatpush1.msra.mxu0 0.0
    %10264 = vmatprep.subr.mxu0 0.0
    %10265 = vmatpush1.msra.mxu0 0.0
    %10266 = vmatprep.subr.mxu0 0.0
    %10267 = vmatpush1.msra.mxu0 0.0
    %10268 = vmatprep.subr.mxu0 0.0
    %10269 = vmatpush1.msra.mxu0 0.0
    %10270 = vmatprep.subr.mxu0 0.0
    %10271 = vmatpush1.msra.mxu0 0.0
    %10272 = vmatprep.subr.mxu0 0.0
    %10273 = vmatpush1.msra.mxu0 0.0
    %10274 = vmatprep.subr.mxu0 0.0
    %10275 = vmatpush1.msra.mxu0 0.0
    %10276 = vmatprep.subr.mxu0 0.0
    %10277 = vmatpush1.msra.mxu0 0.0
    %10278 = vmatprep.subr.mxu0 0.0
    %10279 = vmatpush1.msra.mxu0 0.0
    %10280 = vmatprep.subr.mxu0 0.0
    %10281 = vmatpush1.msra.mxu0 0.0
    %10282 = vmatprep.mubr.f32.mxu0 0.0
    %v10283 = vand.u32 %v9750, 4294901760
    %10284 = vmatmul.mubr.f32.gmra.mrb[0].mxu0 %v10283
    %v10285 = vpop.f32.mrb[0].mxu0
    %v10286 = vadd.f32 %v10207, %v10285
    %v10287 = vpop.f32.mrb[0].mxu0
    %10288 = vdwg.mxu0
    %v10289 = vld [vmem:[%s4] sm:$0xff]
    %v10290 = vmul.f32 %v580, 16.0
    %v10291 = vadd.f32 %v10289, %v10290
    %vm10292 = vcmask 15360
    %10293 = vst.msk [vmem:[#allocation2] sm:$0xff] %vm10292, %v10291
    %v10294 = vmul.f32 %v10286, 16.0
    %10296 = vrot.lane.b32.xlu0 %v10294, 2
    %v10297 = vpop.permute.xlu0 %10296
    %v10299 = vadd.f32 %v10289, %v10297
    %vm10300 = vcmask 31760
    %10301 = vst.msk [vmem:[#allocation2] sm:$0xff] %vm10300, %v10299
    %v10302 = vmul.f32 %v10289, %v9749
    %vm10303 = vcmask 39968
    %10304 = vst.msk [vmem:[#allocation2] sm:$0xff] %vm10303, %v10302
    %vm10305 = vcmask 64552
    %10306 = vst.msk [vmem:[#allocation2] sm:$0xff] %vm10305, 0.0
    // Predicated region
    $region22: #{tpu_custom_call.1} parent=1 // pred_check
      _
    $region23: #{tpu_custom_call.1} parent=1 // pred_check_branch
      %10308 = sbr.rel (0) target = $region25
    $region24: #{tpu_custom_call.1} parent=1 // pred_region
      %s10310 = ssub.s32 128, 128
      %10311 = vsyncadd [#allocation3], %s10310
      %s10313 = sshll.u32 [#allocation2], 4
      %s10314 = int_to_ptr.vmem [resolvable:$true] %s10313
      %10316 = dma.vmem_to_hbm [thread:$0]  %s10314, 128, %s5, [#allocation3]
    $region25: #{tpu_custom_call.1} parent=1 // pred_fallthru
      _
    // Predicated region
    $region26: #{tpu_custom_call.1} parent=1 // pred_check
      _
    $region27: #{tpu_custom_call.1} parent=1 // pred_check_branch
      %10318 = sbr.rel (0) target = $region29
    $region28: #{tpu_custom_call.1} parent=1 // pred_region
      %10319 = dma.done [#allocation3], 128
    $region29: #{tpu_custom_call.1} parent=1 // pred_fallthru
      _
    %10320 = vsyncpa [#allocation3], 1

</llo_original>
